<compile_context>
chip_gen: v7x
topology: tpu7x:2x2x1
jax: 0.10.0
libtpu: 0.0.40
codegen_flags: <defaults>
</compile_context>

<pallas_src>
from functools import partial

import jax
import jax.numpy as jnp
from jax import lax
from jax.experimental import pallas as pl
from jax.experimental.pallas import tpu as pltpu

BN_EPS = 1e-5


# ----------------------------------------------------------------------------
# Pallas kernel: fused DownLayerResidual forward for one (batch, Wo-block).
# ----------------------------------------------------------------------------
def _down_layer_kernel(xp_ref, xs_ref, wbp_ref, w1_ref, t1_ref, w2_ref, t2_ref,
                       o_ref, y1pad_ref, *, pack1, pack2):
    Do, Ho, WOB, Cout_p = o_ref.shape
    Cmid_p = y1pad_ref.shape[-1]
    Cin = xp_ref.shape[-1]
    M = Do * Ho * WOB
    f32 = jnp.float32

    # ---- resid conv1: 4x4x1 stride-2 conv.  BN1 scale folded into w1; conv
    # bias + BN1 shift in t1.  bf16 operands, f32 accumulation.
    K1 = xs_ref.shape[-1]
    if pack1:
        # wrapper pre-packed all 16 (kd,kh) taps into the lane/K dim -> one dot.
        lhs1 = xs_ref[...].reshape(M, K1)
        acc1 = jnp.dot(lhs1, w1_ref[...], preferred_element_type=f32)
    else:
        # fallback for large Cin: stride-2 parities in lanes, 4 (a,b) taps.
        acc1 = jnp.zeros((M, Cmid_p), f32)
        for a in range(2):
            for b in range(2):
                lhs = xs_ref[a:a + Do, b:b + Ho, :, :].reshape(M, K1)
                acc1 = acc1 + jnp.dot(lhs, w1_ref[a, b],
                                      preferred_element_type=f32)
    y1 = jnp.maximum(acc1 + t1_ref[...], 0.0)                    # f32

    # ---- zero only the halo slabs (rows 0/Do+1, cols 0/Ho+1), once per batch
    # element.  The interior is fully rewritten every step; gating on the first
    # Wo-block keeps this megacore-safe when the batch axis is core-sharded.
    @pl.when(pl.program_id(1) == 0)
    def _():
        zdt = y1pad_ref.dtype
        y1pad_ref[0:1, :, :, :] = jnp.zeros((1, Ho + 2, WOB, Cmid_p), zdt)
        y1pad_ref[Do + 1:Do + 2, :, :, :] = jnp.zeros((1, Ho + 2, WOB, Cmid_p), zdt)
        y1pad_ref[1:Do + 1, 0:1, :, :] = jnp.zeros((Do, 1, WOB, Cmid_p), zdt)
        y1pad_ref[1:Do + 1, Ho + 1:Ho + 2, :, :] = jnp.zeros((Do, 1, WOB, Cmid_p), zdt)

    # stage y1 (bf16) with a zero halo for the 3x3 conv.
    y1pad_ref[1:Do + 1, 1:Ho + 1, :, :] = (
        y1.reshape(Do, Ho, WOB, Cmid_p).astype(y1pad_ref.dtype))

    # ---- bypass: 1x1x1 conv on the pre-pooled operand (pool done in wrapper);
    # seeds the conv2 accumulator together with the folded BN2 shift.
    acc2 = jnp.dot(xp_ref[...].reshape(M, Cin), wbp_ref[...],
                   preferred_element_type=f32) + t2_ref[...]

    # ---- resid conv2: 3x3x1 stride-1 conv.
    if pack2:
        # im2col in-kernel: 9 aligned 128-lane slabs concatenated into K -> 1 dot.
        taps = [y1pad_ref[kd:kd + Do, kh:kh + Ho, :, :]
                for kd in range(3) for kh in range(3)]
        lhs2 = jnp.concatenate(taps, axis=-1).reshape(M, 9 * Cmid_p)
        acc2 = acc2 + jnp.dot(lhs2, w2_ref[...], preferred_element_type=f32)
    else:
        for kd in range(3):
            for kh in range(3):
                tap = y1pad_ref[kd:kd + Do, kh:kh + Ho, :, :].reshape(M, Cmid_p)
                acc2 = acc2 + jnp.dot(tap, w2_ref[kd, kh],
                                      preferred_element_type=f32)

    # ---- residual add already accumulated; final ReLU, lane-dense bf16 store.
    o_ref[...] = jnp.maximum(acc2, 0.0).reshape(Do, Ho, WOB, Cout_p).astype(o_ref.dtype)


# ----------------------------------------------------------------------------
# Glue: TemporalShift, spectral norm, parameter setup (plain JAX)
# ----------------------------------------------------------------------------
def _tsm_channel_shifts(C, nth_channel, n_shifts):
    """Per-channel W-shift implied by the (assumed) TemporalShift module."""
    fold = max(C // nth_channel, 1)
    shifts = [0] * C
    for i in range(n_shifts):
        s = i + 1
        c_fwd = 2 * i * fold
        c_bwd = (2 * i + 1) * fold
        if c_fwd + fold <= C:
            for c in range(c_fwd, c_fwd + fold):
                shifts[c] = s
        if c_bwd + fold <= C:
            for c in range(c_bwd, c_bwd + fold):
                shifts[c] = -s
    return shifts


def temporal_shift(x_ncdhw, nth_channel=4, n_shifts=2):
    """Reference TSM (full resolution, NCDHW) used by the pure-JAX reference."""
    N, C, D, H, W = x_ncdhw.shape
    fold = max(C // nth_channel, 1)
    out = x_ncdhw
    for i in range(n_shifts):
        s = i + 1
        c_fwd = 2 * i * fold
        c_bwd = (2 * i + 1) * fold
        if c_fwd + fold <= C:
            fwd = jnp.pad(x_ncdhw[:, c_fwd:c_fwd + fold, :, :, :W - s],
                          ((0, 0), (0, 0), (0, 0), (0, 0), (s, 0)))
            out = out.at[:, c_fwd:c_fwd + fold].set(fwd)
        if c_bwd + fold <= C:
            bwd = jnp.pad(x_ncdhw[:, c_bwd:c_bwd + fold, :, :, s:],
                          ((0, 0), (0, 0), (0, 0), (0, 0), (0, s)))
            out = out.at[:, c_bwd:c_bwd + fold].set(bwd)
    return out


def _tsm_even_w_channels_last(x, nth_channel, n_shifts):
    """TemporalShift(x) restricted to even W positions, returned channels-last
    as (N, D, H, Wo, C), without materialising the full-size shifted tensor."""
    N, C, D, H, W = x.shape
    shifts = _tsm_channel_shifts(C, nth_channel, n_shifts)
    x_cl = jnp.transpose(x, (0, 2, 3, 4, 1))           # (N, D, H, W, C)
    pieces = []
    c0 = 0
    while c0 < C:
        c1 = c0 + 1
        while c1 < C and shifts[c1] == shifts[c0]:
            c1 += 1
        s = shifts[c0]
        xg = x_cl[..., c0:c1]
        if s > 0:        # out[..., w, :] = x[..., w - s, :]
            xg = jnp.pad(xg[:, :, :, :W - s, :],
                         ((0, 0), (0, 0), (0, 0), (s, 0), (0, 0)))
        elif s < 0:
            t = -s
            xg = jnp.pad(xg[:, :, :, t:, :],
                         ((0, 0), (0, 0), (0, 0), (0, t), (0, 0)))
        pieces.append(xg[:, :, :, 0::2, :])
        c0 = c1
    return jnp.concatenate(pieces, axis=-1)             # (N, D, H, Wo, C)


def spectral_normalize(w, n_iters=50, key=None):
    """torch.nn.utils.spectral_norm: W / sigma(W), power iteration on (O, -1)."""
    w2d = w.reshape(w.shape[0], -1)
    if key is None:
        key = jax.random.PRNGKey(0)
    u = jax.random.normal(key, (w2d.shape[0],), jnp.float32)
    u = u / (jnp.linalg.norm(u) + 1e-12)
    v = None
    for _ in range(n_iters):
        v = w2d.T @ u
        v = v / (jnp.linalg.norm(v) + 1e-12)
        u = w2d @ v
        u = u / (jnp.linalg.norm(u) + 1e-12)
    sigma = u @ (w2d @ v)
    return w / sigma


def init_params(key, ch_in, ch_out, tsm_nth_channel=4, tsm_n_shifts=2):
    ks = jax.random.split(key, 13)
    p = {}
    p['wbp'] = spectral_normalize(
        0.1 * jax.random.normal(ks[0], (ch_out, ch_in, 1, 1, 1), jnp.float32))
    p['w1'] = spectral_normalize(
        0.1 * jax.random.normal(ks[1], (ch_in, ch_in, 4, 4, 1), jnp.float32))
    p['b1'] = 0.1 * jax.random.normal(ks[2], (ch_in,), jnp.float32)
    p['g1'] = 1.0 + 0.1 * jax.random.normal(ks[3], (ch_in,), jnp.float32)
    p['bt1'] = 0.1 * jax.random.normal(ks[4], (ch_in,), jnp.float32)
    p['rm1'] = 0.1 * jax.random.normal(ks[5], (ch_in,), jnp.float32)
    p['rv1'] = 1.0 + 0.1 * jnp.abs(jax.random.normal(ks[6], (ch_in,), jnp.float32))
    p['w2'] = spectral_normalize(
        0.1 * jax.random.normal(ks[7], (ch_out, ch_in, 3, 3, 1), jnp.float32))
    p['b2'] = 0.1 * jax.random.normal(ks[8], (ch_out,), jnp.float32)
    p['g2'] = 1.0 + 0.1 * jax.random.normal(ks[9], (ch_out,), jnp.float32)
    p['bt2'] = 0.1 * jax.random.normal(ks[10], (ch_out,), jnp.float32)
    p['rm2'] = 0.1 * jax.random.normal(ks[11], (ch_out,), jnp.float32)
    p['rv2'] = 1.0 + 0.1 * jnp.abs(jax.random.normal(ks[12], (ch_out,), jnp.float32))
    p['tsm_nth_channel'] = tsm_nth_channel
    p['tsm_n_shifts'] = tsm_n_shifts
    return p


# ----------------------------------------------------------------------------
# Wrapper: NCDHW in/out, Pallas kernel inside
# ----------------------------------------------------------------------------
def _round_up(v, m):
    return (v + m - 1) // m * m


def _vmem_capacity_bytes():
    try:
        cap = getattr(pltpu.get_tpu_info(), "vmem_capacity_bytes", None)
        if cap:
            return int(cap)
    except Exception:
        pass
    return 64 * 1024 * 1024        # conservative (v7x-sized) default


@partial(jax.jit, static_argnums=(2, 3, 4))
def _down_layer_forward_impl(x, arrays, tsm_nth_channel, tsm_n_shifts,
                             use_buffered):
    N, Cin, D, H, W = x.shape
    Cmid = arrays['w1'].shape[0]          # ch_in (intermediate channels)
    Cout = arrays['wbp'].shape[0]
    assert D % 2 == 0 and H % 2 == 0 and W % 2 == 0
    Do, Ho, Wo = D // 2, H // 2, W // 2
    Dq, Hq = Do + 1, Ho + 1
    Cmid_p = _round_up(Cmid, 128)         # lane-dense padded channel counts
    Cout_p = _round_up(Cout, 128)
    x = x.astype(jnp.float32)

    # K-packing decisions (static): pack conv taps into the lane/K dim when the
    # per-tap K would otherwise be lane-sparse / force many accumulator passes.
    pack1 = (4 * Cin) < 128               # conv1: all 16 taps -> one dot
    pack2 = Cmid <= 128                   # conv2: 9 taps -> one dot (K = 9*Cmid_p)
    K1 = 16 * Cin if pack1 else 4 * Cin

    # ---- activation operands (layout plumbing; bf16 at the kernel boundary) --
    # bypass operand: AvgPool3d(2,2) reduced here (x/8-sized operand); the
    # 1x1x1 conv matmul stays inside the kernel.
    x_cl = jnp.transpose(x, (0, 2, 3, 4, 1))                         # (N,D,H,W,C)
    xp = x_cl.reshape(N, Do, 2, Ho, 2, Wo, 2, Cin).mean(axis=(2, 4, 6))
    xp = xp.astype(jnp.bfloat16)                                     # (N,Do,Ho,Wo,C)

    # resid conv1 operand: TSM fused with the stride-2 W selection.
    xs_ev = _tsm_even_w_channels_last(x, tsm_nth_channel, tsm_n_shifts)  # (N,D,H,Wo,C)
    xs_pad = jnp.pad(xs_ev, ((0, 0), (1, 1), (1, 1), (0, 0), (0, 0)))    # (N,D+2,H+2,Wo,C)
    if pack1:
        # full im2col: all 16 (kd,kh) taps in the lane/K dim -> single MXU dot.
        pieces = [xs_pad[:, kd:kd + 2 * Do:2, kh:kh + 2 * Ho:2, :, :]
                  for kd in range(4) for kh in range(4)]
        xs = jnp.concatenate(pieces, axis=-1).astype(jnp.bfloat16)   # (N,Do,Ho,Wo,16*Cin)
    else:
        # fallback: stride-2 parities (rd,rh) merged into lanes, 4 taps in-kernel.
        xs = xs_pad.reshape(N, Dq, 2, Hq, 2, Wo, Cin)
        xs = jnp.transpose(xs, (0, 1, 3, 5, 2, 4, 6)).reshape(N, Dq, Hq, Wo, 4 * Cin)
        xs = xs.astype(jnp.bfloat16)

    # ---- parameters: spectral-normed weights with BN scales folded in, --------
    # channel dims zero-padded to multiples of 128, shipped to the MXU in bf16.
    s1 = arrays['g1'] / jnp.sqrt(arrays['rv1'] + BN_EPS)              # (Cmid,)
    s2 = arrays['g2'] / jnp.sqrt(arrays['rv2'] + BN_EPS)              # (Cout,)

    w1f = arrays['w1'][:, :, :, :, 0] * s1[:, None, None, None]       # (Cmid,Cin,4,4)
    if pack1:
        w1 = jnp.transpose(w1f, (2, 3, 1, 0)).reshape(16 * Cin, Cmid)
        w1 = jnp.pad(w1, ((0, 0), (0, Cmid_p - Cmid))).astype(jnp.bfloat16)
    else:
        w1 = w1f.reshape(Cmid, Cin, 2, 2, 2, 2)                       # kd->(a,rd), kh->(b,rh)
        w1 = jnp.transpose(w1, (2, 4, 3, 5, 1, 0)).reshape(2, 2, 4 * Cin, Cmid)
        w1 = jnp.pad(w1, ((0, 0), (0, 0), (0, 0), (0, Cmid_p - Cmid)))
        w1 = w1.astype(jnp.bfloat16)

    w2f = arrays['w2'][:, :, :, :, 0] * s2[:, None, None, None]       # (Cout,Cmid,3,3)
    w2f = jnp.transpose(w2f, (2, 3, 1, 0))                            # (3,3,Cmid,Cout)
    w2f = jnp.pad(w2f, ((0, 0), (0, 0), (0, Cmid_p - Cmid), (0, Cout_p - Cout)))
    w2 = (w2f.reshape(9 * Cmid_p, Cout_p) if pack2 else w2f).astype(jnp.bfloat16)

    wbp = jnp.transpose(arrays['wbp'][:, :, 0, 0, 0], (1, 0))         # (Cin,Cout)
    wbp = jnp.pad(wbp, ((0, 0), (0, Cout_p - Cout))).astype(jnp.bfloat16)

    t1 = (arrays['b1'] - arrays['rm1']) * s1 + arrays['bt1']          # f32 shifts
    t1 = jnp.pad(t1, (0, Cmid_p - Cmid)).reshape(1, Cmid_p)
    t2 = (arrays['b2'] - arrays['rm2']) * s2 + arrays['bt2']
    t2 = jnp.pad(t2, (0, Cout_p - Cout)).reshape(1, Cout_p)

    # ---- generation-aware VMEM budget (64 MiB limit / 48 MiB budget on ---------
    # v5e/v6e with 128 MiB physical VMEM; 32 / 24 MiB on v7x with 64 MiB).
    vmem_cap = _vmem_capacity_bytes()
    vmem_limit = min(vmem_cap // 2, 96 * 1024 * 1024)
    budget = (vmem_limit * 3) // 4

    def vmem_bytes(wob):
        m = Do * Ho * wob
        xs_e = m * K1 if pack1 else Dq * Hq * wob * 4 * Cin
        inp = 2 * 2 * (m * Cin + xs_e)                        # bf16 inputs, 2 bufs
        outb = 2 * 2 * m * Cout_p                             # bf16 output, 2 bufs
        scr = 2 * (Do + 2) * (Ho + 2) * wob * Cmid_p          # bf16 halo scratch
        wts = (1 if use_buffered else 2) * 2 * (
            Cin * Cout_p + 16 * Cin * Cmid_p + 9 * Cmid_p * Cout_p) \
            + 2 * 4 * (Cmid_p + Cout_p)
        tmp = 4 * m * 2 * (Cmid_p + Cout_p)                   # f32 acc/relu temps
        tmp += 2 * m * (9 * Cmid_p if pack2 else Cmid_p)      # packed conv2 LHS (bf16)
        if pack1:
            tmp += 2 * m * K1                                 # flattened conv1 LHS
        return inp + outb + scr + wts + tmp

    # wo_block: largest sublane-aligned divisor of Wo that fits the budget,
    # preferring >=2 W-blocks per batch element (pipeline depth so input DMAs
    # overlap compute) and M = Do*Ho*wo_block a multiple of 256 (v6e MXU).
    candidates = [w for w in range(16, Wo + 1, 16) if Wo % w == 0]
    if not candidates:
        candidates = [w for w in range(8, Wo + 1, 8) if Wo % w == 0]
    if not candidates:
        candidates = [Wo]
    fitting = [w for w in candidates if vmem_bytes(w) <= budget] or [min(candidates)]

    def _score(w):
        return (Wo // w >= 2, (Do * Ho * w) % 256 == 0, w)

    wo_block = max(fitting, key=_score)
    n_wblk = Wo // wo_block

    # constant-index weight/bias operands: single-buffered when supported
    # (their index_map never changes, so they never re-DMA).
    def _const_spec(shape):
        zeros = (0,) * len(shape)
        if use_buffered:
            return pl.BlockSpec(shape, lambda n, w: zeros,
                                pipeline_mode=pl.Buffered(1))
        return pl.BlockSpec(shape, lambda n, w: zeros)

    if pack1:
        xs_spec = pl.BlockSpec((None, Do, Ho, wo_block, K1),
                               lambda n, w: (n, 0, 0, w, 0))
        w1_spec = _const_spec((K1, Cmid_p))
    else:
        xs_spec = pl.BlockSpec((None, Dq, Hq, wo_block, 4 * Cin),
                               lambda n, w: (n, 0, 0, w, 0))
        w1_spec = _const_spec((2, 2, 4 * Cin, Cmid_p))
    w2_spec = _const_spec((9 * Cmid_p, Cout_p) if pack2 else (3, 3, Cmid_p, Cout_p))

    out = pl.pallas_call(
        partial(_down_layer_kernel, pack1=pack1, pack2=pack2),
        out_shape=jax.ShapeDtypeStruct((N, Do, Ho, Wo, Cout_p), jnp.bfloat16),
        grid=(N, n_wblk),
        in_specs=[
            pl.BlockSpec((None, Do, Ho, wo_block, Cin),
                         lambda n, w: (n, 0, 0, w, 0)),
            xs_spec,
            _const_spec((Cin, Cout_p)),
            w1_spec,
            _const_spec((1, Cmid_p)),
            w2_spec,
            _const_spec((1, Cout_p)),
        ],
        out_specs=pl.BlockSpec((None, Do, Ho, wo_block, Cout_p),
                               lambda n, w: (n, 0, 0, w, 0)),
        scratch_shapes=[
            pltpu.VMEM((Do + 2, Ho + 2, wo_block, Cmid_p), jnp.bfloat16)],
        compiler_params=pltpu.CompilerParams(
            dimension_semantics=("parallel", "arbitrary"),
            vmem_limit_bytes=vmem_limit),
    )(xp, xs, wbp, w1, t1, w2, t2)

    out = out[..., :Cout].astype(jnp.float32)      # drop lane padding, back to f32
    return jnp.transpose(out, (0, 4, 1, 2, 3))     # back to PyTorch NCDHW


def down_layer_residual_forward(x, p):
    """DownLayerResidual.forward (proj / proj_class disabled) via Pallas."""
    arrays = {k: v for k, v in p.items()
              if k not in ('tsm_nth_channel', 'tsm_n_shifts')}
    nth = int(p['tsm_nth_channel'])
    nsh = int(p['tsm_n_shifts'])
    last_err = None
    # Try with single-buffered constant operands (pl.Buffered(1)); if the
    # runtime rejects pipeline_mode, fall back to plain double-buffered specs.
    for use_buffered in (True, False):
        try:
            out = _down_layer_forward_impl(x, arrays, nth, nsh, use_buffered)
            return jax.block_until_ready(out)
        except Exception as e:                       # noqa: BLE001
            last_err = e
    raise last_err


# ----------------------------------------------------------------------------
# Pure-JAX reference (XLA convs), mirrors the PyTorch forward exactly
# ----------------------------------------------------------------------------
def _bn_eval(z, g, b, rm, rv):
    sh = (1, -1, 1, 1, 1)
    return ((z - rm.reshape(sh)) / jnp.sqrt(rv.reshape(sh) + BN_EPS)
            * g.reshape(sh) + b.reshape(sh))


def reference_forward(x, p):
    dn = ('NCDHW', 'OIDHW', 'NCDHW')
    x = x.astype(jnp.float32)
    xs = temporal_shift(x, p['tsm_nth_channel'], p['tsm_n_shifts'])
    z1 = lax.conv_general_dilated(xs, p['w1'], (2, 2, 2),
                                  [(1, 1), (1, 1), (0, 0)],
                                  dimension_numbers=dn)
    z1 = z1 + p['b1'].reshape(1, -1, 1, 1, 1)
    y1 = jax.nn.relu(_bn_eval(z1, p['g1'], p['bt1'], p['rm1'], p['rv1']))
    z2 = lax.conv_general_dilated(y1, p['w2'], (1, 1, 1),
                                  [(1, 1), (1, 1), (0, 0)],
                                  dimension_numbers=dn)
    z2 = z2 + p['b2'].reshape(1, -1, 1, 1, 1)
    resid = _bn_eval(z2, p['g2'], p['bt2'], p['rm2'], p['rv2'])
    pooled = lax.reduce_window(x, 0.0, lax.add,
                               (1, 1, 2, 2, 2), (1, 1, 2, 2, 2), 'VALID') / 8.0
    byp = lax.conv_general_dilated(pooled, p['wbp'], (1, 1, 1),
                                   'VALID', dimension_numbers=dn)
    return jax.nn.relu(byp + resid)


if __name__ == "__main__":
    N, Cin, Cout = 2, 4, 8
    D = H = W = 16
    key = jax.random.PRNGKey(0)
    kx, kp = jax.random.split(key)
    x = jax.random.normal(kx, (N, Cin, D, H, W), dtype=jnp.float32)
    params = init_params(kp, Cin, Cout)

    out = down_layer_residual_forward(x, params)          # blocks internally
    ref = jax.block_until_ready(reference_forward(x, params))
    assert out.shape == ref.shape == (N, Cout, D // 2, H // 2, W // 2)
    max_err = float(jnp.max(jnp.abs(out - ref)))
    if not bool(jnp.allclose(out, ref, atol=5e-2, rtol=5e-2)):
        raise AssertionError(
            f"Pallas kernel mismatch vs reference, max abs err={max_err}")
    print("KERNEL_OK")
</pallas_src>

<mosaic_0001>
module attributes {stable_mosaic.version = 11 : i64} {
  func.func @_down_layer_kernel(%arg0: i32, %arg1: i32, %arg2: memref<1x8x8x8x4xbf16, #tpu.memory_space<vmem>>, %arg3: memref<1x8x8x8x64xbf16, #tpu.memory_space<vmem>>, %arg4: memref<4x128xbf16, #tpu.memory_space<vmem>>, %arg5: memref<64x128xbf16, #tpu.memory_space<vmem>>, %arg6: memref<1x128xf32, #tpu.memory_space<vmem>>, %arg7: memref<1152x128xbf16, #tpu.memory_space<vmem>>, %arg8: memref<1x128xf32, #tpu.memory_space<vmem>>, %arg9: memref<1x8x8x8x128xbf16, #tpu.memory_space<vmem>>, %arg10: memref<10x10x8x128xbf16, #tpu.memory_space<vmem>>) attributes {dimension_semantics = [#tpu.dimension_semantics<parallel>, #tpu.dimension_semantics<arbitrary>], iteration_bounds = array<i64: 2, 1>, scalar_prefetch = 0 : i64, scratch_operands = 1 : i64, tpu.core_type = #tpu.core_type<tc>, window_params = [{transform_indices = @transform_0, window_bounds = array<i64: 1, 8, 8, 8, 4>}, {transform_indices = @transform_1, window_bounds = array<i64: 1, 8, 8, 8, 64>}, {pipeline_mode = #tpu.pipeline_mode<synchronous>, transform_indices = @transform_2, window_bounds = array<i64: 4, 128>}, {pipeline_mode = #tpu.pipeline_mode<synchronous>, transform_indices = @transform_3, window_bounds = array<i64: 64, 128>}, {pipeline_mode = #tpu.pipeline_mode<synchronous>, transform_indices = @transform_4, window_bounds = array<i64: 1, 128>}, {pipeline_mode = #tpu.pipeline_mode<synchronous>, transform_indices = @transform_5, window_bounds = array<i64: 1152, 128>}, {pipeline_mode = #tpu.pipeline_mode<synchronous>, transform_indices = @transform_6, window_bounds = array<i64: 1, 128>}, {transform_indices = @transform_7, window_bounds = array<i64: 1, 8, 8, 8, 128>}]} {
    %c0 = arith.constant 0 : index
    %c0_0 = arith.constant 0 : index
    %c0_1 = arith.constant 0 : index
    %c0_2 = arith.constant 0 : index
    %c0_3 = arith.constant 0 : index
    %0 = vector.load %arg3[%c0, %c0_0, %c0_1, %c0_2, %c0_3] : memref<1x8x8x8x64xbf16, #tpu.memory_space<vmem>>, vector<1x8x8x8x64xbf16>
    %1 = vector.shape_cast %0 : vector<1x8x8x8x64xbf16> to vector<8x8x8x64xbf16>
    %2 = vector.shape_cast %1 : vector<8x8x8x64xbf16> to vector<512x64xbf16>
    %c0_4 = arith.constant 0 : index
    %c0_5 = arith.constant 0 : index
    %3 = vector.load %arg5[%c0_4, %c0_5] : memref<64x128xbf16, #tpu.memory_space<vmem>>, vector<64x128xbf16>
    %cst = arith.constant dense<0.000000e+00> : vector<512x128xf32>
    %4 = tpu.matmul %2, %3, %cst {dimension_numbers = #tpu.dot_dimension_numbers<[1], [0], [0], [1], [0, 0, 1, 1], [], []>} : vector<512x64xbf16>, vector<64x128xbf16>, vector<512x128xf32> -> vector<512x128xf32>
    %c0_6 = arith.constant 0 : index
    %c0_7 = arith.constant 0 : index
    %5 = vector.load %arg6[%c0_6, %c0_7] : memref<1x128xf32, #tpu.memory_space<vmem>>, vector<1x128xf32>
    %6 = vector.broadcast %5 : vector<1x128xf32> to vector<512x128xf32>
    %7 = arith.addf %4, %6 : vector<512x128xf32>
    %cst_8 = arith.constant 0.000000e+00 : f32
    %8 = vector.broadcast %cst_8 : f32 to vector<512x128xf32>
    %9 = arith.maximumf %7, %8 : vector<512x128xf32>
    %c0_i32 = arith.constant 0 : i32
    %10 = arith.cmpi eq, %arg1, %c0_i32 : i32
    %11 = arith.extui %10 : i1 to i32
    %c0_i32_9 = arith.constant 0 : i32
    %12 = arith.cmpi ne, %11, %c0_i32_9 : i32
    scf.if %12 {
      %cst_67 = arith.constant 0.000000e+00 : bf16
      %45 = vector.broadcast %cst_67 : bf16 to vector<1x10x8x128xbf16>
      %c0_68 = arith.constant 0 : index
      %c0_69 = arith.constant 0 : index
      %c0_70 = arith.constant 0 : index
      %c0_71 = arith.constant 0 : index
      %46 = vector.load %arg10[%c0_68, %c0_69, %c0_70, %c0_71] : memref<10x10x8x128xbf16, #tpu.memory_space<vmem>>, vector<1x10x8x128xbf16>
      tpu.vector_store %arg10[%c0_68, %c0_69, %c0_70, %c0_71], %45 {strides = array<i32>} : memref<10x10x8x128xbf16, #tpu.memory_space<vmem>>, vector<1x10x8x128xbf16>,
      %cst_72 = arith.constant 0.000000e+00 : bf16
      %47 = vector.broadcast %cst_72 : bf16 to vector<1x10x8x128xbf16>
      %c9 = arith.constant 9 : index
      %c0_73 = arith.constant 0 : index
      %c0_74 = arith.constant 0 : index
      %c0_75 = arith.constant 0 : index
      %48 = vector.load %arg10[%c9, %c0_73, %c0_74, %c0_75] : memref<10x10x8x128xbf16, #tpu.memory_space<vmem>>, vector<1x10x8x128xbf16>
      tpu.vector_store %arg10[%c9, %c0_73, %c0_74, %c0_75], %47 {strides = array<i32>} : memref<10x10x8x128xbf16, #tpu.memory_space<vmem>>, vector<1x10x8x128xbf16>,
      %cst_76 = arith.constant 0.000000e+00 : bf16
      %49 = vector.broadcast %cst_76 : bf16 to vector<8x1x8x128xbf16>
      %c1_77 = arith.constant 1 : index
      %c0_78 = arith.constant 0 : index
      %c0_79 = arith.constant 0 : index
      %c0_80 = arith.constant 0 : index
      %50 = vector.load %arg10[%c1_77, %c0_78, %c0_79, %c0_80] : memref<10x10x8x128xbf16, #tpu.memory_space<vmem>>, vector<8x1x8x128xbf16>
      tpu.vector_store %arg10[%c1_77, %c0_78, %c0_79, %c0_80], %49 {strides = array<i32>} : memref<10x10x8x128xbf16, #tpu.memory_space<vmem>>, vector<8x1x8x128xbf16>,
      %cst_81 = arith.constant 0.000000e+00 : bf16
      %51 = vector.broadcast %cst_81 : bf16 to vector<8x1x8x128xbf16>
      %c1_82 = arith.constant 1 : index
      %c9_83 = arith.constant 9 : index
      %c0_84 = arith.constant 0 : index
      %c0_85 = arith.constant 0 : index
      %52 = vector.load %arg10[%c1_82, %c9_83, %c0_84, %c0_85] : memref<10x10x8x128xbf16, #tpu.memory_space<vmem>>, vector<8x1x8x128xbf16>
      tpu.vector_store %arg10[%c1_82, %c9_83, %c0_84, %c0_85], %51 {strides = array<i32>} : memref<10x10x8x128xbf16, #tpu.memory_space<vmem>>, vector<8x1x8x128xbf16>,
    } else {
    }
    %13 = vector.shape_cast %9 : vector<512x128xf32> to vector<8x8x8x128xf32>
    %14 = arith.truncf %13 : vector<8x8x8x128xf32> to vector<8x8x8x128xbf16>
    %c1 = arith.constant 1 : index
    %c1_10 = arith.constant 1 : index
    %c0_11 = arith.constant 0 : index
    %c0_12 = arith.constant 0 : index
    %15 = vector.load %arg10[%c1, %c1_10, %c0_11, %c0_12] : memref<10x10x8x128xbf16, #tpu.memory_space<vmem>>, vector<8x8x8x128xbf16>
    tpu.vector_store %arg10[%c1, %c1_10, %c0_11, %c0_12], %14 {strides = array<i32>} : memref<10x10x8x128xbf16, #tpu.memory_space<vmem>>, vector<8x8x8x128xbf16>,
    %c0_13 = arith.constant 0 : index
    %c0_14 = arith.constant 0 : index
    %c0_15 = arith.constant 0 : index
    %c0_16 = arith.constant 0 : index
    %c0_17 = arith.constant 0 : index
    %16 = vector.load %arg2[%c0_13, %c0_14, %c0_15, %c0_16, %c0_17] : memref<1x8x8x8x4xbf16, #tpu.memory_space<vmem>>, vector<1x8x8x8x4xbf16>
    %17 = vector.shape_cast %16 : vector<1x8x8x8x4xbf16> to vector<8x8x8x4xbf16>
    %18 = vector.shape_cast %17 : vector<8x8x8x4xbf16> to vector<512x4xbf16>
    %c0_18 = arith.constant 0 : index
    %c0_19 = arith.constant 0 : index
    %19 = vector.load %arg4[%c0_18, %c0_19] : memref<4x128xbf16, #tpu.memory_space<vmem>>, vector<4x128xbf16>
    %cst_20 = arith.constant dense<0.000000e+00> : vector<512x128xf32>
    %20 = tpu.matmul %18, %19, %cst_20 {dimension_numbers = #tpu.dot_dimension_numbers<[1], [0], [0], [1], [0, 0, 1, 1], [], []>} : vector<512x4xbf16>, vector<4x128xbf16>, vector<512x128xf32> -> vector<512x128xf32>
    %c0_21 = arith.constant 0 : index
    %c0_22 = arith.constant 0 : index
    %21 = vector.load %arg8[%c0_21, %c0_22] : memref<1x128xf32, #tpu.memory_space<vmem>>, vector<1x128xf32>
    %22 = vector.broadcast %21 : vector<1x128xf32> to vector<512x128xf32>
    %23 = arith.addf %20, %22 : vector<512x128xf32>
    %c0_23 = arith.constant 0 : index
    %c0_24 = arith.constant 0 : index
    %c0_25 = arith.constant 0 : index
    %c0_26 = arith.constant 0 : index
    %24 = vector.load %arg10[%c0_23, %c0_24, %c0_25, %c0_26] : memref<10x10x8x128xbf16, #tpu.memory_space<vmem>>, vector<8x8x8x128xbf16>
    %c0_27 = arith.constant 0 : index
    %c1_28 = arith.constant 1 : index
    %c0_29 = arith.constant 0 : index
    %c0_30 = arith.constant 0 : index
    %25 = vector.load %arg10[%c0_27, %c1_28, %c0_29, %c0_30] : memref<10x10x8x128xbf16, #tpu.memory_space<vmem>>, vector<8x8x8x128xbf16>
    %c0_31 = arith.constant 0 : index
    %c2 = arith.constant 2 : index
    %c0_32 = arith.constant 0 : index
    %c0_33 = arith.constant 0 : index
    %26 = vector.load %arg10[%c0_31, %c2, %c0_32, %c0_33] : memref<10x10x8x128xbf16, #tpu.memory_space<vmem>>, vector<8x8x8x128xbf16>
    %c1_34 = arith.constant 1 : index
    %c0_35 = arith.constant 0 : index
    %c0_36 = arith.constant 0 : index
    %c0_37 = arith.constant 0 : index
    %27 = vector.load %arg10[%c1_34, %c0_35, %c0_36, %c0_37] : memref<10x10x8x128xbf16, #tpu.memory_space<vmem>>, vector<8x8x8x128xbf16>
    %c1_38 = arith.constant 1 : index
    %c1_39 = arith.constant 1 : index
    %c0_40 = arith.constant 0 : index
    %c0_41 = arith.constant 0 : index
    %28 = vector.load %arg10[%c1_38, %c1_39, %c0_40, %c0_41] : memref<10x10x8x128xbf16, #tpu.memory_space<vmem>>, vector<8x8x8x128xbf16>
    %c1_42 = arith.constant 1 : index
    %c2_43 = arith.constant 2 : index
    %c0_44 = arith.constant 0 : index
    %c0_45 = arith.constant 0 : index
    %29 = vector.load %arg10[%c1_42, %c2_43, %c0_44, %c0_45] : memref<10x10x8x128xbf16, #tpu.memory_space<vmem>>, vector<8x8x8x128xbf16>
    %c2_46 = arith.constant 2 : index
    %c0_47 = arith.constant 0 : index
    %c0_48 = arith.constant 0 : index
    %c0_49 = arith.constant 0 : index
    %30 = vector.load %arg10[%c2_46, %c0_47, %c0_48, %c0_49] : memref<10x10x8x128xbf16, #tpu.memory_space<vmem>>, vector<8x8x8x128xbf16>
    %c2_50 = arith.constant 2 : index
    %c1_51 = arith.constant 1 : index
    %c0_52 = arith.constant 0 : index
    %c0_53 = arith.constant 0 : index
    %31 = vector.load %arg10[%c2_50, %c1_51, %c0_52, %c0_53] : memref<10x10x8x128xbf16, #tpu.memory_space<vmem>>, vector<8x8x8x128xbf16>
    %c2_54 = arith.constant 2 : index
    %c2_55 = arith.constant 2 : index
    %c0_56 = arith.constant 0 : index
    %c0_57 = arith.constant 0 : index
    %32 = vector.load %arg10[%c2_54, %c2_55, %c0_56, %c0_57] : memref<10x10x8x128xbf16, #tpu.memory_space<vmem>>, vector<8x8x8x128xbf16>
    %33 = tpu.concatenate %24, %25, %26, %27, %28, %29, %30, %31, %32 in 3 : vector<8x8x8x128xbf16>, vector<8x8x8x128xbf16>, vector<8x8x8x128xbf16>, vector<8x8x8x128xbf16>, vector<8x8x8x128xbf16>, vector<8x8x8x128xbf16>, vector<8x8x8x128xbf16>, vector<8x8x8x128xbf16>, vector<8x8x8x128xbf16> -> vector<8x8x8x1152xbf16>
    %34 = vector.shape_cast %33 : vector<8x8x8x1152xbf16> to vector<512x1152xbf16>
    %c0_58 = arith.constant 0 : index
    %c0_59 = arith.constant 0 : index
    %35 = vector.load %arg7[%c0_58, %c0_59] : memref<1152x128xbf16, #tpu.memory_space<vmem>>, vector<1152x128xbf16>
    %cst_60 = arith.constant dense<0.000000e+00> : vector<512x128xf32>
    %36 = tpu.matmul %34, %35, %cst_60 {dimension_numbers = #tpu.dot_dimension_numbers<[1], [0], [0], [1], [0, 0, 1, 1], [], []>} : vector<512x1152xbf16>, vector<1152x128xbf16>, vector<512x128xf32> -> vector<512x128xf32>
    %37 = arith.addf %23, %36 : vector<512x128xf32>
    %cst_61 = arith.constant 0.000000e+00 : f32
    %38 = vector.broadcast %cst_61 : f32 to vector<512x128xf32>
    %39 = arith.maximumf %37, %38 : vector<512x128xf32>
    %40 = vector.shape_cast %39 : vector<512x128xf32> to vector<8x8x8x128xf32>
    %41 = arith.truncf %40 : vector<8x8x8x128xf32> to vector<8x8x8x128xbf16>
    %c0_62 = arith.constant 0 : index
    %c0_63 = arith.constant 0 : index
    %c0_64 = arith.constant 0 : index
    %c0_65 = arith.constant 0 : index
    %c0_66 = arith.constant 0 : index
    %42 = vector.load %arg9[%c0_62, %c0_63, %c0_64, %c0_65, %c0_66] : memref<1x8x8x8x128xbf16, #tpu.memory_space<vmem>>, vector<1x8x8x8x128xbf16>
    %43 = vector.shape_cast %42 : vector<1x8x8x8x128xbf16> to vector<8x8x8x128xbf16>
    %44 = vector.shape_cast %41 : vector<8x8x8x128xbf16> to vector<1x8x8x8x128xbf16>
    tpu.vector_store %arg9[%c0_62, %c0_63, %c0_64, %c0_65, %c0_66], %44 {strides = array<i32>} : memref<1x8x8x8x128xbf16, #tpu.memory_space<vmem>>, vector<1x8x8x8x128xbf16>,
    return
  }
  func.func @transform_0(%arg0: i32, %arg1: i32) -> (i32, i32, i32, i32, i32) {
    %c0_i32 = arith.constant 0 : i32
    %c0_i32_0 = arith.constant 0 : i32
    %c0_i32_1 = arith.constant 0 : i32
    %c0_i32_2 = arith.constant 0 : i32
    return %arg0, %c0_i32, %c0_i32_0, %arg1, %c0_i32_1 : i32, i32, i32, i32, i32
  }
  func.func @transform_1(%arg0: i32, %arg1: i32) -> (i32, i32, i32, i32, i32) {
    %c0_i32 = arith.constant 0 : i32
    %c0_i32_0 = arith.constant 0 : i32
    %c0_i32_1 = arith.constant 0 : i32
    %c0_i32_2 = arith.constant 0 : i32
    return %arg0, %c0_i32, %c0_i32_0, %arg1, %c0_i32_1 : i32, i32, i32, i32, i32
  }
  func.func @transform_2(%arg0: i32, %arg1: i32) -> (i32, i32) {
    %c0_i32 = arith.constant 0 : i32
    %c0_i32_0 = arith.constant 0 : i32
    %c0_i32_1 = arith.constant 0 : i32
    return %c0_i32, %c0_i32_0 : i32, i32
  }
  func.func @transform_3(%arg0: i32, %arg1: i32) -> (i32, i32) {
    %c0_i32 = arith.constant 0 : i32
    %c0_i32_0 = arith.constant 0 : i32
    %c0_i32_1 = arith.constant 0 : i32
    return %c0_i32, %c0_i32_0 : i32, i32
  }
  func.func @transform_4(%arg0: i32, %arg1: i32) -> (i32, i32) {
    %c0_i32 = arith.constant 0 : i32
    %c0_i32_0 = arith.constant 0 : i32
    %c0_i32_1 = arith.constant 0 : i32
    return %c0_i32, %c0_i32_0 : i32, i32
  }
  func.func @transform_5(%arg0: i32, %arg1: i32) -> (i32, i32) {
    %c0_i32 = arith.constant 0 : i32
    %c0_i32_0 = arith.constant 0 : i32
    %c0_i32_1 = arith.constant 0 : i32
    return %c0_i32, %c0_i32_0 : i32, i32
  }
  func.func @transform_6(%arg0: i32, %arg1: i32) -> (i32, i32) {
    %c0_i32 = arith.constant 0 : i32
    %c0_i32_0 = arith.constant 0 : i32
    %c0_i32_1 = arith.constant 0 : i32
    return %c0_i32, %c0_i32_0 : i32, i32
  }
  func.func @transform_7(%arg0: i32, %arg1: i32) -> (i32, i32, i32, i32, i32) {
    %c0_i32 = arith.constant 0 : i32
    %c0_i32_0 = arith.constant 0 : i32
    %c0_i32_1 = arith.constant 0 : i32
    %c0_i32_2 = arith.constant 0 : i32
    return %arg0, %c0_i32, %c0_i32_0, %arg1, %c0_i32_1 : i32, i32, i32, i32, i32
  }
}

module attributes {stable_mosaic.version = 11 : i64} {
  func.func @_down_layer_kernel(%arg0: i32, %arg1: i32, %arg2: memref<1x8x8x8x4xbf16, #tpu.memory_space<vmem>>, %arg3: memref<1x8x8x8x64xbf16, #tpu.memory_space<vmem>>, %arg4: memref<4x128xbf16, #tpu.memory_space<vmem>>, %arg5: memref<64x128xbf16, #tpu.memory_space<vmem>>, %arg6: memref<1x128xf32, #tpu.memory_space<vmem>>, %arg7: memref<1152x128xbf16, #tpu.memory_space<vmem>>, %arg8: memref<1x128xf32, #tpu.memory_space<vmem>>, %arg9: memref<1x8x8x8x128xbf16, #tpu.memory_space<vmem>>, %arg10: memref<10x10x8x128xbf16, #tpu.memory_space<vmem>>) attributes {dimension_semantics = [#tpu.dimension_semantics<parallel>, #tpu.dimension_semantics<arbitrary>], iteration_bounds = array<i64: 2, 1>, scalar_prefetch = 0 : i64, scratch_operands = 1 : i64, tpu.core_type = #tpu.core_type<tc>, window_params = [{transform_indices = @transform_0, window_bounds = array<i64: 1, 8, 8, 8, 4>}, {transform_indices = @transform_1, window_bounds = array<i64: 1, 8, 8, 8, 64>}, {pipeline_mode = #tpu.pipeline_mode<synchronous>, transform_indices = @transform_2, window_bounds = array<i64: 4, 128>}, {pipeline_mode = #tpu.pipeline_mode<synchronous>, transform_indices = @transform_3, window_bounds = array<i64: 64, 128>}, {pipeline_mode = #tpu.pipeline_mode<synchronous>, transform_indices = @transform_4, window_bounds = array<i64: 1, 128>}, {pipeline_mode = #tpu.pipeline_mode<synchronous>, transform_indices = @transform_5, window_bounds = array<i64: 1152, 128>}, {pipeline_mode = #tpu.pipeline_mode<synchronous>, transform_indices = @transform_6, window_bounds = array<i64: 1, 128>}, {transform_indices = @transform_7, window_bounds = array<i64: 1, 8, 8, 8, 128>}]} {
    %c0 = arith.constant 0 : index
    %c0_0 = arith.constant 0 : index
    %c0_1 = arith.constant 0 : index
    %c0_2 = arith.constant 0 : index
    %c0_3 = arith.constant 0 : index
    %0 = vector.load %arg3[%c0, %c0_0, %c0_1, %c0_2, %c0_3] : memref<1x8x8x8x64xbf16, #tpu.memory_space<vmem>>, vector<1x8x8x8x64xbf16>
    %1 = vector.shape_cast %0 : vector<1x8x8x8x64xbf16> to vector<8x8x8x64xbf16>
    %2 = vector.shape_cast %1 : vector<8x8x8x64xbf16> to vector<512x64xbf16>
    %c0_4 = arith.constant 0 : index
    %c0_5 = arith.constant 0 : index
    %3 = vector.load %arg5[%c0_4, %c0_5] : memref<64x128xbf16, #tpu.memory_space<vmem>>, vector<64x128xbf16>
    %cst = arith.constant dense<0.000000e+00> : vector<512x128xf32>
    %4 = tpu.matmul %2, %3, %cst {dimension_numbers = #tpu.dot_dimension_numbers<[1], [0], [0], [1], [0, 0, 1, 1], [], []>} : vector<512x64xbf16>, vector<64x128xbf16>, vector<512x128xf32> -> vector<512x128xf32>
    %c0_6 = arith.constant 0 : index
    %c0_7 = arith.constant 0 : index
    %5 = vector.load %arg6[%c0_6, %c0_7] : memref<1x128xf32, #tpu.memory_space<vmem>>, vector<1x128xf32>
    %6 = vector.broadcast %5 : vector<1x128xf32> to vector<512x128xf32>
    %7 = arith.addf %4, %6 : vector<512x128xf32>
    %cst_8 = arith.constant 0.000000e+00 : f32
    %8 = vector.broadcast %cst_8 : f32 to vector<512x128xf32>
    %9 = arith.maximumf %7, %8 : vector<512x128xf32>
    %c0_i32 = arith.constant 0 : i32
    %10 = arith.cmpi eq, %arg1, %c0_i32 : i32
    %11 = arith.extui %10 : i1 to i32
    %c0_i32_9 = arith.constant 0 : i32
    %12 = arith.cmpi ne, %11, %c0_i32_9 : i32
    scf.if %12 {
      %cst_67 = arith.constant 0.000000e+00 : bf16
      %45 = vector.broadcast %cst_67 : bf16 to vector<1x10x8x128xbf16>
      %c0_68 = arith.constant 0 : index
      %c0_69 = arith.constant 0 : index
      %c0_70 = arith.constant 0 : index
      %c0_71 = arith.constant 0 : index
      %46 = vector.load %arg10[%c0_68, %c0_69, %c0_70, %c0_71] : memref<10x10x8x128xbf16, #tpu.memory_space<vmem>>, vector<1x10x8x128xbf16>
      tpu.vector_store %arg10[%c0_68, %c0_69, %c0_70, %c0_71], %45 {strides = array<i32>} : memref<10x10x8x128xbf16, #tpu.memory_space<vmem>>, vector<1x10x8x128xbf16>,
      %cst_72 = arith.constant 0.000000e+00 : bf16
      %47 = vector.broadcast %cst_72 : bf16 to vector<1x10x8x128xbf16>
      %c9 = arith.constant 9 : index
      %c0_73 = arith.constant 0 : index
      %c0_74 = arith.constant 0 : index
      %c0_75 = arith.constant 0 : index
      %48 = vector.load %arg10[%c9, %c0_73, %c0_74, %c0_75] : memref<10x10x8x128xbf16, #tpu.memory_space<vmem>>, vector<1x10x8x128xbf16>
      tpu.vector_store %arg10[%c9, %c0_73, %c0_74, %c0_75], %47 {strides = array<i32>} : memref<10x10x8x128xbf16, #tpu.memory_space<vmem>>, vector<1x10x8x128xbf16>,
      %cst_76 = arith.constant 0.000000e+00 : bf16
      %49 = vector.broadcast %cst_76 : bf16 to vector<8x1x8x128xbf16>
      %c1_77 = arith.constant 1 : index
      %c0_78 = arith.constant 0 : index
      %c0_79 = arith.constant 0 : index
      %c0_80 = arith.constant 0 : index
      %50 = vector.load %arg10[%c1_77, %c0_78, %c0_79, %c0_80] : memref<10x10x8x128xbf16, #tpu.memory_space<vmem>>, vector<8x1x8x128xbf16>
      tpu.vector_store %arg10[%c1_77, %c0_78, %c0_79, %c0_80], %49 {strides = array<i32>} : memref<10x10x8x128xbf16, #tpu.memory_space<vmem>>, vector<8x1x8x128xbf16>,
      %cst_81 = arith.constant 0.000000e+00 : bf16
      %51 = vector.broadcast %cst_81 : bf16 to vector<8x1x8x128xbf16>
      %c1_82 = arith.constant 1 : index
      %c9_83 = arith.constant 9 : index
      %c0_84 = arith.constant 0 : index
      %c0_85 = arith.constant 0 : index
      %52 = vector.load %arg10[%c1_82, %c9_83, %c0_84, %c0_85] : memref<10x10x8x128xbf16, #tpu.memory_space<vmem>>, vector<8x1x8x128xbf16>
      tpu.vector_store %arg10[%c1_82, %c9_83, %c0_84, %c0_85], %51 {strides = array<i32>} : memref<10x10x8x128xbf16, #tpu.memory_space<vmem>>, vector<8x1x8x128xbf16>,
    } else {
    }
    %13 = vector.shape_cast %9 : vector<512x128xf32> to vector<8x8x8x128xf32>
    %14 = arith.truncf %13 : vector<8x8x8x128xf32> to vector<8x8x8x128xbf16>
    %c1 = arith.constant 1 : index
    %c1_10 = arith.constant 1 : index
    %c0_11 = arith.constant 0 : index
    %c0_12 = arith.constant 0 : index
    %15 = vector.load %arg10[%c1, %c1_10, %c0_11, %c0_12] : memref<10x10x8x128xbf16, #tpu.memory_space<vmem>>, vector<8x8x8x128xbf16>
    tpu.vector_store %arg10[%c1, %c1_10, %c0_11, %c0_12], %14 {strides = array<i32>} : memref<10x10x8x128xbf16, #tpu.memory_space<vmem>>, vector<8x8x8x128xbf16>,
    %c0_13 = arith.constant 0 : index
    %c0_14 = arith.constant 0 : index
    %c0_15 = arith.constant 0 : index
    %c0_16 = arith.constant 0 : index
    %c0_17 = arith.constant 0 : index
    %16 = vector.load %arg2[%c0_13, %c0_14, %c0_15, %c0_16, %c0_17] : memref<1x8x8x8x4xbf16, #tpu.memory_space<vmem>>, vector<1x8x8x8x4xbf16>
    %17 = vector.shape_cast %16 : vector<1x8x8x8x4xbf16> to vector<8x8x8x4xbf16>
    %18 = vector.shape_cast %17 : vector<8x8x8x4xbf16> to vector<512x4xbf16>
    %c0_18 = arith.constant 0 : index
    %c0_19 = arith.constant 0 : index
    %19 = vector.load %arg4[%c0_18, %c0_19] : memref<4x128xbf16, #tpu.memory_space<vmem>>, vector<4x128xbf16>
    %cst_20 = arith.constant dense<0.000000e+00> : vector<512x128xf32>
    %20 = tpu.matmul %18, %19, %cst_20 {dimension_numbers = #tpu.dot_dimension_numbers<[1], [0], [0], [1], [0, 0, 1, 1], [], []>} : vector<512x4xbf16>, vector<4x128xbf16>, vector<512x128xf32> -> vector<512x128xf32>
    %c0_21 = arith.constant 0 : index
    %c0_22 = arith.constant 0 : index
    %21 = vector.load %arg8[%c0_21, %c0_22] : memref<1x128xf32, #tpu.memory_space<vmem>>, vector<1x128xf32>
    %22 = vector.broadcast %21 : vector<1x128xf32> to vector<512x128xf32>
    %23 = arith.addf %20, %22 : vector<512x128xf32>
    %c0_23 = arith.constant 0 : index
    %c0_24 = arith.constant 0 : index
    %c0_25 = arith.constant 0 : index
    %c0_26 = arith.constant 0 : index
    %24 = vector.load %arg10[%c0_23, %c0_24, %c0_25, %c0_26] : memref<10x10x8x128xbf16, #tpu.memory_space<vmem>>, vector<8x8x8x128xbf16>
    %c0_27 = arith.constant 0 : index
    %c1_28 = arith.constant 1 : index
    %c0_29 = arith.constant 0 : index
    %c0_30 = arith.constant 0 : index
    %25 = vector.load %arg10[%c0_27, %c1_28, %c0_29, %c0_30] : memref<10x10x8x128xbf16, #tpu.memory_space<vmem>>, vector<8x8x8x128xbf16>
    %c0_31 = arith.constant 0 : index
    %c2 = arith.constant 2 : index
    %c0_32 = arith.constant 0 : index
    %c0_33 = arith.constant 0 : index
    %26 = vector.load %arg10[%c0_31, %c2, %c0_32, %c0_33] : memref<10x10x8x128xbf16, #tpu.memory_space<vmem>>, vector<8x8x8x128xbf16>
    %c1_34 = arith.constant 1 : index
    %c0_35 = arith.constant 0 : index
    %c0_36 = arith.constant 0 : index
    %c0_37 = arith.constant 0 : index
    %27 = vector.load %arg10[%c1_34, %c0_35, %c0_36, %c0_37] : memref<10x10x8x128xbf16, #tpu.memory_space<vmem>>, vector<8x8x8x128xbf16>
    %c1_38 = arith.constant 1 : index
    %c1_39 = arith.constant 1 : index
    %c0_40 = arith.constant 0 : index
    %c0_41 = arith.constant 0 : index
    %28 = vector.load %arg10[%c1_38, %c1_39, %c0_40, %c0_41] : memref<10x10x8x128xbf16, #tpu.memory_space<vmem>>, vector<8x8x8x128xbf16>
    %c1_42 = arith.constant 1 : index
    %c2_43 = arith.constant 2 : index
    %c0_44 = arith.constant 0 : index
    %c0_45 = arith.constant 0 : index
    %29 = vector.load %arg10[%c1_42, %c2_43, %c0_44, %c0_45] : memref<10x10x8x128xbf16, #tpu.memory_space<vmem>>, vector<8x8x8x128xbf16>
    %c2_46 = arith.constant 2 : index
    %c0_47 = arith.constant 0 : index
    %c0_48 = arith.constant 0 : index
    %c0_49 = arith.constant 0 : index
    %30 = vector.load %arg10[%c2_46, %c0_47, %c0_48, %c0_49] : memref<10x10x8x128xbf16, #tpu.memory_space<vmem>>, vector<8x8x8x128xbf16>
    %c2_50 = arith.constant 2 : index
    %c1_51 = arith.constant 1 : index
    %c0_52 = arith.constant 0 : index
    %c0_53 = arith.constant 0 : index
    %31 = vector.load %arg10[%c2_50, %c1_51, %c0_52, %c0_53] : memref<10x10x8x128xbf16, #tpu.memory_space<vmem>>, vector<8x8x8x128xbf16>
    %c2_54 = arith.constant 2 : index
    %c2_55 = arith.constant 2 : index
    %c0_56 = arith.constant 0 : index
    %c0_57 = arith.constant 0 : index
    %32 = vector.load %arg10[%c2_54, %c2_55, %c0_56, %c0_57] : memref<10x10x8x128xbf16, #tpu.memory_space<vmem>>, vector<8x8x8x128xbf16>
    %33 = tpu.concatenate %24, %25, %26, %27, %28, %29, %30, %31, %32 in 3 : vector<8x8x8x128xbf16>, vector<8x8x8x128xbf16>, vector<8x8x8x128xbf16>, vector<8x8x8x128xbf16>, vector<8x8x8x128xbf16>, vector<8x8x8x128xbf16>, vector<8x8x8x128xbf16>, vector<8x8x8x128xbf16>, vector<8x8x8x128xbf16> -> vector<8x8x8x1152xbf16>
    %34 = vector.shape_cast %33 : vector<8x8x8x1152xbf16> to vector<512x1152xbf16>
    %c0_58 = arith.constant 0 : index
    %c0_59 = arith.constant 0 : index
    %35 = vector.load %arg7[%c0_58, %c0_59] : memref<1152x128xbf16, #tpu.memory_space<vmem>>, vector<1152x128xbf16>
    %cst_60 = arith.constant dense<0.000000e+00> : vector<512x128xf32>
    %36 = tpu.matmul %34, %35, %cst_60 {dimension_numbers = #tpu.dot_dimension_numbers<[1], [0], [0], [1], [0, 0, 1, 1], [], []>} : vector<512x1152xbf16>, vector<1152x128xbf16>, vector<512x128xf32> -> vector<512x128xf32>
    %37 = arith.addf %23, %36 : vector<512x128xf32>
    %cst_61 = arith.constant 0.000000e+00 : f32
    %38 = vector.broadcast %cst_61 : f32 to vector<512x128xf32>
    %39 = arith.maximumf %37, %38 : vector<512x128xf32>
    %40 = vector.shape_cast %39 : vector<512x128xf32> to vector<8x8x8x128xf32>
    %41 = arith.truncf %40 : vector<8x8x8x128xf32> to vector<8x8x8x128xbf16>
    %c0_62 = arith.constant 0 : index
    %c0_63 = arith.constant 0 : index
    %c0_64 = arith.constant 0 : index
    %c0_65 = arith.constant 0 : index
    %c0_66 = arith.constant 0 : index
    %42 = vector.load %arg9[%c0_62, %c0_63, %c0_64, %c0_65, %c0_66] : memref<1x8x8x8x128xbf16, #tpu.memory_space<vmem>>, vector<1x8x8x8x128xbf16>
    %43 = vector.shape_cast %42 : vector<1x8x8x8x128xbf16> to vector<8x8x8x128xbf16>
    %44 = vector.shape_cast %41 : vector<8x8x8x128xbf16> to vector<1x8x8x8x128xbf16>
    tpu.vector_store %arg9[%c0_62, %c0_63, %c0_64, %c0_65, %c0_66], %44 {strides = array<i32>} : memref<1x8x8x8x128xbf16, #tpu.memory_space<vmem>>, vector<1x8x8x8x128xbf16>,
    return
  }
  func.func @transform_0(%arg0: i32, %arg1: i32) -> (i32, i32, i32, i32, i32) {
    %c0_i32 = arith.constant 0 : i32
    %c0_i32_0 = arith.constant 0 : i32
    %c0_i32_1 = arith.constant 0 : i32
    %c0_i32_2 = arith.constant 0 : i32
    return %arg0, %c0_i32, %c0_i32_0, %arg1, %c0_i32_1 : i32, i32, i32, i32, i32
  }
  func.func @transform_1(%arg0: i32, %arg1: i32) -> (i32, i32, i32, i32, i32) {
    %c0_i32 = arith.constant 0 : i32
    %c0_i32_0 = arith.constant 0 : i32
    %c0_i32_1 = arith.constant 0 : i32
    %c0_i32_2 = arith.constant 0 : i32
    return %arg0, %c0_i32, %c0_i32_0, %arg1, %c0_i32_1 : i32, i32, i32, i32, i32
  }
  func.func @transform_2(%arg0: i32, %arg1: i32) -> (i32, i32) {
    %c0_i32 = arith.constant 0 : i32
    %c0_i32_0 = arith.constant 0 : i32
    %c0_i32_1 = arith.constant 0 : i32
    return %c0_i32, %c0_i32_0 : i32, i32
  }
  func.func @transform_3(%arg0: i32, %arg1: i32) -> (i32, i32) {
    %c0_i32 = arith.constant 0 : i32
    %c0_i32_0 = arith.constant 0 : i32
    %c0_i32_1 = arith.constant 0 : i32
    return %c0_i32, %c0_i32_0 : i32, i32
  }
  func.func @transform_4(%arg0: i32, %arg1: i32) -> (i32, i32) {
    %c0_i32 = arith.constant 0 : i32
    %c0_i32_0 = arith.constant 0 : i32
    %c0_i32_1 = arith.constant 0 : i32
    return %c0_i32, %c0_i32_0 : i32, i32
  }
  func.func @transform_5(%arg0: i32, %arg1: i32) -> (i32, i32) {
    %c0_i32 = arith.constant 0 : i32
    %c0_i32_0 = arith.constant 0 : i32
    %c0_i32_1 = arith.constant 0 : i32
    return %c0_i32, %c0_i32_0 : i32, i32
  }
  func.func @transform_6(%arg0: i32, %arg1: i32) -> (i32, i32) {
    %c0_i32 = arith.constant 0 : i32
    %c0_i32_0 = arith.constant 0 : i32
    %c0_i32_1 = arith.constant 0 : i32
    return %c0_i32, %c0_i32_0 : i32, i32
  }
  func.func @transform_7(%arg0: i32, %arg1: i32) -> (i32, i32, i32, i32, i32) {
    %c0_i32 = arith.constant 0 : i32
    %c0_i32_0 = arith.constant 0 : i32
    %c0_i32_1 = arith.constant 0 : i32
    %c0_i32_2 = arith.constant 0 : i32
    return %arg0, %c0_i32, %c0_i32_0, %arg1, %c0_i32_1 : i32, i32, i32, i32, i32
  }
}

</mosaic_0001>

<llo_original>
// kernel: _down_layer_forward_impl.1
$region0: #{_down_layer_forward_impl.1}
  #allocation0 [shape = 'u32[]', space=smem, size = 0x4, offset = 0x4, fixed_abs, tag = 'smem constant byte address 0x4 - core index']
  #allocation1 [shape = 'u32[144,128]{1,0:T(1,128)}', space=vmem, size = 0x12000, scoped, tag = 'internal scratch']
  #allocation2 [shape = 'bf16[10,10,8,128]{3,2,1,0:T(8,128)(2,1)}', space=vmem, size = 0x32000, scoped, tag = 'scratch operand']
  %s0 = inlined_call_operand.vmem [shape: bf16[2,8,8,8,4], index: 0, kind: input, shape index: {}]
  %s1 = inlined_call_operand.vmem [shape: bf16[2,8,8,8,64], index: 1, kind: input, shape index: {}]
  %s2 = inlined_call_operand.vmem [shape: bf16[4,128], index: 2, kind: input, shape index: {}]
  %s3 = inlined_call_operand.vmem [shape: bf16[64,128], index: 3, kind: input, shape index: {}]
  %s4 = inlined_call_operand.vmem [shape: f32[1,128], index: 4, kind: input, shape index: {}]
  %s5 = inlined_call_operand.vmem [shape: bf16[1152,128], index: 5, kind: input, shape index: {}]
  %s6 = inlined_call_operand.vmem [shape: f32[1,128], index: 6, kind: input, shape index: {}]
  %s7 = inlined_call_operand.vmem [shape: bf16[2,8,8,8,128], index: 7, kind: output, shape index: {}]
  %s8 = sld [smem:[#allocation0]]
  $region65: #{_down_layer_forward_impl.1} parent=0
    _
  %s10 = ssub.s32 1, %s8
  %s11 = scalar_select 0, %s10, %s8
  loop: start=0, step=1, limit=4
  $region2: #{_down_layer_forward_impl.1} parent=0 // loop_pre_header
    _
  $region3: #{_down_layer_forward_impl.1} parent=0 // loop_header
    %s13 = sphi 0, %s17
    %p14 = scmp.ge.s32.totalorder %s13, 4
    %s20 = sphi 0, %s32
    %s21 = sphi 0, %s28
    %s22 = sphi 0, %s20
    %s23 = sphi 0, %s21
    %s24 = sphi 0, %s22
    %s25 = sphi 0, %s23
    %s37 = sphi 0, %s39
    %s40 = sphi 0, %s37
    %s41 = sphi 0, %s40
    %s57 = sphi 0, %s41
    %s65 = sphi 0, %s67
    %s68 = sphi 0, %s65
    %s69 = sphi 0, %s68
    %s85 = sphi 0, %s69
    %s89 = sphi 0, %s89
    %s91 = sphi 0, %s89
    %s92 = sphi 0, %s91
    %s106 = sphi 0, %s92
    %s110 = sphi 0, %s110
    %s112 = sphi 0, %s110
    %s113 = sphi 0, %s112
    %s127 = sphi 0, %s113
    %s131 = sphi 0, %s131
    %s133 = sphi 0, %s131
    %s134 = sphi 0, %s133
    %s148 = sphi 0, %s134
    %s152 = sphi 0, %s152
    %s154 = sphi 0, %s152
    %s155 = sphi 0, %s154
    %s169 = sphi 0, %s155
    %s173 = sphi 0, %s173
    %s175 = sphi 0, %s173
    %s176 = sphi 0, %s175
    %s190 = sphi 0, %s176
    %s198 = sphi 0, %s200
    %s201 = sphi 0, %s198
    %s202 = sphi 0, %s201
    %s218 = sphi 0, %s202
  $region4: #{_down_layer_forward_impl.1} parent=0 // loop_header_branch
    %16 = sbr.rel (%p14) target = $region8
  $region5: #{_down_layer_forward_impl.1} parent=0 // loop_body
    %s18 = ssub.s32 %s13, 1
    %s19 = ssub.s32 %s13, 2
    %s26 = sadd.s32 1, %s21
    %p27 = scmp.ge.s32.totalorder %s26, 1
    %s28 = scalar_select %p27, 0, %s26
    %s29 = sadd.s32 1, %s20
    %s30 = scalar_select %p27, %s29, %s20
    %p31 = scmp.ge.s32.totalorder %s30, 2
    %s32 = scalar_select %p31, 0, %s30
    %s33 = ssub.s32 %s20, %s32
    %s34 = ssub.s32 %s21, %s28
    %s35 = sor.u32 %s33, %s34
    %p36 = scmp.eq.s32.totalorder %s35, 0
    %s38 = sadd.s32 %s37, 1
    %s39 = scalar_select %p36, %s37, %s38
    %p42 = pneg %p36
    %p43 = scmp.eq.s32.totalorder %s13, 1
    %p44 = por %p42, %p43
    %p45 = scmp.ne.s32.totalorder %s37, %s40
    %p46 = scmp.eq.s32.totalorder %s13, 0
    %p47 = por %p45, %p46
    %p48 = scmp.ne.s32.totalorder %s37, %s40
    %p49 = scmp.eq.s32.totalorder %s18, 1
    %p50 = por %p48, %p49
    %p51 = scmp.ne.s32.totalorder %s40, %s41
    %p52 = scmp.eq.s32.totalorder %s18, 0
    %p53 = por %p51, %p52
    %p54 = scmp.ne.s32.totalorder %s40, %s41
    %p55 = scmp.eq.s32.totalorder %s19, 1
    %p56 = por %p54, %p55
    %p58 = scmp.ne.s32.totalorder %s41, %s57
    %p59 = scmp.eq.s32.totalorder %s19, 0
    %p60 = por %p58, %p59
    %s61 = ssub.s32 %s20, %s32
    %s62 = ssub.s32 %s21, %s28
    %s63 = sor.u32 %s61, %s62
    %p64 = scmp.eq.s32.totalorder %s63, 0
    %s66 = sadd.s32 %s65, 1
    %s67 = scalar_select %p64, %s65, %s66
    %p70 = pneg %p64
    %p71 = scmp.eq.s32.totalorder %s13, 1
    %p72 = por %p70, %p71
    %p73 = scmp.ne.s32.totalorder %s65, %s68
    %p74 = scmp.eq.s32.totalorder %s13, 0
    %p75 = por %p73, %p74
    %p76 = scmp.ne.s32.totalorder %s65, %s68
    %p77 = scmp.eq.s32.totalorder %s18, 1
    %p78 = por %p76, %p77
    %p79 = scmp.ne.s32.totalorder %s68, %s69
    %p80 = scmp.eq.s32.totalorder %s18, 0
    %p81 = por %p79, %p80
    %p82 = scmp.ne.s32.totalorder %s68, %s69
    %p83 = scmp.eq.s32.totalorder %s19, 1
    %p84 = por %p82, %p83
    %p86 = scmp.ne.s32.totalorder %s69, %s85
    %p87 = scmp.eq.s32.totalorder %s19, 0
    %p88 = por %p86, %p87
    %s90 = sadd.s32 %s89, 1
    %p93 = scmp.eq.s32.totalorder %s13, 1
    %p94 = scmp.ne.s32.totalorder %s89, %s91
    %p95 = scmp.eq.s32.totalorder %s13, 0
    %p96 = por %p94, %p95
    %p97 = scmp.ne.s32.totalorder %s89, %s91
    %p98 = scmp.eq.s32.totalorder %s18, 1
    %p99 = por %p97, %p98
    %p100 = scmp.ne.s32.totalorder %s91, %s92
    %p101 = scmp.eq.s32.totalorder %s18, 0
    %p102 = por %p100, %p101
    %p103 = scmp.ne.s32.totalorder %s91, %s92
    %p104 = scmp.eq.s32.totalorder %s19, 1
    %p105 = por %p103, %p104
    %p107 = scmp.ne.s32.totalorder %s92, %s106
    %p108 = scmp.eq.s32.totalorder %s19, 0
    %p109 = por %p107, %p108
    %s111 = sadd.s32 %s110, 1
    %p114 = scmp.eq.s32.totalorder %s13, 1
    %p115 = scmp.ne.s32.totalorder %s110, %s112
    %p116 = scmp.eq.s32.totalorder %s13, 0
    %p117 = por %p115, %p116
    %p118 = scmp.ne.s32.totalorder %s110, %s112
    %p119 = scmp.eq.s32.totalorder %s18, 1
    %p120 = por %p118, %p119
    %p121 = scmp.ne.s32.totalorder %s112, %s113
    %p122 = scmp.eq.s32.totalorder %s18, 0
    %p123 = por %p121, %p122
    %p124 = scmp.ne.s32.totalorder %s112, %s113
    %p125 = scmp.eq.s32.totalorder %s19, 1
    %p126 = por %p124, %p125
    %p128 = scmp.ne.s32.totalorder %s113, %s127
    %p129 = scmp.eq.s32.totalorder %s19, 0
    %p130 = por %p128, %p129
    %s132 = sadd.s32 %s131, 1
    %p135 = scmp.eq.s32.totalorder %s13, 1
    %p136 = scmp.ne.s32.totalorder %s131, %s133
    %p137 = scmp.eq.s32.totalorder %s13, 0
    %p138 = por %p136, %p137
    %p139 = scmp.ne.s32.totalorder %s131, %s133
    %p140 = scmp.eq.s32.totalorder %s18, 1
    %p141 = por %p139, %p140
    %p142 = scmp.ne.s32.totalorder %s133, %s134
    %p143 = scmp.eq.s32.totalorder %s18, 0
    %p144 = por %p142, %p143
    %p145 = scmp.ne.s32.totalorder %s133, %s134
    %p146 = scmp.eq.s32.totalorder %s19, 1
    %p147 = por %p145, %p146
    %p149 = scmp.ne.s32.totalorder %s134, %s148
    %p150 = scmp.eq.s32.totalorder %s19, 0
    %p151 = por %p149, %p150
    %s153 = sadd.s32 %s152, 1
    %p156 = scmp.eq.s32.totalorder %s13, 1
    %p157 = scmp.ne.s32.totalorder %s152, %s154
    %p158 = scmp.eq.s32.totalorder %s13, 0
    %p159 = por %p157, %p158
    %p160 = scmp.ne.s32.totalorder %s152, %s154
    %p161 = scmp.eq.s32.totalorder %s18, 1
    %p162 = por %p160, %p161
    %p163 = scmp.ne.s32.totalorder %s154, %s155
    %p164 = scmp.eq.s32.totalorder %s18, 0
    %p165 = por %p163, %p164
    %p166 = scmp.ne.s32.totalorder %s154, %s155
    %p167 = scmp.eq.s32.totalorder %s19, 1
    %p168 = por %p166, %p167
    %p170 = scmp.ne.s32.totalorder %s155, %s169
    %p171 = scmp.eq.s32.totalorder %s19, 0
    %p172 = por %p170, %p171
    %s174 = sadd.s32 %s173, 1
    %p177 = scmp.eq.s32.totalorder %s13, 1
    %p178 = scmp.ne.s32.totalorder %s173, %s175
    %p179 = scmp.eq.s32.totalorder %s13, 0
    %p180 = por %p178, %p179
    %p181 = scmp.ne.s32.totalorder %s173, %s175
    %p182 = scmp.eq.s32.totalorder %s18, 1
    %p183 = por %p181, %p182
    %p184 = scmp.ne.s32.totalorder %s175, %s176
    %p185 = scmp.eq.s32.totalorder %s18, 0
    %p186 = por %p184, %p185
    %p187 = scmp.ne.s32.totalorder %s175, %s176
    %p188 = scmp.eq.s32.totalorder %s19, 1
    %p189 = por %p187, %p188
    %p191 = scmp.ne.s32.totalorder %s176, %s190
    %p192 = scmp.eq.s32.totalorder %s19, 0
    %p193 = por %p191, %p192
    %s194 = ssub.s32 %s20, %s32
    %s195 = ssub.s32 %s21, %s28
    %s196 = sor.u32 %s194, %s195
    %p197 = scmp.eq.s32.totalorder %s196, 0
    %s199 = sadd.s32 %s198, 1
    %s200 = scalar_select %p197, %s198, %s199
    %p203 = pneg %p197
    %p204 = scmp.eq.s32.totalorder %s13, 1
    %p205 = por %p203, %p204
    %p206 = scmp.ne.s32.totalorder %s198, %s201
    %p207 = scmp.eq.s32.totalorder %s13, 0
    %p208 = por %p206, %p207
    %p209 = scmp.ne.s32.totalorder %s198, %s201
    %p210 = scmp.eq.s32.totalorder %s18, 1
    %p211 = por %p209, %p210
    %p212 = scmp.ne.s32.totalorder %s201, %s202
    %p213 = scmp.eq.s32.totalorder %s18, 0
    %p214 = por %p212, %p213
    %p215 = scmp.ne.s32.totalorder %s201, %s202
    %p216 = scmp.eq.s32.totalorder %s19, 1
    %p217 = por %p215, %p216
    %p219 = scmp.ne.s32.totalorder %s202, %s218
    %p220 = scmp.eq.s32.totalorder %s19, 0
    %p221 = por %p219, %p220
    %p222 = scmp.le.s32.totalorder 1, %s13
    %p223 = scmp.lt.s32.totalorder %s13, 3
    %p224 = pnand %p222, %p223
    %p225 = pneg %p224
    // Predicated region
    $region9: #{_down_layer_forward_impl.1} parent=5 // pred_check
      _
    $region10: #{_down_layer_forward_impl.1} parent=5 // pred_check_branch
      %227 = sbr.rel (%p224) target = $region12
    $region11: #{_down_layer_forward_impl.1} parent=5 // pred_region
      %s228 = ssub.s32 %s13, 1
      // Predicated region
      $region13: #{_down_layer_forward_impl.1} parent=11 // pred_check
        %p229 = pneg %p102
      $region14: #{_down_layer_forward_impl.1} parent=11 // pred_check_branch
        %231 = sbr.rel (%p229) target = $region16
      $region15: #{_down_layer_forward_impl.1} parent=11 // pred_region
        _
      $region16: #{_down_layer_forward_impl.1} parent=11 // pred_fallthru
        _
      // Predicated region
      $region17: #{_down_layer_forward_impl.1} parent=11 // pred_check
        %p232 = pneg %p123
      $region18: #{_down_layer_forward_impl.1} parent=11 // pred_check_branch
        %234 = sbr.rel (%p232) target = $region20
      $region19: #{_down_layer_forward_impl.1} parent=11 // pred_region
        _
      $region20: #{_down_layer_forward_impl.1} parent=11 // pred_fallthru
        _
      // Predicated region
      $region21: #{_down_layer_forward_impl.1} parent=11 // pred_check
        %p235 = pneg %p144
      $region22: #{_down_layer_forward_impl.1} parent=11 // pred_check_branch
        %237 = sbr.rel (%p235) target = $region24
      $region23: #{_down_layer_forward_impl.1} parent=11 // pred_region
        _
      $region24: #{_down_layer_forward_impl.1} parent=11 // pred_fallthru
        _
      // Predicated region
      $region25: #{_down_layer_forward_impl.1} parent=11 // pred_check
        %p238 = pneg %p165
      $region26: #{_down_layer_forward_impl.1} parent=11 // pred_check_branch
        %240 = sbr.rel (%p238) target = $region28
      $region27: #{_down_layer_forward_impl.1} parent=11 // pred_region
        _
      $region28: #{_down_layer_forward_impl.1} parent=11 // pred_fallthru
        _
      // Predicated region
      $region29: #{_down_layer_forward_impl.1} parent=11 // pred_check
        %p241 = pneg %p186
      $region30: #{_down_layer_forward_impl.1} parent=11 // pred_check_branch
        %243 = sbr.rel (%p241) target = $region32
      $region31: #{_down_layer_forward_impl.1} parent=11 // pred_region
        _
      $region32: #{_down_layer_forward_impl.1} parent=11 // pred_fallthru
        _
    $region12: #{_down_layer_forward_impl.1} parent=5 // pred_fallthru
      _
    %p244 = scmp.lt.s32.totalorder %s13, 2
    // Predicated region
    $region33: #{_down_layer_forward_impl.1} parent=5 // pred_check
      %p245 = pneg %p244
    $region34: #{_down_layer_forward_impl.1} parent=5 // pred_check_branch
      %247 = sbr.rel (%p245) target = $region36
    $region35: #{_down_layer_forward_impl.1} parent=5 // pred_region
      // Predicated region
      $region37: #{_down_layer_forward_impl.1} parent=35 // pred_check
        %p248 = pneg %p47
      $region38: #{_down_layer_forward_impl.1} parent=35 // pred_check_branch
        %250 = sbr.rel (%p248) target = $region40
      $region39: #{_down_layer_forward_impl.1} parent=35 // pred_region
        %p251 = scmp.lt.s32.totalorder %s20, 1
        %s252 = scalar_select %p251, %s20, 1
        %p253 = scmp.lt.s32.totalorder %s21, 0
        %s254 = scalar_select %p253, %s21, 0
        %s255 = smul.addr %s252, 64
        %s256 = sadd.s32 %s254, %s255
        %s257 = smul.addr %s256, 4
        %s258 = scalar_lea.vmem %s0, %s257
      $region40: #{_down_layer_forward_impl.1} parent=35 // pred_fallthru
        _
      // Predicated region
      $region41: #{_down_layer_forward_impl.1} parent=35 // pred_check
        %p259 = pneg %p75
      $region42: #{_down_layer_forward_impl.1} parent=35 // pred_check_branch
        %261 = sbr.rel (%p259) target = $region44
      $region43: #{_down_layer_forward_impl.1} parent=35 // pred_region
        %p262 = scmp.lt.s32.totalorder %s20, 1
        %s263 = scalar_select %p262, %s20, 1
        %p264 = scmp.lt.s32.totalorder %s21, 0
        %s265 = scalar_select %p264, %s21, 0
        %s266 = smul.addr %s263, 64
        %s267 = sadd.s32 %s265, %s266
        %s268 = smul.addr %s267, 4
        %s269 = scalar_lea.vmem %s1, %s268
      $region44: #{_down_layer_forward_impl.1} parent=35 // pred_fallthru
        _
    $region36: #{_down_layer_forward_impl.1} parent=5 // pred_fallthru
      _
    %p270 = scmp.le.s32.totalorder 1, %s13
    %p271 = scmp.lt.s32.totalorder %s13, 3
    %p272 = pnand %p270, %p271
    %p273 = pneg %p272
    // Predicated region
    $region45: #{_down_layer_forward_impl.1} parent=5 // pred_check
      _
    $region46: #{_down_layer_forward_impl.1} parent=5 // pred_check_branch
      %275 = sbr.rel (%p272) target = $region48
    $region47: #{_down_layer_forward_impl.1} parent=5 // pred_region
      %s276 = ssub.s32 %s13, 1
      %p277 = scmp.lt.s32.totalorder %s22, 1
      %s278 = scalar_select %p277, %s22, 1
      %p279 = scmp.lt.s32.totalorder %s23, 0
      %s280 = scalar_select %p279, %s23, 0
      %s281 = smul.addr %s278, 64
      %s282 = sadd.s32 %s280, %s281
      %s283 = smul.addr %s282, 4
      %s284 = scalar_lea.vmem %s0, %s283
      %p285 = pneg %p53
      %p286 = pneg %p50
      %p287 = scmp.lt.s32.totalorder %s22, 1
      %s288 = scalar_select %p287, %s22, 1
      %p289 = scmp.lt.s32.totalorder %s23, 0
      %s290 = scalar_select %p289, %s23, 0
      %s291 = smul.addr %s288, 64
      %s292 = sadd.s32 %s290, %s291
      %s293 = smul.addr %s292, 4
      %s294 = scalar_lea.vmem %s1, %s293
      %p295 = pneg %p81
      %p296 = pneg %p78
      %p297 = pneg %p102
      %p298 = pneg %p99
      %p299 = pneg %p123
      %p300 = pneg %p120
      %p301 = pneg %p144
      %p302 = pneg %p141
      %p303 = pneg %p165
      %p304 = pneg %p162
      %p305 = pneg %p186
      %p306 = pneg %p183
      %p307 = pneg %p214
      %p308 = pneg %p211
      %p309 = scmp.lt.s32.totalorder %s22, 1
      %s310 = scalar_select %p309, %s22, 1
      %p311 = scmp.lt.s32.totalorder %s23, 0
      %s312 = scalar_select %p311, %s23, 0
      %s313 = smul.addr %s310, 64
      %s314 = sadd.s32 %s312, %s313
      %s315 = smul.addr %s314, 4
      %s316 = scalar_lea.vmem %s7, %s315
      %p317 = scmp.lt.s32.totalorder %s22, 1
      %s318 = scalar_select %p317, %s22, 1
      %p319 = scmp.lt.s32.totalorder %s23, 0
      %s320 = scalar_select %p319, %s23, 0
      %s321 = smul.addr %s318, 64
      %s322 = sadd.s32 %s320, %s321
      %s323 = smul.addr %s322, 4
      %s324 = scalar_lea.vmem %s0, %s323
      %p325 = scmp.lt.s32.totalorder %s22, 1
      %s326 = scalar_select %p325, %s22, 1
      %p327 = scmp.lt.s32.totalorder %s23, 0
      %s328 = scalar_select %p327, %s23, 0
      %s329 = smul.addr %s326, 64
      %s330 = sadd.s32 %s328, %s329
      %s331 = smul.addr %s330, 4
      %s332 = scalar_lea.vmem %s1, %s331
      %p333 = scmp.lt.s32.totalorder %s22, 1
      %s334 = scalar_select %p333, %s22, 1
      %p335 = scmp.lt.s32.totalorder %s23, 0
      %s336 = scalar_select %p335, %s23, 0
      %s337 = smul.addr %s334, 64
      %s338 = sadd.s32 %s336, %s337
      %s339 = smul.addr %s338, 4
      %s340 = scalar_lea.vmem %s7, %s339
      %v342 = vld [vmem:[%s332] sm:$0xf]
      %v343 = vld [vmem:[%s332 + $0x4] sm:$0xf]
      %v344 = vld [vmem:[%s332 + $0x8] sm:$0xf]
      %v345 = vld [vmem:[%s332 + $0xc] sm:$0xf]
      %v346 = vld [vmem:[%s332 + $0x10] sm:$0xf]
      %v347 = vld [vmem:[%s332 + $0x14] sm:$0xf]
      %v348 = vld [vmem:[%s332 + $0x18] sm:$0xf]
      %v349 = vld [vmem:[%s332 + $0x1c] sm:$0xf]
      %v350 = vld [vmem:[%s332 + $0x20] sm:$0xf]
      %v351 = vld [vmem:[%s332 + $0x24] sm:$0xf]
      %v352 = vld [vmem:[%s332 + $0x28] sm:$0xf]
      %v353 = vld [vmem:[%s332 + $0x2c] sm:$0xf]
      %v354 = vld [vmem:[%s332 + $0x30] sm:$0xf]
      %v355 = vld [vmem:[%s332 + $0x34] sm:$0xf]
      %v356 = vld [vmem:[%s332 + $0x38] sm:$0xf]
      %v357 = vld [vmem:[%s332 + $0x3c] sm:$0xf]
      %v358 = vld [vmem:[%s332 + $0x40] sm:$0xf]
      %v359 = vld [vmem:[%s332 + $0x44] sm:$0xf]
      %v360 = vld [vmem:[%s332 + $0x48] sm:$0xf]
      %v361 = vld [vmem:[%s332 + $0x4c] sm:$0xf]
      %v362 = vld [vmem:[%s332 + $0x50] sm:$0xf]
      %v363 = vld [vmem:[%s332 + $0x54] sm:$0xf]
      %v364 = vld [vmem:[%s332 + $0x58] sm:$0xf]
      %v365 = vld [vmem:[%s332 + $0x5c] sm:$0xf]
      %v366 = vld [vmem:[%s332 + $0x60] sm:$0xf]
      %v367 = vld [vmem:[%s332 + $0x64] sm:$0xf]
      %v368 = vld [vmem:[%s332 + $0x68] sm:$0xf]
      %v369 = vld [vmem:[%s332 + $0x6c] sm:$0xf]
      %v370 = vld [vmem:[%s332 + $0x70] sm:$0xf]
      %v371 = vld [vmem:[%s332 + $0x74] sm:$0xf]
      %v372 = vld [vmem:[%s332 + $0x78] sm:$0xf]
      %v373 = vld [vmem:[%s332 + $0x7c] sm:$0xf]
      %v374 = vld [vmem:[%s332 + $0x80] sm:$0xf]
      %v375 = vld [vmem:[%s332 + $0x84] sm:$0xf]
      %v376 = vld [vmem:[%s332 + $0x88] sm:$0xf]
      %v377 = vld [vmem:[%s332 + $0x8c] sm:$0xf]
      %v378 = vld [vmem:[%s332 + $0x90] sm:$0xf]
      %v379 = vld [vmem:[%s332 + $0x94] sm:$0xf]
      %v380 = vld [vmem:[%s332 + $0x98] sm:$0xf]
      %v381 = vld [vmem:[%s332 + $0x9c] sm:$0xf]
      %v382 = vld [vmem:[%s332 + $0xa0] sm:$0xf]
      %v383 = vld [vmem:[%s332 + $0xa4] sm:$0xf]
      %v384 = vld [vmem:[%s332 + $0xa8] sm:$0xf]
      %v385 = vld [vmem:[%s332 + $0xac] sm:$0xf]
      %v386 = vld [vmem:[%s332 + $0xb0] sm:$0xf]
      %v387 = vld [vmem:[%s332 + $0xb4] sm:$0xf]
      %v388 = vld [vmem:[%s332 + $0xb8] sm:$0xf]
      %v389 = vld [vmem:[%s332 + $0xbc] sm:$0xf]
      %v390 = vld [vmem:[%s332 + $0xc0] sm:$0xf]
      %v391 = vld [vmem:[%s332 + $0xc4] sm:$0xf]
      %v392 = vld [vmem:[%s332 + $0xc8] sm:$0xf]
      %v393 = vld [vmem:[%s332 + $0xcc] sm:$0xf]
      %v394 = vld [vmem:[%s332 + $0xd0] sm:$0xf]
      %v395 = vld [vmem:[%s332 + $0xd4] sm:$0xf]
      %v396 = vld [vmem:[%s332 + $0xd8] sm:$0xf]
      %v397 = vld [vmem:[%s332 + $0xdc] sm:$0xf]
      %v398 = vld [vmem:[%s332 + $0xe0] sm:$0xf]
      %v399 = vld [vmem:[%s332 + $0xe4] sm:$0xf]
      %v400 = vld [vmem:[%s332 + $0xe8] sm:$0xf]
      %v401 = vld [vmem:[%s332 + $0xec] sm:$0xf]
      %v402 = vld [vmem:[%s332 + $0xf0] sm:$0xf]
      %v403 = vld [vmem:[%s332 + $0xf4] sm:$0xf]
      %v404 = vld [vmem:[%s332 + $0xf8] sm:$0xf]
      %v405 = vld [vmem:[%s332 + $0xfc] sm:$0xf]
      %v406 = vld [vmem:[%s3] sm:$0xf]
      %v407 = vld [vmem:[%s3 + $0x4] sm:$0xf]
      %v408 = vld [vmem:[%s3 + $0x8] sm:$0xf]
      %v409 = vld [vmem:[%s3 + $0xc] sm:$0xf]
      %v410 = vld [vmem:[%s3 + $0x10] sm:$0xf]
      %v411 = vld [vmem:[%s3 + $0x14] sm:$0xf]
      %v412 = vld [vmem:[%s3 + $0x18] sm:$0xf]
      %v413 = vld [vmem:[%s3 + $0x1c] sm:$0xf]
      %v414 = vld [vmem:[%s4] sm:$0x1]
      %v416 = vlaneseq
      %v417 = vshrl.u32 %v416, 7
      %v418 = vsub.s32 0, %v417
      %v419 = vrot.slane %v414, %v418
      %v485 = vunpack.c.l.b16 %v342
      %v486 = vunpack.c.l.b16 %v343
      %v487 = vunpack.c.l.b16 %v344
      %v488 = vunpack.c.l.b16 %v345
      %v489 = vunpack.c.l.b16 %v346
      %v490 = vunpack.c.l.b16 %v347
      %v491 = vunpack.c.l.b16 %v348
      %v492 = vunpack.c.l.b16 %v349
      %v493 = vunpack.c.l.b16 %v350
      %v494 = vunpack.c.l.b16 %v351
      %v495 = vunpack.c.l.b16 %v352
      %v496 = vunpack.c.l.b16 %v353
      %v497 = vunpack.c.l.b16 %v354
      %v498 = vunpack.c.l.b16 %v355
      %v499 = vunpack.c.l.b16 %v356
      %v500 = vunpack.c.l.b16 %v357
      %v501 = vunpack.c.l.b16 %v358
      %v502 = vunpack.c.l.b16 %v359
      %v503 = vunpack.c.l.b16 %v360
      %v504 = vunpack.c.l.b16 %v361
      %v505 = vunpack.c.l.b16 %v362
      %v506 = vunpack.c.l.b16 %v363
      %v507 = vunpack.c.l.b16 %v364
      %v508 = vunpack.c.l.b16 %v365
      %v509 = vunpack.c.l.b16 %v366
      %v510 = vunpack.c.l.b16 %v367
      %v511 = vunpack.c.l.b16 %v368
      %v512 = vunpack.c.l.b16 %v369
      %v513 = vunpack.c.l.b16 %v370
      %v514 = vunpack.c.l.b16 %v371
      %v515 = vunpack.c.l.b16 %v372
      %v516 = vunpack.c.l.b16 %v373
      %v517 = vunpack.c.l.b16 %v374
      %v518 = vunpack.c.l.b16 %v375
      %v519 = vunpack.c.l.b16 %v376
      %v520 = vunpack.c.l.b16 %v377
      %v521 = vunpack.c.l.b16 %v378
      %v522 = vunpack.c.l.b16 %v379
      %v523 = vunpack.c.l.b16 %v380
      %v524 = vunpack.c.l.b16 %v381
      %v525 = vunpack.c.l.b16 %v382
      %v526 = vunpack.c.l.b16 %v383
      %v527 = vunpack.c.l.b16 %v384
      %v528 = vunpack.c.l.b16 %v385
      %v529 = vunpack.c.l.b16 %v386
      %v530 = vunpack.c.l.b16 %v387
      %v531 = vunpack.c.l.b16 %v388
      %v532 = vunpack.c.l.b16 %v389
      %v533 = vunpack.c.l.b16 %v390
      %v534 = vunpack.c.l.b16 %v391
      %v535 = vunpack.c.l.b16 %v392
      %v536 = vunpack.c.l.b16 %v393
      %v537 = vunpack.c.l.b16 %v394
      %v538 = vunpack.c.l.b16 %v395
      %v539 = vunpack.c.l.b16 %v396
      %v540 = vunpack.c.l.b16 %v397
      %v541 = vunpack.c.l.b16 %v398
      %v542 = vunpack.c.l.b16 %v399
      %v543 = vunpack.c.l.b16 %v400
      %v544 = vunpack.c.l.b16 %v401
      %v545 = vunpack.c.l.b16 %v402
      %v546 = vunpack.c.l.b16 %v403
      %v547 = vunpack.c.l.b16 %v404
      %v548 = vunpack.c.l.b16 %v405
      %v549 = vpack.c.b16 %v486, %v485
      %v550 = vpack.c.b16 %v488, %v487
      %v551 = vpack.c.b16 %v490, %v489
      %v552 = vpack.c.b16 %v492, %v491
      %v553 = vpack.c.b16 %v494, %v493
      %v554 = vpack.c.b16 %v496, %v495
      %v555 = vpack.c.b16 %v498, %v497
      %v556 = vpack.c.b16 %v500, %v499
      %v557 = vpack.c.b16 %v502, %v501
      %v558 = vpack.c.b16 %v504, %v503
      %v559 = vpack.c.b16 %v506, %v505
      %v560 = vpack.c.b16 %v508, %v507
      %v561 = vpack.c.b16 %v510, %v509
      %v562 = vpack.c.b16 %v512, %v511
      %v563 = vpack.c.b16 %v514, %v513
      %v564 = vpack.c.b16 %v516, %v515
      %v565 = vpack.c.b16 %v518, %v517
      %v566 = vpack.c.b16 %v520, %v519
      %v567 = vpack.c.b16 %v522, %v521
      %v568 = vpack.c.b16 %v524, %v523
      %v569 = vpack.c.b16 %v526, %v525
      %v570 = vpack.c.b16 %v528, %v527
      %v571 = vpack.c.b16 %v530, %v529
      %v572 = vpack.c.b16 %v532, %v531
      %v573 = vpack.c.b16 %v534, %v533
      %v574 = vpack.c.b16 %v536, %v535
      %v575 = vpack.c.b16 %v538, %v537
      %v576 = vpack.c.b16 %v540, %v539
      %v577 = vpack.c.b16 %v542, %v541
      %v578 = vpack.c.b16 %v544, %v543
      %v579 = vpack.c.b16 %v546, %v545
      %v580 = vpack.c.b16 %v548, %v547
      %v589 = vunpack.c.l.b16 %v406
      %v590 = vunpack.c.l.b16 %v407
      %v591 = vunpack.c.l.b16 %v408
      %v592 = vunpack.c.l.b16 %v409
      %v593 = vunpack.c.l.b16 %v410
      %v594 = vunpack.c.l.b16 %v411
      %v595 = vunpack.c.l.b16 %v412
      %v596 = vunpack.c.l.b16 %v413
      %v597 = vpack.c.b16 %v590, %v589
      %v598 = vpack.c.b16 %v592, %v591
      %v599 = vpack.c.b16 %v594, %v593
      %v600 = vpack.c.b16 %v596, %v595
      %vm605 = vcmask 523264
      %v607 = vsel %vm605, %v549, 0
      %v610 = vsel %vm605, %v550, 0
      %v613 = vsel %vm605, %v551, 0
      %v616 = vsel %vm605, %v552, 0
      %v619 = vsel %vm605, %v553, 0
      %v622 = vsel %vm605, %v554, 0
      %v625 = vsel %vm605, %v555, 0
      %v628 = vsel %vm605, %v556, 0
      %v631 = vsel %vm605, %v557, 0
      %v634 = vsel %vm605, %v558, 0
      %v637 = vsel %vm605, %v559, 0
      %v640 = vsel %vm605, %v560, 0
      %v643 = vsel %vm605, %v561, 0
      %v646 = vsel %vm605, %v562, 0
      %v649 = vsel %vm605, %v563, 0
      %v652 = vsel %vm605, %v564, 0
      %v655 = vsel %vm605, %v565, 0
      %v658 = vsel %vm605, %v566, 0
      %v661 = vsel %vm605, %v567, 0
      %v664 = vsel %vm605, %v568, 0
      %v667 = vsel %vm605, %v569, 0
      %v670 = vsel %vm605, %v570, 0
      %v673 = vsel %vm605, %v571, 0
      %v676 = vsel %vm605, %v572, 0
      %v679 = vsel %vm605, %v573, 0
      %v682 = vsel %vm605, %v574, 0
      %v685 = vsel %vm605, %v575, 0
      %v688 = vsel %vm605, %v576, 0
      %v691 = vsel %vm605, %v577, 0
      %v694 = vsel %vm605, %v578, 0
      %v697 = vsel %vm605, %v579, 0
      %v700 = vsel %vm605, %v580, 0
      %702 = vmatprep.subr.bf16.mxu0 0
      %703 = vmatpush1.bf16.msra.mxu0 %v597
      %704 = vmatprep.subr.bf16.mxu0 0
      %705 = vmatpush1.bf16.msra.mxu0 %v598
      %706 = vmatprep.subr.bf16.mxu0 0
      %707 = vmatpush1.bf16.msra.mxu0 %v599
      %708 = vmatprep.subr.bf16.mxu0 0
      %709 = vmatpush1.bf16.msra.mxu0 %v600
      %710 = vmatprep.subr.bf16.mxu0 0
      %711 = vmatpush1.bf16.msra.mxu0 0
      %712 = vmatprep.subr.bf16.mxu0 0
      %713 = vmatpush1.bf16.msra.mxu0 0
      %714 = vmatprep.subr.bf16.mxu0 0
      %715 = vmatpush1.bf16.msra.mxu0 0
      %716 = vmatprep.subr.bf16.mxu0 0
      %717 = vmatpush1.bf16.msra.mxu0 0
      %718 = vmatprep.subr.bf16.mxu0 0
      %719 = vmatpush1.bf16.msra.mxu0 0
      %720 = vmatprep.subr.bf16.mxu0 0
      %721 = vmatpush1.bf16.msra.mxu0 0
      %722 = vmatprep.subr.bf16.mxu0 0
      %723 = vmatpush1.bf16.msra.mxu0 0
      %724 = vmatprep.subr.bf16.mxu0 0
      %725 = vmatpush1.bf16.msra.mxu0 0
      %726 = vmatprep.subr.bf16.mxu0 0
      %727 = vmatpush1.bf16.msra.mxu0 0
      %728 = vmatprep.subr.bf16.mxu0 0
      %729 = vmatpush1.bf16.msra.mxu0 0
      %730 = vmatprep.subr.bf16.mxu0 0
      %731 = vmatpush1.bf16.msra.mxu0 0
      %732 = vmatprep.subr.bf16.mxu0 0
      %733 = vmatpush1.bf16.msra.mxu0 0
      %734 = vmatprep.mubr.bf16.mxu0 0
      %735 = vmatmul.mubr.bf16.gmra.mrb[0].mxu0 %v607
      %v736 = vpop.f32.mrb[0].mxu0
      %v737 = vadd.f32 %v419, %v736
      %v738 = vpop.f32.mrb[0].mxu0
      %v739 = vpop.f32.mrb[0].mxu0
      %v740 = vadd.f32 %v419, %v739
      %v741 = vpop.f32.mrb[0].mxu0
      %742 = vmatprep.mubr.bf16.mxu0 0
      %743 = vmatmul.mubr.bf16.gmra.mrb[0].mxu0 %v610
      %v744 = vpop.f32.mrb[0].mxu0
      %v745 = vadd.f32 %v419, %v744
      %v746 = vpop.f32.mrb[0].mxu0
      %v747 = vpop.f32.mrb[0].mxu0
      %v748 = vadd.f32 %v419, %v747
      %v749 = vpop.f32.mrb[0].mxu0
      %750 = vmatprep.mubr.bf16.mxu0 0
      %751 = vmatmul.mubr.bf16.gmra.mrb[0].mxu0 %v613
      %v752 = vpop.f32.mrb[0].mxu0
      %v753 = vadd.f32 %v419, %v752
      %v754 = vpop.f32.mrb[0].mxu0
      %v755 = vpop.f32.mrb[0].mxu0
      %v756 = vadd.f32 %v419, %v755
      %v757 = vpop.f32.mrb[0].mxu0
      %758 = vmatprep.mubr.bf16.mxu0 0
      %759 = vmatmul.mubr.bf16.gmra.mrb[0].mxu0 %v616
      %v760 = vpop.f32.mrb[0].mxu0
      %v761 = vadd.f32 %v419, %v760
      %v762 = vpop.f32.mrb[0].mxu0
      %v763 = vpop.f32.mrb[0].mxu0
      %v764 = vadd.f32 %v419, %v763
      %v765 = vpop.f32.mrb[0].mxu0
      %766 = vmatprep.mubr.bf16.mxu0 0
      %767 = vmatmul.mubr.bf16.gmra.mrb[0].mxu0 %v619
      %v768 = vpop.f32.mrb[0].mxu0
      %v769 = vadd.f32 %v419, %v768
      %v770 = vpop.f32.mrb[0].mxu0
      %v771 = vpop.f32.mrb[0].mxu0
      %v772 = vadd.f32 %v419, %v771
      %v773 = vpop.f32.mrb[0].mxu0
      %774 = vmatprep.mubr.bf16.mxu0 0
      %775 = vmatmul.mubr.bf16.gmra.mrb[0].mxu0 %v622
      %v776 = vpop.f32.mrb[0].mxu0
      %v777 = vadd.f32 %v419, %v776
      %v778 = vpop.f32.mrb[0].mxu0
      %v779 = vpop.f32.mrb[0].mxu0
      %v780 = vadd.f32 %v419, %v779
      %v781 = vpop.f32.mrb[0].mxu0
      %782 = vmatprep.mubr.bf16.mxu0 0
      %783 = vmatmul.mubr.bf16.gmra.mrb[0].mxu0 %v625
      %v784 = vpop.f32.mrb[0].mxu0
      %v785 = vadd.f32 %v419, %v784
      %v786 = vpop.f32.mrb[0].mxu0
      %v787 = vpop.f32.mrb[0].mxu0
      %v788 = vadd.f32 %v419, %v787
      %v789 = vpop.f32.mrb[0].mxu0
      %790 = vmatprep.mubr.bf16.mxu0 0
      %791 = vmatmul.mubr.bf16.gmra.mrb[0].mxu0 %v628
      %v792 = vpop.f32.mrb[0].mxu0
      %v793 = vadd.f32 %v419, %v792
      %v794 = vpop.f32.mrb[0].mxu0
      %v795 = vpop.f32.mrb[0].mxu0
      %v796 = vadd.f32 %v419, %v795
      %v797 = vpop.f32.mrb[0].mxu0
      %798 = vmatprep.mubr.bf16.mxu0 0
      %799 = vmatmul.mubr.bf16.gmra.mrb[0].mxu0 %v631
      %v800 = vpop.f32.mrb[0].mxu0
      %v801 = vadd.f32 %v419, %v800
      %v802 = vpop.f32.mrb[0].mxu0
      %v803 = vpop.f32.mrb[0].mxu0
      %v804 = vadd.f32 %v419, %v803
      %v805 = vpop.f32.mrb[0].mxu0
      %806 = vmatprep.mubr.bf16.mxu0 0
      %807 = vmatmul.mubr.bf16.gmra.mrb[0].mxu0 %v634
      %v808 = vpop.f32.mrb[0].mxu0
      %v809 = vadd.f32 %v419, %v808
      %v810 = vpop.f32.mrb[0].mxu0
      %v811 = vpop.f32.mrb[0].mxu0
      %v812 = vadd.f32 %v419, %v811
      %v813 = vpop.f32.mrb[0].mxu0
      %814 = vmatprep.mubr.bf16.mxu0 0
      %815 = vmatmul.mubr.bf16.gmra.mrb[0].mxu0 %v637
      %v816 = vpop.f32.mrb[0].mxu0
      %v817 = vadd.f32 %v419, %v816
      %v818 = vpop.f32.mrb[0].mxu0
      %v819 = vpop.f32.mrb[0].mxu0
      %v820 = vadd.f32 %v419, %v819
      %v821 = vpop.f32.mrb[0].mxu0
      %822 = vmatprep.mubr.bf16.mxu0 0
      %823 = vmatmul.mubr.bf16.gmra.mrb[0].mxu0 %v640
      %v824 = vpop.f32.mrb[0].mxu0
      %v825 = vadd.f32 %v419, %v824
      %v826 = vpop.f32.mrb[0].mxu0
      %v827 = vpop.f32.mrb[0].mxu0
      %v828 = vadd.f32 %v419, %v827
      %v829 = vpop.f32.mrb[0].mxu0
      %830 = vmatprep.mubr.bf16.mxu0 0
      %831 = vmatmul.mubr.bf16.gmra.mrb[0].mxu0 %v643
      %v832 = vpop.f32.mrb[0].mxu0
      %v833 = vadd.f32 %v419, %v832
      %v834 = vpop.f32.mrb[0].mxu0
      %v835 = vpop.f32.mrb[0].mxu0
      %v836 = vadd.f32 %v419, %v835
      %v837 = vpop.f32.mrb[0].mxu0
      %838 = vmatprep.mubr.bf16.mxu0 0
      %839 = vmatmul.mubr.bf16.gmra.mrb[0].mxu0 %v646
      %v840 = vpop.f32.mrb[0].mxu0
      %v841 = vadd.f32 %v419, %v840
      %v842 = vpop.f32.mrb[0].mxu0
      %v843 = vpop.f32.mrb[0].mxu0
      %v844 = vadd.f32 %v419, %v843
      %v845 = vpop.f32.mrb[0].mxu0
      %846 = vmatprep.mubr.bf16.mxu0 0
      %847 = vmatmul.mubr.bf16.gmra.mrb[0].mxu0 %v649
      %v848 = vpop.f32.mrb[0].mxu0
      %v849 = vadd.f32 %v419, %v848
      %v850 = vpop.f32.mrb[0].mxu0
      %v851 = vpop.f32.mrb[0].mxu0
      %v852 = vadd.f32 %v419, %v851
      %v853 = vpop.f32.mrb[0].mxu0
      %854 = vmatprep.mubr.bf16.mxu0 0
      %855 = vmatmul.mubr.bf16.gmra.mrb[0].mxu0 %v652
      %v856 = vpop.f32.mrb[0].mxu0
      %v857 = vadd.f32 %v419, %v856
      %v858 = vpop.f32.mrb[0].mxu0
      %v859 = vpop.f32.mrb[0].mxu0
      %v860 = vadd.f32 %v419, %v859
      %v861 = vpop.f32.mrb[0].mxu0
      %862 = vmatprep.mubr.bf16.mxu0 0
      %863 = vmatmul.mubr.bf16.gmra.mrb[0].mxu0 %v655
      %v864 = vpop.f32.mrb[0].mxu0
      %v865 = vadd.f32 %v419, %v864
      %v866 = vpop.f32.mrb[0].mxu0
      %v867 = vpop.f32.mrb[0].mxu0
      %v868 = vadd.f32 %v419, %v867
      %v869 = vpop.f32.mrb[0].mxu0
      %870 = vmatprep.mubr.bf16.mxu0 0
      %871 = vmatmul.mubr.bf16.gmra.mrb[0].mxu0 %v658
      %v872 = vpop.f32.mrb[0].mxu0
      %v873 = vadd.f32 %v419, %v872
      %v874 = vpop.f32.mrb[0].mxu0
      %v875 = vpop.f32.mrb[0].mxu0
      %v876 = vadd.f32 %v419, %v875
      %v877 = vpop.f32.mrb[0].mxu0
      %878 = vmatprep.mubr.bf16.mxu0 0
      %879 = vmatmul.mubr.bf16.gmra.mrb[0].mxu0 %v661
      %v880 = vpop.f32.mrb[0].mxu0
      %v881 = vadd.f32 %v419, %v880
      %v882 = vpop.f32.mrb[0].mxu0
      %v883 = vpop.f32.mrb[0].mxu0
      %v884 = vadd.f32 %v419, %v883
      %v885 = vpop.f32.mrb[0].mxu0
      %886 = vmatprep.mubr.bf16.mxu0 0
      %887 = vmatmul.mubr.bf16.gmra.mrb[0].mxu0 %v664
      %v888 = vpop.f32.mrb[0].mxu0
      %v889 = vadd.f32 %v419, %v888
      %v890 = vpop.f32.mrb[0].mxu0
      %v891 = vpop.f32.mrb[0].mxu0
      %v892 = vadd.f32 %v419, %v891
      %v893 = vpop.f32.mrb[0].mxu0
      %894 = vmatprep.mubr.bf16.mxu0 0
      %895 = vmatmul.mubr.bf16.gmra.mrb[0].mxu0 %v667
      %v896 = vpop.f32.mrb[0].mxu0
      %v897 = vadd.f32 %v419, %v896
      %v898 = vpop.f32.mrb[0].mxu0
      %v899 = vpop.f32.mrb[0].mxu0
      %v900 = vadd.f32 %v419, %v899
      %v901 = vpop.f32.mrb[0].mxu0
      %902 = vmatprep.mubr.bf16.mxu0 0
      %903 = vmatmul.mubr.bf16.gmra.mrb[0].mxu0 %v670
      %v904 = vpop.f32.mrb[0].mxu0
      %v905 = vadd.f32 %v419, %v904
      %v906 = vpop.f32.mrb[0].mxu0
      %v907 = vpop.f32.mrb[0].mxu0
      %v908 = vadd.f32 %v419, %v907
      %v909 = vpop.f32.mrb[0].mxu0
      %910 = vmatprep.mubr.bf16.mxu0 0
      %911 = vmatmul.mubr.bf16.gmra.mrb[0].mxu0 %v673
      %v912 = vpop.f32.mrb[0].mxu0
      %v913 = vadd.f32 %v419, %v912
      %v914 = vpop.f32.mrb[0].mxu0
      %v915 = vpop.f32.mrb[0].mxu0
      %v916 = vadd.f32 %v419, %v915
      %v917 = vpop.f32.mrb[0].mxu0
      %918 = vmatprep.mubr.bf16.mxu0 0
      %919 = vmatmul.mubr.bf16.gmra.mrb[0].mxu0 %v676
      %v920 = vpop.f32.mrb[0].mxu0
      %v921 = vadd.f32 %v419, %v920
      %v922 = vpop.f32.mrb[0].mxu0
      %v923 = vpop.f32.mrb[0].mxu0
      %v924 = vadd.f32 %v419, %v923
      %v925 = vpop.f32.mrb[0].mxu0
      %926 = vmatprep.mubr.bf16.mxu0 0
      %927 = vmatmul.mubr.bf16.gmra.mrb[0].mxu0 %v679
      %v928 = vpop.f32.mrb[0].mxu0
      %v929 = vadd.f32 %v419, %v928
      %v930 = vpop.f32.mrb[0].mxu0
      %v931 = vpop.f32.mrb[0].mxu0
      %v932 = vadd.f32 %v419, %v931
      %v933 = vpop.f32.mrb[0].mxu0
      %934 = vmatprep.mubr.bf16.mxu0 0
      %935 = vmatmul.mubr.bf16.gmra.mrb[0].mxu0 %v682
      %v936 = vpop.f32.mrb[0].mxu0
      %v937 = vadd.f32 %v419, %v936
      %v938 = vpop.f32.mrb[0].mxu0
      %v939 = vpop.f32.mrb[0].mxu0
      %v940 = vadd.f32 %v419, %v939
      %v941 = vpop.f32.mrb[0].mxu0
      %942 = vmatprep.mubr.bf16.mxu0 0
      %943 = vmatmul.mubr.bf16.gmra.mrb[0].mxu0 %v685
      %v944 = vpop.f32.mrb[0].mxu0
      %v945 = vadd.f32 %v419, %v944
      %v946 = vpop.f32.mrb[0].mxu0
      %v947 = vpop.f32.mrb[0].mxu0
      %v948 = vadd.f32 %v419, %v947
      %v949 = vpop.f32.mrb[0].mxu0
      %950 = vmatprep.mubr.bf16.mxu0 0
      %951 = vmatmul.mubr.bf16.gmra.mrb[0].mxu0 %v688
      %v952 = vpop.f32.mrb[0].mxu0
      %v953 = vadd.f32 %v419, %v952
      %v954 = vpop.f32.mrb[0].mxu0
      %v955 = vpop.f32.mrb[0].mxu0
      %v956 = vadd.f32 %v419, %v955
      %v957 = vpop.f32.mrb[0].mxu0
      %958 = vmatprep.mubr.bf16.mxu0 0
      %959 = vmatmul.mubr.bf16.gmra.mrb[0].mxu0 %v691
      %v960 = vpop.f32.mrb[0].mxu0
      %v961 = vadd.f32 %v419, %v960
      %v962 = vpop.f32.mrb[0].mxu0
      %v963 = vpop.f32.mrb[0].mxu0
      %v964 = vadd.f32 %v419, %v963
      %v965 = vpop.f32.mrb[0].mxu0
      %966 = vmatprep.mubr.bf16.mxu0 0
      %967 = vmatmul.mubr.bf16.gmra.mrb[0].mxu0 %v694
      %v968 = vpop.f32.mrb[0].mxu0
      %v969 = vadd.f32 %v419, %v968
      %v970 = vpop.f32.mrb[0].mxu0
      %v971 = vpop.f32.mrb[0].mxu0
      %v972 = vadd.f32 %v419, %v971
      %v973 = vpop.f32.mrb[0].mxu0
      %974 = vmatprep.mubr.bf16.mxu0 0
      %975 = vmatmul.mubr.bf16.gmra.mrb[0].mxu0 %v697
      %v976 = vpop.f32.mrb[0].mxu0
      %v977 = vadd.f32 %v419, %v976
      %v978 = vpop.f32.mrb[0].mxu0
      %v979 = vpop.f32.mrb[0].mxu0
      %v980 = vadd.f32 %v419, %v979
      %v981 = vpop.f32.mrb[0].mxu0
      %982 = vmatprep.mubr.bf16.mxu0 0
      %983 = vmatmul.mubr.bf16.gmra.mrb[0].mxu0 %v700
      %v984 = vpop.f32.mrb[0].mxu0
      %v985 = vadd.f32 %v419, %v984
      %v986 = vpop.f32.mrb[0].mxu0
      %v987 = vpop.f32.mrb[0].mxu0
      %v988 = vadd.f32 %v419, %v987
      %v989 = vpop.f32.mrb[0].mxu0
      %990 = vdwg.mxu0
      %v991 = vmax.f32 %v737, 0.0
      %v992 = vmax.f32 %v740, 0.0
      %v993 = vmax.f32 %v745, 0.0
      %v994 = vmax.f32 %v748, 0.0
      %v995 = vmax.f32 %v753, 0.0
      %v996 = vmax.f32 %v756, 0.0
      %v997 = vmax.f32 %v761, 0.0
      %v998 = vmax.f32 %v764, 0.0
      %v999 = vmax.f32 %v769, 0.0
      %v1000 = vmax.f32 %v772, 0.0
      %v1001 = vmax.f32 %v777, 0.0
      %v1002 = vmax.f32 %v780, 0.0
      %v1003 = vmax.f32 %v785, 0.0
      %v1004 = vmax.f32 %v788, 0.0
      %v1005 = vmax.f32 %v793, 0.0
      %v1006 = vmax.f32 %v796, 0.0
      %v1007 = vmax.f32 %v801, 0.0
      %v1008 = vmax.f32 %v804, 0.0
      %v1009 = vmax.f32 %v809, 0.0
      %v1010 = vmax.f32 %v812, 0.0
      %v1011 = vmax.f32 %v817, 0.0
      %v1012 = vmax.f32 %v820, 0.0
      %v1013 = vmax.f32 %v825, 0.0
      %v1014 = vmax.f32 %v828, 0.0
      %v1015 = vmax.f32 %v833, 0.0
      %v1016 = vmax.f32 %v836, 0.0
      %v1017 = vmax.f32 %v841, 0.0
      %v1018 = vmax.f32 %v844, 0.0
      %v1019 = vmax.f32 %v849, 0.0
      %v1020 = vmax.f32 %v852, 0.0
      %v1021 = vmax.f32 %v857, 0.0
      %v1022 = vmax.f32 %v860, 0.0
      %v1023 = vmax.f32 %v865, 0.0
      %v1024 = vmax.f32 %v868, 0.0
      %v1025 = vmax.f32 %v873, 0.0
      %v1026 = vmax.f32 %v876, 0.0
      %v1027 = vmax.f32 %v881, 0.0
      %v1028 = vmax.f32 %v884, 0.0
      %v1029 = vmax.f32 %v889, 0.0
      %v1030 = vmax.f32 %v892, 0.0
      %v1031 = vmax.f32 %v897, 0.0
      %v1032 = vmax.f32 %v900, 0.0
      %v1033 = vmax.f32 %v905, 0.0
      %v1034 = vmax.f32 %v908, 0.0
      %v1035 = vmax.f32 %v913, 0.0
      %v1036 = vmax.f32 %v916, 0.0
      %v1037 = vmax.f32 %v921, 0.0
      %v1038 = vmax.f32 %v924, 0.0
      %v1039 = vmax.f32 %v929, 0.0
      %v1040 = vmax.f32 %v932, 0.0
      %v1041 = vmax.f32 %v937, 0.0
      %v1042 = vmax.f32 %v940, 0.0
      %v1043 = vmax.f32 %v945, 0.0
      %v1044 = vmax.f32 %v948, 0.0
      %v1045 = vmax.f32 %v953, 0.0
      %v1046 = vmax.f32 %v956, 0.0
      %v1047 = vmax.f32 %v961, 0.0
      %v1048 = vmax.f32 %v964, 0.0
      %v1049 = vmax.f32 %v969, 0.0
      %v1050 = vmax.f32 %v972, 0.0
      %v1051 = vmax.f32 %v977, 0.0
      %v1052 = vmax.f32 %v980, 0.0
      %v1053 = vmax.f32 %v985, 0.0
      %v1054 = vmax.f32 %v988, 0.0
      %p1055 = scmp.eq.s32.totalorder %s23, 0
      // Predicated region
      $region49: #{_down_layer_forward_impl.1} parent=47 // pred_check
        %p1056 = pneg %p1055
      $region50: #{_down_layer_forward_impl.1} parent=47 // pred_check_branch
        %1058 = sbr.rel (%p1056) target = $region52
      $region51: #{_down_layer_forward_impl.1} parent=47 // pred_region
        %1059 = vst [vmem:[#allocation2] sm:$0xf] 0
        %1060 = vst [vmem:[#allocation2 + $0x4] sm:$0xf] 0
        %1061 = vst [vmem:[#allocation2 + $0x8] sm:$0xf] 0
        %1062 = vst [vmem:[#allocation2 + $0xc] sm:$0xf] 0
        %1063 = vst [vmem:[#allocation2 + $0x10] sm:$0xf] 0
        %1064 = vst [vmem:[#allocation2 + $0x14] sm:$0xf] 0
        %1065 = vst [vmem:[#allocation2 + $0x18] sm:$0xf] 0
        %1066 = vst [vmem:[#allocation2 + $0x1c] sm:$0xf] 0
        %1067 = vst [vmem:[#allocation2 + $0x20] sm:$0xf] 0
        %1068 = vst [vmem:[#allocation2 + $0x24] sm:$0xf] 0
        %s1069 = scalar_lea.vmem [#allocation2], 360
        %1070 = vst [vmem:[%s1069] sm:$0xf] 0
        %1071 = vst [vmem:[%s1069 + $0x4] sm:$0xf] 0
        %1072 = vst [vmem:[%s1069 + $0x8] sm:$0xf] 0
        %1073 = vst [vmem:[%s1069 + $0xc] sm:$0xf] 0
        %1074 = vst [vmem:[%s1069 + $0x10] sm:$0xf] 0
        %1075 = vst [vmem:[%s1069 + $0x14] sm:$0xf] 0
        %1076 = vst [vmem:[%s1069 + $0x18] sm:$0xf] 0
        %1077 = vst [vmem:[%s1069 + $0x1c] sm:$0xf] 0
        %1078 = vst [vmem:[%s1069 + $0x20] sm:$0xf] 0
        %1079 = vst [vmem:[%s1069 + $0x24] sm:$0xf] 0
        %s1080 = scalar_lea.vmem [#allocation2], 40
        %1081 = vst [vmem:[%s1080] sm:$0xf] 0
        %1082 = vst [vmem:[%s1080 + $0x28] sm:$0xf] 0
        %1083 = vst [vmem:[%s1080 + $0x50] sm:$0xf] 0
        %1084 = vst [vmem:[%s1080 + $0x78] sm:$0xf] 0
        %1085 = vst [vmem:[%s1080 + $0xa0] sm:$0xf] 0
        %1086 = vst [vmem:[%s1080 + $0xc8] sm:$0xf] 0
        %1087 = vst [vmem:[%s1080 + $0xf0] sm:$0xf] 0
        %1088 = vst [vmem:[%s1080 + $0x118] sm:$0xf] 0
        %s1089 = scalar_lea.vmem [#allocation2], 76
        %1090 = vst [vmem:[%s1089] sm:$0xf] 0
        %1091 = vst [vmem:[%s1089 + $0x28] sm:$0xf] 0
        %1092 = vst [vmem:[%s1089 + $0x50] sm:$0xf] 0
        %1093 = vst [vmem:[%s1089 + $0x78] sm:$0xf] 0
        %1094 = vst [vmem:[%s1089 + $0xa0] sm:$0xf] 0
        %1095 = vst [vmem:[%s1089 + $0xc8] sm:$0xf] 0
        %1096 = vst [vmem:[%s1089 + $0xf0] sm:$0xf] 0
        %1097 = vst [vmem:[%s1089 + $0x118] sm:$0xf] 0
      $region52: #{_down_layer_forward_impl.1} parent=47 // pred_fallthru
        _
      %v1098 = vpack.c.bf16 %v991, %v991
      %v1099 = vpack.c.bf16 %v992, %v992
      %v1100 = vpack.c.bf16 %v993, %v993
      %v1101 = vpack.c.bf16 %v994, %v994
      %v1102 = vpack.c.bf16 %v995, %v995
      %v1103 = vpack.c.bf16 %v996, %v996
      %v1104 = vpack.c.bf16 %v997, %v997
      %v1105 = vpack.c.bf16 %v998, %v998
      %v1106 = vpack.c.bf16 %v999, %v999
      %v1107 = vpack.c.bf16 %v1000, %v1000
      %v1108 = vpack.c.bf16 %v1001, %v1001
      %v1109 = vpack.c.bf16 %v1002, %v1002
      %v1110 = vpack.c.bf16 %v1003, %v1003
      %v1111 = vpack.c.bf16 %v1004, %v1004
      %v1112 = vpack.c.bf16 %v1005, %v1005
      %v1113 = vpack.c.bf16 %v1006, %v1006
      %v1114 = vpack.c.bf16 %v1007, %v1007
      %v1115 = vpack.c.bf16 %v1008, %v1008
      %v1116 = vpack.c.bf16 %v1009, %v1009
      %v1117 = vpack.c.bf16 %v1010, %v1010
      %v1118 = vpack.c.bf16 %v1011, %v1011
      %v1119 = vpack.c.bf16 %v1012, %v1012
      %v1120 = vpack.c.bf16 %v1013, %v1013
      %v1121 = vpack.c.bf16 %v1014, %v1014
      %v1122 = vpack.c.bf16 %v1015, %v1015
      %v1123 = vpack.c.bf16 %v1016, %v1016
      %v1124 = vpack.c.bf16 %v1017, %v1017
      %v1125 = vpack.c.bf16 %v1018, %v1018
      %v1126 = vpack.c.bf16 %v1019, %v1019
      %v1127 = vpack.c.bf16 %v1020, %v1020
      %v1128 = vpack.c.bf16 %v1021, %v1021
      %v1129 = vpack.c.bf16 %v1022, %v1022
      %v1130 = vpack.c.bf16 %v1023, %v1023
      %v1131 = vpack.c.bf16 %v1024, %v1024
      %v1132 = vpack.c.bf16 %v1025, %v1025
      %v1133 = vpack.c.bf16 %v1026, %v1026
      %v1134 = vpack.c.bf16 %v1027, %v1027
      %v1135 = vpack.c.bf16 %v1028, %v1028
      %v1136 = vpack.c.bf16 %v1029, %v1029
      %v1137 = vpack.c.bf16 %v1030, %v1030
      %v1138 = vpack.c.bf16 %v1031, %v1031
      %v1139 = vpack.c.bf16 %v1032, %v1032
      %v1140 = vpack.c.bf16 %v1033, %v1033
      %v1141 = vpack.c.bf16 %v1034, %v1034
      %v1142 = vpack.c.bf16 %v1035, %v1035
      %v1143 = vpack.c.bf16 %v1036, %v1036
      %v1144 = vpack.c.bf16 %v1037, %v1037
      %v1145 = vpack.c.bf16 %v1038, %v1038
      %v1146 = vpack.c.bf16 %v1039, %v1039
      %v1147 = vpack.c.bf16 %v1040, %v1040
      %v1148 = vpack.c.bf16 %v1041, %v1041
      %v1149 = vpack.c.bf16 %v1042, %v1042
      %v1150 = vpack.c.bf16 %v1043, %v1043
      %v1151 = vpack.c.bf16 %v1044, %v1044
      %v1152 = vpack.c.bf16 %v1045, %v1045
      %v1153 = vpack.c.bf16 %v1046, %v1046
      %v1154 = vpack.c.bf16 %v1047, %v1047
      %v1155 = vpack.c.bf16 %v1048, %v1048
      %v1156 = vpack.c.bf16 %v1049, %v1049
      %v1157 = vpack.c.bf16 %v1050, %v1050
      %v1158 = vpack.c.bf16 %v1051, %v1051
      %v1159 = vpack.c.bf16 %v1052, %v1052
      %v1160 = vpack.c.bf16 %v1053, %v1053
      %v1161 = vpack.c.bf16 %v1054, %v1054
      %s1162 = scalar_lea.vmem [#allocation2], 44
      %1163 = vst [vmem:[%s1162] sm:$0xf] %v1098
      %1164 = vst [vmem:[%s1162 + $0x4] sm:$0xf] %v1099
      %1165 = vst [vmem:[%s1162 + $0x8] sm:$0xf] %v1100
      %1166 = vst [vmem:[%s1162 + $0xc] sm:$0xf] %v1101
      %1167 = vst [vmem:[%s1162 + $0x10] sm:$0xf] %v1102
      %1168 = vst [vmem:[%s1162 + $0x14] sm:$0xf] %v1103
      %1169 = vst [vmem:[%s1162 + $0x18] sm:$0xf] %v1104
      %1170 = vst [vmem:[%s1162 + $0x1c] sm:$0xf] %v1105
      %1171 = vst [vmem:[%s1162 + $0x28] sm:$0xf] %v1106
      %1172 = vst [vmem:[%s1162 + $0x2c] sm:$0xf] %v1107
      %1173 = vst [vmem:[%s1162 + $0x30] sm:$0xf] %v1108
      %1174 = vst [vmem:[%s1162 + $0x34] sm:$0xf] %v1109
      %1175 = vst [vmem:[%s1162 + $0x38] sm:$0xf] %v1110
      %1176 = vst [vmem:[%s1162 + $0x3c] sm:$0xf] %v1111
      %1177 = vst [vmem:[%s1162 + $0x40] sm:$0xf] %v1112
      %1178 = vst [vmem:[%s1162 + $0x44] sm:$0xf] %v1113
      %1179 = vst [vmem:[%s1162 + $0x50] sm:$0xf] %v1114
      %1180 = vst [vmem:[%s1162 + $0x54] sm:$0xf] %v1115
      %1181 = vst [vmem:[%s1162 + $0x58] sm:$0xf] %v1116
      %1182 = vst [vmem:[%s1162 + $0x5c] sm:$0xf] %v1117
      %1183 = vst [vmem:[%s1162 + $0x60] sm:$0xf] %v1118
      %1184 = vst [vmem:[%s1162 + $0x64] sm:$0xf] %v1119
      %1185 = vst [vmem:[%s1162 + $0x68] sm:$0xf] %v1120
      %1186 = vst [vmem:[%s1162 + $0x6c] sm:$0xf] %v1121
      %1187 = vst [vmem:[%s1162 + $0x78] sm:$0xf] %v1122
      %1188 = vst [vmem:[%s1162 + $0x7c] sm:$0xf] %v1123
      %1189 = vst [vmem:[%s1162 + $0x80] sm:$0xf] %v1124
      %1190 = vst [vmem:[%s1162 + $0x84] sm:$0xf] %v1125
      %1191 = vst [vmem:[%s1162 + $0x88] sm:$0xf] %v1126
      %1192 = vst [vmem:[%s1162 + $0x8c] sm:$0xf] %v1127
      %1193 = vst [vmem:[%s1162 + $0x90] sm:$0xf] %v1128
      %1194 = vst [vmem:[%s1162 + $0x94] sm:$0xf] %v1129
      %1195 = vst [vmem:[%s1162 + $0xa0] sm:$0xf] %v1130
      %1196 = vst [vmem:[%s1162 + $0xa4] sm:$0xf] %v1131
      %1197 = vst [vmem:[%s1162 + $0xa8] sm:$0xf] %v1132
      %1198 = vst [vmem:[%s1162 + $0xac] sm:$0xf] %v1133
      %1199 = vst [vmem:[%s1162 + $0xb0] sm:$0xf] %v1134
      %1200 = vst [vmem:[%s1162 + $0xb4] sm:$0xf] %v1135
      %1201 = vst [vmem:[%s1162 + $0xb8] sm:$0xf] %v1136
      %1202 = vst [vmem:[%s1162 + $0xbc] sm:$0xf] %v1137
      %1203 = vst [vmem:[%s1162 + $0xc8] sm:$0xf] %v1138
      %1204 = vst [vmem:[%s1162 + $0xcc] sm:$0xf] %v1139
      %1205 = vst [vmem:[%s1162 + $0xd0] sm:$0xf] %v1140
      %1206 = vst [vmem:[%s1162 + $0xd4] sm:$0xf] %v1141
      %1207 = vst [vmem:[%s1162 + $0xd8] sm:$0xf] %v1142
      %1208 = vst [vmem:[%s1162 + $0xdc] sm:$0xf] %v1143
      %1209 = vst [vmem:[%s1162 + $0xe0] sm:$0xf] %v1144
      %1210 = vst [vmem:[%s1162 + $0xe4] sm:$0xf] %v1145
      %1211 = vst [vmem:[%s1162 + $0xf0] sm:$0xf] %v1146
      %1212 = vst [vmem:[%s1162 + $0xf4] sm:$0xf] %v1147
      %1213 = vst [vmem:[%s1162 + $0xf8] sm:$0xf] %v1148
      %1214 = vst [vmem:[%s1162 + $0xfc] sm:$0xf] %v1149
      %1215 = vst [vmem:[%s1162 + $0x100] sm:$0xf] %v1150
      %1216 = vst [vmem:[%s1162 + $0x104] sm:$0xf] %v1151
      %1217 = vst [vmem:[%s1162 + $0x108] sm:$0xf] %v1152
      %1218 = vst [vmem:[%s1162 + $0x10c] sm:$0xf] %v1153
      %1219 = vst [vmem:[%s1162 + $0x118] sm:$0xf] %v1154
      %1220 = vst [vmem:[%s1162 + $0x11c] sm:$0xf] %v1155
      %1221 = vst [vmem:[%s1162 + $0x120] sm:$0xf] %v1156
      %1222 = vst [vmem:[%s1162 + $0x124] sm:$0xf] %v1157
      %1223 = vst [vmem:[%s1162 + $0x128] sm:$0xf] %v1158
      %1224 = vst [vmem:[%s1162 + $0x12c] sm:$0xf] %v1159
      %1225 = vst [vmem:[%s1162 + $0x130] sm:$0xf] %v1160
      %1226 = vst [vmem:[%s1162 + $0x134] sm:$0xf] %v1161
      %v1227 = vld [vmem:[%s324] sm:$0xf]
      %v1228 = vld [vmem:[%s324 + $0x4] sm:$0xf]
      %v1229 = vld [vmem:[%s324 + $0x8] sm:$0xf]
      %v1230 = vld [vmem:[%s324 + $0xc] sm:$0xf]
      %v1231 = vld [vmem:[%s324 + $0x10] sm:$0xf]
      %v1232 = vld [vmem:[%s324 + $0x14] sm:$0xf]
      %v1233 = vld [vmem:[%s324 + $0x18] sm:$0xf]
      %v1234 = vld [vmem:[%s324 + $0x1c] sm:$0xf]
      %v1235 = vld [vmem:[%s324 + $0x20] sm:$0xf]
      %v1236 = vld [vmem:[%s324 + $0x24] sm:$0xf]
      %v1237 = vld [vmem:[%s324 + $0x28] sm:$0xf]
      %v1238 = vld [vmem:[%s324 + $0x2c] sm:$0xf]
      %v1239 = vld [vmem:[%s324 + $0x30] sm:$0xf]
      %v1240 = vld [vmem:[%s324 + $0x34] sm:$0xf]
      %v1241 = vld [vmem:[%s324 + $0x38] sm:$0xf]
      %v1242 = vld [vmem:[%s324 + $0x3c] sm:$0xf]
      %v1243 = vld [vmem:[%s324 + $0x40] sm:$0xf]
      %v1244 = vld [vmem:[%s324 + $0x44] sm:$0xf]
      %v1245 = vld [vmem:[%s324 + $0x48] sm:$0xf]
      %v1246 = vld [vmem:[%s324 + $0x4c] sm:$0xf]
      %v1247 = vld [vmem:[%s324 + $0x50] sm:$0xf]
      %v1248 = vld [vmem:[%s324 + $0x54] sm:$0xf]
      %v1249 = vld [vmem:[%s324 + $0x58] sm:$0xf]
      %v1250 = vld [vmem:[%s324 + $0x5c] sm:$0xf]
      %v1251 = vld [vmem:[%s324 + $0x60] sm:$0xf]
      %v1252 = vld [vmem:[%s324 + $0x64] sm:$0xf]
      %v1253 = vld [vmem:[%s324 + $0x68] sm:$0xf]
      %v1254 = vld [vmem:[%s324 + $0x6c] sm:$0xf]
      %v1255 = vld [vmem:[%s324 + $0x70] sm:$0xf]
      %v1256 = vld [vmem:[%s324 + $0x74] sm:$0xf]
      %v1257 = vld [vmem:[%s324 + $0x78] sm:$0xf]
      %v1258 = vld [vmem:[%s324 + $0x7c] sm:$0xf]
      %v1259 = vld [vmem:[%s324 + $0x80] sm:$0xf]
      %v1260 = vld [vmem:[%s324 + $0x84] sm:$0xf]
      %v1261 = vld [vmem:[%s324 + $0x88] sm:$0xf]
      %v1262 = vld [vmem:[%s324 + $0x8c] sm:$0xf]
      %v1263 = vld [vmem:[%s324 + $0x90] sm:$0xf]
      %v1264 = vld [vmem:[%s324 + $0x94] sm:$0xf]
      %v1265 = vld [vmem:[%s324 + $0x98] sm:$0xf]
      %v1266 = vld [vmem:[%s324 + $0x9c] sm:$0xf]
      %v1267 = vld [vmem:[%s324 + $0xa0] sm:$0xf]
      %v1268 = vld [vmem:[%s324 + $0xa4] sm:$0xf]
      %v1269 = vld [vmem:[%s324 + $0xa8] sm:$0xf]
      %v1270 = vld [vmem:[%s324 + $0xac] sm:$0xf]
      %v1271 = vld [vmem:[%s324 + $0xb0] sm:$0xf]
      %v1272 = vld [vmem:[%s324 + $0xb4] sm:$0xf]
      %v1273 = vld [vmem:[%s324 + $0xb8] sm:$0xf]
      %v1274 = vld [vmem:[%s324 + $0xbc] sm:$0xf]
      %v1275 = vld [vmem:[%s324 + $0xc0] sm:$0xf]
      %v1276 = vld [vmem:[%s324 + $0xc4] sm:$0xf]
      %v1277 = vld [vmem:[%s324 + $0xc8] sm:$0xf]
      %v1278 = vld [vmem:[%s324 + $0xcc] sm:$0xf]
      %v1279 = vld [vmem:[%s324 + $0xd0] sm:$0xf]
      %v1280 = vld [vmem:[%s324 + $0xd4] sm:$0xf]
      %v1281 = vld [vmem:[%s324 + $0xd8] sm:$0xf]
      %v1282 = vld [vmem:[%s324 + $0xdc] sm:$0xf]
      %v1283 = vld [vmem:[%s324 + $0xe0] sm:$0xf]
      %v1284 = vld [vmem:[%s324 + $0xe4] sm:$0xf]
      %v1285 = vld [vmem:[%s324 + $0xe8] sm:$0xf]
      %v1286 = vld [vmem:[%s324 + $0xec] sm:$0xf]
      %v1287 = vld [vmem:[%s324 + $0xf0] sm:$0xf]
      %v1288 = vld [vmem:[%s324 + $0xf4] sm:$0xf]
      %v1289 = vld [vmem:[%s324 + $0xf8] sm:$0xf]
      %v1290 = vld [vmem:[%s324 + $0xfc] sm:$0xf]
      %v1291 = vld [vmem:[%s2] sm:$0x3]
      %v1292 = vld [vmem:[%s6] sm:$0x1]
      %v1294 = vlaneseq
      %v1295 = vshrl.u32 %v1294, 7
      %v1296 = vsub.s32 0, %v1295
      %v1297 = vrot.slane %v1292, %v1296
      %v1363 = vunpack.c.l.b16 %v1227
      %v1364 = vunpack.c.l.b16 %v1228
      %v1365 = vunpack.c.l.b16 %v1229
      %v1366 = vunpack.c.l.b16 %v1230
      %v1367 = vunpack.c.l.b16 %v1231
      %v1368 = vunpack.c.l.b16 %v1232
      %v1369 = vunpack.c.l.b16 %v1233
      %v1370 = vunpack.c.l.b16 %v1234
      %v1371 = vunpack.c.l.b16 %v1235
      %v1372 = vunpack.c.l.b16 %v1236
      %v1373 = vunpack.c.l.b16 %v1237
      %v1374 = vunpack.c.l.b16 %v1238
      %v1375 = vunpack.c.l.b16 %v1239
      %v1376 = vunpack.c.l.b16 %v1240
      %v1377 = vunpack.c.l.b16 %v1241
      %v1378 = vunpack.c.l.b16 %v1242
      %v1379 = vunpack.c.l.b16 %v1243
      %v1380 = vunpack.c.l.b16 %v1244
      %v1381 = vunpack.c.l.b16 %v1245
      %v1382 = vunpack.c.l.b16 %v1246
      %v1383 = vunpack.c.l.b16 %v1247
      %v1384 = vunpack.c.l.b16 %v1248
      %v1385 = vunpack.c.l.b16 %v1249
      %v1386 = vunpack.c.l.b16 %v1250
      %v1387 = vunpack.c.l.b16 %v1251
      %v1388 = vunpack.c.l.b16 %v1252
      %v1389 = vunpack.c.l.b16 %v1253
      %v1390 = vunpack.c.l.b16 %v1254
      %v1391 = vunpack.c.l.b16 %v1255
      %v1392 = vunpack.c.l.b16 %v1256
      %v1393 = vunpack.c.l.b16 %v1257
      %v1394 = vunpack.c.l.b16 %v1258
      %v1395 = vunpack.c.l.b16 %v1259
      %v1396 = vunpack.c.l.b16 %v1260
      %v1397 = vunpack.c.l.b16 %v1261
      %v1398 = vunpack.c.l.b16 %v1262
      %v1399 = vunpack.c.l.b16 %v1263
      %v1400 = vunpack.c.l.b16 %v1264
      %v1401 = vunpack.c.l.b16 %v1265
      %v1402 = vunpack.c.l.b16 %v1266
      %v1403 = vunpack.c.l.b16 %v1267
      %v1404 = vunpack.c.l.b16 %v1268
      %v1405 = vunpack.c.l.b16 %v1269
      %v1406 = vunpack.c.l.b16 %v1270
      %v1407 = vunpack.c.l.b16 %v1271
      %v1408 = vunpack.c.l.b16 %v1272
      %v1409 = vunpack.c.l.b16 %v1273
      %v1410 = vunpack.c.l.b16 %v1274
      %v1411 = vunpack.c.l.b16 %v1275
      %v1412 = vunpack.c.l.b16 %v1276
      %v1413 = vunpack.c.l.b16 %v1277
      %v1414 = vunpack.c.l.b16 %v1278
      %v1415 = vunpack.c.l.b16 %v1279
      %v1416 = vunpack.c.l.b16 %v1280
      %v1417 = vunpack.c.l.b16 %v1281
      %v1418 = vunpack.c.l.b16 %v1282
      %v1419 = vunpack.c.l.b16 %v1283
      %v1420 = vunpack.c.l.b16 %v1284
      %v1421 = vunpack.c.l.b16 %v1285
      %v1422 = vunpack.c.l.b16 %v1286
      %v1423 = vunpack.c.l.b16 %v1287
      %v1424 = vunpack.c.l.b16 %v1288
      %v1425 = vunpack.c.l.b16 %v1289
      %v1426 = vunpack.c.l.b16 %v1290
      %v1427 = vpack.c.b16 %v1364, %v1363
      %v1428 = vpack.c.b16 %v1366, %v1365
      %v1429 = vpack.c.b16 %v1368, %v1367
      %v1430 = vpack.c.b16 %v1370, %v1369
      %v1431 = vpack.c.b16 %v1372, %v1371
      %v1432 = vpack.c.b16 %v1374, %v1373
      %v1433 = vpack.c.b16 %v1376, %v1375
      %v1434 = vpack.c.b16 %v1378, %v1377
      %v1435 = vpack.c.b16 %v1380, %v1379
      %v1436 = vpack.c.b16 %v1382, %v1381
      %v1437 = vpack.c.b16 %v1384, %v1383
      %v1438 = vpack.c.b16 %v1386, %v1385
      %v1439 = vpack.c.b16 %v1388, %v1387
      %v1440 = vpack.c.b16 %v1390, %v1389
      %v1441 = vpack.c.b16 %v1392, %v1391
      %v1442 = vpack.c.b16 %v1394, %v1393
      %v1443 = vpack.c.b16 %v1396, %v1395
      %v1444 = vpack.c.b16 %v1398, %v1397
      %v1445 = vpack.c.b16 %v1400, %v1399
      %v1446 = vpack.c.b16 %v1402, %v1401
      %v1447 = vpack.c.b16 %v1404, %v1403
      %v1448 = vpack.c.b16 %v1406, %v1405
      %v1449 = vpack.c.b16 %v1408, %v1407
      %v1450 = vpack.c.b16 %v1410, %v1409
      %v1451 = vpack.c.b16 %v1412, %v1411
      %v1452 = vpack.c.b16 %v1414, %v1413
      %v1453 = vpack.c.b16 %v1416, %v1415
      %v1454 = vpack.c.b16 %v1418, %v1417
      %v1455 = vpack.c.b16 %v1420, %v1419
      %v1456 = vpack.c.b16 %v1422, %v1421
      %v1457 = vpack.c.b16 %v1424, %v1423
      %v1458 = vpack.c.b16 %v1426, %v1425
      %vm1459 = vcmask 31744
      %v1461 = vsel %vm1459, %v1427, 0
      %v1464 = vsel %vm1459, %v1428, 0
      %v1467 = vsel %vm1459, %v1429, 0
      %v1470 = vsel %vm1459, %v1430, 0
      %v1473 = vsel %vm1459, %v1431, 0
      %v1476 = vsel %vm1459, %v1432, 0
      %v1479 = vsel %vm1459, %v1433, 0
      %v1482 = vsel %vm1459, %v1434, 0
      %v1485 = vsel %vm1459, %v1435, 0
      %v1488 = vsel %vm1459, %v1436, 0
      %v1491 = vsel %vm1459, %v1437, 0
      %v1494 = vsel %vm1459, %v1438, 0
      %v1497 = vsel %vm1459, %v1439, 0
      %v1500 = vsel %vm1459, %v1440, 0
      %v1503 = vsel %vm1459, %v1441, 0
      %v1506 = vsel %vm1459, %v1442, 0
      %v1509 = vsel %vm1459, %v1443, 0
      %v1512 = vsel %vm1459, %v1444, 0
      %v1515 = vsel %vm1459, %v1445, 0
      %v1518 = vsel %vm1459, %v1446, 0
      %v1521 = vsel %vm1459, %v1447, 0
      %v1524 = vsel %vm1459, %v1448, 0
      %v1527 = vsel %vm1459, %v1449, 0
      %v1530 = vsel %vm1459, %v1450, 0
      %v1533 = vsel %vm1459, %v1451, 0
      %v1536 = vsel %vm1459, %v1452, 0
      %v1539 = vsel %vm1459, %v1453, 0
      %v1542 = vsel %vm1459, %v1454, 0
      %v1545 = vsel %vm1459, %v1455, 0
      %v1548 = vsel %vm1459, %v1456, 0
      %v1551 = vsel %vm1459, %v1457, 0
      %v1554 = vsel %vm1459, %v1458, 0
      %vm1556 = vcmask 1041408
      %v1558 = vsel %vm1556, %v1291, 0
      %1560 = vmatprep.subr.bf16.mxu0 0
      %1561 = vmatpush1.bf16.msra.mxu0 %v1558
      %1562 = vmatprep.subr.bf16.mxu0 0
      %1563 = vmatpush1.bf16.msra.mxu0 0
      %1564 = vmatprep.subr.bf16.mxu0 0
      %1565 = vmatpush1.bf16.msra.mxu0 0
      %1566 = vmatprep.subr.bf16.mxu0 0
      %1567 = vmatpush1.bf16.msra.mxu0 0
      %1568 = vmatprep.subr.bf16.mxu0 0
      %1569 = vmatpush1.bf16.msra.mxu0 0
      %1570 = vmatprep.subr.bf16.mxu0 0
      %1571 = vmatpush1.bf16.msra.mxu0 0
      %1572 = vmatprep.subr.bf16.mxu0 0
      %1573 = vmatpush1.bf16.msra.mxu0 0
      %1574 = vmatprep.subr.bf16.mxu0 0
      %1575 = vmatpush1.bf16.msra.mxu0 0
      %1576 = vmatprep.subr.bf16.mxu0 0
      %1577 = vmatpush1.bf16.msra.mxu0 0
      %1578 = vmatprep.subr.bf16.mxu0 0
      %1579 = vmatpush1.bf16.msra.mxu0 0
      %1580 = vmatprep.subr.bf16.mxu0 0
      %1581 = vmatpush1.bf16.msra.mxu0 0
      %1582 = vmatprep.subr.bf16.mxu0 0
      %1583 = vmatpush1.bf16.msra.mxu0 0
      %1584 = vmatprep.subr.bf16.mxu0 0
      %1585 = vmatpush1.bf16.msra.mxu0 0
      %1586 = vmatprep.subr.bf16.mxu0 0
      %1587 = vmatpush1.bf16.msra.mxu0 0
      %1588 = vmatprep.subr.bf16.mxu0 0
      %1589 = vmatpush1.bf16.msra.mxu0 0
      %1590 = vmatprep.subr.bf16.mxu0 0
      %1591 = vmatpush1.bf16.msra.mxu0 0
      %1592 = vmatprep.mubr.bf16.mxu0 0
      %1593 = vmatmul.mubr.bf16.gmra.mrb[0].mxu0 %v1461
      %v1594 = vpop.f32.mrb[0].mxu0
      %v1595 = vadd.f32 %v1297, %v1594
      %v1596 = vpop.f32.mrb[0].mxu0
      %v1597 = vpop.f32.mrb[0].mxu0
      %v1598 = vadd.f32 %v1297, %v1597
      %v1599 = vpop.f32.mrb[0].mxu0
      %1600 = vmatprep.mubr.bf16.mxu0 0
      %1601 = vmatmul.mubr.bf16.gmra.mrb[0].mxu0 %v1464
      %v1602 = vpop.f32.mrb[0].mxu0
      %v1603 = vadd.f32 %v1297, %v1602
      %v1604 = vpop.f32.mrb[0].mxu0
      %v1605 = vpop.f32.mrb[0].mxu0
      %v1606 = vadd.f32 %v1297, %v1605
      %v1607 = vpop.f32.mrb[0].mxu0
      %1608 = vmatprep.mubr.bf16.mxu0 0
      %1609 = vmatmul.mubr.bf16.gmra.mrb[0].mxu0 %v1467
      %v1610 = vpop.f32.mrb[0].mxu0
      %v1611 = vadd.f32 %v1297, %v1610
      %v1612 = vpop.f32.mrb[0].mxu0
      %v1613 = vpop.f32.mrb[0].mxu0
      %v1614 = vadd.f32 %v1297, %v1613
      %v1615 = vpop.f32.mrb[0].mxu0
      %1616 = vmatprep.mubr.bf16.mxu0 0
      %1617 = vmatmul.mubr.bf16.gmra.mrb[0].mxu0 %v1470
      %v1618 = vpop.f32.mrb[0].mxu0
      %v1619 = vadd.f32 %v1297, %v1618
      %v1620 = vpop.f32.mrb[0].mxu0
      %v1621 = vpop.f32.mrb[0].mxu0
      %v1622 = vadd.f32 %v1297, %v1621
      %v1623 = vpop.f32.mrb[0].mxu0
      %1624 = vmatprep.mubr.bf16.mxu0 0
      %1625 = vmatmul.mubr.bf16.gmra.mrb[0].mxu0 %v1473
      %v1626 = vpop.f32.mrb[0].mxu0
      %v1627 = vadd.f32 %v1297, %v1626
      %v1628 = vpop.f32.mrb[0].mxu0
      %v1629 = vpop.f32.mrb[0].mxu0
      %v1630 = vadd.f32 %v1297, %v1629
      %v1631 = vpop.f32.mrb[0].mxu0
      %1632 = vmatprep.mubr.bf16.mxu0 0
      %1633 = vmatmul.mubr.bf16.gmra.mrb[0].mxu0 %v1476
      %v1634 = vpop.f32.mrb[0].mxu0
      %v1635 = vadd.f32 %v1297, %v1634
      %v1636 = vpop.f32.mrb[0].mxu0
      %v1637 = vpop.f32.mrb[0].mxu0
      %v1638 = vadd.f32 %v1297, %v1637
      %v1639 = vpop.f32.mrb[0].mxu0
      %1640 = vmatprep.mubr.bf16.mxu0 0
      %1641 = vmatmul.mubr.bf16.gmra.mrb[0].mxu0 %v1479
      %v1642 = vpop.f32.mrb[0].mxu0
      %v1643 = vadd.f32 %v1297, %v1642
      %v1644 = vpop.f32.mrb[0].mxu0
      %v1645 = vpop.f32.mrb[0].mxu0
      %v1646 = vadd.f32 %v1297, %v1645
      %v1647 = vpop.f32.mrb[0].mxu0
      %1648 = vmatprep.mubr.bf16.mxu0 0
      %1649 = vmatmul.mubr.bf16.gmra.mrb[0].mxu0 %v1482
      %v1650 = vpop.f32.mrb[0].mxu0
      %v1651 = vadd.f32 %v1297, %v1650
      %v1652 = vpop.f32.mrb[0].mxu0
      %v1653 = vpop.f32.mrb[0].mxu0
      %v1654 = vadd.f32 %v1297, %v1653
      %v1655 = vpop.f32.mrb[0].mxu0
      %1656 = vmatprep.mubr.bf16.mxu0 0
      %1657 = vmatmul.mubr.bf16.gmra.mrb[0].mxu0 %v1485
      %v1658 = vpop.f32.mrb[0].mxu0
      %v1659 = vadd.f32 %v1297, %v1658
      %v1660 = vpop.f32.mrb[0].mxu0
      %v1661 = vpop.f32.mrb[0].mxu0
      %v1662 = vadd.f32 %v1297, %v1661
      %v1663 = vpop.f32.mrb[0].mxu0
      %1664 = vmatprep.mubr.bf16.mxu0 0
      %1665 = vmatmul.mubr.bf16.gmra.mrb[0].mxu0 %v1488
      %v1666 = vpop.f32.mrb[0].mxu0
      %v1667 = vadd.f32 %v1297, %v1666
      %v1668 = vpop.f32.mrb[0].mxu0
      %v1669 = vpop.f32.mrb[0].mxu0
      %v1670 = vadd.f32 %v1297, %v1669
      %v1671 = vpop.f32.mrb[0].mxu0
      %1672 = vmatprep.mubr.bf16.mxu0 0
      %1673 = vmatmul.mubr.bf16.gmra.mrb[0].mxu0 %v1491
      %v1674 = vpop.f32.mrb[0].mxu0
      %v1675 = vadd.f32 %v1297, %v1674
      %v1676 = vpop.f32.mrb[0].mxu0
      %v1677 = vpop.f32.mrb[0].mxu0
      %v1678 = vadd.f32 %v1297, %v1677
      %v1679 = vpop.f32.mrb[0].mxu0
      %1680 = vmatprep.mubr.bf16.mxu0 0
      %1681 = vmatmul.mubr.bf16.gmra.mrb[0].mxu0 %v1494
      %v1682 = vpop.f32.mrb[0].mxu0
      %v1683 = vadd.f32 %v1297, %v1682
      %v1684 = vpop.f32.mrb[0].mxu0
      %v1685 = vpop.f32.mrb[0].mxu0
      %v1686 = vadd.f32 %v1297, %v1685
      %v1687 = vpop.f32.mrb[0].mxu0
      %1688 = vmatprep.mubr.bf16.mxu0 0
      %1689 = vmatmul.mubr.bf16.gmra.mrb[0].mxu0 %v1497
      %v1690 = vpop.f32.mrb[0].mxu0
      %v1691 = vadd.f32 %v1297, %v1690
      %v1692 = vpop.f32.mrb[0].mxu0
      %v1693 = vpop.f32.mrb[0].mxu0
      %v1694 = vadd.f32 %v1297, %v1693
      %v1695 = vpop.f32.mrb[0].mxu0
      %1696 = vmatprep.mubr.bf16.mxu0 0
      %1697 = vmatmul.mubr.bf16.gmra.mrb[0].mxu0 %v1500
      %v1698 = vpop.f32.mrb[0].mxu0
      %v1699 = vadd.f32 %v1297, %v1698
      %v1700 = vpop.f32.mrb[0].mxu0
      %v1701 = vpop.f32.mrb[0].mxu0
      %v1702 = vadd.f32 %v1297, %v1701
      %v1703 = vpop.f32.mrb[0].mxu0
      %1704 = vmatprep.mubr.bf16.mxu0 0
      %1705 = vmatmul.mubr.bf16.gmra.mrb[0].mxu0 %v1503
      %v1706 = vpop.f32.mrb[0].mxu0
      %v1707 = vadd.f32 %v1297, %v1706
      %v1708 = vpop.f32.mrb[0].mxu0
      %v1709 = vpop.f32.mrb[0].mxu0
      %v1710 = vadd.f32 %v1297, %v1709
      %v1711 = vpop.f32.mrb[0].mxu0
      %1712 = vmatprep.mubr.bf16.mxu0 0
      %1713 = vmatmul.mubr.bf16.gmra.mrb[0].mxu0 %v1506
      %v1714 = vpop.f32.mrb[0].mxu0
      %v1715 = vadd.f32 %v1297, %v1714
      %v1716 = vpop.f32.mrb[0].mxu0
      %v1717 = vpop.f32.mrb[0].mxu0
      %v1718 = vadd.f32 %v1297, %v1717
      %v1719 = vpop.f32.mrb[0].mxu0
      %1720 = vmatprep.mubr.bf16.mxu0 0
      %1721 = vmatmul.mubr.bf16.gmra.mrb[0].mxu0 %v1509
      %v1722 = vpop.f32.mrb[0].mxu0
      %v1723 = vadd.f32 %v1297, %v1722
      %v1724 = vpop.f32.mrb[0].mxu0
      %v1725 = vpop.f32.mrb[0].mxu0
      %v1726 = vadd.f32 %v1297, %v1725
      %v1727 = vpop.f32.mrb[0].mxu0
      %1728 = vmatprep.mubr.bf16.mxu0 0
      %1729 = vmatmul.mubr.bf16.gmra.mrb[0].mxu0 %v1512
      %v1730 = vpop.f32.mrb[0].mxu0
      %v1731 = vadd.f32 %v1297, %v1730
      %v1732 = vpop.f32.mrb[0].mxu0
      %v1733 = vpop.f32.mrb[0].mxu0
      %v1734 = vadd.f32 %v1297, %v1733
      %v1735 = vpop.f32.mrb[0].mxu0
      %1736 = vmatprep.mubr.bf16.mxu0 0
      %1737 = vmatmul.mubr.bf16.gmra.mrb[0].mxu0 %v1515
      %v1738 = vpop.f32.mrb[0].mxu0
      %v1739 = vadd.f32 %v1297, %v1738
      %v1740 = vpop.f32.mrb[0].mxu0
      %v1741 = vpop.f32.mrb[0].mxu0
      %v1742 = vadd.f32 %v1297, %v1741
      %v1743 = vpop.f32.mrb[0].mxu0
      %1744 = vmatprep.mubr.bf16.mxu0 0
      %1745 = vmatmul.mubr.bf16.gmra.mrb[0].mxu0 %v1518
      %v1746 = vpop.f32.mrb[0].mxu0
      %v1747 = vadd.f32 %v1297, %v1746
      %v1748 = vpop.f32.mrb[0].mxu0
      %v1749 = vpop.f32.mrb[0].mxu0
      %v1750 = vadd.f32 %v1297, %v1749
      %v1751 = vpop.f32.mrb[0].mxu0
      %1752 = vmatprep.mubr.bf16.mxu0 0
      %1753 = vmatmul.mubr.bf16.gmra.mrb[0].mxu0 %v1521
      %v1754 = vpop.f32.mrb[0].mxu0
      %v1755 = vadd.f32 %v1297, %v1754
      %v1756 = vpop.f32.mrb[0].mxu0
      %v1757 = vpop.f32.mrb[0].mxu0
      %v1758 = vadd.f32 %v1297, %v1757
      %v1759 = vpop.f32.mrb[0].mxu0
      %1760 = vmatprep.mubr.bf16.mxu0 0
      %1761 = vmatmul.mubr.bf16.gmra.mrb[0].mxu0 %v1524
      %v1762 = vpop.f32.mrb[0].mxu0
      %v1763 = vadd.f32 %v1297, %v1762
      %v1764 = vpop.f32.mrb[0].mxu0
      %v1765 = vpop.f32.mrb[0].mxu0
      %v1766 = vadd.f32 %v1297, %v1765
      %v1767 = vpop.f32.mrb[0].mxu0
      %1768 = vmatprep.mubr.bf16.mxu0 0
      %1769 = vmatmul.mubr.bf16.gmra.mrb[0].mxu0 %v1527
      %v1770 = vpop.f32.mrb[0].mxu0
      %v1771 = vadd.f32 %v1297, %v1770
      %v1772 = vpop.f32.mrb[0].mxu0
      %v1773 = vpop.f32.mrb[0].mxu0
      %v1774 = vadd.f32 %v1297, %v1773
      %v1775 = vpop.f32.mrb[0].mxu0
      %1776 = vmatprep.mubr.bf16.mxu0 0
      %1777 = vmatmul.mubr.bf16.gmra.mrb[0].mxu0 %v1530
      %v1778 = vpop.f32.mrb[0].mxu0
      %v1779 = vadd.f32 %v1297, %v1778
      %v1780 = vpop.f32.mrb[0].mxu0
      %v1781 = vpop.f32.mrb[0].mxu0
      %v1782 = vadd.f32 %v1297, %v1781
      %v1783 = vpop.f32.mrb[0].mxu0
      %1784 = vmatprep.mubr.bf16.mxu0 0
      %1785 = vmatmul.mubr.bf16.gmra.mrb[0].mxu0 %v1533
      %v1786 = vpop.f32.mrb[0].mxu0
      %v1787 = vadd.f32 %v1297, %v1786
      %v1788 = vpop.f32.mrb[0].mxu0
      %v1789 = vpop.f32.mrb[0].mxu0
      %v1790 = vadd.f32 %v1297, %v1789
      %v1791 = vpop.f32.mrb[0].mxu0
      %1792 = vmatprep.mubr.bf16.mxu0 0
      %1793 = vmatmul.mubr.bf16.gmra.mrb[0].mxu0 %v1536
      %v1794 = vpop.f32.mrb[0].mxu0
      %v1795 = vadd.f32 %v1297, %v1794
      %v1796 = vpop.f32.mrb[0].mxu0
      %v1797 = vpop.f32.mrb[0].mxu0
      %v1798 = vadd.f32 %v1297, %v1797
      %v1799 = vpop.f32.mrb[0].mxu0
      %1800 = vmatprep.mubr.bf16.mxu0 0
      %1801 = vmatmul.mubr.bf16.gmra.mrb[0].mxu0 %v1539
      %v1802 = vpop.f32.mrb[0].mxu0
      %v1803 = vadd.f32 %v1297, %v1802
      %v1804 = vpop.f32.mrb[0].mxu0
      %v1805 = vpop.f32.mrb[0].mxu0
      %v1806 = vadd.f32 %v1297, %v1805
      %v1807 = vpop.f32.mrb[0].mxu0
      %1808 = vmatprep.mubr.bf16.mxu0 0
      %1809 = vmatmul.mubr.bf16.gmra.mrb[0].mxu0 %v1542
      %v1810 = vpop.f32.mrb[0].mxu0
      %v1811 = vadd.f32 %v1297, %v1810
      %v1812 = vpop.f32.mrb[0].mxu0
      %v1813 = vpop.f32.mrb[0].mxu0
      %v1814 = vadd.f32 %v1297, %v1813
      %v1815 = vpop.f32.mrb[0].mxu0
      %1816 = vmatprep.mubr.bf16.mxu0 0
      %1817 = vmatmul.mubr.bf16.gmra.mrb[0].mxu0 %v1545
      %v1818 = vpop.f32.mrb[0].mxu0
      %v1819 = vadd.f32 %v1297, %v1818
      %v1820 = vpop.f32.mrb[0].mxu0
      %v1821 = vpop.f32.mrb[0].mxu0
      %v1822 = vadd.f32 %v1297, %v1821
      %v1823 = vpop.f32.mrb[0].mxu0
      %1824 = vmatprep.mubr.bf16.mxu0 0
      %1825 = vmatmul.mubr.bf16.gmra.mrb[0].mxu0 %v1548
      %v1826 = vpop.f32.mrb[0].mxu0
      %v1827 = vadd.f32 %v1297, %v1826
      %v1828 = vpop.f32.mrb[0].mxu0
      %v1829 = vpop.f32.mrb[0].mxu0
      %v1830 = vadd.f32 %v1297, %v1829
      %v1831 = vpop.f32.mrb[0].mxu0
      %1832 = vmatprep.mubr.bf16.mxu0 0
      %1833 = vmatmul.mubr.bf16.gmra.mrb[0].mxu0 %v1551
      %v1834 = vpop.f32.mrb[0].mxu0
      %v1835 = vadd.f32 %v1297, %v1834
      %v1836 = vpop.f32.mrb[0].mxu0
      %v1837 = vpop.f32.mrb[0].mxu0
      %v1838 = vadd.f32 %v1297, %v1837
      %v1839 = vpop.f32.mrb[0].mxu0
      %1840 = vmatprep.mubr.bf16.mxu0 0
      %1841 = vmatmul.mubr.bf16.gmra.mrb[0].mxu0 %v1554
      %v1842 = vpop.f32.mrb[0].mxu0
      %v1843 = vadd.f32 %v1297, %v1842
      %v1844 = vpop.f32.mrb[0].mxu0
      %v1845 = vpop.f32.mrb[0].mxu0
      %v1846 = vadd.f32 %v1297, %v1845
      %v1847 = vpop.f32.mrb[0].mxu0
      %1848 = vdwg.mxu0
      %v1849 = vld [vmem:[#allocation2] sm:$0xf]
      %v1850 = vld [vmem:[#allocation2 + $0x4] sm:$0xf]
      %v1851 = vld [vmem:[#allocation2 + $0x8] sm:$0xf]
      %v1852 = vld [vmem:[#allocation2 + $0xc] sm:$0xf]
      %v1853 = vld [vmem:[#allocation2 + $0x10] sm:$0xf]
      %v1854 = vld [vmem:[#allocation2 + $0x14] sm:$0xf]
      %v1855 = vld [vmem:[#allocation2 + $0x18] sm:$0xf]
      %v1856 = vld [vmem:[#allocation2 + $0x1c] sm:$0xf]
      %v1857 = vld [vmem:[#allocation2 + $0x28] sm:$0xf]
      %v1858 = vld [vmem:[#allocation2 + $0x2c] sm:$0xf]
      %v1859 = vld [vmem:[#allocation2 + $0x30] sm:$0xf]
      %v1860 = vld [vmem:[#allocation2 + $0x34] sm:$0xf]
      %v1861 = vld [vmem:[#allocation2 + $0x38] sm:$0xf]
      %v1862 = vld [vmem:[#allocation2 + $0x3c] sm:$0xf]
      %v1863 = vld [vmem:[#allocation2 + $0x40] sm:$0xf]
      %v1864 = vld [vmem:[#allocation2 + $0x44] sm:$0xf]
      %v1865 = vld [vmem:[#allocation2 + $0x50] sm:$0xf]
      %v1866 = vld [vmem:[#allocation2 + $0x54] sm:$0xf]
      %v1867 = vld [vmem:[#allocation2 + $0x58] sm:$0xf]
      %v1868 = vld [vmem:[#allocation2 + $0x5c] sm:$0xf]
      %v1869 = vld [vmem:[#allocation2 + $0x60] sm:$0xf]
      %v1870 = vld [vmem:[#allocation2 + $0x64] sm:$0xf]
      %v1871 = vld [vmem:[#allocation2 + $0x68] sm:$0xf]
      %v1872 = vld [vmem:[#allocation2 + $0x6c] sm:$0xf]
      %v1873 = vld [vmem:[#allocation2 + $0x78] sm:$0xf]
      %v1874 = vld [vmem:[#allocation2 + $0x7c] sm:$0xf]
      %v1875 = vld [vmem:[#allocation2 + $0x80] sm:$0xf]
      %v1876 = vld [vmem:[#allocation2 + $0x84] sm:$0xf]
      %v1877 = vld [vmem:[#allocation2 + $0x88] sm:$0xf]
      %v1878 = vld [vmem:[#allocation2 + $0x8c] sm:$0xf]
      %v1879 = vld [vmem:[#allocation2 + $0x90] sm:$0xf]
      %v1880 = vld [vmem:[#allocation2 + $0x94] sm:$0xf]
      %v1881 = vld [vmem:[#allocation2 + $0xa0] sm:$0xf]
      %v1882 = vld [vmem:[#allocation2 + $0xa4] sm:$0xf]
      %v1883 = vld [vmem:[#allocation2 + $0xa8] sm:$0xf]
      %v1884 = vld [vmem:[#allocation2 + $0xac] sm:$0xf]
      %v1885 = vld [vmem:[#allocation2 + $0xb0] sm:$0xf]
      %v1886 = vld [vmem:[#allocation2 + $0xb4] sm:$0xf]
      %v1887 = vld [vmem:[#allocation2 + $0xb8] sm:$0xf]
      %v1888 = vld [vmem:[#allocation2 + $0xbc] sm:$0xf]
      %v1889 = vld [vmem:[#allocation2 + $0xc8] sm:$0xf]
      %v1890 = vld [vmem:[#allocation2 + $0xcc] sm:$0xf]
      %v1891 = vld [vmem:[#allocation2 + $0xd0] sm:$0xf]
      %v1892 = vld [vmem:[#allocation2 + $0xd4] sm:$0xf]
      %v1893 = vld [vmem:[#allocation2 + $0xd8] sm:$0xf]
      %v1894 = vld [vmem:[#allocation2 + $0xdc] sm:$0xf]
      %v1895 = vld [vmem:[#allocation2 + $0xe0] sm:$0xf]
      %v1896 = vld [vmem:[#allocation2 + $0xe4] sm:$0xf]
      %v1897 = vld [vmem:[#allocation2 + $0xf0] sm:$0xf]
      %v1898 = vld [vmem:[#allocation2 + $0xf4] sm:$0xf]
      %v1899 = vld [vmem:[#allocation2 + $0xf8] sm:$0xf]
      %v1900 = vld [vmem:[#allocation2 + $0xfc] sm:$0xf]
      %v1901 = vld [vmem:[#allocation2 + $0x100] sm:$0xf]
      %v1902 = vld [vmem:[#allocation2 + $0x104] sm:$0xf]
      %v1903 = vld [vmem:[#allocation2 + $0x108] sm:$0xf]
      %v1904 = vld [vmem:[#allocation2 + $0x10c] sm:$0xf]
      %v1905 = vld [vmem:[#allocation2 + $0x118] sm:$0xf]
      %v1906 = vld [vmem:[#allocation2 + $0x11c] sm:$0xf]
      %v1907 = vld [vmem:[#allocation2 + $0x120] sm:$0xf]
      %v1908 = vld [vmem:[#allocation2 + $0x124] sm:$0xf]
      %v1909 = vld [vmem:[#allocation2 + $0x128] sm:$0xf]
      %v1910 = vld [vmem:[#allocation2 + $0x12c] sm:$0xf]
      %v1911 = vld [vmem:[#allocation2 + $0x130] sm:$0xf]
      %v1912 = vld [vmem:[#allocation2 + $0x134] sm:$0xf]
      %s1913 = scalar_lea.vmem [#allocation2], 4
      %v1914 = vld [vmem:[%s1913] sm:$0xf]
      %v1915 = vld [vmem:[%s1913 + $0x4] sm:$0xf]
      %v1916 = vld [vmem:[%s1913 + $0x8] sm:$0xf]
      %v1917 = vld [vmem:[%s1913 + $0xc] sm:$0xf]
      %v1918 = vld [vmem:[%s1913 + $0x10] sm:$0xf]
      %v1919 = vld [vmem:[%s1913 + $0x14] sm:$0xf]
      %v1920 = vld [vmem:[%s1913 + $0x18] sm:$0xf]
      %v1921 = vld [vmem:[%s1913 + $0x1c] sm:$0xf]
      %v1922 = vld [vmem:[%s1913 + $0x28] sm:$0xf]
      %v1923 = vld [vmem:[%s1913 + $0x2c] sm:$0xf]
      %v1924 = vld [vmem:[%s1913 + $0x30] sm:$0xf]
      %v1925 = vld [vmem:[%s1913 + $0x34] sm:$0xf]
      %v1926 = vld [vmem:[%s1913 + $0x38] sm:$0xf]
      %v1927 = vld [vmem:[%s1913 + $0x3c] sm:$0xf]
      %v1928 = vld [vmem:[%s1913 + $0x40] sm:$0xf]
      %v1929 = vld [vmem:[%s1913 + $0x44] sm:$0xf]
      %v1930 = vld [vmem:[%s1913 + $0x50] sm:$0xf]
      %v1931 = vld [vmem:[%s1913 + $0x54] sm:$0xf]
      %v1932 = vld [vmem:[%s1913 + $0x58] sm:$0xf]
      %v1933 = vld [vmem:[%s1913 + $0x5c] sm:$0xf]
      %v1934 = vld [vmem:[%s1913 + $0x60] sm:$0xf]
      %v1935 = vld [vmem:[%s1913 + $0x64] sm:$0xf]
      %v1936 = vld [vmem:[%s1913 + $0x68] sm:$0xf]
      %v1937 = vld [vmem:[%s1913 + $0x6c] sm:$0xf]
      %v1938 = vld [vmem:[%s1913 + $0x78] sm:$0xf]
      %v1939 = vld [vmem:[%s1913 + $0x7c] sm:$0xf]
      %v1940 = vld [vmem:[%s1913 + $0x80] sm:$0xf]
      %v1941 = vld [vmem:[%s1913 + $0x84] sm:$0xf]
      %v1942 = vld [vmem:[%s1913 + $0x88] sm:$0xf]
      %v1943 = vld [vmem:[%s1913 + $0x8c] sm:$0xf]
      %v1944 = vld [vmem:[%s1913 + $0x90] sm:$0xf]
      %v1945 = vld [vmem:[%s1913 + $0x94] sm:$0xf]
      %v1946 = vld [vmem:[%s1913 + $0xa0] sm:$0xf]
      %v1947 = vld [vmem:[%s1913 + $0xa4] sm:$0xf]
      %v1948 = vld [vmem:[%s1913 + $0xa8] sm:$0xf]
      %v1949 = vld [vmem:[%s1913 + $0xac] sm:$0xf]
      %v1950 = vld [vmem:[%s1913 + $0xb0] sm:$0xf]
      %v1951 = vld [vmem:[%s1913 + $0xb4] sm:$0xf]
      %v1952 = vld [vmem:[%s1913 + $0xb8] sm:$0xf]
      %v1953 = vld [vmem:[%s1913 + $0xbc] sm:$0xf]
      %v1954 = vld [vmem:[%s1913 + $0xc8] sm:$0xf]
      %v1955 = vld [vmem:[%s1913 + $0xcc] sm:$0xf]
      %v1956 = vld [vmem:[%s1913 + $0xd0] sm:$0xf]
      %v1957 = vld [vmem:[%s1913 + $0xd4] sm:$0xf]
      %v1958 = vld [vmem:[%s1913 + $0xd8] sm:$0xf]
      %v1959 = vld [vmem:[%s1913 + $0xdc] sm:$0xf]
      %v1960 = vld [vmem:[%s1913 + $0xe0] sm:$0xf]
      %v1961 = vld [vmem:[%s1913 + $0xe4] sm:$0xf]
      %v1962 = vld [vmem:[%s1913 + $0xf0] sm:$0xf]
      %v1963 = vld [vmem:[%s1913 + $0xf4] sm:$0xf]
      %v1964 = vld [vmem:[%s1913 + $0xf8] sm:$0xf]
      %v1965 = vld [vmem:[%s1913 + $0xfc] sm:$0xf]
      %v1966 = vld [vmem:[%s1913 + $0x100] sm:$0xf]
      %v1967 = vld [vmem:[%s1913 + $0x104] sm:$0xf]
      %v1968 = vld [vmem:[%s1913 + $0x108] sm:$0xf]
      %v1969 = vld [vmem:[%s1913 + $0x10c] sm:$0xf]
      %v1970 = vld [vmem:[%s1913 + $0x118] sm:$0xf]
      %v1971 = vld [vmem:[%s1913 + $0x11c] sm:$0xf]
      %v1972 = vld [vmem:[%s1913 + $0x120] sm:$0xf]
      %v1973 = vld [vmem:[%s1913 + $0x124] sm:$0xf]
      %v1974 = vld [vmem:[%s1913 + $0x128] sm:$0xf]
      %v1975 = vld [vmem:[%s1913 + $0x12c] sm:$0xf]
      %v1976 = vld [vmem:[%s1913 + $0x130] sm:$0xf]
      %v1977 = vld [vmem:[%s1913 + $0x134] sm:$0xf]
      %s1978 = scalar_lea.vmem [#allocation2], 8
      %v1979 = vld [vmem:[%s1978] sm:$0xf]
      %v1980 = vld [vmem:[%s1978 + $0x4] sm:$0xf]
      %v1981 = vld [vmem:[%s1978 + $0x8] sm:$0xf]
      %v1982 = vld [vmem:[%s1978 + $0xc] sm:$0xf]
      %v1983 = vld [vmem:[%s1978 + $0x10] sm:$0xf]
      %v1984 = vld [vmem:[%s1978 + $0x14] sm:$0xf]
      %v1985 = vld [vmem:[%s1978 + $0x18] sm:$0xf]
      %v1986 = vld [vmem:[%s1978 + $0x1c] sm:$0xf]
      %v1987 = vld [vmem:[%s1978 + $0x28] sm:$0xf]
      %v1988 = vld [vmem:[%s1978 + $0x2c] sm:$0xf]
      %v1989 = vld [vmem:[%s1978 + $0x30] sm:$0xf]
      %v1990 = vld [vmem:[%s1978 + $0x34] sm:$0xf]
      %v1991 = vld [vmem:[%s1978 + $0x38] sm:$0xf]
      %v1992 = vld [vmem:[%s1978 + $0x3c] sm:$0xf]
      %v1993 = vld [vmem:[%s1978 + $0x40] sm:$0xf]
      %v1994 = vld [vmem:[%s1978 + $0x44] sm:$0xf]
      %v1995 = vld [vmem:[%s1978 + $0x50] sm:$0xf]
      %v1996 = vld [vmem:[%s1978 + $0x54] sm:$0xf]
      %v1997 = vld [vmem:[%s1978 + $0x58] sm:$0xf]
      %v1998 = vld [vmem:[%s1978 + $0x5c] sm:$0xf]
      %v1999 = vld [vmem:[%s1978 + $0x60] sm:$0xf]
      %v2000 = vld [vmem:[%s1978 + $0x64] sm:$0xf]
      %v2001 = vld [vmem:[%s1978 + $0x68] sm:$0xf]
      %v2002 = vld [vmem:[%s1978 + $0x6c] sm:$0xf]
      %v2003 = vld [vmem:[%s1978 + $0x78] sm:$0xf]
      %v2004 = vld [vmem:[%s1978 + $0x7c] sm:$0xf]
      %v2005 = vld [vmem:[%s1978 + $0x80] sm:$0xf]
      %v2006 = vld [vmem:[%s1978 + $0x84] sm:$0xf]
      %v2007 = vld [vmem:[%s1978 + $0x88] sm:$0xf]
      %v2008 = vld [vmem:[%s1978 + $0x8c] sm:$0xf]
      %v2009 = vld [vmem:[%s1978 + $0x90] sm:$0xf]
      %v2010 = vld [vmem:[%s1978 + $0x94] sm:$0xf]
      %v2011 = vld [vmem:[%s1978 + $0xa0] sm:$0xf]
      %v2012 = vld [vmem:[%s1978 + $0xa4] sm:$0xf]
      %v2013 = vld [vmem:[%s1978 + $0xa8] sm:$0xf]
      %v2014 = vld [vmem:[%s1978 + $0xac] sm:$0xf]
      %v2015 = vld [vmem:[%s1978 + $0xb0] sm:$0xf]
      %v2016 = vld [vmem:[%s1978 + $0xb4] sm:$0xf]
      %v2017 = vld [vmem:[%s1978 + $0xb8] sm:$0xf]
      %v2018 = vld [vmem:[%s1978 + $0xbc] sm:$0xf]
      %v2019 = vld [vmem:[%s1978 + $0xc8] sm:$0xf]
      %v2020 = vld [vmem:[%s1978 + $0xcc] sm:$0xf]
      %v2021 = vld [vmem:[%s1978 + $0xd0] sm:$0xf]
      %v2022 = vld [vmem:[%s1978 + $0xd4] sm:$0xf]
      %v2023 = vld [vmem:[%s1978 + $0xd8] sm:$0xf]
      %v2024 = vld [vmem:[%s1978 + $0xdc] sm:$0xf]
      %v2025 = vld [vmem:[%s1978 + $0xe0] sm:$0xf]
      %v2026 = vld [vmem:[%s1978 + $0xe4] sm:$0xf]
      %v2027 = vld [vmem:[%s1978 + $0xf0] sm:$0xf]
      %v2028 = vld [vmem:[%s1978 + $0xf4] sm:$0xf]
      %v2029 = vld [vmem:[%s1978 + $0xf8] sm:$0xf]
      %v2030 = vld [vmem:[%s1978 + $0xfc] sm:$0xf]
      %v2031 = vld [vmem:[%s1978 + $0x100] sm:$0xf]
      %v2032 = vld [vmem:[%s1978 + $0x104] sm:$0xf]
      %v2033 = vld [vmem:[%s1978 + $0x108] sm:$0xf]
      %v2034 = vld [vmem:[%s1978 + $0x10c] sm:$0xf]
      %v2035 = vld [vmem:[%s1978 + $0x118] sm:$0xf]
      %v2036 = vld [vmem:[%s1978 + $0x11c] sm:$0xf]
      %v2037 = vld [vmem:[%s1978 + $0x120] sm:$0xf]
      %v2038 = vld [vmem:[%s1978 + $0x124] sm:$0xf]
      %v2039 = vld [vmem:[%s1978 + $0x128] sm:$0xf]
      %v2040 = vld [vmem:[%s1978 + $0x12c] sm:$0xf]
      %v2041 = vld [vmem:[%s1978 + $0x130] sm:$0xf]
      %v2042 = vld [vmem:[%s1978 + $0x134] sm:$0xf]
      %s2043 = scalar_lea.vmem [#allocation2], 40
      %v2044 = vld [vmem:[%s2043] sm:$0xf]
      %v2045 = vld [vmem:[%s2043 + $0x4] sm:$0xf]
      %v2046 = vld [vmem:[%s2043 + $0x8] sm:$0xf]
      %v2047 = vld [vmem:[%s2043 + $0xc] sm:$0xf]
      %v2048 = vld [vmem:[%s2043 + $0x10] sm:$0xf]
      %v2049 = vld [vmem:[%s2043 + $0x14] sm:$0xf]
      %v2050 = vld [vmem:[%s2043 + $0x18] sm:$0xf]
      %v2051 = vld [vmem:[%s2043 + $0x1c] sm:$0xf]
      %v2052 = vld [vmem:[%s2043 + $0x28] sm:$0xf]
      %v2053 = vld [vmem:[%s2043 + $0x2c] sm:$0xf]
      %v2054 = vld [vmem:[%s2043 + $0x30] sm:$0xf]
      %v2055 = vld [vmem:[%s2043 + $0x34] sm:$0xf]
      %v2056 = vld [vmem:[%s2043 + $0x38] sm:$0xf]
      %v2057 = vld [vmem:[%s2043 + $0x3c] sm:$0xf]
      %v2058 = vld [vmem:[%s2043 + $0x40] sm:$0xf]
      %v2059 = vld [vmem:[%s2043 + $0x44] sm:$0xf]
      %v2060 = vld [vmem:[%s2043 + $0x50] sm:$0xf]
      %v2061 = vld [vmem:[%s2043 + $0x54] sm:$0xf]
      %v2062 = vld [vmem:[%s2043 + $0x58] sm:$0xf]
      %v2063 = vld [vmem:[%s2043 + $0x5c] sm:$0xf]
      %v2064 = vld [vmem:[%s2043 + $0x60] sm:$0xf]
      %v2065 = vld [vmem:[%s2043 + $0x64] sm:$0xf]
      %v2066 = vld [vmem:[%s2043 + $0x68] sm:$0xf]
      %v2067 = vld [vmem:[%s2043 + $0x6c] sm:$0xf]
      %v2068 = vld [vmem:[%s2043 + $0x78] sm:$0xf]
      %v2069 = vld [vmem:[%s2043 + $0x7c] sm:$0xf]
      %v2070 = vld [vmem:[%s2043 + $0x80] sm:$0xf]
      %v2071 = vld [vmem:[%s2043 + $0x84] sm:$0xf]
      %v2072 = vld [vmem:[%s2043 + $0x88] sm:$0xf]
      %v2073 = vld [vmem:[%s2043 + $0x8c] sm:$0xf]
      %v2074 = vld [vmem:[%s2043 + $0x90] sm:$0xf]
      %v2075 = vld [vmem:[%s2043 + $0x94] sm:$0xf]
      %v2076 = vld [vmem:[%s2043 + $0xa0] sm:$0xf]
      %v2077 = vld [vmem:[%s2043 + $0xa4] sm:$0xf]
      %v2078 = vld [vmem:[%s2043 + $0xa8] sm:$0xf]
      %v2079 = vld [vmem:[%s2043 + $0xac] sm:$0xf]
      %v2080 = vld [vmem:[%s2043 + $0xb0] sm:$0xf]
      %v2081 = vld [vmem:[%s2043 + $0xb4] sm:$0xf]
      %v2082 = vld [vmem:[%s2043 + $0xb8] sm:$0xf]
      %v2083 = vld [vmem:[%s2043 + $0xbc] sm:$0xf]
      %v2084 = vld [vmem:[%s2043 + $0xc8] sm:$0xf]
      %v2085 = vld [vmem:[%s2043 + $0xcc] sm:$0xf]
      %v2086 = vld [vmem:[%s2043 + $0xd0] sm:$0xf]
      %v2087 = vld [vmem:[%s2043 + $0xd4] sm:$0xf]
      %v2088 = vld [vmem:[%s2043 + $0xd8] sm:$0xf]
      %v2089 = vld [vmem:[%s2043 + $0xdc] sm:$0xf]
      %v2090 = vld [vmem:[%s2043 + $0xe0] sm:$0xf]
      %v2091 = vld [vmem:[%s2043 + $0xe4] sm:$0xf]
      %v2092 = vld [vmem:[%s2043 + $0xf0] sm:$0xf]
      %v2093 = vld [vmem:[%s2043 + $0xf4] sm:$0xf]
      %v2094 = vld [vmem:[%s2043 + $0xf8] sm:$0xf]
      %v2095 = vld [vmem:[%s2043 + $0xfc] sm:$0xf]
      %v2096 = vld [vmem:[%s2043 + $0x100] sm:$0xf]
      %v2097 = vld [vmem:[%s2043 + $0x104] sm:$0xf]
      %v2098 = vld [vmem:[%s2043 + $0x108] sm:$0xf]
      %v2099 = vld [vmem:[%s2043 + $0x10c] sm:$0xf]
      %v2100 = vld [vmem:[%s2043 + $0x118] sm:$0xf]
      %v2101 = vld [vmem:[%s2043 + $0x11c] sm:$0xf]
      %v2102 = vld [vmem:[%s2043 + $0x120] sm:$0xf]
      %v2103 = vld [vmem:[%s2043 + $0x124] sm:$0xf]
      %v2104 = vld [vmem:[%s2043 + $0x128] sm:$0xf]
      %v2105 = vld [vmem:[%s2043 + $0x12c] sm:$0xf]
      %v2106 = vld [vmem:[%s2043 + $0x130] sm:$0xf]
      %v2107 = vld [vmem:[%s2043 + $0x134] sm:$0xf]
      %v2108 = vld [vmem:[%s1162] sm:$0xf]
      %v2109 = vld [vmem:[%s1162 + $0x4] sm:$0xf]
      %v2110 = vld [vmem:[%s1162 + $0x8] sm:$0xf]
      %v2111 = vld [vmem:[%s1162 + $0xc] sm:$0xf]
      %v2112 = vld [vmem:[%s1162 + $0x10] sm:$0xf]
      %v2113 = vld [vmem:[%s1162 + $0x14] sm:$0xf]
      %v2114 = vld [vmem:[%s1162 + $0x18] sm:$0xf]
      %v2115 = vld [vmem:[%s1162 + $0x1c] sm:$0xf]
      %v2116 = vld [vmem:[%s1162 + $0x28] sm:$0xf]
      %v2117 = vld [vmem:[%s1162 + $0x2c] sm:$0xf]
      %v2118 = vld [vmem:[%s1162 + $0x30] sm:$0xf]
      %v2119 = vld [vmem:[%s1162 + $0x34] sm:$0xf]
      %v2120 = vld [vmem:[%s1162 + $0x38] sm:$0xf]
      %v2121 = vld [vmem:[%s1162 + $0x3c] sm:$0xf]
      %v2122 = vld [vmem:[%s1162 + $0x40] sm:$0xf]
      %v2123 = vld [vmem:[%s1162 + $0x44] sm:$0xf]
      %v2124 = vld [vmem:[%s1162 + $0x50] sm:$0xf]
      %v2125 = vld [vmem:[%s1162 + $0x54] sm:$0xf]
      %v2126 = vld [vmem:[%s1162 + $0x58] sm:$0xf]
      %v2127 = vld [vmem:[%s1162 + $0x5c] sm:$0xf]
      %v2128 = vld [vmem:[%s1162 + $0x60] sm:$0xf]
      %v2129 = vld [vmem:[%s1162 + $0x64] sm:$0xf]
      %v2130 = vld [vmem:[%s1162 + $0x68] sm:$0xf]
      %v2131 = vld [vmem:[%s1162 + $0x6c] sm:$0xf]
      %v2132 = vld [vmem:[%s1162 + $0x78] sm:$0xf]
      %v2133 = vld [vmem:[%s1162 + $0x7c] sm:$0xf]
      %v2134 = vld [vmem:[%s1162 + $0x80] sm:$0xf]
      %v2135 = vld [vmem:[%s1162 + $0x84] sm:$0xf]
      %v2136 = vld [vmem:[%s1162 + $0x88] sm:$0xf]
      %v2137 = vld [vmem:[%s1162 + $0x8c] sm:$0xf]
      %v2138 = vld [vmem:[%s1162 + $0x90] sm:$0xf]
      %v2139 = vld [vmem:[%s1162 + $0x94] sm:$0xf]
      %v2140 = vld [vmem:[%s1162 + $0xa0] sm:$0xf]
      %v2141 = vld [vmem:[%s1162 + $0xa4] sm:$0xf]
      %v2142 = vld [vmem:[%s1162 + $0xa8] sm:$0xf]
      %v2143 = vld [vmem:[%s1162 + $0xac] sm:$0xf]
      %v2144 = vld [vmem:[%s1162 + $0xb0] sm:$0xf]
      %v2145 = vld [vmem:[%s1162 + $0xb4] sm:$0xf]
      %v2146 = vld [vmem:[%s1162 + $0xb8] sm:$0xf]
      %v2147 = vld [vmem:[%s1162 + $0xbc] sm:$0xf]
      %v2148 = vld [vmem:[%s1162 + $0xc8] sm:$0xf]
      %v2149 = vld [vmem:[%s1162 + $0xcc] sm:$0xf]
      %v2150 = vld [vmem:[%s1162 + $0xd0] sm:$0xf]
      %v2151 = vld [vmem:[%s1162 + $0xd4] sm:$0xf]
      %v2152 = vld [vmem:[%s1162 + $0xd8] sm:$0xf]
      %v2153 = vld [vmem:[%s1162 + $0xdc] sm:$0xf]
      %v2154 = vld [vmem:[%s1162 + $0xe0] sm:$0xf]
      %v2155 = vld [vmem:[%s1162 + $0xe4] sm:$0xf]
      %v2156 = vld [vmem:[%s1162 + $0xf0] sm:$0xf]
      %v2157 = vld [vmem:[%s1162 + $0xf4] sm:$0xf]
      %v2158 = vld [vmem:[%s1162 + $0xf8] sm:$0xf]
      %v2159 = vld [vmem:[%s1162 + $0xfc] sm:$0xf]
      %v2160 = vld [vmem:[%s1162 + $0x100] sm:$0xf]
      %v2161 = vld [vmem:[%s1162 + $0x104] sm:$0xf]
      %v2162 = vld [vmem:[%s1162 + $0x108] sm:$0xf]
      %v2163 = vld [vmem:[%s1162 + $0x10c] sm:$0xf]
      %v2164 = vld [vmem:[%s1162 + $0x118] sm:$0xf]
      %v2165 = vld [vmem:[%s1162 + $0x11c] sm:$0xf]
      %v2166 = vld [vmem:[%s1162 + $0x120] sm:$0xf]
      %v2167 = vld [vmem:[%s1162 + $0x124] sm:$0xf]
      %v2168 = vld [vmem:[%s1162 + $0x128] sm:$0xf]
      %v2169 = vld [vmem:[%s1162 + $0x12c] sm:$0xf]
      %v2170 = vld [vmem:[%s1162 + $0x130] sm:$0xf]
      %v2171 = vld [vmem:[%s1162 + $0x134] sm:$0xf]
      %s2172 = scalar_lea.vmem [#allocation2], 48
      %v2173 = vld [vmem:[%s2172] sm:$0xf]
      %v2174 = vld [vmem:[%s2172 + $0x4] sm:$0xf]
      %v2175 = vld [vmem:[%s2172 + $0x8] sm:$0xf]
      %v2176 = vld [vmem:[%s2172 + $0xc] sm:$0xf]
      %v2177 = vld [vmem:[%s2172 + $0x10] sm:$0xf]
      %v2178 = vld [vmem:[%s2172 + $0x14] sm:$0xf]
      %v2179 = vld [vmem:[%s2172 + $0x18] sm:$0xf]
      %v2180 = vld [vmem:[%s2172 + $0x1c] sm:$0xf]
      %v2181 = vld [vmem:[%s2172 + $0x28] sm:$0xf]
      %v2182 = vld [vmem:[%s2172 + $0x2c] sm:$0xf]
      %v2183 = vld [vmem:[%s2172 + $0x30] sm:$0xf]
      %v2184 = vld [vmem:[%s2172 + $0x34] sm:$0xf]
      %v2185 = vld [vmem:[%s2172 + $0x38] sm:$0xf]
      %v2186 = vld [vmem:[%s2172 + $0x3c] sm:$0xf]
      %v2187 = vld [vmem:[%s2172 + $0x40] sm:$0xf]
      %v2188 = vld [vmem:[%s2172 + $0x44] sm:$0xf]
      %v2189 = vld [vmem:[%s2172 + $0x50] sm:$0xf]
      %v2190 = vld [vmem:[%s2172 + $0x54] sm:$0xf]
      %v2191 = vld [vmem:[%s2172 + $0x58] sm:$0xf]
      %v2192 = vld [vmem:[%s2172 + $0x5c] sm:$0xf]
      %v2193 = vld [vmem:[%s2172 + $0x60] sm:$0xf]
      %v2194 = vld [vmem:[%s2172 + $0x64] sm:$0xf]
      %v2195 = vld [vmem:[%s2172 + $0x68] sm:$0xf]
      %v2196 = vld [vmem:[%s2172 + $0x6c] sm:$0xf]
      %v2197 = vld [vmem:[%s2172 + $0x78] sm:$0xf]
      %v2198 = vld [vmem:[%s2172 + $0x7c] sm:$0xf]
      %v2199 = vld [vmem:[%s2172 + $0x80] sm:$0xf]
      %v2200 = vld [vmem:[%s2172 + $0x84] sm:$0xf]
      %v2201 = vld [vmem:[%s2172 + $0x88] sm:$0xf]
      %v2202 = vld [vmem:[%s2172 + $0x8c] sm:$0xf]
      %v2203 = vld [vmem:[%s2172 + $0x90] sm:$0xf]
      %v2204 = vld [vmem:[%s2172 + $0x94] sm:$0xf]
      %v2205 = vld [vmem:[%s2172 + $0xa0] sm:$0xf]
      %v2206 = vld [vmem:[%s2172 + $0xa4] sm:$0xf]
      %v2207 = vld [vmem:[%s2172 + $0xa8] sm:$0xf]
      %v2208 = vld [vmem:[%s2172 + $0xac] sm:$0xf]
      %v2209 = vld [vmem:[%s2172 + $0xb0] sm:$0xf]
      %v2210 = vld [vmem:[%s2172 + $0xb4] sm:$0xf]
      %v2211 = vld [vmem:[%s2172 + $0xb8] sm:$0xf]
      %v2212 = vld [vmem:[%s2172 + $0xbc] sm:$0xf]
      %v2213 = vld [vmem:[%s2172 + $0xc8] sm:$0xf]
      %v2214 = vld [vmem:[%s2172 + $0xcc] sm:$0xf]
      %v2215 = vld [vmem:[%s2172 + $0xd0] sm:$0xf]
      %v2216 = vld [vmem:[%s2172 + $0xd4] sm:$0xf]
      %v2217 = vld [vmem:[%s2172 + $0xd8] sm:$0xf]
      %v2218 = vld [vmem:[%s2172 + $0xdc] sm:$0xf]
      %v2219 = vld [vmem:[%s2172 + $0xe0] sm:$0xf]
      %v2220 = vld [vmem:[%s2172 + $0xe4] sm:$0xf]
      %v2221 = vld [vmem:[%s2172 + $0xf0] sm:$0xf]
      %v2222 = vld [vmem:[%s2172 + $0xf4] sm:$0xf]
      %v2223 = vld [vmem:[%s2172 + $0xf8] sm:$0xf]
      %v2224 = vld [vmem:[%s2172 + $0xfc] sm:$0xf]
      %v2225 = vld [vmem:[%s2172 + $0x100] sm:$0xf]
      %v2226 = vld [vmem:[%s2172 + $0x104] sm:$0xf]
      %v2227 = vld [vmem:[%s2172 + $0x108] sm:$0xf]
      %v2228 = vld [vmem:[%s2172 + $0x10c] sm:$0xf]
      %v2229 = vld [vmem:[%s2172 + $0x118] sm:$0xf]
      %v2230 = vld [vmem:[%s2172 + $0x11c] sm:$0xf]
      %v2231 = vld [vmem:[%s2172 + $0x120] sm:$0xf]
      %v2232 = vld [vmem:[%s2172 + $0x124] sm:$0xf]
      %v2233 = vld [vmem:[%s2172 + $0x128] sm:$0xf]
      %v2234 = vld [vmem:[%s2172 + $0x12c] sm:$0xf]
      %v2235 = vld [vmem:[%s2172 + $0x130] sm:$0xf]
      %v2236 = vld [vmem:[%s2172 + $0x134] sm:$0xf]
      %s2237 = scalar_lea.vmem [#allocation2], 80
      %v2238 = vld [vmem:[%s2237] sm:$0xf]
      %v2239 = vld [vmem:[%s2237 + $0x4] sm:$0xf]
      %v2240 = vld [vmem:[%s2237 + $0x8] sm:$0xf]
      %v2241 = vld [vmem:[%s2237 + $0xc] sm:$0xf]
      %v2242 = vld [vmem:[%s2237 + $0x10] sm:$0xf]
      %v2243 = vld [vmem:[%s2237 + $0x14] sm:$0xf]
      %v2244 = vld [vmem:[%s2237 + $0x18] sm:$0xf]
      %v2245 = vld [vmem:[%s2237 + $0x1c] sm:$0xf]
      %v2246 = vld [vmem:[%s2237 + $0x28] sm:$0xf]
      %v2247 = vld [vmem:[%s2237 + $0x2c] sm:$0xf]
      %v2248 = vld [vmem:[%s2237 + $0x30] sm:$0xf]
      %v2249 = vld [vmem:[%s2237 + $0x34] sm:$0xf]
      %v2250 = vld [vmem:[%s2237 + $0x38] sm:$0xf]
      %v2251 = vld [vmem:[%s2237 + $0x3c] sm:$0xf]
      %v2252 = vld [vmem:[%s2237 + $0x40] sm:$0xf]
      %v2253 = vld [vmem:[%s2237 + $0x44] sm:$0xf]
      %v2254 = vld [vmem:[%s2237 + $0x50] sm:$0xf]
      %v2255 = vld [vmem:[%s2237 + $0x54] sm:$0xf]
      %v2256 = vld [vmem:[%s2237 + $0x58] sm:$0xf]
      %v2257 = vld [vmem:[%s2237 + $0x5c] sm:$0xf]
      %v2258 = vld [vmem:[%s2237 + $0x60] sm:$0xf]
      %v2259 = vld [vmem:[%s2237 + $0x64] sm:$0xf]
      %v2260 = vld [vmem:[%s2237 + $0x68] sm:$0xf]
      %v2261 = vld [vmem:[%s2237 + $0x6c] sm:$0xf]
      %v2262 = vld [vmem:[%s2237 + $0x78] sm:$0xf]
      %v2263 = vld [vmem:[%s2237 + $0x7c] sm:$0xf]
      %v2264 = vld [vmem:[%s2237 + $0x80] sm:$0xf]
      %v2265 = vld [vmem:[%s2237 + $0x84] sm:$0xf]
      %v2266 = vld [vmem:[%s2237 + $0x88] sm:$0xf]
      %v2267 = vld [vmem:[%s2237 + $0x8c] sm:$0xf]
      %v2268 = vld [vmem:[%s2237 + $0x90] sm:$0xf]
      %v2269 = vld [vmem:[%s2237 + $0x94] sm:$0xf]
      %v2270 = vld [vmem:[%s2237 + $0xa0] sm:$0xf]
      %v2271 = vld [vmem:[%s2237 + $0xa4] sm:$0xf]
      %v2272 = vld [vmem:[%s2237 + $0xa8] sm:$0xf]
      %v2273 = vld [vmem:[%s2237 + $0xac] sm:$0xf]
      %v2274 = vld [vmem:[%s2237 + $0xb0] sm:$0xf]
      %v2275 = vld [vmem:[%s2237 + $0xb4] sm:$0xf]
      %v2276 = vld [vmem:[%s2237 + $0xb8] sm:$0xf]
      %v2277 = vld [vmem:[%s2237 + $0xbc] sm:$0xf]
      %v2278 = vld [vmem:[%s2237 + $0xc8] sm:$0xf]
      %v2279 = vld [vmem:[%s2237 + $0xcc] sm:$0xf]
      %v2280 = vld [vmem:[%s2237 + $0xd0] sm:$0xf]
      %v2281 = vld [vmem:[%s2237 + $0xd4] sm:$0xf]
      %v2282 = vld [vmem:[%s2237 + $0xd8] sm:$0xf]
      %v2283 = vld [vmem:[%s2237 + $0xdc] sm:$0xf]
      %v2284 = vld [vmem:[%s2237 + $0xe0] sm:$0xf]
      %v2285 = vld [vmem:[%s2237 + $0xe4] sm:$0xf]
      %v2286 = vld [vmem:[%s2237 + $0xf0] sm:$0xf]
      %v2287 = vld [vmem:[%s2237 + $0xf4] sm:$0xf]
      %v2288 = vld [vmem:[%s2237 + $0xf8] sm:$0xf]
      %v2289 = vld [vmem:[%s2237 + $0xfc] sm:$0xf]
      %v2290 = vld [vmem:[%s2237 + $0x100] sm:$0xf]
      %v2291 = vld [vmem:[%s2237 + $0x104] sm:$0xf]
      %v2292 = vld [vmem:[%s2237 + $0x108] sm:$0xf]
      %v2293 = vld [vmem:[%s2237 + $0x10c] sm:$0xf]
      %v2294 = vld [vmem:[%s2237 + $0x118] sm:$0xf]
      %v2295 = vld [vmem:[%s2237 + $0x11c] sm:$0xf]
      %v2296 = vld [vmem:[%s2237 + $0x120] sm:$0xf]
      %v2297 = vld [vmem:[%s2237 + $0x124] sm:$0xf]
      %v2298 = vld [vmem:[%s2237 + $0x128] sm:$0xf]
      %v2299 = vld [vmem:[%s2237 + $0x12c] sm:$0xf]
      %v2300 = vld [vmem:[%s2237 + $0x130] sm:$0xf]
      %v2301 = vld [vmem:[%s2237 + $0x134] sm:$0xf]
      %s2302 = scalar_lea.vmem [#allocation2], 84
      %v2303 = vld [vmem:[%s2302] sm:$0xf]
      %v2304 = vld [vmem:[%s2302 + $0x4] sm:$0xf]
      %v2305 = vld [vmem:[%s2302 + $0x8] sm:$0xf]
      %v2306 = vld [vmem:[%s2302 + $0xc] sm:$0xf]
      %v2307 = vld [vmem:[%s2302 + $0x10] sm:$0xf]
      %v2308 = vld [vmem:[%s2302 + $0x14] sm:$0xf]
      %v2309 = vld [vmem:[%s2302 + $0x18] sm:$0xf]
      %v2310 = vld [vmem:[%s2302 + $0x1c] sm:$0xf]
      %v2311 = vld [vmem:[%s2302 + $0x28] sm:$0xf]
      %v2312 = vld [vmem:[%s2302 + $0x2c] sm:$0xf]
      %v2313 = vld [vmem:[%s2302 + $0x30] sm:$0xf]
      %v2314 = vld [vmem:[%s2302 + $0x34] sm:$0xf]
      %v2315 = vld [vmem:[%s2302 + $0x38] sm:$0xf]
      %v2316 = vld [vmem:[%s2302 + $0x3c] sm:$0xf]
      %v2317 = vld [vmem:[%s2302 + $0x40] sm:$0xf]
      %v2318 = vld [vmem:[%s2302 + $0x44] sm:$0xf]
      %v2319 = vld [vmem:[%s2302 + $0x50] sm:$0xf]
      %v2320 = vld [vmem:[%s2302 + $0x54] sm:$0xf]
      %v2321 = vld [vmem:[%s2302 + $0x58] sm:$0xf]
      %v2322 = vld [vmem:[%s2302 + $0x5c] sm:$0xf]
      %v2323 = vld [vmem:[%s2302 + $0x60] sm:$0xf]
      %v2324 = vld [vmem:[%s2302 + $0x64] sm:$0xf]
      %v2325 = vld [vmem:[%s2302 + $0x68] sm:$0xf]
      %v2326 = vld [vmem:[%s2302 + $0x6c] sm:$0xf]
      %v2327 = vld [vmem:[%s2302 + $0x78] sm:$0xf]
      %v2328 = vld [vmem:[%s2302 + $0x7c] sm:$0xf]
      %v2329 = vld [vmem:[%s2302 + $0x80] sm:$0xf]
      %v2330 = vld [vmem:[%s2302 + $0x84] sm:$0xf]
      %v2331 = vld [vmem:[%s2302 + $0x88] sm:$0xf]
      %v2332 = vld [vmem:[%s2302 + $0x8c] sm:$0xf]
      %v2333 = vld [vmem:[%s2302 + $0x90] sm:$0xf]
      %v2334 = vld [vmem:[%s2302 + $0x94] sm:$0xf]
      %v2335 = vld [vmem:[%s2302 + $0xa0] sm:$0xf]
      %v2336 = vld [vmem:[%s2302 + $0xa4] sm:$0xf]
      %v2337 = vld [vmem:[%s2302 + $0xa8] sm:$0xf]
      %v2338 = vld [vmem:[%s2302 + $0xac] sm:$0xf]
      %v2339 = vld [vmem:[%s2302 + $0xb0] sm:$0xf]
      %v2340 = vld [vmem:[%s2302 + $0xb4] sm:$0xf]
      %v2341 = vld [vmem:[%s2302 + $0xb8] sm:$0xf]
      %v2342 = vld [vmem:[%s2302 + $0xbc] sm:$0xf]
      %v2343 = vld [vmem:[%s2302 + $0xc8] sm:$0xf]
      %v2344 = vld [vmem:[%s2302 + $0xcc] sm:$0xf]
      %v2345 = vld [vmem:[%s2302 + $0xd0] sm:$0xf]
      %v2346 = vld [vmem:[%s2302 + $0xd4] sm:$0xf]
      %v2347 = vld [vmem:[%s2302 + $0xd8] sm:$0xf]
      %v2348 = vld [vmem:[%s2302 + $0xdc] sm:$0xf]
      %v2349 = vld [vmem:[%s2302 + $0xe0] sm:$0xf]
      %v2350 = vld [vmem:[%s2302 + $0xe4] sm:$0xf]
      %v2351 = vld [vmem:[%s2302 + $0xf0] sm:$0xf]
      %v2352 = vld [vmem:[%s2302 + $0xf4] sm:$0xf]
      %v2353 = vld [vmem:[%s2302 + $0xf8] sm:$0xf]
      %v2354 = vld [vmem:[%s2302 + $0xfc] sm:$0xf]
      %v2355 = vld [vmem:[%s2302 + $0x100] sm:$0xf]
      %v2356 = vld [vmem:[%s2302 + $0x104] sm:$0xf]
      %v2357 = vld [vmem:[%s2302 + $0x108] sm:$0xf]
      %v2358 = vld [vmem:[%s2302 + $0x10c] sm:$0xf]
      %v2359 = vld [vmem:[%s2302 + $0x118] sm:$0xf]
      %v2360 = vld [vmem:[%s2302 + $0x11c] sm:$0xf]
      %v2361 = vld [vmem:[%s2302 + $0x120] sm:$0xf]
      %v2362 = vld [vmem:[%s2302 + $0x124] sm:$0xf]
      %v2363 = vld [vmem:[%s2302 + $0x128] sm:$0xf]
      %v2364 = vld [vmem:[%s2302 + $0x12c] sm:$0xf]
      %v2365 = vld [vmem:[%s2302 + $0x130] sm:$0xf]
      %v2366 = vld [vmem:[%s2302 + $0x134] sm:$0xf]
      %s2367 = scalar_lea.vmem [#allocation2], 88
      %v2368 = vld [vmem:[%s2367] sm:$0xf]
      %v2369 = vld [vmem:[%s2367 + $0x4] sm:$0xf]
      %v2370 = vld [vmem:[%s2367 + $0x8] sm:$0xf]
      %v2371 = vld [vmem:[%s2367 + $0xc] sm:$0xf]
      %v2372 = vld [vmem:[%s2367 + $0x10] sm:$0xf]
      %v2373 = vld [vmem:[%s2367 + $0x14] sm:$0xf]
      %v2374 = vld [vmem:[%s2367 + $0x18] sm:$0xf]
      %v2375 = vld [vmem:[%s2367 + $0x1c] sm:$0xf]
      %v2376 = vld [vmem:[%s2367 + $0x28] sm:$0xf]
      %v2377 = vld [vmem:[%s2367 + $0x2c] sm:$0xf]
      %v2378 = vld [vmem:[%s2367 + $0x30] sm:$0xf]
      %v2379 = vld [vmem:[%s2367 + $0x34] sm:$0xf]
      %v2380 = vld [vmem:[%s2367 + $0x38] sm:$0xf]
      %v2381 = vld [vmem:[%s2367 + $0x3c] sm:$0xf]
      %v2382 = vld [vmem:[%s2367 + $0x40] sm:$0xf]
      %v2383 = vld [vmem:[%s2367 + $0x44] sm:$0xf]
      %v2384 = vld [vmem:[%s2367 + $0x50] sm:$0xf]
      %v2385 = vld [vmem:[%s2367 + $0x54] sm:$0xf]
      %v2386 = vld [vmem:[%s2367 + $0x58] sm:$0xf]
      %v2387 = vld [vmem:[%s2367 + $0x5c] sm:$0xf]
      %v2388 = vld [vmem:[%s2367 + $0x60] sm:$0xf]
      %v2389 = vld [vmem:[%s2367 + $0x64] sm:$0xf]
      %v2390 = vld [vmem:[%s2367 + $0x68] sm:$0xf]
      %v2391 = vld [vmem:[%s2367 + $0x6c] sm:$0xf]
      %v2392 = vld [vmem:[%s2367 + $0x78] sm:$0xf]
      %v2393 = vld [vmem:[%s2367 + $0x7c] sm:$0xf]
      %v2394 = vld [vmem:[%s2367 + $0x80] sm:$0xf]
      %v2395 = vld [vmem:[%s2367 + $0x84] sm:$0xf]
      %v2396 = vld [vmem:[%s2367 + $0x88] sm:$0xf]
      %v2397 = vld [vmem:[%s2367 + $0x8c] sm:$0xf]
      %v2398 = vld [vmem:[%s2367 + $0x90] sm:$0xf]
      %v2399 = vld [vmem:[%s2367 + $0x94] sm:$0xf]
      %v2400 = vld [vmem:[%s2367 + $0xa0] sm:$0xf]
      %v2401 = vld [vmem:[%s2367 + $0xa4] sm:$0xf]
      %v2402 = vld [vmem:[%s2367 + $0xa8] sm:$0xf]
      %v2403 = vld [vmem:[%s2367 + $0xac] sm:$0xf]
      %v2404 = vld [vmem:[%s2367 + $0xb0] sm:$0xf]
      %v2405 = vld [vmem:[%s2367 + $0xb4] sm:$0xf]
      %v2406 = vld [vmem:[%s2367 + $0xb8] sm:$0xf]
      %v2407 = vld [vmem:[%s2367 + $0xbc] sm:$0xf]
      %v2408 = vld [vmem:[%s2367 + $0xc8] sm:$0xf]
      %v2409 = vld [vmem:[%s2367 + $0xcc] sm:$0xf]
      %v2410 = vld [vmem:[%s2367 + $0xd0] sm:$0xf]
      %v2411 = vld [vmem:[%s2367 + $0xd4] sm:$0xf]
      %v2412 = vld [vmem:[%s2367 + $0xd8] sm:$0xf]
      %v2413 = vld [vmem:[%s2367 + $0xdc] sm:$0xf]
      %v2414 = vld [vmem:[%s2367 + $0xe0] sm:$0xf]
      %v2415 = vld [vmem:[%s2367 + $0xe4] sm:$0xf]
      %v2416 = vld [vmem:[%s2367 + $0xf0] sm:$0xf]
      %v2417 = vld [vmem:[%s2367 + $0xf4] sm:$0xf]
      %v2418 = vld [vmem:[%s2367 + $0xf8] sm:$0xf]
      %v2419 = vld [vmem:[%s2367 + $0xfc] sm:$0xf]
      %v2420 = vld [vmem:[%s2367 + $0x100] sm:$0xf]
      %v2421 = vld [vmem:[%s2367 + $0x104] sm:$0xf]
      %v2422 = vld [vmem:[%s2367 + $0x108] sm:$0xf]
      %v2423 = vld [vmem:[%s2367 + $0x10c] sm:$0xf]
      %v2424 = vld [vmem:[%s2367 + $0x118] sm:$0xf]
      %v2425 = vld [vmem:[%s2367 + $0x11c] sm:$0xf]
      %v2426 = vld [vmem:[%s2367 + $0x120] sm:$0xf]
      %v2427 = vld [vmem:[%s2367 + $0x124] sm:$0xf]
      %v2428 = vld [vmem:[%s2367 + $0x128] sm:$0xf]
      %v2429 = vld [vmem:[%s2367 + $0x12c] sm:$0xf]
      %v2430 = vld [vmem:[%s2367 + $0x130] sm:$0xf]
      %v2431 = vld [vmem:[%s2367 + $0x134] sm:$0xf]
      %v3008 = vunpack.c.l.b16 %v1849
      %v3009 = vunpack.c.l.b16 %v1914
      %v3010 = vunpack.c.l.b16 %v1979
      %v3011 = vunpack.c.l.b16 %v2044
      %v3012 = vunpack.c.l.b16 %v2108
      %v3013 = vunpack.c.l.b16 %v2173
      %v3014 = vunpack.c.l.b16 %v2238
      %v3015 = vunpack.c.l.b16 %v2303
      %v3016 = vunpack.c.l.b16 %v2368
      %v3017 = vunpack.c.l.b16 %v1850
      %v3018 = vunpack.c.l.b16 %v1915
      %v3019 = vunpack.c.l.b16 %v1980
      %v3020 = vunpack.c.l.b16 %v2045
      %v3021 = vunpack.c.l.b16 %v2109
      %v3022 = vunpack.c.l.b16 %v2174
      %v3023 = vunpack.c.l.b16 %v2239
      %v3024 = vunpack.c.l.b16 %v2304
      %v3025 = vunpack.c.l.b16 %v2369
      %v3026 = vunpack.c.l.b16 %v1851
      %v3027 = vunpack.c.l.b16 %v1916
      %v3028 = vunpack.c.l.b16 %v1981
      %v3029 = vunpack.c.l.b16 %v2046
      %v3030 = vunpack.c.l.b16 %v2110
      %v3031 = vunpack.c.l.b16 %v2175
      %v3032 = vunpack.c.l.b16 %v2240
      %v3033 = vunpack.c.l.b16 %v2305
      %v3034 = vunpack.c.l.b16 %v2370
      %v3035 = vunpack.c.l.b16 %v1852
      %v3036 = vunpack.c.l.b16 %v1917
      %v3037 = vunpack.c.l.b16 %v1982
      %v3038 = vunpack.c.l.b16 %v2047
      %v3039 = vunpack.c.l.b16 %v2111
      %v3040 = vunpack.c.l.b16 %v2176
      %v3041 = vunpack.c.l.b16 %v2241
      %v3042 = vunpack.c.l.b16 %v2306
      %v3043 = vunpack.c.l.b16 %v2371
      %v3044 = vunpack.c.l.b16 %v1853
      %v3045 = vunpack.c.l.b16 %v1918
      %v3046 = vunpack.c.l.b16 %v1983
      %v3047 = vunpack.c.l.b16 %v2048
      %v3048 = vunpack.c.l.b16 %v2112
      %v3049 = vunpack.c.l.b16 %v2177
      %v3050 = vunpack.c.l.b16 %v2242
      %v3051 = vunpack.c.l.b16 %v2307
      %v3052 = vunpack.c.l.b16 %v2372
      %v3053 = vunpack.c.l.b16 %v1854
      %v3054 = vunpack.c.l.b16 %v1919
      %v3055 = vunpack.c.l.b16 %v1984
      %v3056 = vunpack.c.l.b16 %v2049
      %v3057 = vunpack.c.l.b16 %v2113
      %v3058 = vunpack.c.l.b16 %v2178
      %v3059 = vunpack.c.l.b16 %v2243
      %v3060 = vunpack.c.l.b16 %v2308
      %v3061 = vunpack.c.l.b16 %v2373
      %v3062 = vunpack.c.l.b16 %v1855
      %v3063 = vunpack.c.l.b16 %v1920
      %v3064 = vunpack.c.l.b16 %v1985
      %v3065 = vunpack.c.l.b16 %v2050
      %v3066 = vunpack.c.l.b16 %v2114
      %v3067 = vunpack.c.l.b16 %v2179
      %v3068 = vunpack.c.l.b16 %v2244
      %v3069 = vunpack.c.l.b16 %v2309
      %v3070 = vunpack.c.l.b16 %v2374
      %v3071 = vunpack.c.l.b16 %v1856
      %v3072 = vunpack.c.l.b16 %v1921
      %v3073 = vunpack.c.l.b16 %v1986
      %v3074 = vunpack.c.l.b16 %v2051
      %v3075 = vunpack.c.l.b16 %v2115
      %v3076 = vunpack.c.l.b16 %v2180
      %v3077 = vunpack.c.l.b16 %v2245
      %v3078 = vunpack.c.l.b16 %v2310
      %v3079 = vunpack.c.l.b16 %v2375
      %v3080 = vunpack.c.l.b16 %v1857
      %v3081 = vunpack.c.l.b16 %v1922
      %v3082 = vunpack.c.l.b16 %v1987
      %v3083 = vunpack.c.l.b16 %v2052
      %v3084 = vunpack.c.l.b16 %v2116
      %v3085 = vunpack.c.l.b16 %v2181
      %v3086 = vunpack.c.l.b16 %v2246
      %v3087 = vunpack.c.l.b16 %v2311
      %v3088 = vunpack.c.l.b16 %v2376
      %v3089 = vunpack.c.l.b16 %v1858
      %v3090 = vunpack.c.l.b16 %v1923
      %v3091 = vunpack.c.l.b16 %v1988
      %v3092 = vunpack.c.l.b16 %v2053
      %v3093 = vunpack.c.l.b16 %v2117
      %v3094 = vunpack.c.l.b16 %v2182
      %v3095 = vunpack.c.l.b16 %v2247
      %v3096 = vunpack.c.l.b16 %v2312
      %v3097 = vunpack.c.l.b16 %v2377
      %v3098 = vunpack.c.l.b16 %v1859
      %v3099 = vunpack.c.l.b16 %v1924
      %v3100 = vunpack.c.l.b16 %v1989
      %v3101 = vunpack.c.l.b16 %v2054
      %v3102 = vunpack.c.l.b16 %v2118
      %v3103 = vunpack.c.l.b16 %v2183
      %v3104 = vunpack.c.l.b16 %v2248
      %v3105 = vunpack.c.l.b16 %v2313
      %v3106 = vunpack.c.l.b16 %v2378
      %v3107 = vunpack.c.l.b16 %v1860
      %v3108 = vunpack.c.l.b16 %v1925
      %v3109 = vunpack.c.l.b16 %v1990
      %v3110 = vunpack.c.l.b16 %v2055
      %v3111 = vunpack.c.l.b16 %v2119
      %v3112 = vunpack.c.l.b16 %v2184
      %v3113 = vunpack.c.l.b16 %v2249
      %v3114 = vunpack.c.l.b16 %v2314
      %v3115 = vunpack.c.l.b16 %v2379
      %v3116 = vunpack.c.l.b16 %v1861
      %v3117 = vunpack.c.l.b16 %v1926
      %v3118 = vunpack.c.l.b16 %v1991
      %v3119 = vunpack.c.l.b16 %v2056
      %v3120 = vunpack.c.l.b16 %v2120
      %v3121 = vunpack.c.l.b16 %v2185
      %v3122 = vunpack.c.l.b16 %v2250
      %v3123 = vunpack.c.l.b16 %v2315
      %v3124 = vunpack.c.l.b16 %v2380
      %v3125 = vunpack.c.l.b16 %v1862
      %v3126 = vunpack.c.l.b16 %v1927
      %v3127 = vunpack.c.l.b16 %v1992
      %v3128 = vunpack.c.l.b16 %v2057
      %v3129 = vunpack.c.l.b16 %v2121
      %v3130 = vunpack.c.l.b16 %v2186
      %v3131 = vunpack.c.l.b16 %v2251
      %v3132 = vunpack.c.l.b16 %v2316
      %v3133 = vunpack.c.l.b16 %v2381
      %v3134 = vunpack.c.l.b16 %v1863
      %v3135 = vunpack.c.l.b16 %v1928
      %v3136 = vunpack.c.l.b16 %v1993
      %v3137 = vunpack.c.l.b16 %v2058
      %v3138 = vunpack.c.l.b16 %v2122
      %v3139 = vunpack.c.l.b16 %v2187
      %v3140 = vunpack.c.l.b16 %v2252
      %v3141 = vunpack.c.l.b16 %v2317
      %v3142 = vunpack.c.l.b16 %v2382
      %v3143 = vunpack.c.l.b16 %v1864
      %v3144 = vunpack.c.l.b16 %v1929
      %v3145 = vunpack.c.l.b16 %v1994
      %v3146 = vunpack.c.l.b16 %v2059
      %v3147 = vunpack.c.l.b16 %v2123
      %v3148 = vunpack.c.l.b16 %v2188
      %v3149 = vunpack.c.l.b16 %v2253
      %v3150 = vunpack.c.l.b16 %v2318
      %v3151 = vunpack.c.l.b16 %v2383
      %v3152 = vunpack.c.l.b16 %v1865
      %v3153 = vunpack.c.l.b16 %v1930
      %v3154 = vunpack.c.l.b16 %v1995
      %v3155 = vunpack.c.l.b16 %v2060
      %v3156 = vunpack.c.l.b16 %v2124
      %v3157 = vunpack.c.l.b16 %v2189
      %v3158 = vunpack.c.l.b16 %v2254
      %v3159 = vunpack.c.l.b16 %v2319
      %v3160 = vunpack.c.l.b16 %v2384
      %v3161 = vunpack.c.l.b16 %v1866
      %v3162 = vunpack.c.l.b16 %v1931
      %v3163 = vunpack.c.l.b16 %v1996
      %v3164 = vunpack.c.l.b16 %v2061
      %v3165 = vunpack.c.l.b16 %v2125
      %v3166 = vunpack.c.l.b16 %v2190
      %v3167 = vunpack.c.l.b16 %v2255
      %v3168 = vunpack.c.l.b16 %v2320
      %v3169 = vunpack.c.l.b16 %v2385
      %v3170 = vunpack.c.l.b16 %v1867
      %v3171 = vunpack.c.l.b16 %v1932
      %v3172 = vunpack.c.l.b16 %v1997
      %v3173 = vunpack.c.l.b16 %v2062
      %v3174 = vunpack.c.l.b16 %v2126
      %v3175 = vunpack.c.l.b16 %v2191
      %v3176 = vunpack.c.l.b16 %v2256
      %v3177 = vunpack.c.l.b16 %v2321
      %v3178 = vunpack.c.l.b16 %v2386
      %v3179 = vunpack.c.l.b16 %v1868
      %v3180 = vunpack.c.l.b16 %v1933
      %v3181 = vunpack.c.l.b16 %v1998
      %v3182 = vunpack.c.l.b16 %v2063
      %v3183 = vunpack.c.l.b16 %v2127
      %v3184 = vunpack.c.l.b16 %v2192
      %v3185 = vunpack.c.l.b16 %v2257
      %v3186 = vunpack.c.l.b16 %v2322
      %v3187 = vunpack.c.l.b16 %v2387
      %v3188 = vunpack.c.l.b16 %v1869
      %v3189 = vunpack.c.l.b16 %v1934
      %v3190 = vunpack.c.l.b16 %v1999
      %v3191 = vunpack.c.l.b16 %v2064
      %v3192 = vunpack.c.l.b16 %v2128
      %v3193 = vunpack.c.l.b16 %v2193
      %v3194 = vunpack.c.l.b16 %v2258
      %v3195 = vunpack.c.l.b16 %v2323
      %v3196 = vunpack.c.l.b16 %v2388
      %v3197 = vunpack.c.l.b16 %v1870
      %v3198 = vunpack.c.l.b16 %v1935
      %v3199 = vunpack.c.l.b16 %v2000
      %v3200 = vunpack.c.l.b16 %v2065
      %v3201 = vunpack.c.l.b16 %v2129
      %v3202 = vunpack.c.l.b16 %v2194
      %v3203 = vunpack.c.l.b16 %v2259
      %v3204 = vunpack.c.l.b16 %v2324
      %v3205 = vunpack.c.l.b16 %v2389
      %v3206 = vunpack.c.l.b16 %v1871
      %v3207 = vunpack.c.l.b16 %v1936
      %v3208 = vunpack.c.l.b16 %v2001
      %v3209 = vunpack.c.l.b16 %v2066
      %v3210 = vunpack.c.l.b16 %v2130
      %v3211 = vunpack.c.l.b16 %v2195
      %v3212 = vunpack.c.l.b16 %v2260
      %v3213 = vunpack.c.l.b16 %v2325
      %v3214 = vunpack.c.l.b16 %v2390
      %v3215 = vunpack.c.l.b16 %v1872
      %v3216 = vunpack.c.l.b16 %v1937
      %v3217 = vunpack.c.l.b16 %v2002
      %v3218 = vunpack.c.l.b16 %v2067
      %v3219 = vunpack.c.l.b16 %v2131
      %v3220 = vunpack.c.l.b16 %v2196
      %v3221 = vunpack.c.l.b16 %v2261
      %v3222 = vunpack.c.l.b16 %v2326
      %v3223 = vunpack.c.l.b16 %v2391
      %v3224 = vunpack.c.l.b16 %v1873
      %v3225 = vunpack.c.l.b16 %v1938
      %v3226 = vunpack.c.l.b16 %v2003
      %v3227 = vunpack.c.l.b16 %v2068
      %v3228 = vunpack.c.l.b16 %v2132
      %v3229 = vunpack.c.l.b16 %v2197
      %v3230 = vunpack.c.l.b16 %v2262
      %v3231 = vunpack.c.l.b16 %v2327
      %v3232 = vunpack.c.l.b16 %v2392
      %v3233 = vunpack.c.l.b16 %v1874
      %v3234 = vunpack.c.l.b16 %v1939
      %v3235 = vunpack.c.l.b16 %v2004
      %v3236 = vunpack.c.l.b16 %v2069
      %v3237 = vunpack.c.l.b16 %v2133
      %v3238 = vunpack.c.l.b16 %v2198
      %v3239 = vunpack.c.l.b16 %v2263
      %v3240 = vunpack.c.l.b16 %v2328
      %v3241 = vunpack.c.l.b16 %v2393
      %v3242 = vunpack.c.l.b16 %v1875
      %v3243 = vunpack.c.l.b16 %v1940
      %v3244 = vunpack.c.l.b16 %v2005
      %v3245 = vunpack.c.l.b16 %v2070
      %v3246 = vunpack.c.l.b16 %v2134
      %v3247 = vunpack.c.l.b16 %v2199
      %v3248 = vunpack.c.l.b16 %v2264
      %v3249 = vunpack.c.l.b16 %v2329
      %v3250 = vunpack.c.l.b16 %v2394
      %v3251 = vunpack.c.l.b16 %v1876
      %v3252 = vunpack.c.l.b16 %v1941
      %v3253 = vunpack.c.l.b16 %v2006
      %v3254 = vunpack.c.l.b16 %v2071
      %v3255 = vunpack.c.l.b16 %v2135
      %v3256 = vunpack.c.l.b16 %v2200
      %v3257 = vunpack.c.l.b16 %v2265
      %v3258 = vunpack.c.l.b16 %v2330
      %v3259 = vunpack.c.l.b16 %v2395
      %v3260 = vunpack.c.l.b16 %v1877
      %v3261 = vunpack.c.l.b16 %v1942
      %v3262 = vunpack.c.l.b16 %v2007
      %v3263 = vunpack.c.l.b16 %v2072
      %v3264 = vunpack.c.l.b16 %v2136
      %v3265 = vunpack.c.l.b16 %v2201
      %v3266 = vunpack.c.l.b16 %v2266
      %v3267 = vunpack.c.l.b16 %v2331
      %v3268 = vunpack.c.l.b16 %v2396
      %v3269 = vunpack.c.l.b16 %v1878
      %v3270 = vunpack.c.l.b16 %v1943
      %v3271 = vunpack.c.l.b16 %v2008
      %v3272 = vunpack.c.l.b16 %v2073
      %v3273 = vunpack.c.l.b16 %v2137
      %v3274 = vunpack.c.l.b16 %v2202
      %v3275 = vunpack.c.l.b16 %v2267
      %v3276 = vunpack.c.l.b16 %v2332
      %v3277 = vunpack.c.l.b16 %v2397
      %v3278 = vunpack.c.l.b16 %v1879
      %v3279 = vunpack.c.l.b16 %v1944
      %v3280 = vunpack.c.l.b16 %v2009
      %v3281 = vunpack.c.l.b16 %v2074
      %v3282 = vunpack.c.l.b16 %v2138
      %v3283 = vunpack.c.l.b16 %v2203
      %v3284 = vunpack.c.l.b16 %v2268
      %v3285 = vunpack.c.l.b16 %v2333
      %v3286 = vunpack.c.l.b16 %v2398
      %v3287 = vunpack.c.l.b16 %v1880
      %v3288 = vunpack.c.l.b16 %v1945
      %v3289 = vunpack.c.l.b16 %v2010
      %v3290 = vunpack.c.l.b16 %v2075
      %v3291 = vunpack.c.l.b16 %v2139
      %v3292 = vunpack.c.l.b16 %v2204
      %v3293 = vunpack.c.l.b16 %v2269
      %v3294 = vunpack.c.l.b16 %v2334
      %v3295 = vunpack.c.l.b16 %v2399
      %v3296 = vunpack.c.l.b16 %v1881
      %v3297 = vunpack.c.l.b16 %v1946
      %v3298 = vunpack.c.l.b16 %v2011
      %v3299 = vunpack.c.l.b16 %v2076
      %v3300 = vunpack.c.l.b16 %v2140
      %v3301 = vunpack.c.l.b16 %v2205
      %v3302 = vunpack.c.l.b16 %v2270
      %v3303 = vunpack.c.l.b16 %v2335
      %v3304 = vunpack.c.l.b16 %v2400
      %v3305 = vunpack.c.l.b16 %v1882
      %v3306 = vunpack.c.l.b16 %v1947
      %v3307 = vunpack.c.l.b16 %v2012
      %v3308 = vunpack.c.l.b16 %v2077
      %v3309 = vunpack.c.l.b16 %v2141
      %v3310 = vunpack.c.l.b16 %v2206
      %v3311 = vunpack.c.l.b16 %v2271
      %v3312 = vunpack.c.l.b16 %v2336
      %v3313 = vunpack.c.l.b16 %v2401
      %v3314 = vunpack.c.l.b16 %v1883
      %v3315 = vunpack.c.l.b16 %v1948
      %v3316 = vunpack.c.l.b16 %v2013
      %v3317 = vunpack.c.l.b16 %v2078
      %v3318 = vunpack.c.l.b16 %v2142
      %v3319 = vunpack.c.l.b16 %v2207
      %v3320 = vunpack.c.l.b16 %v2272
      %v3321 = vunpack.c.l.b16 %v2337
      %v3322 = vunpack.c.l.b16 %v2402
      %v3323 = vunpack.c.l.b16 %v1884
      %v3324 = vunpack.c.l.b16 %v1949
      %v3325 = vunpack.c.l.b16 %v2014
      %v3326 = vunpack.c.l.b16 %v2079
      %v3327 = vunpack.c.l.b16 %v2143
      %v3328 = vunpack.c.l.b16 %v2208
      %v3329 = vunpack.c.l.b16 %v2273
      %v3330 = vunpack.c.l.b16 %v2338
      %v3331 = vunpack.c.l.b16 %v2403
      %v3332 = vunpack.c.l.b16 %v1885
      %v3333 = vunpack.c.l.b16 %v1950
      %v3334 = vunpack.c.l.b16 %v2015
      %v3335 = vunpack.c.l.b16 %v2080
      %v3336 = vunpack.c.l.b16 %v2144
      %v3337 = vunpack.c.l.b16 %v2209
      %v3338 = vunpack.c.l.b16 %v2274
      %v3339 = vunpack.c.l.b16 %v2339
      %v3340 = vunpack.c.l.b16 %v2404
      %v3341 = vunpack.c.l.b16 %v1886
      %v3342 = vunpack.c.l.b16 %v1951
      %v3343 = vunpack.c.l.b16 %v2016
      %v3344 = vunpack.c.l.b16 %v2081
      %v3345 = vunpack.c.l.b16 %v2145
      %v3346 = vunpack.c.l.b16 %v2210
      %v3347 = vunpack.c.l.b16 %v2275
      %v3348 = vunpack.c.l.b16 %v2340
      %v3349 = vunpack.c.l.b16 %v2405
      %v3350 = vunpack.c.l.b16 %v1887
      %v3351 = vunpack.c.l.b16 %v1952
      %v3352 = vunpack.c.l.b16 %v2017
      %v3353 = vunpack.c.l.b16 %v2082
      %v3354 = vunpack.c.l.b16 %v2146
      %v3355 = vunpack.c.l.b16 %v2211
      %v3356 = vunpack.c.l.b16 %v2276
      %v3357 = vunpack.c.l.b16 %v2341
      %v3358 = vunpack.c.l.b16 %v2406
      %v3359 = vunpack.c.l.b16 %v1888
      %v3360 = vunpack.c.l.b16 %v1953
      %v3361 = vunpack.c.l.b16 %v2018
      %v3362 = vunpack.c.l.b16 %v2083
      %v3363 = vunpack.c.l.b16 %v2147
      %v3364 = vunpack.c.l.b16 %v2212
      %v3365 = vunpack.c.l.b16 %v2277
      %v3366 = vunpack.c.l.b16 %v2342
      %v3367 = vunpack.c.l.b16 %v2407
      %v3368 = vunpack.c.l.b16 %v1889
      %v3369 = vunpack.c.l.b16 %v1954
      %v3370 = vunpack.c.l.b16 %v2019
      %v3371 = vunpack.c.l.b16 %v2084
      %v3372 = vunpack.c.l.b16 %v2148
      %v3373 = vunpack.c.l.b16 %v2213
      %v3374 = vunpack.c.l.b16 %v2278
      %v3375 = vunpack.c.l.b16 %v2343
      %v3376 = vunpack.c.l.b16 %v2408
      %v3377 = vunpack.c.l.b16 %v1890
      %v3378 = vunpack.c.l.b16 %v1955
      %v3379 = vunpack.c.l.b16 %v2020
      %v3380 = vunpack.c.l.b16 %v2085
      %v3381 = vunpack.c.l.b16 %v2149
      %v3382 = vunpack.c.l.b16 %v2214
      %v3383 = vunpack.c.l.b16 %v2279
      %v3384 = vunpack.c.l.b16 %v2344
      %v3385 = vunpack.c.l.b16 %v2409
      %v3386 = vunpack.c.l.b16 %v1891
      %v3387 = vunpack.c.l.b16 %v1956
      %v3388 = vunpack.c.l.b16 %v2021
      %v3389 = vunpack.c.l.b16 %v2086
      %v3390 = vunpack.c.l.b16 %v2150
      %v3391 = vunpack.c.l.b16 %v2215
      %v3392 = vunpack.c.l.b16 %v2280
      %v3393 = vunpack.c.l.b16 %v2345
      %v3394 = vunpack.c.l.b16 %v2410
      %v3395 = vunpack.c.l.b16 %v1892
      %v3396 = vunpack.c.l.b16 %v1957
      %v3397 = vunpack.c.l.b16 %v2022
      %v3398 = vunpack.c.l.b16 %v2087
      %v3399 = vunpack.c.l.b16 %v2151
      %v3400 = vunpack.c.l.b16 %v2216
      %v3401 = vunpack.c.l.b16 %v2281
      %v3402 = vunpack.c.l.b16 %v2346
      %v3403 = vunpack.c.l.b16 %v2411
      %v3404 = vunpack.c.l.b16 %v1893
      %v3405 = vunpack.c.l.b16 %v1958
      %v3406 = vunpack.c.l.b16 %v2023
      %v3407 = vunpack.c.l.b16 %v2088
      %v3408 = vunpack.c.l.b16 %v2152
      %v3409 = vunpack.c.l.b16 %v2217
      %v3410 = vunpack.c.l.b16 %v2282
      %v3411 = vunpack.c.l.b16 %v2347
      %v3412 = vunpack.c.l.b16 %v2412
      %v3413 = vunpack.c.l.b16 %v1894
      %v3414 = vunpack.c.l.b16 %v1959
      %v3415 = vunpack.c.l.b16 %v2024
      %v3416 = vunpack.c.l.b16 %v2089
      %v3417 = vunpack.c.l.b16 %v2153
      %v3418 = vunpack.c.l.b16 %v2218
      %v3419 = vunpack.c.l.b16 %v2283
      %v3420 = vunpack.c.l.b16 %v2348
      %v3421 = vunpack.c.l.b16 %v2413
      %v3422 = vunpack.c.l.b16 %v1895
      %v3423 = vunpack.c.l.b16 %v1960
      %v3424 = vunpack.c.l.b16 %v2025
      %v3425 = vunpack.c.l.b16 %v2090
      %v3426 = vunpack.c.l.b16 %v2154
      %v3427 = vunpack.c.l.b16 %v2219
      %v3428 = vunpack.c.l.b16 %v2284
      %v3429 = vunpack.c.l.b16 %v2349
      %v3430 = vunpack.c.l.b16 %v2414
      %v3431 = vunpack.c.l.b16 %v1896
      %v3432 = vunpack.c.l.b16 %v1961
      %v3433 = vunpack.c.l.b16 %v2026
      %v3434 = vunpack.c.l.b16 %v2091
      %v3435 = vunpack.c.l.b16 %v2155
      %v3436 = vunpack.c.l.b16 %v2220
      %v3437 = vunpack.c.l.b16 %v2285
      %v3438 = vunpack.c.l.b16 %v2350
      %v3439 = vunpack.c.l.b16 %v2415
      %v3440 = vunpack.c.l.b16 %v1897
      %v3441 = vunpack.c.l.b16 %v1962
      %v3442 = vunpack.c.l.b16 %v2027
      %v3443 = vunpack.c.l.b16 %v2092
      %v3444 = vunpack.c.l.b16 %v2156
      %v3445 = vunpack.c.l.b16 %v2221
      %v3446 = vunpack.c.l.b16 %v2286
      %v3447 = vunpack.c.l.b16 %v2351
      %v3448 = vunpack.c.l.b16 %v2416
      %v3449 = vunpack.c.l.b16 %v1898
      %v3450 = vunpack.c.l.b16 %v1963
      %v3451 = vunpack.c.l.b16 %v2028
      %v3452 = vunpack.c.l.b16 %v2093
      %v3453 = vunpack.c.l.b16 %v2157
      %v3454 = vunpack.c.l.b16 %v2222
      %v3455 = vunpack.c.l.b16 %v2287
      %v3456 = vunpack.c.l.b16 %v2352
      %v3457 = vunpack.c.l.b16 %v2417
      %v3458 = vunpack.c.l.b16 %v1899
      %v3459 = vunpack.c.l.b16 %v1964
      %v3460 = vunpack.c.l.b16 %v2029
      %v3461 = vunpack.c.l.b16 %v2094
      %v3462 = vunpack.c.l.b16 %v2158
      %v3463 = vunpack.c.l.b16 %v2223
      %v3464 = vunpack.c.l.b16 %v2288
      %v3465 = vunpack.c.l.b16 %v2353
      %v3466 = vunpack.c.l.b16 %v2418
      %v3467 = vunpack.c.l.b16 %v1900
      %v3468 = vunpack.c.l.b16 %v1965
      %v3469 = vunpack.c.l.b16 %v2030
      %v3470 = vunpack.c.l.b16 %v2095
      %v3471 = vunpack.c.l.b16 %v2159
      %v3472 = vunpack.c.l.b16 %v2224
      %v3473 = vunpack.c.l.b16 %v2289
      %v3474 = vunpack.c.l.b16 %v2354
      %v3475 = vunpack.c.l.b16 %v2419
      %v3476 = vunpack.c.l.b16 %v1901
      %v3477 = vunpack.c.l.b16 %v1966
      %v3478 = vunpack.c.l.b16 %v2031
      %v3479 = vunpack.c.l.b16 %v2096
      %v3480 = vunpack.c.l.b16 %v2160
      %v3481 = vunpack.c.l.b16 %v2225
      %v3482 = vunpack.c.l.b16 %v2290
      %v3483 = vunpack.c.l.b16 %v2355
      %v3484 = vunpack.c.l.b16 %v2420
      %v3485 = vunpack.c.l.b16 %v1902
      %v3486 = vunpack.c.l.b16 %v1967
      %v3487 = vunpack.c.l.b16 %v2032
      %v3488 = vunpack.c.l.b16 %v2097
      %v3489 = vunpack.c.l.b16 %v2161
      %v3490 = vunpack.c.l.b16 %v2226
      %v3491 = vunpack.c.l.b16 %v2291
      %v3492 = vunpack.c.l.b16 %v2356
      %v3493 = vunpack.c.l.b16 %v2421
      %v3494 = vunpack.c.l.b16 %v1903
      %v3495 = vunpack.c.l.b16 %v1968
      %v3496 = vunpack.c.l.b16 %v2033
      %v3497 = vunpack.c.l.b16 %v2098
      %v3498 = vunpack.c.l.b16 %v2162
      %v3499 = vunpack.c.l.b16 %v2227
      %v3500 = vunpack.c.l.b16 %v2292
      %v3501 = vunpack.c.l.b16 %v2357
      %v3502 = vunpack.c.l.b16 %v2422
      %v3503 = vunpack.c.l.b16 %v1904
      %v3504 = vunpack.c.l.b16 %v1969
      %v3505 = vunpack.c.l.b16 %v2034
      %v3506 = vunpack.c.l.b16 %v2099
      %v3507 = vunpack.c.l.b16 %v2163
      %v3508 = vunpack.c.l.b16 %v2228
      %v3509 = vunpack.c.l.b16 %v2293
      %v3510 = vunpack.c.l.b16 %v2358
      %v3511 = vunpack.c.l.b16 %v2423
      %v3512 = vunpack.c.l.b16 %v1905
      %v3513 = vunpack.c.l.b16 %v1970
      %v3514 = vunpack.c.l.b16 %v2035
      %v3515 = vunpack.c.l.b16 %v2100
      %v3516 = vunpack.c.l.b16 %v2164
      %v3517 = vunpack.c.l.b16 %v2229
      %v3518 = vunpack.c.l.b16 %v2294
      %v3519 = vunpack.c.l.b16 %v2359
      %v3520 = vunpack.c.l.b16 %v2424
      %v3521 = vunpack.c.l.b16 %v1906
      %v3522 = vunpack.c.l.b16 %v1971
      %v3523 = vunpack.c.l.b16 %v2036
      %v3524 = vunpack.c.l.b16 %v2101
      %v3525 = vunpack.c.l.b16 %v2165
      %v3526 = vunpack.c.l.b16 %v2230
      %v3527 = vunpack.c.l.b16 %v2295
      %v3528 = vunpack.c.l.b16 %v2360
      %v3529 = vunpack.c.l.b16 %v2425
      %v3530 = vunpack.c.l.b16 %v1907
      %v3531 = vunpack.c.l.b16 %v1972
      %v3532 = vunpack.c.l.b16 %v2037
      %v3533 = vunpack.c.l.b16 %v2102
      %v3534 = vunpack.c.l.b16 %v2166
      %v3535 = vunpack.c.l.b16 %v2231
      %v3536 = vunpack.c.l.b16 %v2296
      %v3537 = vunpack.c.l.b16 %v2361
      %v3538 = vunpack.c.l.b16 %v2426
      %v3539 = vunpack.c.l.b16 %v1908
      %v3540 = vunpack.c.l.b16 %v1973
      %v3541 = vunpack.c.l.b16 %v2038
      %v3542 = vunpack.c.l.b16 %v2103
      %v3543 = vunpack.c.l.b16 %v2167
      %v3544 = vunpack.c.l.b16 %v2232
      %v3545 = vunpack.c.l.b16 %v2297
      %v3546 = vunpack.c.l.b16 %v2362
      %v3547 = vunpack.c.l.b16 %v2427
      %v3548 = vunpack.c.l.b16 %v1909
      %v3549 = vunpack.c.l.b16 %v1974
      %v3550 = vunpack.c.l.b16 %v2039
      %v3551 = vunpack.c.l.b16 %v2104
      %v3552 = vunpack.c.l.b16 %v2168
      %v3553 = vunpack.c.l.b16 %v2233
      %v3554 = vunpack.c.l.b16 %v2298
      %v3555 = vunpack.c.l.b16 %v2363
      %v3556 = vunpack.c.l.b16 %v2428
      %v3557 = vunpack.c.l.b16 %v1910
      %v3558 = vunpack.c.l.b16 %v1975
      %v3559 = vunpack.c.l.b16 %v2040
      %v3560 = vunpack.c.l.b16 %v2105
      %v3561 = vunpack.c.l.b16 %v2169
      %v3562 = vunpack.c.l.b16 %v2234
      %v3563 = vunpack.c.l.b16 %v2299
      %v3564 = vunpack.c.l.b16 %v2364
      %v3565 = vunpack.c.l.b16 %v2429
      %v3566 = vunpack.c.l.b16 %v1911
      %v3567 = vunpack.c.l.b16 %v1976
      %v3568 = vunpack.c.l.b16 %v2041
      %v3569 = vunpack.c.l.b16 %v2106
      %v3570 = vunpack.c.l.b16 %v2170
      %v3571 = vunpack.c.l.b16 %v2235
      %v3572 = vunpack.c.l.b16 %v2300
      %v3573 = vunpack.c.l.b16 %v2365
      %v3574 = vunpack.c.l.b16 %v2430
      %v3575 = vunpack.c.l.b16 %v1912
      %v3576 = vunpack.c.l.b16 %v1977
      %v3577 = vunpack.c.l.b16 %v2042
      %v3578 = vunpack.c.l.b16 %v2107
      %v3579 = vunpack.c.l.b16 %v2171
      %v3580 = vunpack.c.l.b16 %v2236
      %v3581 = vunpack.c.l.b16 %v2301
      %v3582 = vunpack.c.l.b16 %v2366
      %v3583 = vunpack.c.l.b16 %v2431
      %v3584 = vld [vmem:[%s5] sm:$0xf]
      %v3585 = vld [vmem:[%s5 + $0x4] sm:$0xf]
      %v3586 = vld [vmem:[%s5 + $0x8] sm:$0xf]
      %v3587 = vld [vmem:[%s5 + $0xc] sm:$0xf]
      %v3588 = vld [vmem:[%s5 + $0x10] sm:$0xf]
      %v3589 = vld [vmem:[%s5 + $0x14] sm:$0xf]
      %v3590 = vld [vmem:[%s5 + $0x18] sm:$0xf]
      %v3591 = vld [vmem:[%s5 + $0x1c] sm:$0xf]
      %v3592 = vld [vmem:[%s5 + $0x20] sm:$0xf]
      %v3593 = vld [vmem:[%s5 + $0x24] sm:$0xf]
      %v3594 = vld [vmem:[%s5 + $0x28] sm:$0xf]
      %v3595 = vld [vmem:[%s5 + $0x2c] sm:$0xf]
      %v3596 = vld [vmem:[%s5 + $0x30] sm:$0xf]
      %v3597 = vld [vmem:[%s5 + $0x34] sm:$0xf]
      %v3598 = vld [vmem:[%s5 + $0x38] sm:$0xf]
      %v3599 = vld [vmem:[%s5 + $0x3c] sm:$0xf]
      %v3600 = vld [vmem:[%s5 + $0x40] sm:$0xf]
      %v3601 = vld [vmem:[%s5 + $0x44] sm:$0xf]
      %v3602 = vld [vmem:[%s5 + $0x48] sm:$0xf]
      %v3603 = vld [vmem:[%s5 + $0x4c] sm:$0xf]
      %v3604 = vld [vmem:[%s5 + $0x50] sm:$0xf]
      %v3605 = vld [vmem:[%s5 + $0x54] sm:$0xf]
      %v3606 = vld [vmem:[%s5 + $0x58] sm:$0xf]
      %v3607 = vld [vmem:[%s5 + $0x5c] sm:$0xf]
      %v3608 = vld [vmem:[%s5 + $0x60] sm:$0xf]
      %v3609 = vld [vmem:[%s5 + $0x64] sm:$0xf]
      %v3610 = vld [vmem:[%s5 + $0x68] sm:$0xf]
      %v3611 = vld [vmem:[%s5 + $0x6c] sm:$0xf]
      %v3612 = vld [vmem:[%s5 + $0x70] sm:$0xf]
      %v3613 = vld [vmem:[%s5 + $0x74] sm:$0xf]
      %v3614 = vld [vmem:[%s5 + $0x78] sm:$0xf]
      %v3615 = vld [vmem:[%s5 + $0x7c] sm:$0xf]
      %v3616 = vld [vmem:[%s5 + $0x80] sm:$0xf]
      %v3617 = vld [vmem:[%s5 + $0x84] sm:$0xf]
      %v3618 = vld [vmem:[%s5 + $0x88] sm:$0xf]
      %v3619 = vld [vmem:[%s5 + $0x8c] sm:$0xf]
      %v3620 = vld [vmem:[%s5 + $0x90] sm:$0xf]
      %v3621 = vld [vmem:[%s5 + $0x94] sm:$0xf]
      %v3622 = vld [vmem:[%s5 + $0x98] sm:$0xf]
      %v3623 = vld [vmem:[%s5 + $0x9c] sm:$0xf]
      %v3624 = vld [vmem:[%s5 + $0xa0] sm:$0xf]
      %v3625 = vld [vmem:[%s5 + $0xa4] sm:$0xf]
      %v3626 = vld [vmem:[%s5 + $0xa8] sm:$0xf]
      %v3627 = vld [vmem:[%s5 + $0xac] sm:$0xf]
      %v3628 = vld [vmem:[%s5 + $0xb0] sm:$0xf]
      %v3629 = vld [vmem:[%s5 + $0xb4] sm:$0xf]
      %v3630 = vld [vmem:[%s5 + $0xb8] sm:$0xf]
      %v3631 = vld [vmem:[%s5 + $0xbc] sm:$0xf]
      %v3632 = vld [vmem:[%s5 + $0xc0] sm:$0xf]
      %v3633 = vld [vmem:[%s5 + $0xc4] sm:$0xf]
      %v3634 = vld [vmem:[%s5 + $0xc8] sm:$0xf]
      %v3635 = vld [vmem:[%s5 + $0xcc] sm:$0xf]
      %v3636 = vld [vmem:[%s5 + $0xd0] sm:$0xf]
      %v3637 = vld [vmem:[%s5 + $0xd4] sm:$0xf]
      %v3638 = vld [vmem:[%s5 + $0xd8] sm:$0xf]
      %v3639 = vld [vmem:[%s5 + $0xdc] sm:$0xf]
      %v3640 = vld [vmem:[%s5 + $0xe0] sm:$0xf]
      %v3641 = vld [vmem:[%s5 + $0xe4] sm:$0xf]
      %v3642 = vld [vmem:[%s5 + $0xe8] sm:$0xf]
      %v3643 = vld [vmem:[%s5 + $0xec] sm:$0xf]
      %v3644 = vld [vmem:[%s5 + $0xf0] sm:$0xf]
      %v3645 = vld [vmem:[%s5 + $0xf4] sm:$0xf]
      %v3646 = vld [vmem:[%s5 + $0xf8] sm:$0xf]
      %v3647 = vld [vmem:[%s5 + $0xfc] sm:$0xf]
      %v3648 = vld [vmem:[%s5 + $0x100] sm:$0xf]
      %v3649 = vld [vmem:[%s5 + $0x104] sm:$0xf]
      %v3650 = vld [vmem:[%s5 + $0x108] sm:$0xf]
      %v3651 = vld [vmem:[%s5 + $0x10c] sm:$0xf]
      %v3652 = vld [vmem:[%s5 + $0x110] sm:$0xf]
      %v3653 = vld [vmem:[%s5 + $0x114] sm:$0xf]
      %v3654 = vld [vmem:[%s5 + $0x118] sm:$0xf]
      %v3655 = vld [vmem:[%s5 + $0x11c] sm:$0xf]
      %v3656 = vld [vmem:[%s5 + $0x120] sm:$0xf]
      %v3657 = vld [vmem:[%s5 + $0x124] sm:$0xf]
      %v3658 = vld [vmem:[%s5 + $0x128] sm:$0xf]
      %v3659 = vld [vmem:[%s5 + $0x12c] sm:$0xf]
      %v3660 = vld [vmem:[%s5 + $0x130] sm:$0xf]
      %v3661 = vld [vmem:[%s5 + $0x134] sm:$0xf]
      %v3662 = vld [vmem:[%s5 + $0x138] sm:$0xf]
      %v3663 = vld [vmem:[%s5 + $0x13c] sm:$0xf]
      %v3664 = vld [vmem:[%s5 + $0x140] sm:$0xf]
      %v3665 = vld [vmem:[%s5 + $0x144] sm:$0xf]
      %v3666 = vld [vmem:[%s5 + $0x148] sm:$0xf]
      %v3667 = vld [vmem:[%s5 + $0x14c] sm:$0xf]
      %v3668 = vld [vmem:[%s5 + $0x150] sm:$0xf]
      %v3669 = vld [vmem:[%s5 + $0x154] sm:$0xf]
      %v3670 = vld [vmem:[%s5 + $0x158] sm:$0xf]
      %v3671 = vld [vmem:[%s5 + $0x15c] sm:$0xf]
      %v3672 = vld [vmem:[%s5 + $0x160] sm:$0xf]
      %v3673 = vld [vmem:[%s5 + $0x164] sm:$0xf]
      %v3674 = vld [vmem:[%s5 + $0x168] sm:$0xf]
      %v3675 = vld [vmem:[%s5 + $0x16c] sm:$0xf]
      %v3676 = vld [vmem:[%s5 + $0x170] sm:$0xf]
      %v3677 = vld [vmem:[%s5 + $0x174] sm:$0xf]
      %v3678 = vld [vmem:[%s5 + $0x178] sm:$0xf]
      %v3679 = vld [vmem:[%s5 + $0x17c] sm:$0xf]
      %v3680 = vld [vmem:[%s5 + $0x180] sm:$0xf]
      %v3681 = vld [vmem:[%s5 + $0x184] sm:$0xf]
      %v3682 = vld [vmem:[%s5 + $0x188] sm:$0xf]
      %v3683 = vld [vmem:[%s5 + $0x18c] sm:$0xf]
      %v3684 = vld [vmem:[%s5 + $0x190] sm:$0xf]
      %v3685 = vld [vmem:[%s5 + $0x194] sm:$0xf]
      %v3686 = vld [vmem:[%s5 + $0x198] sm:$0xf]
      %v3687 = vld [vmem:[%s5 + $0x19c] sm:$0xf]
      %v3688 = vld [vmem:[%s5 + $0x1a0] sm:$0xf]
      %v3689 = vld [vmem:[%s5 + $0x1a4] sm:$0xf]
      %v3690 = vld [vmem:[%s5 + $0x1a8] sm:$0xf]
      %v3691 = vld [vmem:[%s5 + $0x1ac] sm:$0xf]
      %v3692 = vld [vmem:[%s5 + $0x1b0] sm:$0xf]
      %v3693 = vld [vmem:[%s5 + $0x1b4] sm:$0xf]
      %v3694 = vld [vmem:[%s5 + $0x1b8] sm:$0xf]
      %v3695 = vld [vmem:[%s5 + $0x1bc] sm:$0xf]
      %v3696 = vld [vmem:[%s5 + $0x1c0] sm:$0xf]
      %v3697 = vld [vmem:[%s5 + $0x1c4] sm:$0xf]
      %v3698 = vld [vmem:[%s5 + $0x1c8] sm:$0xf]
      %v3699 = vld [vmem:[%s5 + $0x1cc] sm:$0xf]
      %v3700 = vld [vmem:[%s5 + $0x1d0] sm:$0xf]
      %v3701 = vld [vmem:[%s5 + $0x1d4] sm:$0xf]
      %v3702 = vld [vmem:[%s5 + $0x1d8] sm:$0xf]
      %v3703 = vld [vmem:[%s5 + $0x1dc] sm:$0xf]
      %v3704 = vld [vmem:[%s5 + $0x1e0] sm:$0xf]
      %v3705 = vld [vmem:[%s5 + $0x1e4] sm:$0xf]
      %v3706 = vld [vmem:[%s5 + $0x1e8] sm:$0xf]
      %v3707 = vld [vmem:[%s5 + $0x1ec] sm:$0xf]
      %v3708 = vld [vmem:[%s5 + $0x1f0] sm:$0xf]
      %v3709 = vld [vmem:[%s5 + $0x1f4] sm:$0xf]
      %v3710 = vld [vmem:[%s5 + $0x1f8] sm:$0xf]
      %v3711 = vld [vmem:[%s5 + $0x1fc] sm:$0xf]
      %v3712 = vld [vmem:[%s5 + $0x200] sm:$0xf]
      %v3713 = vld [vmem:[%s5 + $0x204] sm:$0xf]
      %v3714 = vld [vmem:[%s5 + $0x208] sm:$0xf]
      %v3715 = vld [vmem:[%s5 + $0x20c] sm:$0xf]
      %v3716 = vld [vmem:[%s5 + $0x210] sm:$0xf]
      %v3717 = vld [vmem:[%s5 + $0x214] sm:$0xf]
      %v3718 = vld [vmem:[%s5 + $0x218] sm:$0xf]
      %v3719 = vld [vmem:[%s5 + $0x21c] sm:$0xf]
      %v3720 = vld [vmem:[%s5 + $0x220] sm:$0xf]
      %v3721 = vld [vmem:[%s5 + $0x224] sm:$0xf]
      %v3722 = vld [vmem:[%s5 + $0x228] sm:$0xf]
      %v3723 = vld [vmem:[%s5 + $0x22c] sm:$0xf]
      %v3724 = vld [vmem:[%s5 + $0x230] sm:$0xf]
      %v3725 = vld [vmem:[%s5 + $0x234] sm:$0xf]
      %v3726 = vld [vmem:[%s5 + $0x238] sm:$0xf]
      %v3727 = vld [vmem:[%s5 + $0x23c] sm:$0xf]
      %v3728 = vpack.c.b16 %v3017, %v3008
      %v3729 = vpack.c.b16 %v3018, %v3009
      %v3730 = vpack.c.b16 %v3019, %v3010
      %v3731 = vpack.c.b16 %v3020, %v3011
      %v3732 = vpack.c.b16 %v3021, %v3012
      %v3733 = vpack.c.b16 %v3022, %v3013
      %v3734 = vpack.c.b16 %v3023, %v3014
      %v3735 = vpack.c.b16 %v3024, %v3015
      %v3736 = vpack.c.b16 %v3025, %v3016
      %v3737 = vpack.c.b16 %v3035, %v3026
      %v3738 = vpack.c.b16 %v3036, %v3027
      %v3739 = vpack.c.b16 %v3037, %v3028
      %v3740 = vpack.c.b16 %v3038, %v3029
      %v3741 = vpack.c.b16 %v3039, %v3030
      %v3742 = vpack.c.b16 %v3040, %v3031
      %v3743 = vpack.c.b16 %v3041, %v3032
      %v3744 = vpack.c.b16 %v3042, %v3033
      %v3745 = vpack.c.b16 %v3043, %v3034
      %v3746 = vpack.c.b16 %v3053, %v3044
      %v3747 = vpack.c.b16 %v3054, %v3045
      %v3748 = vpack.c.b16 %v3055, %v3046
      %v3749 = vpack.c.b16 %v3056, %v3047
      %v3750 = vpack.c.b16 %v3057, %v3048
      %v3751 = vpack.c.b16 %v3058, %v3049
      %v3752 = vpack.c.b16 %v3059, %v3050
      %v3753 = vpack.c.b16 %v3060, %v3051
      %v3754 = vpack.c.b16 %v3061, %v3052
      %v3755 = vpack.c.b16 %v3071, %v3062
      %v3756 = vpack.c.b16 %v3072, %v3063
      %v3757 = vpack.c.b16 %v3073, %v3064
      %v3758 = vpack.c.b16 %v3074, %v3065
      %v3759 = vpack.c.b16 %v3075, %v3066
      %v3760 = vpack.c.b16 %v3076, %v3067
      %v3761 = vpack.c.b16 %v3077, %v3068
      %v3762 = vpack.c.b16 %v3078, %v3069
      %v3763 = vpack.c.b16 %v3079, %v3070
      %v3764 = vpack.c.b16 %v3089, %v3080
      %v3765 = vpack.c.b16 %v3090, %v3081
      %v3766 = vpack.c.b16 %v3091, %v3082
      %v3767 = vpack.c.b16 %v3092, %v3083
      %v3768 = vpack.c.b16 %v3093, %v3084
      %v3769 = vpack.c.b16 %v3094, %v3085
      %v3770 = vpack.c.b16 %v3095, %v3086
      %v3771 = vpack.c.b16 %v3096, %v3087
      %v3772 = vpack.c.b16 %v3097, %v3088
      %v3773 = vpack.c.b16 %v3107, %v3098
      %v3774 = vpack.c.b16 %v3108, %v3099
      %v3775 = vpack.c.b16 %v3109, %v3100
      %v3776 = vpack.c.b16 %v3110, %v3101
      %v3777 = vpack.c.b16 %v3111, %v3102
      %v3778 = vpack.c.b16 %v3112, %v3103
      %v3779 = vpack.c.b16 %v3113, %v3104
      %v3780 = vpack.c.b16 %v3114, %v3105
      %v3781 = vpack.c.b16 %v3115, %v3106
      %v3782 = vpack.c.b16 %v3125, %v3116
      %v3783 = vpack.c.b16 %v3126, %v3117
      %v3784 = vpack.c.b16 %v3127, %v3118
      %v3785 = vpack.c.b16 %v3128, %v3119
      %v3786 = vpack.c.b16 %v3129, %v3120
      %v3787 = vpack.c.b16 %v3130, %v3121
      %v3788 = vpack.c.b16 %v3131, %v3122
      %v3789 = vpack.c.b16 %v3132, %v3123
      %v3790 = vpack.c.b16 %v3133, %v3124
      %v3791 = vpack.c.b16 %v3143, %v3134
      %v3792 = vpack.c.b16 %v3144, %v3135
      %v3793 = vpack.c.b16 %v3145, %v3136
      %v3794 = vpack.c.b16 %v3146, %v3137
      %v3795 = vpack.c.b16 %v3147, %v3138
      %v3796 = vpack.c.b16 %v3148, %v3139
      %v3797 = vpack.c.b16 %v3149, %v3140
      %v3798 = vpack.c.b16 %v3150, %v3141
      %v3799 = vpack.c.b16 %v3151, %v3142
      %v3800 = vpack.c.b16 %v3161, %v3152
      %v3801 = vpack.c.b16 %v3162, %v3153
      %v3802 = vpack.c.b16 %v3163, %v3154
      %v3803 = vpack.c.b16 %v3164, %v3155
      %v3804 = vpack.c.b16 %v3165, %v3156
      %v3805 = vpack.c.b16 %v3166, %v3157
      %v3806 = vpack.c.b16 %v3167, %v3158
      %v3807 = vpack.c.b16 %v3168, %v3159
      %v3808 = vpack.c.b16 %v3169, %v3160
      %v3809 = vpack.c.b16 %v3179, %v3170
      %v3810 = vpack.c.b16 %v3180, %v3171
      %v3811 = vpack.c.b16 %v3181, %v3172
      %v3812 = vpack.c.b16 %v3182, %v3173
      %v3813 = vpack.c.b16 %v3183, %v3174
      %v3814 = vpack.c.b16 %v3184, %v3175
      %v3815 = vpack.c.b16 %v3185, %v3176
      %v3816 = vpack.c.b16 %v3186, %v3177
      %v3817 = vpack.c.b16 %v3187, %v3178
      %v3818 = vpack.c.b16 %v3197, %v3188
      %v3819 = vpack.c.b16 %v3198, %v3189
      %v3820 = vpack.c.b16 %v3199, %v3190
      %v3821 = vpack.c.b16 %v3200, %v3191
      %v3822 = vpack.c.b16 %v3201, %v3192
      %v3823 = vpack.c.b16 %v3202, %v3193
      %v3824 = vpack.c.b16 %v3203, %v3194
      %v3825 = vpack.c.b16 %v3204, %v3195
      %v3826 = vpack.c.b16 %v3205, %v3196
      %v3827 = vpack.c.b16 %v3215, %v3206
      %v3828 = vpack.c.b16 %v3216, %v3207
      %v3829 = vpack.c.b16 %v3217, %v3208
      %v3830 = vpack.c.b16 %v3218, %v3209
      %v3831 = vpack.c.b16 %v3219, %v3210
      %v3832 = vpack.c.b16 %v3220, %v3211
      %v3833 = vpack.c.b16 %v3221, %v3212
      %v3834 = vpack.c.b16 %v3222, %v3213
      %v3835 = vpack.c.b16 %v3223, %v3214
      %v3836 = vpack.c.b16 %v3233, %v3224
      %v3837 = vpack.c.b16 %v3234, %v3225
      %v3838 = vpack.c.b16 %v3235, %v3226
      %v3839 = vpack.c.b16 %v3236, %v3227
      %v3840 = vpack.c.b16 %v3237, %v3228
      %v3841 = vpack.c.b16 %v3238, %v3229
      %v3842 = vpack.c.b16 %v3239, %v3230
      %v3843 = vpack.c.b16 %v3240, %v3231
      %v3844 = vpack.c.b16 %v3241, %v3232
      %v3845 = vpack.c.b16 %v3251, %v3242
      %v3846 = vpack.c.b16 %v3252, %v3243
      %v3847 = vpack.c.b16 %v3253, %v3244
      %v3848 = vpack.c.b16 %v3254, %v3245
      %v3849 = vpack.c.b16 %v3255, %v3246
      %v3850 = vpack.c.b16 %v3256, %v3247
      %v3851 = vpack.c.b16 %v3257, %v3248
      %v3852 = vpack.c.b16 %v3258, %v3249
      %v3853 = vpack.c.b16 %v3259, %v3250
      %v3854 = vpack.c.b16 %v3269, %v3260
      %v3855 = vpack.c.b16 %v3270, %v3261
      %v3856 = vpack.c.b16 %v3271, %v3262
      %v3857 = vpack.c.b16 %v3272, %v3263
      %v3858 = vpack.c.b16 %v3273, %v3264
      %v3859 = vpack.c.b16 %v3274, %v3265
      %v3860 = vpack.c.b16 %v3275, %v3266
      %v3861 = vpack.c.b16 %v3276, %v3267
      %v3862 = vpack.c.b16 %v3277, %v3268
      %v3863 = vpack.c.b16 %v3287, %v3278
      %v3864 = vpack.c.b16 %v3288, %v3279
      %v3865 = vpack.c.b16 %v3289, %v3280
      %v3866 = vpack.c.b16 %v3290, %v3281
      %v3867 = vpack.c.b16 %v3291, %v3282
      %v3868 = vpack.c.b16 %v3292, %v3283
      %v3869 = vpack.c.b16 %v3293, %v3284
      %v3870 = vpack.c.b16 %v3294, %v3285
      %v3871 = vpack.c.b16 %v3295, %v3286
      %v3872 = vpack.c.b16 %v3305, %v3296
      %v3873 = vpack.c.b16 %v3306, %v3297
      %v3874 = vpack.c.b16 %v3307, %v3298
      %v3875 = vpack.c.b16 %v3308, %v3299
      %v3876 = vpack.c.b16 %v3309, %v3300
      %v3877 = vpack.c.b16 %v3310, %v3301
      %v3878 = vpack.c.b16 %v3311, %v3302
      %v3879 = vpack.c.b16 %v3312, %v3303
      %v3880 = vpack.c.b16 %v3313, %v3304
      %v3881 = vpack.c.b16 %v3323, %v3314
      %v3882 = vpack.c.b16 %v3324, %v3315
      %v3883 = vpack.c.b16 %v3325, %v3316
      %v3884 = vpack.c.b16 %v3326, %v3317
      %v3885 = vpack.c.b16 %v3327, %v3318
      %v3886 = vpack.c.b16 %v3328, %v3319
      %v3887 = vpack.c.b16 %v3329, %v3320
      %v3888 = vpack.c.b16 %v3330, %v3321
      %v3889 = vpack.c.b16 %v3331, %v3322
      %v3890 = vpack.c.b16 %v3341, %v3332
      %v3891 = vpack.c.b16 %v3342, %v3333
      %v3892 = vpack.c.b16 %v3343, %v3334
      %v3893 = vpack.c.b16 %v3344, %v3335
      %v3894 = vpack.c.b16 %v3345, %v3336
      %v3895 = vpack.c.b16 %v3346, %v3337
      %v3896 = vpack.c.b16 %v3347, %v3338
      %v3897 = vpack.c.b16 %v3348, %v3339
      %v3898 = vpack.c.b16 %v3349, %v3340
      %v3899 = vpack.c.b16 %v3359, %v3350
      %v3900 = vpack.c.b16 %v3360, %v3351
      %v3901 = vpack.c.b16 %v3361, %v3352
      %v3902 = vpack.c.b16 %v3362, %v3353
      %v3903 = vpack.c.b16 %v3363, %v3354
      %v3904 = vpack.c.b16 %v3364, %v3355
      %v3905 = vpack.c.b16 %v3365, %v3356
      %v3906 = vpack.c.b16 %v3366, %v3357
      %v3907 = vpack.c.b16 %v3367, %v3358
      %v3908 = vpack.c.b16 %v3377, %v3368
      %v3909 = vpack.c.b16 %v3378, %v3369
      %v3910 = vpack.c.b16 %v3379, %v3370
      %v3911 = vpack.c.b16 %v3380, %v3371
      %v3912 = vpack.c.b16 %v3381, %v3372
      %v3913 = vpack.c.b16 %v3382, %v3373
      %v3914 = vpack.c.b16 %v3383, %v3374
      %v3915 = vpack.c.b16 %v3384, %v3375
      %v3916 = vpack.c.b16 %v3385, %v3376
      %v3917 = vpack.c.b16 %v3395, %v3386
      %v3918 = vpack.c.b16 %v3396, %v3387
      %v3919 = vpack.c.b16 %v3397, %v3388
      %v3920 = vpack.c.b16 %v3398, %v3389
      %v3921 = vpack.c.b16 %v3399, %v3390
      %v3922 = vpack.c.b16 %v3400, %v3391
      %v3923 = vpack.c.b16 %v3401, %v3392
      %v3924 = vpack.c.b16 %v3402, %v3393
      %v3925 = vpack.c.b16 %v3403, %v3394
      %v3926 = vpack.c.b16 %v3413, %v3404
      %v3927 = vpack.c.b16 %v3414, %v3405
      %v3928 = vpack.c.b16 %v3415, %v3406
      %v3929 = vpack.c.b16 %v3416, %v3407
      %v3930 = vpack.c.b16 %v3417, %v3408
      %v3931 = vpack.c.b16 %v3418, %v3409
      %v3932 = vpack.c.b16 %v3419, %v3410
      %v3933 = vpack.c.b16 %v3420, %v3411
      %v3934 = vpack.c.b16 %v3421, %v3412
      %v3935 = vpack.c.b16 %v3431, %v3422
      %v3936 = vpack.c.b16 %v3432, %v3423
      %v3937 = vpack.c.b16 %v3433, %v3424
      %v3938 = vpack.c.b16 %v3434, %v3425
      %v3939 = vpack.c.b16 %v3435, %v3426
      %v3940 = vpack.c.b16 %v3436, %v3427
      %v3941 = vpack.c.b16 %v3437, %v3428
      %v3942 = vpack.c.b16 %v3438, %v3429
      %v3943 = vpack.c.b16 %v3439, %v3430
      %v3944 = vpack.c.b16 %v3449, %v3440
      %v3945 = vpack.c.b16 %v3450, %v3441
      %v3946 = vpack.c.b16 %v3451, %v3442
      %v3947 = vpack.c.b16 %v3452, %v3443
      %v3948 = vpack.c.b16 %v3453, %v3444
      %v3949 = vpack.c.b16 %v3454, %v3445
      %v3950 = vpack.c.b16 %v3455, %v3446
      %v3951 = vpack.c.b16 %v3456, %v3447
      %v3952 = vpack.c.b16 %v3457, %v3448
      %v3953 = vpack.c.b16 %v3467, %v3458
      %v3954 = vpack.c.b16 %v3468, %v3459
      %v3955 = vpack.c.b16 %v3469, %v3460
      %v3956 = vpack.c.b16 %v3470, %v3461
      %v3957 = vpack.c.b16 %v3471, %v3462
      %v3958 = vpack.c.b16 %v3472, %v3463
      %v3959 = vpack.c.b16 %v3473, %v3464
      %v3960 = vpack.c.b16 %v3474, %v3465
      %v3961 = vpack.c.b16 %v3475, %v3466
      %v3962 = vpack.c.b16 %v3485, %v3476
      %v3963 = vpack.c.b16 %v3486, %v3477
      %v3964 = vpack.c.b16 %v3487, %v3478
      %v3965 = vpack.c.b16 %v3488, %v3479
      %v3966 = vpack.c.b16 %v3489, %v3480
      %v3967 = vpack.c.b16 %v3490, %v3481
      %v3968 = vpack.c.b16 %v3491, %v3482
      %v3969 = vpack.c.b16 %v3492, %v3483
      %v3970 = vpack.c.b16 %v3493, %v3484
      %v3971 = vpack.c.b16 %v3503, %v3494
      %v3972 = vpack.c.b16 %v3504, %v3495
      %v3973 = vpack.c.b16 %v3505, %v3496
      %v3974 = vpack.c.b16 %v3506, %v3497
      %v3975 = vpack.c.b16 %v3507, %v3498
      %v3976 = vpack.c.b16 %v3508, %v3499
      %v3977 = vpack.c.b16 %v3509, %v3500
      %v3978 = vpack.c.b16 %v3510, %v3501
      %v3979 = vpack.c.b16 %v3511, %v3502
      %v3980 = vpack.c.b16 %v3521, %v3512
      %v3981 = vpack.c.b16 %v3522, %v3513
      %v3982 = vpack.c.b16 %v3523, %v3514
      %v3983 = vpack.c.b16 %v3524, %v3515
      %v3984 = vpack.c.b16 %v3525, %v3516
      %v3985 = vpack.c.b16 %v3526, %v3517
      %v3986 = vpack.c.b16 %v3527, %v3518
      %v3987 = vpack.c.b16 %v3528, %v3519
      %v3988 = vpack.c.b16 %v3529, %v3520
      %v3989 = vpack.c.b16 %v3539, %v3530
      %v3990 = vpack.c.b16 %v3540, %v3531
      %v3991 = vpack.c.b16 %v3541, %v3532
      %v3992 = vpack.c.b16 %v3542, %v3533
      %v3993 = vpack.c.b16 %v3543, %v3534
      %v3994 = vpack.c.b16 %v3544, %v3535
      %v3995 = vpack.c.b16 %v3545, %v3536
      %v3996 = vpack.c.b16 %v3546, %v3537
      %v3997 = vpack.c.b16 %v3547, %v3538
      %v3998 = vpack.c.b16 %v3557, %v3548
      %v3999 = vpack.c.b16 %v3558, %v3549
      %v4000 = vpack.c.b16 %v3559, %v3550
      %v4001 = vpack.c.b16 %v3560, %v3551
      %v4002 = vpack.c.b16 %v3561, %v3552
      %v4003 = vpack.c.b16 %v3562, %v3553
      %v4004 = vpack.c.b16 %v3563, %v3554
      %v4005 = vpack.c.b16 %v3564, %v3555
      %v4006 = vpack.c.b16 %v3565, %v3556
      %v4007 = vpack.c.b16 %v3575, %v3566
      %v4008 = vpack.c.b16 %v3576, %v3567
      %v4009 = vpack.c.b16 %v3577, %v3568
      %v4010 = vpack.c.b16 %v3578, %v3569
      %v4011 = vpack.c.b16 %v3579, %v3570
      %v4012 = vpack.c.b16 %v3580, %v3571
      %v4013 = vpack.c.b16 %v3581, %v3572
      %v4014 = vpack.c.b16 %v3582, %v3573
      %v4015 = vpack.c.b16 %v3583, %v3574
      %v4448 = vunpack.c.l.b16 %v3584
      %v4449 = vunpack.c.l.b16 %v3585
      %v4450 = vunpack.c.l.b16 %v3586
      %v4451 = vunpack.c.l.b16 %v3587
      %v4452 = vunpack.c.l.b16 %v3588
      %v4453 = vunpack.c.l.b16 %v3589
      %v4454 = vunpack.c.l.b16 %v3590
      %v4455 = vunpack.c.l.b16 %v3591
      %v4456 = vunpack.c.l.b16 %v3592
      %v4457 = vunpack.c.l.b16 %v3593
      %v4458 = vunpack.c.l.b16 %v3594
      %v4459 = vunpack.c.l.b16 %v3595
      %v4460 = vunpack.c.l.b16 %v3596
      %v4461 = vunpack.c.l.b16 %v3597
      %v4462 = vunpack.c.l.b16 %v3598
      %v4463 = vunpack.c.l.b16 %v3599
      %v4464 = vunpack.c.l.b16 %v3600
      %v4465 = vunpack.c.l.b16 %v3601
      %v4466 = vunpack.c.l.b16 %v3602
      %v4467 = vunpack.c.l.b16 %v3603
      %v4468 = vunpack.c.l.b16 %v3604
      %v4469 = vunpack.c.l.b16 %v3605
      %v4470 = vunpack.c.l.b16 %v3606
      %v4471 = vunpack.c.l.b16 %v3607
      %v4472 = vunpack.c.l.b16 %v3608
      %v4473 = vunpack.c.l.b16 %v3609
      %v4474 = vunpack.c.l.b16 %v3610
      %v4475 = vunpack.c.l.b16 %v3611
      %v4476 = vunpack.c.l.b16 %v3612
      %v4477 = vunpack.c.l.b16 %v3613
      %v4478 = vunpack.c.l.b16 %v3614
      %v4479 = vunpack.c.l.b16 %v3615
      %v4480 = vunpack.c.l.b16 %v3616
      %v4481 = vunpack.c.l.b16 %v3617
      %v4482 = vunpack.c.l.b16 %v3618
      %v4483 = vunpack.c.l.b16 %v3619
      %v4484 = vunpack.c.l.b16 %v3620
      %v4485 = vunpack.c.l.b16 %v3621
      %v4486 = vunpack.c.l.b16 %v3622
      %v4487 = vunpack.c.l.b16 %v3623
      %v4488 = vunpack.c.l.b16 %v3624
      %v4489 = vunpack.c.l.b16 %v3625
      %v4490 = vunpack.c.l.b16 %v3626
      %v4491 = vunpack.c.l.b16 %v3627
      %v4492 = vunpack.c.l.b16 %v3628
      %v4493 = vunpack.c.l.b16 %v3629
      %v4494 = vunpack.c.l.b16 %v3630
      %v4495 = vunpack.c.l.b16 %v3631
      %v4496 = vunpack.c.l.b16 %v3632
      %v4497 = vunpack.c.l.b16 %v3633
      %v4498 = vunpack.c.l.b16 %v3634
      %v4499 = vunpack.c.l.b16 %v3635
      %v4500 = vunpack.c.l.b16 %v3636
      %v4501 = vunpack.c.l.b16 %v3637
      %v4502 = vunpack.c.l.b16 %v3638
      %v4503 = vunpack.c.l.b16 %v3639
      %v4504 = vunpack.c.l.b16 %v3640
      %v4505 = vunpack.c.l.b16 %v3641
      %v4506 = vunpack.c.l.b16 %v3642
      %v4507 = vunpack.c.l.b16 %v3643
      %v4508 = vunpack.c.l.b16 %v3644
      %v4509 = vunpack.c.l.b16 %v3645
      %v4510 = vunpack.c.l.b16 %v3646
      %v4511 = vunpack.c.l.b16 %v3647
      %v4512 = vunpack.c.l.b16 %v3648
      %v4513 = vunpack.c.l.b16 %v3649
      %v4514 = vunpack.c.l.b16 %v3650
      %v4515 = vunpack.c.l.b16 %v3651
      %v4516 = vunpack.c.l.b16 %v3652
      %v4517 = vunpack.c.l.b16 %v3653
      %v4518 = vunpack.c.l.b16 %v3654
      %v4519 = vunpack.c.l.b16 %v3655
      %v4520 = vunpack.c.l.b16 %v3656
      %v4521 = vunpack.c.l.b16 %v3657
      %v4522 = vunpack.c.l.b16 %v3658
      %v4523 = vunpack.c.l.b16 %v3659
      %v4524 = vunpack.c.l.b16 %v3660
      %v4525 = vunpack.c.l.b16 %v3661
      %v4526 = vunpack.c.l.b16 %v3662
      %v4527 = vunpack.c.l.b16 %v3663
      %v4528 = vunpack.c.l.b16 %v3664
      %v4529 = vunpack.c.l.b16 %v3665
      %v4530 = vunpack.c.l.b16 %v3666
      %v4531 = vunpack.c.l.b16 %v3667
      %v4532 = vunpack.c.l.b16 %v3668
      %v4533 = vunpack.c.l.b16 %v3669
      %v4534 = vunpack.c.l.b16 %v3670
      %v4535 = vunpack.c.l.b16 %v3671
      %v4536 = vunpack.c.l.b16 %v3672
      %v4537 = vunpack.c.l.b16 %v3673
      %v4538 = vunpack.c.l.b16 %v3674
      %v4539 = vunpack.c.l.b16 %v3675
      %v4540 = vunpack.c.l.b16 %v3676
      %v4541 = vunpack.c.l.b16 %v3677
      %v4542 = vunpack.c.l.b16 %v3678
      %v4543 = vunpack.c.l.b16 %v3679
      %v4544 = vunpack.c.l.b16 %v3680
      %v4545 = vunpack.c.l.b16 %v3681
      %v4546 = vunpack.c.l.b16 %v3682
      %v4547 = vunpack.c.l.b16 %v3683
      %v4548 = vunpack.c.l.b16 %v3684
      %v4549 = vunpack.c.l.b16 %v3685
      %v4550 = vunpack.c.l.b16 %v3686
      %v4551 = vunpack.c.l.b16 %v3687
      %v4552 = vunpack.c.l.b16 %v3688
      %v4553 = vunpack.c.l.b16 %v3689
      %v4554 = vunpack.c.l.b16 %v3690
      %v4555 = vunpack.c.l.b16 %v3691
      %v4556 = vunpack.c.l.b16 %v3692
      %v4557 = vunpack.c.l.b16 %v3693
      %v4558 = vunpack.c.l.b16 %v3694
      %v4559 = vunpack.c.l.b16 %v3695
      %v4560 = vunpack.c.l.b16 %v3696
      %v4561 = vunpack.c.l.b16 %v3697
      %v4562 = vunpack.c.l.b16 %v3698
      %v4563 = vunpack.c.l.b16 %v3699
      %v4564 = vunpack.c.l.b16 %v3700
      %v4565 = vunpack.c.l.b16 %v3701
      %v4566 = vunpack.c.l.b16 %v3702
      %v4567 = vunpack.c.l.b16 %v3703
      %v4568 = vunpack.c.l.b16 %v3704
      %v4569 = vunpack.c.l.b16 %v3705
      %v4570 = vunpack.c.l.b16 %v3706
      %v4571 = vunpack.c.l.b16 %v3707
      %v4572 = vunpack.c.l.b16 %v3708
      %v4573 = vunpack.c.l.b16 %v3709
      %v4574 = vunpack.c.l.b16 %v3710
      %v4575 = vunpack.c.l.b16 %v3711
      %v4576 = vunpack.c.l.b16 %v3712
      %v4577 = vunpack.c.l.b16 %v3713
      %v4578 = vunpack.c.l.b16 %v3714
      %v4579 = vunpack.c.l.b16 %v3715
      %v4580 = vunpack.c.l.b16 %v3716
      %v4581 = vunpack.c.l.b16 %v3717
      %v4582 = vunpack.c.l.b16 %v3718
      %v4583 = vunpack.c.l.b16 %v3719
      %v4584 = vunpack.c.l.b16 %v3720
      %v4585 = vunpack.c.l.b16 %v3721
      %v4586 = vunpack.c.l.b16 %v3722
      %v4587 = vunpack.c.l.b16 %v3723
      %v4588 = vunpack.c.l.b16 %v3724
      %v4589 = vunpack.c.l.b16 %v3725
      %v4590 = vunpack.c.l.b16 %v3726
      %v4591 = vunpack.c.l.b16 %v3727
      %v4592 = vpack.c.b16 %v4449, %v4448
      %v4593 = vpack.c.b16 %v4451, %v4450
      %v4594 = vpack.c.b16 %v4453, %v4452
      %v4595 = vpack.c.b16 %v4455, %v4454
      %v4596 = vpack.c.b16 %v4457, %v4456
      %v4597 = vpack.c.b16 %v4459, %v4458
      %v4598 = vpack.c.b16 %v4461, %v4460
      %v4599 = vpack.c.b16 %v4463, %v4462
      %v4600 = vpack.c.b16 %v4465, %v4464
      %v4601 = vpack.c.b16 %v4467, %v4466
      %v4602 = vpack.c.b16 %v4469, %v4468
      %v4603 = vpack.c.b16 %v4471, %v4470
      %v4604 = vpack.c.b16 %v4473, %v4472
      %v4605 = vpack.c.b16 %v4475, %v4474
      %v4606 = vpack.c.b16 %v4477, %v4476
      %v4607 = vpack.c.b16 %v4479, %v4478
      %v4608 = vpack.c.b16 %v4481, %v4480
      %v4609 = vpack.c.b16 %v4483, %v4482
      %v4610 = vpack.c.b16 %v4485, %v4484
      %v4611 = vpack.c.b16 %v4487, %v4486
      %v4612 = vpack.c.b16 %v4489, %v4488
      %v4613 = vpack.c.b16 %v4491, %v4490
      %v4614 = vpack.c.b16 %v4493, %v4492
      %v4615 = vpack.c.b16 %v4495, %v4494
      %v4616 = vpack.c.b16 %v4497, %v4496
      %v4617 = vpack.c.b16 %v4499, %v4498
      %v4618 = vpack.c.b16 %v4501, %v4500
      %v4619 = vpack.c.b16 %v4503, %v4502
      %v4620 = vpack.c.b16 %v4505, %v4504
      %v4621 = vpack.c.b16 %v4507, %v4506
      %v4622 = vpack.c.b16 %v4509, %v4508
      %v4623 = vpack.c.b16 %v4511, %v4510
      %v4624 = vpack.c.b16 %v4513, %v4512
      %v4625 = vpack.c.b16 %v4515, %v4514
      %v4626 = vpack.c.b16 %v4517, %v4516
      %v4627 = vpack.c.b16 %v4519, %v4518
      %v4628 = vpack.c.b16 %v4521, %v4520
      %v4629 = vpack.c.b16 %v4523, %v4522
      %v4630 = vpack.c.b16 %v4525, %v4524
      %v4631 = vpack.c.b16 %v4527, %v4526
      %v4632 = vpack.c.b16 %v4529, %v4528
      %v4633 = vpack.c.b16 %v4531, %v4530
      %v4634 = vpack.c.b16 %v4533, %v4532
      %v4635 = vpack.c.b16 %v4535, %v4534
      %v4636 = vpack.c.b16 %v4537, %v4536
      %v4637 = vpack.c.b16 %v4539, %v4538
      %v4638 = vpack.c.b16 %v4541, %v4540
      %v4639 = vpack.c.b16 %v4543, %v4542
      %v4640 = vpack.c.b16 %v4545, %v4544
      %v4641 = vpack.c.b16 %v4547, %v4546
      %v4642 = vpack.c.b16 %v4549, %v4548
      %v4643 = vpack.c.b16 %v4551, %v4550
      %v4644 = vpack.c.b16 %v4553, %v4552
      %v4645 = vpack.c.b16 %v4555, %v4554
      %v4646 = vpack.c.b16 %v4557, %v4556
      %v4647 = vpack.c.b16 %v4559, %v4558
      %v4648 = vpack.c.b16 %v4561, %v4560
      %v4649 = vpack.c.b16 %v4563, %v4562
      %v4650 = vpack.c.b16 %v4565, %v4564
      %v4651 = vpack.c.b16 %v4567, %v4566
      %v4652 = vpack.c.b16 %v4569, %v4568
      %v4653 = vpack.c.b16 %v4571, %v4570
      %v4654 = vpack.c.b16 %v4573, %v4572
      %v4655 = vpack.c.b16 %v4575, %v4574
      %v4656 = vpack.c.b16 %v4577, %v4576
      %v4657 = vpack.c.b16 %v4579, %v4578
      %v4658 = vpack.c.b16 %v4581, %v4580
      %v4659 = vpack.c.b16 %v4583, %v4582
      %v4660 = vpack.c.b16 %v4585, %v4584
      %v4661 = vpack.c.b16 %v4587, %v4586
      %v4662 = vpack.c.b16 %v4589, %v4588
      %v4663 = vpack.c.b16 %v4591, %v4590
      %4736 = vmatprep.subr.bf16.mxu0 0
      %4737 = vmatpush1.bf16.msra.mxu0 %v4592
      %4738 = vmatprep.subr.bf16.mxu0 0
      %4739 = vmatpush1.bf16.msra.mxu0 %v4593
      %4740 = vmatprep.subr.bf16.mxu0 0
      %4741 = vmatpush1.bf16.msra.mxu0 %v4594
      %4742 = vmatprep.subr.bf16.mxu0 0
      %4743 = vmatpush1.bf16.msra.mxu0 %v4595
      %4744 = vmatprep.subr.bf16.mxu0 0
      %4745 = vmatpush1.bf16.msra.mxu0 %v4596
      %4746 = vmatprep.subr.bf16.mxu0 0
      %4747 = vmatpush1.bf16.msra.mxu0 %v4597
      %4748 = vmatprep.subr.bf16.mxu0 0
      %4749 = vmatpush1.bf16.msra.mxu0 %v4598
      %4750 = vmatprep.subr.bf16.mxu0 0
      %4751 = vmatpush1.bf16.msra.mxu0 %v4599
      %4752 = vmatprep.subr.bf16.mxu0 0
      %4753 = vmatpush1.bf16.msra.mxu0 %v4600
      %4754 = vmatprep.subr.bf16.mxu0 0
      %4755 = vmatpush1.bf16.msra.mxu0 %v4601
      %4756 = vmatprep.subr.bf16.mxu0 0
      %4757 = vmatpush1.bf16.msra.mxu0 %v4602
      %4758 = vmatprep.subr.bf16.mxu0 0
      %4759 = vmatpush1.bf16.msra.mxu0 %v4603
      %4760 = vmatprep.subr.bf16.mxu0 0
      %4761 = vmatpush1.bf16.msra.mxu0 %v4604
      %4762 = vmatprep.subr.bf16.mxu0 0
      %4763 = vmatpush1.bf16.msra.mxu0 %v4605
      %4764 = vmatprep.subr.bf16.mxu0 0
      %4765 = vmatpush1.bf16.msra.mxu0 %v4606
      %4766 = vmatprep.subr.bf16.mxu0 0
      %4767 = vmatpush1.bf16.msra.mxu0 %v4607
      %4768 = vmatprep.mubr.bf16.mxu0 %v3729
      %4769 = vmatmul.mubr.bf16.gmra.mrb[0].mxu0 %v3728
      %v4770 = vpop.f32.mrb[0].mxu0
      %v4771 = vadd.f32 0.0, %v4770
      %v4772 = vpop.f32.mrb[0].mxu0
      %v4773 = vpop.f32.mrb[0].mxu0
      %v4774 = vadd.f32 0.0, %v4773
      %v4775 = vpop.f32.mrb[0].mxu0
      %4776 = vmatprep.mubr.bf16.mxu0 %v3738
      %4777 = vmatmul.mubr.bf16.gmra.mrb[0].mxu0 %v3737
      %v4778 = vpop.f32.mrb[0].mxu0
      %v4779 = vadd.f32 0.0, %v4778
      %v4780 = vpop.f32.mrb[0].mxu0
      %v4781 = vpop.f32.mrb[0].mxu0
      %v4782 = vadd.f32 0.0, %v4781
      %v4783 = vpop.f32.mrb[0].mxu0
      %4784 = vmatprep.mubr.bf16.mxu0 %v3747
      %4785 = vmatmul.mubr.bf16.gmra.mrb[0].mxu0 %v3746
      %v4786 = vpop.f32.mrb[0].mxu0
      %v4787 = vadd.f32 0.0, %v4786
      %v4788 = vpop.f32.mrb[0].mxu0
      %v4789 = vpop.f32.mrb[0].mxu0
      %v4790 = vadd.f32 0.0, %v4789
      %v4791 = vpop.f32.mrb[0].mxu0
      %4792 = vmatprep.mubr.bf16.mxu0 %v3756
      %4793 = vmatmul.mubr.bf16.gmra.mrb[0].mxu0 %v3755
      %v4794 = vpop.f32.mrb[0].mxu0
      %v4795 = vadd.f32 0.0, %v4794
      %v4796 = vpop.f32.mrb[0].mxu0
      %v4797 = vpop.f32.mrb[0].mxu0
      %v4798 = vadd.f32 0.0, %v4797
      %v4799 = vpop.f32.mrb[0].mxu0
      %4800 = vmatprep.mubr.bf16.mxu0 %v3765
      %4801 = vmatmul.mubr.bf16.gmra.mrb[0].mxu0 %v3764
      %v4802 = vpop.f32.mrb[0].mxu0
      %v4803 = vadd.f32 0.0, %v4802
      %v4804 = vpop.f32.mrb[0].mxu0
      %v4805 = vpop.f32.mrb[0].mxu0
      %v4806 = vadd.f32 0.0, %v4805
      %v4807 = vpop.f32.mrb[0].mxu0
      %4808 = vmatprep.mubr.bf16.mxu0 %v3774
      %4809 = vmatmul.mubr.bf16.gmra.mrb[0].mxu0 %v3773
      %v4810 = vpop.f32.mrb[0].mxu0
      %v4811 = vadd.f32 0.0, %v4810
      %v4812 = vpop.f32.mrb[0].mxu0
      %v4813 = vpop.f32.mrb[0].mxu0
      %v4814 = vadd.f32 0.0, %v4813
      %v4815 = vpop.f32.mrb[0].mxu0
      %4816 = vmatprep.mubr.bf16.mxu0 %v3783
      %4817 = vmatmul.mubr.bf16.gmra.mrb[0].mxu0 %v3782
      %v4818 = vpop.f32.mrb[0].mxu0
      %v4819 = vadd.f32 0.0, %v4818
      %v4820 = vpop.f32.mrb[0].mxu0
      %v4821 = vpop.f32.mrb[0].mxu0
      %v4822 = vadd.f32 0.0, %v4821
      %v4823 = vpop.f32.mrb[0].mxu0
      %4824 = vmatprep.mubr.bf16.mxu0 %v3792
      %4825 = vmatmul.mubr.bf16.gmra.mrb[0].mxu0 %v3791
      %v4826 = vpop.f32.mrb[0].mxu0
      %v4827 = vadd.f32 0.0, %v4826
      %v4828 = vpop.f32.mrb[0].mxu0
      %v4829 = vpop.f32.mrb[0].mxu0
      %v4830 = vadd.f32 0.0, %v4829
      %v4831 = vpop.f32.mrb[0].mxu0
      %4832 = vmatprep.mubr.bf16.mxu0 %v3801
      %4833 = vmatmul.mubr.bf16.gmra.mrb[0].mxu0 %v3800
      %v4834 = vpop.f32.mrb[0].mxu0
      %v4835 = vadd.f32 0.0, %v4834
      %v4836 = vpop.f32.mrb[0].mxu0
      %v4837 = vpop.f32.mrb[0].mxu0
      %v4838 = vadd.f32 0.0, %v4837
      %v4839 = vpop.f32.mrb[0].mxu0
      %4840 = vmatprep.mubr.bf16.mxu0 %v3810
      %4841 = vmatmul.mubr.bf16.gmra.mrb[0].mxu0 %v3809
      %v4842 = vpop.f32.mrb[0].mxu0
      %v4843 = vadd.f32 0.0, %v4842
      %v4844 = vpop.f32.mrb[0].mxu0
      %v4845 = vpop.f32.mrb[0].mxu0
      %v4846 = vadd.f32 0.0, %v4845
      %v4847 = vpop.f32.mrb[0].mxu0
      %4848 = vmatprep.mubr.bf16.mxu0 %v3819
      %4849 = vmatmul.mubr.bf16.gmra.mrb[0].mxu0 %v3818
      %v4850 = vpop.f32.mrb[0].mxu0
      %v4851 = vadd.f32 0.0, %v4850
      %v4852 = vpop.f32.mrb[0].mxu0
      %v4853 = vpop.f32.mrb[0].mxu0
      %v4854 = vadd.f32 0.0, %v4853
      %v4855 = vpop.f32.mrb[0].mxu0
      %4856 = vmatprep.mubr.bf16.mxu0 %v3828
      %4857 = vmatmul.mubr.bf16.gmra.mrb[0].mxu0 %v3827
      %v4858 = vpop.f32.mrb[0].mxu0
      %v4859 = vadd.f32 0.0, %v4858
      %v4860 = vpop.f32.mrb[0].mxu0
      %v4861 = vpop.f32.mrb[0].mxu0
      %v4862 = vadd.f32 0.0, %v4861
      %v4863 = vpop.f32.mrb[0].mxu0
      %4864 = vmatprep.mubr.bf16.mxu0 %v3837
      %4865 = vmatmul.mubr.bf16.gmra.mrb[0].mxu0 %v3836
      %v4866 = vpop.f32.mrb[0].mxu0
      %v4867 = vadd.f32 0.0, %v4866
      %v4868 = vpop.f32.mrb[0].mxu0
      %v4869 = vpop.f32.mrb[0].mxu0
      %v4870 = vadd.f32 0.0, %v4869
      %v4871 = vpop.f32.mrb[0].mxu0
      %4872 = vmatprep.mubr.bf16.mxu0 %v3846
      %4873 = vmatmul.mubr.bf16.gmra.mrb[0].mxu0 %v3845
      %v4874 = vpop.f32.mrb[0].mxu0
      %v4875 = vadd.f32 0.0, %v4874
      %v4876 = vpop.f32.mrb[0].mxu0
      %v4877 = vpop.f32.mrb[0].mxu0
      %v4878 = vadd.f32 0.0, %v4877
      %v4879 = vpop.f32.mrb[0].mxu0
      %4880 = vmatprep.mubr.bf16.mxu0 %v3855
      %4881 = vmatmul.mubr.bf16.gmra.mrb[0].mxu0 %v3854
      %v4882 = vpop.f32.mrb[0].mxu0
      %v4883 = vadd.f32 0.0, %v4882
      %v4884 = vpop.f32.mrb[0].mxu0
      %v4885 = vpop.f32.mrb[0].mxu0
      %v4886 = vadd.f32 0.0, %v4885
      %v4887 = vpop.f32.mrb[0].mxu0
      %4888 = vmatprep.mubr.bf16.mxu0 %v3864
      %4889 = vmatmul.mubr.bf16.gmra.mrb[0].mxu0 %v3863
      %v4890 = vpop.f32.mrb[0].mxu0
      %v4891 = vadd.f32 0.0, %v4890
      %v4892 = vpop.f32.mrb[0].mxu0
      %v4893 = vpop.f32.mrb[0].mxu0
      %v4894 = vadd.f32 0.0, %v4893
      %v4895 = vpop.f32.mrb[0].mxu0
      %4896 = vmatprep.mubr.bf16.mxu0 %v3873
      %4897 = vmatmul.mubr.bf16.gmra.mrb[0].mxu0 %v3872
      %v4898 = vpop.f32.mrb[0].mxu0
      %v4899 = vadd.f32 0.0, %v4898
      %v4900 = vpop.f32.mrb[0].mxu0
      %v4901 = vpop.f32.mrb[0].mxu0
      %v4902 = vadd.f32 0.0, %v4901
      %v4903 = vpop.f32.mrb[0].mxu0
      %4904 = vmatprep.mubr.bf16.mxu0 %v3882
      %4905 = vmatmul.mubr.bf16.gmra.mrb[0].mxu0 %v3881
      %v4906 = vpop.f32.mrb[0].mxu0
      %v4907 = vadd.f32 0.0, %v4906
      %v4908 = vpop.f32.mrb[0].mxu0
      %v4909 = vpop.f32.mrb[0].mxu0
      %v4910 = vadd.f32 0.0, %v4909
      %v4911 = vpop.f32.mrb[0].mxu0
      %4912 = vmatprep.mubr.bf16.mxu0 %v3891
      %4913 = vmatmul.mubr.bf16.gmra.mrb[0].mxu0 %v3890
      %v4914 = vpop.f32.mrb[0].mxu0
      %v4915 = vadd.f32 0.0, %v4914
      %v4916 = vpop.f32.mrb[0].mxu0
      %v4917 = vpop.f32.mrb[0].mxu0
      %v4918 = vadd.f32 0.0, %v4917
      %v4919 = vpop.f32.mrb[0].mxu0
      %4920 = vmatprep.mubr.bf16.mxu0 %v3900
      %4921 = vmatmul.mubr.bf16.gmra.mrb[0].mxu0 %v3899
      %v4922 = vpop.f32.mrb[0].mxu0
      %v4923 = vadd.f32 0.0, %v4922
      %v4924 = vpop.f32.mrb[0].mxu0
      %v4925 = vpop.f32.mrb[0].mxu0
      %v4926 = vadd.f32 0.0, %v4925
      %v4927 = vpop.f32.mrb[0].mxu0
      %4928 = vmatprep.mubr.bf16.mxu0 %v3909
      %4929 = vmatmul.mubr.bf16.gmra.mrb[0].mxu0 %v3908
      %v4930 = vpop.f32.mrb[0].mxu0
      %v4931 = vadd.f32 0.0, %v4930
      %v4932 = vpop.f32.mrb[0].mxu0
      %v4933 = vpop.f32.mrb[0].mxu0
      %v4934 = vadd.f32 0.0, %v4933
      %v4935 = vpop.f32.mrb[0].mxu0
      %4936 = vmatprep.mubr.bf16.mxu0 %v3918
      %4937 = vmatmul.mubr.bf16.gmra.mrb[0].mxu0 %v3917
      %v4938 = vpop.f32.mrb[0].mxu0
      %v4939 = vadd.f32 0.0, %v4938
      %v4940 = vpop.f32.mrb[0].mxu0
      %v4941 = vpop.f32.mrb[0].mxu0
      %v4942 = vadd.f32 0.0, %v4941
      %v4943 = vpop.f32.mrb[0].mxu0
      %4944 = vmatprep.mubr.bf16.mxu0 %v3927
      %4945 = vmatmul.mubr.bf16.gmra.mrb[0].mxu0 %v3926
      %v4946 = vpop.f32.mrb[0].mxu0
      %v4947 = vadd.f32 0.0, %v4946
      %v4948 = vpop.f32.mrb[0].mxu0
      %v4949 = vpop.f32.mrb[0].mxu0
      %v4950 = vadd.f32 0.0, %v4949
      %v4951 = vpop.f32.mrb[0].mxu0
      %4952 = vmatprep.mubr.bf16.mxu0 %v3936
      %4953 = vmatmul.mubr.bf16.gmra.mrb[0].mxu0 %v3935
      %v4954 = vpop.f32.mrb[0].mxu0
      %v4955 = vadd.f32 0.0, %v4954
      %v4956 = vpop.f32.mrb[0].mxu0
      %v4957 = vpop.f32.mrb[0].mxu0
      %v4958 = vadd.f32 0.0, %v4957
      %v4959 = vpop.f32.mrb[0].mxu0
      %4960 = vmatprep.mubr.bf16.mxu0 %v3945
      %4961 = vmatmul.mubr.bf16.gmra.mrb[0].mxu0 %v3944
      %v4962 = vpop.f32.mrb[0].mxu0
      %v4963 = vadd.f32 0.0, %v4962
      %v4964 = vpop.f32.mrb[0].mxu0
      %v4965 = vpop.f32.mrb[0].mxu0
      %v4966 = vadd.f32 0.0, %v4965
      %v4967 = vpop.f32.mrb[0].mxu0
      %4968 = vmatprep.mubr.bf16.mxu0 %v3954
      %4969 = vmatmul.mubr.bf16.gmra.mrb[0].mxu0 %v3953
      %v4970 = vpop.f32.mrb[0].mxu0
      %v4971 = vadd.f32 0.0, %v4970
      %v4972 = vpop.f32.mrb[0].mxu0
      %v4973 = vpop.f32.mrb[0].mxu0
      %v4974 = vadd.f32 0.0, %v4973
      %v4975 = vpop.f32.mrb[0].mxu0
      %4976 = vmatprep.mubr.bf16.mxu0 %v3963
      %4977 = vmatmul.mubr.bf16.gmra.mrb[0].mxu0 %v3962
      %v4978 = vpop.f32.mrb[0].mxu0
      %v4979 = vadd.f32 0.0, %v4978
      %v4980 = vpop.f32.mrb[0].mxu0
      %v4981 = vpop.f32.mrb[0].mxu0
      %v4982 = vadd.f32 0.0, %v4981
      %v4983 = vpop.f32.mrb[0].mxu0
      %4984 = vmatprep.mubr.bf16.mxu0 %v3972
      %4985 = vmatmul.mubr.bf16.gmra.mrb[0].mxu0 %v3971
      %v4986 = vpop.f32.mrb[0].mxu0
      %v4987 = vadd.f32 0.0, %v4986
      %v4988 = vpop.f32.mrb[0].mxu0
      %v4989 = vpop.f32.mrb[0].mxu0
      %v4990 = vadd.f32 0.0, %v4989
      %v4991 = vpop.f32.mrb[0].mxu0
      %4992 = vmatprep.mubr.bf16.mxu0 %v3981
      %4993 = vmatmul.mubr.bf16.gmra.mrb[0].mxu0 %v3980
      %v4994 = vpop.f32.mrb[0].mxu0
      %v4995 = vadd.f32 0.0, %v4994
      %v4996 = vpop.f32.mrb[0].mxu0
      %v4997 = vpop.f32.mrb[0].mxu0
      %v4998 = vadd.f32 0.0, %v4997
      %v4999 = vpop.f32.mrb[0].mxu0
      %5000 = vmatprep.mubr.bf16.mxu0 %v3990
      %5001 = vmatmul.mubr.bf16.gmra.mrb[0].mxu0 %v3989
      %v5002 = vpop.f32.mrb[0].mxu0
      %v5003 = vadd.f32 0.0, %v5002
      %v5004 = vpop.f32.mrb[0].mxu0
      %v5005 = vpop.f32.mrb[0].mxu0
      %v5006 = vadd.f32 0.0, %v5005
      %v5007 = vpop.f32.mrb[0].mxu0
      %5008 = vmatprep.mubr.bf16.mxu0 %v3999
      %5009 = vmatmul.mubr.bf16.gmra.mrb[0].mxu0 %v3998
      %v5010 = vpop.f32.mrb[0].mxu0
      %v5011 = vadd.f32 0.0, %v5010
      %v5012 = vpop.f32.mrb[0].mxu0
      %v5013 = vpop.f32.mrb[0].mxu0
      %v5014 = vadd.f32 0.0, %v5013
      %v5015 = vpop.f32.mrb[0].mxu0
      %5016 = vmatprep.mubr.bf16.mxu0 %v4008
      %5017 = vmatmul.mubr.bf16.gmra.mrb[0].mxu0 %v4007
      %v5018 = vpop.f32.mrb[0].mxu0
      %v5019 = vadd.f32 0.0, %v5018
      %v5020 = vpop.f32.mrb[0].mxu0
      %v5021 = vpop.f32.mrb[0].mxu0
      %v5022 = vadd.f32 0.0, %v5021
      %v5023 = vpop.f32.mrb[0].mxu0
      %5024 = vdwg.mxu0
      %5025 = vmatprep.subr.bf16.mxu0 0
      %5026 = vmatpush1.bf16.msra.mxu0 %v4608
      %5027 = vmatprep.subr.bf16.mxu0 0
      %5028 = vmatpush1.bf16.msra.mxu0 %v4609
      %5029 = vmatprep.subr.bf16.mxu0 0
      %5030 = vmatpush1.bf16.msra.mxu0 %v4610
      %5031 = vmatprep.subr.bf16.mxu0 0
      %5032 = vmatpush1.bf16.msra.mxu0 %v4611
      %5033 = vmatprep.subr.bf16.mxu0 0
      %5034 = vmatpush1.bf16.msra.mxu0 %v4612
      %5035 = vmatprep.subr.bf16.mxu0 0
      %5036 = vmatpush1.bf16.msra.mxu0 %v4613
      %5037 = vmatprep.subr.bf16.mxu0 0
      %5038 = vmatpush1.bf16.msra.mxu0 %v4614
      %5039 = vmatprep.subr.bf16.mxu0 0
      %5040 = vmatpush1.bf16.msra.mxu0 %v4615
      %5041 = vmatprep.subr.bf16.mxu0 0
      %5042 = vmatpush1.bf16.msra.mxu0 %v4616
      %5043 = vmatprep.subr.bf16.mxu0 0
      %5044 = vmatpush1.bf16.msra.mxu0 %v4617
      %5045 = vmatprep.subr.bf16.mxu0 0
      %5046 = vmatpush1.bf16.msra.mxu0 %v4618
      %5047 = vmatprep.subr.bf16.mxu0 0
      %5048 = vmatpush1.bf16.msra.mxu0 %v4619
      %5049 = vmatprep.subr.bf16.mxu0 0
      %5050 = vmatpush1.bf16.msra.mxu0 %v4620
      %5051 = vmatprep.subr.bf16.mxu0 0
      %5052 = vmatpush1.bf16.msra.mxu0 %v4621
      %5053 = vmatprep.subr.bf16.mxu0 0
      %5054 = vmatpush1.bf16.msra.mxu0 %v4622
      %5055 = vmatprep.subr.bf16.mxu0 0
      %5056 = vmatpush1.bf16.msra.mxu0 %v4623
      %5057 = vmatprep.mubr.bf16.mxu0 %v3731
      %5058 = vmatmul.mubr.bf16.gmra.mrb[0].mxu0 %v3730
      %v5059 = vpop.f32.mrb[0].mxu0
      %v5060 = vadd.f32 %v4771, %v5059
      %v5061 = vpop.f32.mrb[0].mxu0
      %v5062 = vpop.f32.mrb[0].mxu0
      %v5063 = vadd.f32 %v4774, %v5062
      %v5064 = vpop.f32.mrb[0].mxu0
      %5065 = vmatprep.mubr.bf16.mxu0 %v3740
      %5066 = vmatmul.mubr.bf16.gmra.mrb[0].mxu0 %v3739
      %v5067 = vpop.f32.mrb[0].mxu0
      %v5068 = vadd.f32 %v4779, %v5067
      %v5069 = vpop.f32.mrb[0].mxu0
      %v5070 = vpop.f32.mrb[0].mxu0
      %v5071 = vadd.f32 %v4782, %v5070
      %v5072 = vpop.f32.mrb[0].mxu0
      %5073 = vmatprep.mubr.bf16.mxu0 %v3749
      %5074 = vmatmul.mubr.bf16.gmra.mrb[0].mxu0 %v3748
      %v5075 = vpop.f32.mrb[0].mxu0
      %v5076 = vadd.f32 %v4787, %v5075
      %v5077 = vpop.f32.mrb[0].mxu0
      %v5078 = vpop.f32.mrb[0].mxu0
      %v5079 = vadd.f32 %v4790, %v5078
      %v5080 = vpop.f32.mrb[0].mxu0
      %5081 = vmatprep.mubr.bf16.mxu0 %v3758
      %5082 = vmatmul.mubr.bf16.gmra.mrb[0].mxu0 %v3757
      %v5083 = vpop.f32.mrb[0].mxu0
      %v5084 = vadd.f32 %v4795, %v5083
      %v5085 = vpop.f32.mrb[0].mxu0
      %v5086 = vpop.f32.mrb[0].mxu0
      %v5087 = vadd.f32 %v4798, %v5086
      %v5088 = vpop.f32.mrb[0].mxu0
      %5089 = vmatprep.mubr.bf16.mxu0 %v3767
      %5090 = vmatmul.mubr.bf16.gmra.mrb[0].mxu0 %v3766
      %v5091 = vpop.f32.mrb[0].mxu0
      %v5092 = vadd.f32 %v4803, %v5091
      %v5093 = vpop.f32.mrb[0].mxu0
      %v5094 = vpop.f32.mrb[0].mxu0
      %v5095 = vadd.f32 %v4806, %v5094
      %v5096 = vpop.f32.mrb[0].mxu0
      %5097 = vmatprep.mubr.bf16.mxu0 %v3776
      %5098 = vmatmul.mubr.bf16.gmra.mrb[0].mxu0 %v3775
      %v5099 = vpop.f32.mrb[0].mxu0
      %v5100 = vadd.f32 %v4811, %v5099
      %v5101 = vpop.f32.mrb[0].mxu0
      %v5102 = vpop.f32.mrb[0].mxu0
      %v5103 = vadd.f32 %v4814, %v5102
      %v5104 = vpop.f32.mrb[0].mxu0
      %5105 = vmatprep.mubr.bf16.mxu0 %v3785
      %5106 = vmatmul.mubr.bf16.gmra.mrb[0].mxu0 %v3784
      %v5107 = vpop.f32.mrb[0].mxu0
      %v5108 = vadd.f32 %v4819, %v5107
      %v5109 = vpop.f32.mrb[0].mxu0
      %v5110 = vpop.f32.mrb[0].mxu0
      %v5111 = vadd.f32 %v4822, %v5110
      %v5112 = vpop.f32.mrb[0].mxu0
      %5113 = vmatprep.mubr.bf16.mxu0 %v3794
      %5114 = vmatmul.mubr.bf16.gmra.mrb[0].mxu0 %v3793
      %v5115 = vpop.f32.mrb[0].mxu0
      %v5116 = vadd.f32 %v4827, %v5115
      %v5117 = vpop.f32.mrb[0].mxu0
      %v5118 = vpop.f32.mrb[0].mxu0
      %v5119 = vadd.f32 %v4830, %v5118
      %v5120 = vpop.f32.mrb[0].mxu0
      %5121 = vmatprep.mubr.bf16.mxu0 %v3803
      %5122 = vmatmul.mubr.bf16.gmra.mrb[0].mxu0 %v3802
      %v5123 = vpop.f32.mrb[0].mxu0
      %v5124 = vadd.f32 %v4835, %v5123
      %v5125 = vpop.f32.mrb[0].mxu0
      %v5126 = vpop.f32.mrb[0].mxu0
      %v5127 = vadd.f32 %v4838, %v5126
      %v5128 = vpop.f32.mrb[0].mxu0
      %5129 = vmatprep.mubr.bf16.mxu0 %v3812
      %5130 = vmatmul.mubr.bf16.gmra.mrb[0].mxu0 %v3811
      %v5131 = vpop.f32.mrb[0].mxu0
      %v5132 = vadd.f32 %v4843, %v5131
      %v5133 = vpop.f32.mrb[0].mxu0
      %v5134 = vpop.f32.mrb[0].mxu0
      %v5135 = vadd.f32 %v4846, %v5134
      %v5136 = vpop.f32.mrb[0].mxu0
      %5137 = vmatprep.mubr.bf16.mxu0 %v3821
      %5138 = vmatmul.mubr.bf16.gmra.mrb[0].mxu0 %v3820
      %v5139 = vpop.f32.mrb[0].mxu0
      %v5140 = vadd.f32 %v4851, %v5139
      %v5141 = vpop.f32.mrb[0].mxu0
      %v5142 = vpop.f32.mrb[0].mxu0
      %v5143 = vadd.f32 %v4854, %v5142
      %v5144 = vpop.f32.mrb[0].mxu0
      %5145 = vmatprep.mubr.bf16.mxu0 %v3830
      %5146 = vmatmul.mubr.bf16.gmra.mrb[0].mxu0 %v3829
      %v5147 = vpop.f32.mrb[0].mxu0
      %v5148 = vadd.f32 %v4859, %v5147
      %v5149 = vpop.f32.mrb[0].mxu0
      %v5150 = vpop.f32.mrb[0].mxu0
      %v5151 = vadd.f32 %v4862, %v5150
      %v5152 = vpop.f32.mrb[0].mxu0
      %5153 = vmatprep.mubr.bf16.mxu0 %v3839
      %5154 = vmatmul.mubr.bf16.gmra.mrb[0].mxu0 %v3838
      %v5155 = vpop.f32.mrb[0].mxu0
      %v5156 = vadd.f32 %v4867, %v5155
      %v5157 = vpop.f32.mrb[0].mxu0
      %v5158 = vpop.f32.mrb[0].mxu0
      %v5159 = vadd.f32 %v4870, %v5158
      %v5160 = vpop.f32.mrb[0].mxu0
      %5161 = vmatprep.mubr.bf16.mxu0 %v3848
      %5162 = vmatmul.mubr.bf16.gmra.mrb[0].mxu0 %v3847
      %v5163 = vpop.f32.mrb[0].mxu0
      %v5164 = vadd.f32 %v4875, %v5163
      %v5165 = vpop.f32.mrb[0].mxu0
      %v5166 = vpop.f32.mrb[0].mxu0
      %v5167 = vadd.f32 %v4878, %v5166
      %v5168 = vpop.f32.mrb[0].mxu0
      %5169 = vmatprep.mubr.bf16.mxu0 %v3857
      %5170 = vmatmul.mubr.bf16.gmra.mrb[0].mxu0 %v3856
      %v5171 = vpop.f32.mrb[0].mxu0
      %v5172 = vadd.f32 %v4883, %v5171
      %v5173 = vpop.f32.mrb[0].mxu0
      %v5174 = vpop.f32.mrb[0].mxu0
      %v5175 = vadd.f32 %v4886, %v5174
      %v5176 = vpop.f32.mrb[0].mxu0
      %5177 = vmatprep.mubr.bf16.mxu0 %v3866
      %5178 = vmatmul.mubr.bf16.gmra.mrb[0].mxu0 %v3865
      %v5179 = vpop.f32.mrb[0].mxu0
      %v5180 = vadd.f32 %v4891, %v5179
      %v5181 = vpop.f32.mrb[0].mxu0
      %v5182 = vpop.f32.mrb[0].mxu0
      %v5183 = vadd.f32 %v4894, %v5182
      %v5184 = vpop.f32.mrb[0].mxu0
      %5185 = vmatprep.mubr.bf16.mxu0 %v3875
      %5186 = vmatmul.mubr.bf16.gmra.mrb[0].mxu0 %v3874
      %v5187 = vpop.f32.mrb[0].mxu0
      %v5188 = vadd.f32 %v4899, %v5187
      %v5189 = vpop.f32.mrb[0].mxu0
      %v5190 = vpop.f32.mrb[0].mxu0
      %v5191 = vadd.f32 %v4902, %v5190
      %v5192 = vpop.f32.mrb[0].mxu0
      %5193 = vmatprep.mubr.bf16.mxu0 %v3884
      %5194 = vmatmul.mubr.bf16.gmra.mrb[0].mxu0 %v3883
      %v5195 = vpop.f32.mrb[0].mxu0
      %v5196 = vadd.f32 %v4907, %v5195
      %v5197 = vpop.f32.mrb[0].mxu0
      %v5198 = vpop.f32.mrb[0].mxu0
      %v5199 = vadd.f32 %v4910, %v5198
      %v5200 = vpop.f32.mrb[0].mxu0
      %5201 = vmatprep.mubr.bf16.mxu0 %v3893
      %5202 = vmatmul.mubr.bf16.gmra.mrb[0].mxu0 %v3892
      %v5203 = vpop.f32.mrb[0].mxu0
      %v5204 = vadd.f32 %v4915, %v5203
      %v5205 = vpop.f32.mrb[0].mxu0
      %v5206 = vpop.f32.mrb[0].mxu0
      %v5207 = vadd.f32 %v4918, %v5206
      %v5208 = vpop.f32.mrb[0].mxu0
      %5209 = vmatprep.mubr.bf16.mxu0 %v3902
      %5210 = vmatmul.mubr.bf16.gmra.mrb[0].mxu0 %v3901
      %v5211 = vpop.f32.mrb[0].mxu0
      %v5212 = vadd.f32 %v4923, %v5211
      %v5213 = vpop.f32.mrb[0].mxu0
      %v5214 = vpop.f32.mrb[0].mxu0
      %v5215 = vadd.f32 %v4926, %v5214
      %v5216 = vpop.f32.mrb[0].mxu0
      %5217 = vmatprep.mubr.bf16.mxu0 %v3911
      %5218 = vmatmul.mubr.bf16.gmra.mrb[0].mxu0 %v3910
      %v5219 = vpop.f32.mrb[0].mxu0
      %v5220 = vadd.f32 %v4931, %v5219
      %v5221 = vpop.f32.mrb[0].mxu0
      %v5222 = vpop.f32.mrb[0].mxu0
      %v5223 = vadd.f32 %v4934, %v5222
      %v5224 = vpop.f32.mrb[0].mxu0
      %5225 = vmatprep.mubr.bf16.mxu0 %v3920
      %5226 = vmatmul.mubr.bf16.gmra.mrb[0].mxu0 %v3919
      %v5227 = vpop.f32.mrb[0].mxu0
      %v5228 = vadd.f32 %v4939, %v5227
      %v5229 = vpop.f32.mrb[0].mxu0
      %v5230 = vpop.f32.mrb[0].mxu0
      %v5231 = vadd.f32 %v4942, %v5230
      %v5232 = vpop.f32.mrb[0].mxu0
      %5233 = vmatprep.mubr.bf16.mxu0 %v3929
      %5234 = vmatmul.mubr.bf16.gmra.mrb[0].mxu0 %v3928
      %v5235 = vpop.f32.mrb[0].mxu0
      %v5236 = vadd.f32 %v4947, %v5235
      %v5237 = vpop.f32.mrb[0].mxu0
      %v5238 = vpop.f32.mrb[0].mxu0
      %v5239 = vadd.f32 %v4950, %v5238
      %v5240 = vpop.f32.mrb[0].mxu0
      %5241 = vmatprep.mubr.bf16.mxu0 %v3938
      %5242 = vmatmul.mubr.bf16.gmra.mrb[0].mxu0 %v3937
      %v5243 = vpop.f32.mrb[0].mxu0
      %v5244 = vadd.f32 %v4955, %v5243
      %v5245 = vpop.f32.mrb[0].mxu0
      %v5246 = vpop.f32.mrb[0].mxu0
      %v5247 = vadd.f32 %v4958, %v5246
      %v5248 = vpop.f32.mrb[0].mxu0
      %5249 = vmatprep.mubr.bf16.mxu0 %v3947
      %5250 = vmatmul.mubr.bf16.gmra.mrb[0].mxu0 %v3946
      %v5251 = vpop.f32.mrb[0].mxu0
      %v5252 = vadd.f32 %v4963, %v5251
      %v5253 = vpop.f32.mrb[0].mxu0
      %v5254 = vpop.f32.mrb[0].mxu0
      %v5255 = vadd.f32 %v4966, %v5254
      %v5256 = vpop.f32.mrb[0].mxu0
      %5257 = vmatprep.mubr.bf16.mxu0 %v3956
      %5258 = vmatmul.mubr.bf16.gmra.mrb[0].mxu0 %v3955
      %v5259 = vpop.f32.mrb[0].mxu0
      %v5260 = vadd.f32 %v4971, %v5259
      %v5261 = vpop.f32.mrb[0].mxu0
      %v5262 = vpop.f32.mrb[0].mxu0
      %v5263 = vadd.f32 %v4974, %v5262
      %v5264 = vpop.f32.mrb[0].mxu0
      %5265 = vmatprep.mubr.bf16.mxu0 %v3965
      %5266 = vmatmul.mubr.bf16.gmra.mrb[0].mxu0 %v3964
      %v5267 = vpop.f32.mrb[0].mxu0
      %v5268 = vadd.f32 %v4979, %v5267
      %v5269 = vpop.f32.mrb[0].mxu0
      %v5270 = vpop.f32.mrb[0].mxu0
      %v5271 = vadd.f32 %v4982, %v5270
      %v5272 = vpop.f32.mrb[0].mxu0
      %5273 = vmatprep.mubr.bf16.mxu0 %v3974
      %5274 = vmatmul.mubr.bf16.gmra.mrb[0].mxu0 %v3973
      %v5275 = vpop.f32.mrb[0].mxu0
      %v5276 = vadd.f32 %v4987, %v5275
      %v5277 = vpop.f32.mrb[0].mxu0
      %v5278 = vpop.f32.mrb[0].mxu0
      %v5279 = vadd.f32 %v4990, %v5278
      %v5280 = vpop.f32.mrb[0].mxu0
      %5281 = vmatprep.mubr.bf16.mxu0 %v3983
      %5282 = vmatmul.mubr.bf16.gmra.mrb[0].mxu0 %v3982
      %v5283 = vpop.f32.mrb[0].mxu0
      %v5284 = vadd.f32 %v4995, %v5283
      %v5285 = vpop.f32.mrb[0].mxu0
      %v5286 = vpop.f32.mrb[0].mxu0
      %v5287 = vadd.f32 %v4998, %v5286
      %v5288 = vpop.f32.mrb[0].mxu0
      %5289 = vmatprep.mubr.bf16.mxu0 %v3992
      %5290 = vmatmul.mubr.bf16.gmra.mrb[0].mxu0 %v3991
      %v5291 = vpop.f32.mrb[0].mxu0
      %v5292 = vadd.f32 %v5003, %v5291
      %v5293 = vpop.f32.mrb[0].mxu0
      %v5294 = vpop.f32.mrb[0].mxu0
      %v5295 = vadd.f32 %v5006, %v5294
      %v5296 = vpop.f32.mrb[0].mxu0
      %5297 = vmatprep.mubr.bf16.mxu0 %v4001
      %5298 = vmatmul.mubr.bf16.gmra.mrb[0].mxu0 %v4000
      %v5299 = vpop.f32.mrb[0].mxu0
      %v5300 = vadd.f32 %v5011, %v5299
      %v5301 = vpop.f32.mrb[0].mxu0
      %v5302 = vpop.f32.mrb[0].mxu0
      %v5303 = vadd.f32 %v5014, %v5302
      %v5304 = vpop.f32.mrb[0].mxu0
      %5305 = vmatprep.mubr.bf16.mxu0 %v4010
      %5306 = vmatmul.mubr.bf16.gmra.mrb[0].mxu0 %v4009
      %v5307 = vpop.f32.mrb[0].mxu0
      %v5308 = vadd.f32 %v5019, %v5307
      %v5309 = vpop.f32.mrb[0].mxu0
      %v5310 = vpop.f32.mrb[0].mxu0
      %v5311 = vadd.f32 %v5022, %v5310
      %v5312 = vpop.f32.mrb[0].mxu0
      %5313 = vdwg.mxu0
      %5314 = vmatprep.subr.bf16.mxu0 0
      %5315 = vmatpush1.bf16.msra.mxu0 %v4624
      %5316 = vmatprep.subr.bf16.mxu0 0
      %5317 = vmatpush1.bf16.msra.mxu0 %v4625
      %5318 = vmatprep.subr.bf16.mxu0 0
      %5319 = vmatpush1.bf16.msra.mxu0 %v4626
      %5320 = vmatprep.subr.bf16.mxu0 0
      %5321 = vmatpush1.bf16.msra.mxu0 %v4627
      %5322 = vmatprep.subr.bf16.mxu0 0
      %5323 = vmatpush1.bf16.msra.mxu0 %v4628
      %5324 = vmatprep.subr.bf16.mxu0 0
      %5325 = vmatpush1.bf16.msra.mxu0 %v4629
      %5326 = vmatprep.subr.bf16.mxu0 0
      %5327 = vmatpush1.bf16.msra.mxu0 %v4630
      %5328 = vmatprep.subr.bf16.mxu0 0
      %5329 = vmatpush1.bf16.msra.mxu0 %v4631
      %5330 = vmatprep.subr.bf16.mxu0 0
      %5331 = vmatpush1.bf16.msra.mxu0 %v4632
      %5332 = vmatprep.subr.bf16.mxu0 0
      %5333 = vmatpush1.bf16.msra.mxu0 %v4633
      %5334 = vmatprep.subr.bf16.mxu0 0
      %5335 = vmatpush1.bf16.msra.mxu0 %v4634
      %5336 = vmatprep.subr.bf16.mxu0 0
      %5337 = vmatpush1.bf16.msra.mxu0 %v4635
      %5338 = vmatprep.subr.bf16.mxu0 0
      %5339 = vmatpush1.bf16.msra.mxu0 %v4636
      %5340 = vmatprep.subr.bf16.mxu0 0
      %5341 = vmatpush1.bf16.msra.mxu0 %v4637
      %5342 = vmatprep.subr.bf16.mxu0 0
      %5343 = vmatpush1.bf16.msra.mxu0 %v4638
      %5344 = vmatprep.subr.bf16.mxu0 0
      %5345 = vmatpush1.bf16.msra.mxu0 %v4639
      %5346 = vmatprep.mubr.bf16.mxu0 %v3733
      %5347 = vmatmul.mubr.bf16.gmra.mrb[0].mxu0 %v3732
      %v5348 = vpop.f32.mrb[0].mxu0
      %v5349 = vadd.f32 %v5060, %v5348
      %v5350 = vpop.f32.mrb[0].mxu0
      %v5351 = vpop.f32.mrb[0].mxu0
      %v5352 = vadd.f32 %v5063, %v5351
      %v5353 = vpop.f32.mrb[0].mxu0
      %5354 = vmatprep.mubr.bf16.mxu0 %v3742
      %5355 = vmatmul.mubr.bf16.gmra.mrb[0].mxu0 %v3741
      %v5356 = vpop.f32.mrb[0].mxu0
      %v5357 = vadd.f32 %v5068, %v5356
      %v5358 = vpop.f32.mrb[0].mxu0
      %v5359 = vpop.f32.mrb[0].mxu0
      %v5360 = vadd.f32 %v5071, %v5359
      %v5361 = vpop.f32.mrb[0].mxu0
      %5362 = vmatprep.mubr.bf16.mxu0 %v3751
      %5363 = vmatmul.mubr.bf16.gmra.mrb[0].mxu0 %v3750
      %v5364 = vpop.f32.mrb[0].mxu0
      %v5365 = vadd.f32 %v5076, %v5364
      %v5366 = vpop.f32.mrb[0].mxu0
      %v5367 = vpop.f32.mrb[0].mxu0
      %v5368 = vadd.f32 %v5079, %v5367
      %v5369 = vpop.f32.mrb[0].mxu0
      %5370 = vmatprep.mubr.bf16.mxu0 %v3760
      %5371 = vmatmul.mubr.bf16.gmra.mrb[0].mxu0 %v3759
      %v5372 = vpop.f32.mrb[0].mxu0
      %v5373 = vadd.f32 %v5084, %v5372
      %v5374 = vpop.f32.mrb[0].mxu0
      %v5375 = vpop.f32.mrb[0].mxu0
      %v5376 = vadd.f32 %v5087, %v5375
      %v5377 = vpop.f32.mrb[0].mxu0
      %5378 = vmatprep.mubr.bf16.mxu0 %v3769
      %5379 = vmatmul.mubr.bf16.gmra.mrb[0].mxu0 %v3768
      %v5380 = vpop.f32.mrb[0].mxu0
      %v5381 = vadd.f32 %v5092, %v5380
      %v5382 = vpop.f32.mrb[0].mxu0
      %v5383 = vpop.f32.mrb[0].mxu0
      %v5384 = vadd.f32 %v5095, %v5383
      %v5385 = vpop.f32.mrb[0].mxu0
      %5386 = vmatprep.mubr.bf16.mxu0 %v3778
      %5387 = vmatmul.mubr.bf16.gmra.mrb[0].mxu0 %v3777
      %v5388 = vpop.f32.mrb[0].mxu0
      %v5389 = vadd.f32 %v5100, %v5388
      %v5390 = vpop.f32.mrb[0].mxu0
      %v5391 = vpop.f32.mrb[0].mxu0
      %v5392 = vadd.f32 %v5103, %v5391
      %v5393 = vpop.f32.mrb[0].mxu0
      %5394 = vmatprep.mubr.bf16.mxu0 %v3787
      %5395 = vmatmul.mubr.bf16.gmra.mrb[0].mxu0 %v3786
      %v5396 = vpop.f32.mrb[0].mxu0
      %v5397 = vadd.f32 %v5108, %v5396
      %v5398 = vpop.f32.mrb[0].mxu0
      %v5399 = vpop.f32.mrb[0].mxu0
      %v5400 = vadd.f32 %v5111, %v5399
      %v5401 = vpop.f32.mrb[0].mxu0
      %5402 = vmatprep.mubr.bf16.mxu0 %v3796
      %5403 = vmatmul.mubr.bf16.gmra.mrb[0].mxu0 %v3795
      %v5404 = vpop.f32.mrb[0].mxu0
      %v5405 = vadd.f32 %v5116, %v5404
      %v5406 = vpop.f32.mrb[0].mxu0
      %v5407 = vpop.f32.mrb[0].mxu0
      %v5408 = vadd.f32 %v5119, %v5407
      %v5409 = vpop.f32.mrb[0].mxu0
      %5410 = vmatprep.mubr.bf16.mxu0 %v3805
      %5411 = vmatmul.mubr.bf16.gmra.mrb[0].mxu0 %v3804
      %v5412 = vpop.f32.mrb[0].mxu0
      %v5413 = vadd.f32 %v5124, %v5412
      %v5414 = vpop.f32.mrb[0].mxu0
      %v5415 = vpop.f32.mrb[0].mxu0
      %v5416 = vadd.f32 %v5127, %v5415
      %v5417 = vpop.f32.mrb[0].mxu0
      %5418 = vmatprep.mubr.bf16.mxu0 %v3814
      %5419 = vmatmul.mubr.bf16.gmra.mrb[0].mxu0 %v3813
      %v5420 = vpop.f32.mrb[0].mxu0
      %v5421 = vadd.f32 %v5132, %v5420
      %v5422 = vpop.f32.mrb[0].mxu0
      %v5423 = vpop.f32.mrb[0].mxu0
      %v5424 = vadd.f32 %v5135, %v5423
      %v5425 = vpop.f32.mrb[0].mxu0
      %5426 = vmatprep.mubr.bf16.mxu0 %v3823
      %5427 = vmatmul.mubr.bf16.gmra.mrb[0].mxu0 %v3822
      %v5428 = vpop.f32.mrb[0].mxu0
      %v5429 = vadd.f32 %v5140, %v5428
      %v5430 = vpop.f32.mrb[0].mxu0
      %v5431 = vpop.f32.mrb[0].mxu0
      %v5432 = vadd.f32 %v5143, %v5431
      %v5433 = vpop.f32.mrb[0].mxu0
      %5434 = vmatprep.mubr.bf16.mxu0 %v3832
      %5435 = vmatmul.mubr.bf16.gmra.mrb[0].mxu0 %v3831
      %v5436 = vpop.f32.mrb[0].mxu0
      %v5437 = vadd.f32 %v5148, %v5436
      %v5438 = vpop.f32.mrb[0].mxu0
      %v5439 = vpop.f32.mrb[0].mxu0
      %v5440 = vadd.f32 %v5151, %v5439
      %v5441 = vpop.f32.mrb[0].mxu0
      %5442 = vmatprep.mubr.bf16.mxu0 %v3841
      %5443 = vmatmul.mubr.bf16.gmra.mrb[0].mxu0 %v3840
      %v5444 = vpop.f32.mrb[0].mxu0
      %v5445 = vadd.f32 %v5156, %v5444
      %v5446 = vpop.f32.mrb[0].mxu0
      %v5447 = vpop.f32.mrb[0].mxu0
      %v5448 = vadd.f32 %v5159, %v5447
      %v5449 = vpop.f32.mrb[0].mxu0
      %5450 = vmatprep.mubr.bf16.mxu0 %v3850
      %5451 = vmatmul.mubr.bf16.gmra.mrb[0].mxu0 %v3849
      %v5452 = vpop.f32.mrb[0].mxu0
      %v5453 = vadd.f32 %v5164, %v5452
      %v5454 = vpop.f32.mrb[0].mxu0
      %v5455 = vpop.f32.mrb[0].mxu0
      %v5456 = vadd.f32 %v5167, %v5455
      %v5457 = vpop.f32.mrb[0].mxu0
      %5458 = vmatprep.mubr.bf16.mxu0 %v3859
      %5459 = vmatmul.mubr.bf16.gmra.mrb[0].mxu0 %v3858
      %v5460 = vpop.f32.mrb[0].mxu0
      %v5461 = vadd.f32 %v5172, %v5460
      %v5462 = vpop.f32.mrb[0].mxu0
      %v5463 = vpop.f32.mrb[0].mxu0
      %v5464 = vadd.f32 %v5175, %v5463
      %v5465 = vpop.f32.mrb[0].mxu0
      %5466 = vmatprep.mubr.bf16.mxu0 %v3868
      %5467 = vmatmul.mubr.bf16.gmra.mrb[0].mxu0 %v3867
      %v5468 = vpop.f32.mrb[0].mxu0
      %v5469 = vadd.f32 %v5180, %v5468
      %v5470 = vpop.f32.mrb[0].mxu0
      %v5471 = vpop.f32.mrb[0].mxu0
      %v5472 = vadd.f32 %v5183, %v5471
      %v5473 = vpop.f32.mrb[0].mxu0
      %5474 = vmatprep.mubr.bf16.mxu0 %v3877
      %5475 = vmatmul.mubr.bf16.gmra.mrb[0].mxu0 %v3876
      %v5476 = vpop.f32.mrb[0].mxu0
      %v5477 = vadd.f32 %v5188, %v5476
      %v5478 = vpop.f32.mrb[0].mxu0
      %v5479 = vpop.f32.mrb[0].mxu0
      %v5480 = vadd.f32 %v5191, %v5479
      %v5481 = vpop.f32.mrb[0].mxu0
      %5482 = vmatprep.mubr.bf16.mxu0 %v3886
      %5483 = vmatmul.mubr.bf16.gmra.mrb[0].mxu0 %v3885
      %v5484 = vpop.f32.mrb[0].mxu0
      %v5485 = vadd.f32 %v5196, %v5484
      %v5486 = vpop.f32.mrb[0].mxu0
      %v5487 = vpop.f32.mrb[0].mxu0
      %v5488 = vadd.f32 %v5199, %v5487
      %v5489 = vpop.f32.mrb[0].mxu0
      %5490 = vmatprep.mubr.bf16.mxu0 %v3895
      %5491 = vmatmul.mubr.bf16.gmra.mrb[0].mxu0 %v3894
      %v5492 = vpop.f32.mrb[0].mxu0
      %v5493 = vadd.f32 %v5204, %v5492
      %v5494 = vpop.f32.mrb[0].mxu0
      %v5495 = vpop.f32.mrb[0].mxu0
      %v5496 = vadd.f32 %v5207, %v5495
      %v5497 = vpop.f32.mrb[0].mxu0
      %5498 = vmatprep.mubr.bf16.mxu0 %v3904
      %5499 = vmatmul.mubr.bf16.gmra.mrb[0].mxu0 %v3903
      %v5500 = vpop.f32.mrb[0].mxu0
      %v5501 = vadd.f32 %v5212, %v5500
      %v5502 = vpop.f32.mrb[0].mxu0
      %v5503 = vpop.f32.mrb[0].mxu0
      %v5504 = vadd.f32 %v5215, %v5503
      %v5505 = vpop.f32.mrb[0].mxu0
      %5506 = vmatprep.mubr.bf16.mxu0 %v3913
      %5507 = vmatmul.mubr.bf16.gmra.mrb[0].mxu0 %v3912
      %v5508 = vpop.f32.mrb[0].mxu0
      %v5509 = vadd.f32 %v5220, %v5508
      %v5510 = vpop.f32.mrb[0].mxu0
      %v5511 = vpop.f32.mrb[0].mxu0
      %v5512 = vadd.f32 %v5223, %v5511
      %v5513 = vpop.f32.mrb[0].mxu0
      %5514 = vmatprep.mubr.bf16.mxu0 %v3922
      %5515 = vmatmul.mubr.bf16.gmra.mrb[0].mxu0 %v3921
      %v5516 = vpop.f32.mrb[0].mxu0
      %v5517 = vadd.f32 %v5228, %v5516
      %v5518 = vpop.f32.mrb[0].mxu0
      %v5519 = vpop.f32.mrb[0].mxu0
      %v5520 = vadd.f32 %v5231, %v5519
      %v5521 = vpop.f32.mrb[0].mxu0
      %5522 = vmatprep.mubr.bf16.mxu0 %v3931
      %5523 = vmatmul.mubr.bf16.gmra.mrb[0].mxu0 %v3930
      %v5524 = vpop.f32.mrb[0].mxu0
      %v5525 = vadd.f32 %v5236, %v5524
      %v5526 = vpop.f32.mrb[0].mxu0
      %v5527 = vpop.f32.mrb[0].mxu0
      %v5528 = vadd.f32 %v5239, %v5527
      %v5529 = vpop.f32.mrb[0].mxu0
      %5530 = vmatprep.mubr.bf16.mxu0 %v3940
      %5531 = vmatmul.mubr.bf16.gmra.mrb[0].mxu0 %v3939
      %v5532 = vpop.f32.mrb[0].mxu0
      %v5533 = vadd.f32 %v5244, %v5532
      %v5534 = vpop.f32.mrb[0].mxu0
      %v5535 = vpop.f32.mrb[0].mxu0
      %v5536 = vadd.f32 %v5247, %v5535
      %v5537 = vpop.f32.mrb[0].mxu0
      %5538 = vmatprep.mubr.bf16.mxu0 %v3949
      %5539 = vmatmul.mubr.bf16.gmra.mrb[0].mxu0 %v3948
      %v5540 = vpop.f32.mrb[0].mxu0
      %v5541 = vadd.f32 %v5252, %v5540
      %v5542 = vpop.f32.mrb[0].mxu0
      %v5543 = vpop.f32.mrb[0].mxu0
      %v5544 = vadd.f32 %v5255, %v5543
      %v5545 = vpop.f32.mrb[0].mxu0
      %5546 = vmatprep.mubr.bf16.mxu0 %v3958
      %5547 = vmatmul.mubr.bf16.gmra.mrb[0].mxu0 %v3957
      %v5548 = vpop.f32.mrb[0].mxu0
      %v5549 = vadd.f32 %v5260, %v5548
      %v5550 = vpop.f32.mrb[0].mxu0
      %v5551 = vpop.f32.mrb[0].mxu0
      %v5552 = vadd.f32 %v5263, %v5551
      %v5553 = vpop.f32.mrb[0].mxu0
      %5554 = vmatprep.mubr.bf16.mxu0 %v3967
      %5555 = vmatmul.mubr.bf16.gmra.mrb[0].mxu0 %v3966
      %v5556 = vpop.f32.mrb[0].mxu0
      %v5557 = vadd.f32 %v5268, %v5556
      %v5558 = vpop.f32.mrb[0].mxu0
      %v5559 = vpop.f32.mrb[0].mxu0
      %v5560 = vadd.f32 %v5271, %v5559
      %v5561 = vpop.f32.mrb[0].mxu0
      %5562 = vmatprep.mubr.bf16.mxu0 %v3976
      %5563 = vmatmul.mubr.bf16.gmra.mrb[0].mxu0 %v3975
      %v5564 = vpop.f32.mrb[0].mxu0
      %v5565 = vadd.f32 %v5276, %v5564
      %v5566 = vpop.f32.mrb[0].mxu0
      %v5567 = vpop.f32.mrb[0].mxu0
      %v5568 = vadd.f32 %v5279, %v5567
      %v5569 = vpop.f32.mrb[0].mxu0
      %5570 = vmatprep.mubr.bf16.mxu0 %v3985
      %5571 = vmatmul.mubr.bf16.gmra.mrb[0].mxu0 %v3984
      %v5572 = vpop.f32.mrb[0].mxu0
      %v5573 = vadd.f32 %v5284, %v5572
      %v5574 = vpop.f32.mrb[0].mxu0
      %v5575 = vpop.f32.mrb[0].mxu0
      %v5576 = vadd.f32 %v5287, %v5575
      %v5577 = vpop.f32.mrb[0].mxu0
      %5578 = vmatprep.mubr.bf16.mxu0 %v3994
      %5579 = vmatmul.mubr.bf16.gmra.mrb[0].mxu0 %v3993
      %v5580 = vpop.f32.mrb[0].mxu0
      %v5581 = vadd.f32 %v5292, %v5580
      %v5582 = vpop.f32.mrb[0].mxu0
      %v5583 = vpop.f32.mrb[0].mxu0
      %v5584 = vadd.f32 %v5295, %v5583
      %v5585 = vpop.f32.mrb[0].mxu0
      %5586 = vmatprep.mubr.bf16.mxu0 %v4003
      %5587 = vmatmul.mubr.bf16.gmra.mrb[0].mxu0 %v4002
      %v5588 = vpop.f32.mrb[0].mxu0
      %v5589 = vadd.f32 %v5300, %v5588
      %v5590 = vpop.f32.mrb[0].mxu0
      %v5591 = vpop.f32.mrb[0].mxu0
      %v5592 = vadd.f32 %v5303, %v5591
      %v5593 = vpop.f32.mrb[0].mxu0
      %5594 = vmatprep.mubr.bf16.mxu0 %v4012
      %5595 = vmatmul.mubr.bf16.gmra.mrb[0].mxu0 %v4011
      %v5596 = vpop.f32.mrb[0].mxu0
      %v5597 = vadd.f32 %v5308, %v5596
      %v5598 = vpop.f32.mrb[0].mxu0
      %v5599 = vpop.f32.mrb[0].mxu0
      %v5600 = vadd.f32 %v5311, %v5599
      %v5601 = vpop.f32.mrb[0].mxu0
      %5602 = vdwg.mxu0
      %5603 = vmatprep.subr.bf16.mxu0 0
      %5604 = vmatpush1.bf16.msra.mxu0 %v4640
      %5605 = vmatprep.subr.bf16.mxu0 0
      %5606 = vmatpush1.bf16.msra.mxu0 %v4641
      %5607 = vmatprep.subr.bf16.mxu0 0
      %5608 = vmatpush1.bf16.msra.mxu0 %v4642
      %5609 = vmatprep.subr.bf16.mxu0 0
      %5610 = vmatpush1.bf16.msra.mxu0 %v4643
      %5611 = vmatprep.subr.bf16.mxu0 0
      %5612 = vmatpush1.bf16.msra.mxu0 %v4644
      %5613 = vmatprep.subr.bf16.mxu0 0
      %5614 = vmatpush1.bf16.msra.mxu0 %v4645
      %5615 = vmatprep.subr.bf16.mxu0 0
      %5616 = vmatpush1.bf16.msra.mxu0 %v4646
      %5617 = vmatprep.subr.bf16.mxu0 0
      %5618 = vmatpush1.bf16.msra.mxu0 %v4647
      %5619 = vmatprep.subr.bf16.mxu0 0
      %5620 = vmatpush1.bf16.msra.mxu0 %v4648
      %5621 = vmatprep.subr.bf16.mxu0 0
      %5622 = vmatpush1.bf16.msra.mxu0 %v4649
      %5623 = vmatprep.subr.bf16.mxu0 0
      %5624 = vmatpush1.bf16.msra.mxu0 %v4650
      %5625 = vmatprep.subr.bf16.mxu0 0
      %5626 = vmatpush1.bf16.msra.mxu0 %v4651
      %5627 = vmatprep.subr.bf16.mxu0 0
      %5628 = vmatpush1.bf16.msra.mxu0 %v4652
      %5629 = vmatprep.subr.bf16.mxu0 0
      %5630 = vmatpush1.bf16.msra.mxu0 %v4653
      %5631 = vmatprep.subr.bf16.mxu0 0
      %5632 = vmatpush1.bf16.msra.mxu0 %v4654
      %5633 = vmatprep.subr.bf16.mxu0 0
      %5634 = vmatpush1.bf16.msra.mxu0 %v4655
      %5635 = vmatprep.mubr.bf16.mxu0 %v3735
      %5636 = vmatmul.mubr.bf16.gmra.mrb[0].mxu0 %v3734
      %v5637 = vpop.f32.mrb[0].mxu0
      %v5638 = vadd.f32 %v5349, %v5637
      %v5639 = vpop.f32.mrb[0].mxu0
      %v5640 = vpop.f32.mrb[0].mxu0
      %v5641 = vadd.f32 %v5352, %v5640
      %v5642 = vpop.f32.mrb[0].mxu0
      %5643 = vmatprep.mubr.bf16.mxu0 %v3744
      %5644 = vmatmul.mubr.bf16.gmra.mrb[0].mxu0 %v3743
      %v5645 = vpop.f32.mrb[0].mxu0
      %v5646 = vadd.f32 %v5357, %v5645
      %v5647 = vpop.f32.mrb[0].mxu0
      %v5648 = vpop.f32.mrb[0].mxu0
      %v5649 = vadd.f32 %v5360, %v5648
      %v5650 = vpop.f32.mrb[0].mxu0
      %5651 = vmatprep.mubr.bf16.mxu0 %v3753
      %5652 = vmatmul.mubr.bf16.gmra.mrb[0].mxu0 %v3752
      %v5653 = vpop.f32.mrb[0].mxu0
      %v5654 = vadd.f32 %v5365, %v5653
      %v5655 = vpop.f32.mrb[0].mxu0
      %v5656 = vpop.f32.mrb[0].mxu0
      %v5657 = vadd.f32 %v5368, %v5656
      %v5658 = vpop.f32.mrb[0].mxu0
      %5659 = vmatprep.mubr.bf16.mxu0 %v3762
      %5660 = vmatmul.mubr.bf16.gmra.mrb[0].mxu0 %v3761
      %v5661 = vpop.f32.mrb[0].mxu0
      %v5662 = vadd.f32 %v5373, %v5661
      %v5663 = vpop.f32.mrb[0].mxu0
      %v5664 = vpop.f32.mrb[0].mxu0
      %v5665 = vadd.f32 %v5376, %v5664
      %v5666 = vpop.f32.mrb[0].mxu0
      %5667 = vmatprep.mubr.bf16.mxu0 %v3771
      %5668 = vmatmul.mubr.bf16.gmra.mrb[0].mxu0 %v3770
      %v5669 = vpop.f32.mrb[0].mxu0
      %v5670 = vadd.f32 %v5381, %v5669
      %v5671 = vpop.f32.mrb[0].mxu0
      %v5672 = vpop.f32.mrb[0].mxu0
      %v5673 = vadd.f32 %v5384, %v5672
      %v5674 = vpop.f32.mrb[0].mxu0
      %5675 = vmatprep.mubr.bf16.mxu0 %v3780
      %5676 = vmatmul.mubr.bf16.gmra.mrb[0].mxu0 %v3779
      %v5677 = vpop.f32.mrb[0].mxu0
      %v5678 = vadd.f32 %v5389, %v5677
      %v5679 = vpop.f32.mrb[0].mxu0
      %v5680 = vpop.f32.mrb[0].mxu0
      %v5681 = vadd.f32 %v5392, %v5680
      %v5682 = vpop.f32.mrb[0].mxu0
      %5683 = vmatprep.mubr.bf16.mxu0 %v3789
      %5684 = vmatmul.mubr.bf16.gmra.mrb[0].mxu0 %v3788
      %v5685 = vpop.f32.mrb[0].mxu0
      %v5686 = vadd.f32 %v5397, %v5685
      %v5687 = vpop.f32.mrb[0].mxu0
      %v5688 = vpop.f32.mrb[0].mxu0
      %v5689 = vadd.f32 %v5400, %v5688
      %v5690 = vpop.f32.mrb[0].mxu0
      %5691 = vmatprep.mubr.bf16.mxu0 %v3798
      %5692 = vmatmul.mubr.bf16.gmra.mrb[0].mxu0 %v3797
      %v5693 = vpop.f32.mrb[0].mxu0
      %v5694 = vadd.f32 %v5405, %v5693
      %v5695 = vpop.f32.mrb[0].mxu0
      %v5696 = vpop.f32.mrb[0].mxu0
      %v5697 = vadd.f32 %v5408, %v5696
      %v5698 = vpop.f32.mrb[0].mxu0
      %5699 = vmatprep.mubr.bf16.mxu0 %v3807
      %5700 = vmatmul.mubr.bf16.gmra.mrb[0].mxu0 %v3806
      %v5701 = vpop.f32.mrb[0].mxu0
      %v5702 = vadd.f32 %v5413, %v5701
      %v5703 = vpop.f32.mrb[0].mxu0
      %v5704 = vpop.f32.mrb[0].mxu0
      %v5705 = vadd.f32 %v5416, %v5704
      %v5706 = vpop.f32.mrb[0].mxu0
      %5707 = vmatprep.mubr.bf16.mxu0 %v3816
      %5708 = vmatmul.mubr.bf16.gmra.mrb[0].mxu0 %v3815
      %v5709 = vpop.f32.mrb[0].mxu0
      %v5710 = vadd.f32 %v5421, %v5709
      %v5711 = vpop.f32.mrb[0].mxu0
      %v5712 = vpop.f32.mrb[0].mxu0
      %v5713 = vadd.f32 %v5424, %v5712
      %v5714 = vpop.f32.mrb[0].mxu0
      %5715 = vmatprep.mubr.bf16.mxu0 %v3825
      %5716 = vmatmul.mubr.bf16.gmra.mrb[0].mxu0 %v3824
      %v5717 = vpop.f32.mrb[0].mxu0
      %v5718 = vadd.f32 %v5429, %v5717
      %v5719 = vpop.f32.mrb[0].mxu0
      %v5720 = vpop.f32.mrb[0].mxu0
      %v5721 = vadd.f32 %v5432, %v5720
      %v5722 = vpop.f32.mrb[0].mxu0
      %5723 = vmatprep.mubr.bf16.mxu0 %v3834
      %5724 = vmatmul.mubr.bf16.gmra.mrb[0].mxu0 %v3833
      %v5725 = vpop.f32.mrb[0].mxu0
      %v5726 = vadd.f32 %v5437, %v5725
      %v5727 = vpop.f32.mrb[0].mxu0
      %v5728 = vpop.f32.mrb[0].mxu0
      %v5729 = vadd.f32 %v5440, %v5728
      %v5730 = vpop.f32.mrb[0].mxu0
      %5731 = vmatprep.mubr.bf16.mxu0 %v3843
      %5732 = vmatmul.mubr.bf16.gmra.mrb[0].mxu0 %v3842
      %v5733 = vpop.f32.mrb[0].mxu0
      %v5734 = vadd.f32 %v5445, %v5733
      %v5735 = vpop.f32.mrb[0].mxu0
      %v5736 = vpop.f32.mrb[0].mxu0
      %v5737 = vadd.f32 %v5448, %v5736
      %v5738 = vpop.f32.mrb[0].mxu0
      %5739 = vmatprep.mubr.bf16.mxu0 %v3852
      %5740 = vmatmul.mubr.bf16.gmra.mrb[0].mxu0 %v3851
      %v5741 = vpop.f32.mrb[0].mxu0
      %v5742 = vadd.f32 %v5453, %v5741
      %v5743 = vpop.f32.mrb[0].mxu0
      %v5744 = vpop.f32.mrb[0].mxu0
      %v5745 = vadd.f32 %v5456, %v5744
      %v5746 = vpop.f32.mrb[0].mxu0
      %5747 = vmatprep.mubr.bf16.mxu0 %v3861
      %5748 = vmatmul.mubr.bf16.gmra.mrb[0].mxu0 %v3860
      %v5749 = vpop.f32.mrb[0].mxu0
      %v5750 = vadd.f32 %v5461, %v5749
      %v5751 = vpop.f32.mrb[0].mxu0
      %v5752 = vpop.f32.mrb[0].mxu0
      %v5753 = vadd.f32 %v5464, %v5752
      %v5754 = vpop.f32.mrb[0].mxu0
      %5755 = vmatprep.mubr.bf16.mxu0 %v3870
      %5756 = vmatmul.mubr.bf16.gmra.mrb[0].mxu0 %v3869
      %v5757 = vpop.f32.mrb[0].mxu0
      %v5758 = vadd.f32 %v5469, %v5757
      %v5759 = vpop.f32.mrb[0].mxu0
      %v5760 = vpop.f32.mrb[0].mxu0
      %v5761 = vadd.f32 %v5472, %v5760
      %v5762 = vpop.f32.mrb[0].mxu0
      %5763 = vmatprep.mubr.bf16.mxu0 %v3879
      %5764 = vmatmul.mubr.bf16.gmra.mrb[0].mxu0 %v3878
      %v5765 = vpop.f32.mrb[0].mxu0
      %v5766 = vadd.f32 %v5477, %v5765
      %v5767 = vpop.f32.mrb[0].mxu0
      %v5768 = vpop.f32.mrb[0].mxu0
      %v5769 = vadd.f32 %v5480, %v5768
      %v5770 = vpop.f32.mrb[0].mxu0
      %5771 = vmatprep.mubr.bf16.mxu0 %v3888
      %5772 = vmatmul.mubr.bf16.gmra.mrb[0].mxu0 %v3887
      %v5773 = vpop.f32.mrb[0].mxu0
      %v5774 = vadd.f32 %v5485, %v5773
      %v5775 = vpop.f32.mrb[0].mxu0
      %v5776 = vpop.f32.mrb[0].mxu0
      %v5777 = vadd.f32 %v5488, %v5776
      %v5778 = vpop.f32.mrb[0].mxu0
      %5779 = vmatprep.mubr.bf16.mxu0 %v3897
      %5780 = vmatmul.mubr.bf16.gmra.mrb[0].mxu0 %v3896
      %v5781 = vpop.f32.mrb[0].mxu0
      %v5782 = vadd.f32 %v5493, %v5781
      %v5783 = vpop.f32.mrb[0].mxu0
      %v5784 = vpop.f32.mrb[0].mxu0
      %v5785 = vadd.f32 %v5496, %v5784
      %v5786 = vpop.f32.mrb[0].mxu0
      %5787 = vmatprep.mubr.bf16.mxu0 %v3906
      %5788 = vmatmul.mubr.bf16.gmra.mrb[0].mxu0 %v3905
      %v5789 = vpop.f32.mrb[0].mxu0
      %v5790 = vadd.f32 %v5501, %v5789
      %v5791 = vpop.f32.mrb[0].mxu0
      %v5792 = vpop.f32.mrb[0].mxu0
      %v5793 = vadd.f32 %v5504, %v5792
      %v5794 = vpop.f32.mrb[0].mxu0
      %5795 = vmatprep.mubr.bf16.mxu0 %v3915
      %5796 = vmatmul.mubr.bf16.gmra.mrb[0].mxu0 %v3914
      %v5797 = vpop.f32.mrb[0].mxu0
      %v5798 = vadd.f32 %v5509, %v5797
      %v5799 = vpop.f32.mrb[0].mxu0
      %v5800 = vpop.f32.mrb[0].mxu0
      %v5801 = vadd.f32 %v5512, %v5800
      %v5802 = vpop.f32.mrb[0].mxu0
      %5803 = vmatprep.mubr.bf16.mxu0 %v3924
      %5804 = vmatmul.mubr.bf16.gmra.mrb[0].mxu0 %v3923
      %v5805 = vpop.f32.mrb[0].mxu0
      %v5806 = vadd.f32 %v5517, %v5805
      %v5807 = vpop.f32.mrb[0].mxu0
      %v5808 = vpop.f32.mrb[0].mxu0
      %v5809 = vadd.f32 %v5520, %v5808
      %v5810 = vpop.f32.mrb[0].mxu0
      %5811 = vmatprep.mubr.bf16.mxu0 %v3933
      %5812 = vmatmul.mubr.bf16.gmra.mrb[0].mxu0 %v3932
      %v5813 = vpop.f32.mrb[0].mxu0
      %v5814 = vadd.f32 %v5525, %v5813
      %v5815 = vpop.f32.mrb[0].mxu0
      %v5816 = vpop.f32.mrb[0].mxu0
      %v5817 = vadd.f32 %v5528, %v5816
      %v5818 = vpop.f32.mrb[0].mxu0
      %5819 = vmatprep.mubr.bf16.mxu0 %v3942
      %5820 = vmatmul.mubr.bf16.gmra.mrb[0].mxu0 %v3941
      %v5821 = vpop.f32.mrb[0].mxu0
      %v5822 = vadd.f32 %v5533, %v5821
      %v5823 = vpop.f32.mrb[0].mxu0
      %v5824 = vpop.f32.mrb[0].mxu0
      %v5825 = vadd.f32 %v5536, %v5824
      %v5826 = vpop.f32.mrb[0].mxu0
      %5827 = vmatprep.mubr.bf16.mxu0 %v3951
      %5828 = vmatmul.mubr.bf16.gmra.mrb[0].mxu0 %v3950
      %v5829 = vpop.f32.mrb[0].mxu0
      %v5830 = vadd.f32 %v5541, %v5829
      %v5831 = vpop.f32.mrb[0].mxu0
      %v5832 = vpop.f32.mrb[0].mxu0
      %v5833 = vadd.f32 %v5544, %v5832
      %v5834 = vpop.f32.mrb[0].mxu0
      %5835 = vmatprep.mubr.bf16.mxu0 %v3960
      %5836 = vmatmul.mubr.bf16.gmra.mrb[0].mxu0 %v3959
      %v5837 = vpop.f32.mrb[0].mxu0
      %v5838 = vadd.f32 %v5549, %v5837
      %v5839 = vpop.f32.mrb[0].mxu0
      %v5840 = vpop.f32.mrb[0].mxu0
      %v5841 = vadd.f32 %v5552, %v5840
      %v5842 = vpop.f32.mrb[0].mxu0
      %5843 = vmatprep.mubr.bf16.mxu0 %v3969
      %5844 = vmatmul.mubr.bf16.gmra.mrb[0].mxu0 %v3968
      %v5845 = vpop.f32.mrb[0].mxu0
      %v5846 = vadd.f32 %v5557, %v5845
      %v5847 = vpop.f32.mrb[0].mxu0
      %v5848 = vpop.f32.mrb[0].mxu0
      %v5849 = vadd.f32 %v5560, %v5848
      %v5850 = vpop.f32.mrb[0].mxu0
      %5851 = vmatprep.mubr.bf16.mxu0 %v3978
      %5852 = vmatmul.mubr.bf16.gmra.mrb[0].mxu0 %v3977
      %v5853 = vpop.f32.mrb[0].mxu0
      %v5854 = vadd.f32 %v5565, %v5853
      %v5855 = vpop.f32.mrb[0].mxu0
      %v5856 = vpop.f32.mrb[0].mxu0
      %v5857 = vadd.f32 %v5568, %v5856
      %v5858 = vpop.f32.mrb[0].mxu0
      %5859 = vmatprep.mubr.bf16.mxu0 %v3987
      %5860 = vmatmul.mubr.bf16.gmra.mrb[0].mxu0 %v3986
      %v5861 = vpop.f32.mrb[0].mxu0
      %v5862 = vadd.f32 %v5573, %v5861
      %v5863 = vpop.f32.mrb[0].mxu0
      %v5864 = vpop.f32.mrb[0].mxu0
      %v5865 = vadd.f32 %v5576, %v5864
      %v5866 = vpop.f32.mrb[0].mxu0
      %5867 = vmatprep.mubr.bf16.mxu0 %v3996
      %5868 = vmatmul.mubr.bf16.gmra.mrb[0].mxu0 %v3995
      %v5869 = vpop.f32.mrb[0].mxu0
      %v5870 = vadd.f32 %v5581, %v5869
      %v5871 = vpop.f32.mrb[0].mxu0
      %v5872 = vpop.f32.mrb[0].mxu0
      %v5873 = vadd.f32 %v5584, %v5872
      %v5874 = vpop.f32.mrb[0].mxu0
      %5875 = vmatprep.mubr.bf16.mxu0 %v4005
      %5876 = vmatmul.mubr.bf16.gmra.mrb[0].mxu0 %v4004
      %v5877 = vpop.f32.mrb[0].mxu0
      %v5878 = vadd.f32 %v5589, %v5877
      %v5879 = vpop.f32.mrb[0].mxu0
      %v5880 = vpop.f32.mrb[0].mxu0
      %v5881 = vadd.f32 %v5592, %v5880
      %v5882 = vpop.f32.mrb[0].mxu0
      %5883 = vmatprep.mubr.bf16.mxu0 %v4014
      %5884 = vmatmul.mubr.bf16.gmra.mrb[0].mxu0 %v4013
      %v5885 = vpop.f32.mrb[0].mxu0
      %v5886 = vadd.f32 %v5597, %v5885
      %v5887 = vpop.f32.mrb[0].mxu0
      %v5888 = vpop.f32.mrb[0].mxu0
      %v5889 = vadd.f32 %v5600, %v5888
      %v5890 = vpop.f32.mrb[0].mxu0
      %5891 = vdwg.mxu0
      %5892 = vmatprep.subr.bf16.mxu0 0
      %5893 = vmatpush1.bf16.msra.mxu0 %v4656
      %5894 = vmatprep.subr.bf16.mxu0 0
      %5895 = vmatpush1.bf16.msra.mxu0 %v4657
      %5896 = vmatprep.subr.bf16.mxu0 0
      %5897 = vmatpush1.bf16.msra.mxu0 %v4658
      %5898 = vmatprep.subr.bf16.mxu0 0
      %5899 = vmatpush1.bf16.msra.mxu0 %v4659
      %5900 = vmatprep.subr.bf16.mxu0 0
      %5901 = vmatpush1.bf16.msra.mxu0 %v4660
      %5902 = vmatprep.subr.bf16.mxu0 0
      %5903 = vmatpush1.bf16.msra.mxu0 %v4661
      %5904 = vmatprep.subr.bf16.mxu0 0
      %5905 = vmatpush1.bf16.msra.mxu0 %v4662
      %5906 = vmatprep.subr.bf16.mxu0 0
      %5907 = vmatpush1.bf16.msra.mxu0 %v4663
      %5908 = vmatprep.subr.bf16.mxu0 0
      %5909 = vmatpush1.bf16.msra.mxu0 0
      %5910 = vmatprep.subr.bf16.mxu0 0
      %5911 = vmatpush1.bf16.msra.mxu0 0
      %5912 = vmatprep.subr.bf16.mxu0 0
      %5913 = vmatpush1.bf16.msra.mxu0 0
      %5914 = vmatprep.subr.bf16.mxu0 0
      %5915 = vmatpush1.bf16.msra.mxu0 0
      %5916 = vmatprep.subr.bf16.mxu0 0
      %5917 = vmatpush1.bf16.msra.mxu0 0
      %5918 = vmatprep.subr.bf16.mxu0 0
      %5919 = vmatpush1.bf16.msra.mxu0 0
      %5920 = vmatprep.subr.bf16.mxu0 0
      %5921 = vmatpush1.bf16.msra.mxu0 0
      %5922 = vmatprep.subr.bf16.mxu0 0
      %5923 = vmatpush1.bf16.msra.mxu0 0
      %5924 = vmatprep.mubr.bf16.mxu0 0
      %5925 = vmatmul.mubr.bf16.gmra.mrb[0].mxu0 %v3736
      %v5926 = vpop.f32.mrb[0].mxu0
      %v5927 = vadd.f32 %v5638, %v5926
      %v5928 = vpop.f32.mrb[0].mxu0
      %v5929 = vpop.f32.mrb[0].mxu0
      %v5930 = vadd.f32 %v5641, %v5929
      %v5931 = vpop.f32.mrb[0].mxu0
      %5932 = vmatprep.mubr.bf16.mxu0 0
      %5933 = vmatmul.mubr.bf16.gmra.mrb[0].mxu0 %v3745
      %v5934 = vpop.f32.mrb[0].mxu0
      %v5935 = vadd.f32 %v5646, %v5934
      %v5936 = vpop.f32.mrb[0].mxu0
      %v5937 = vpop.f32.mrb[0].mxu0
      %v5938 = vadd.f32 %v5649, %v5937
      %v5939 = vpop.f32.mrb[0].mxu0
      %5940 = vmatprep.mubr.bf16.mxu0 0
      %5941 = vmatmul.mubr.bf16.gmra.mrb[0].mxu0 %v3754
      %v5942 = vpop.f32.mrb[0].mxu0
      %v5943 = vadd.f32 %v5654, %v5942
      %v5944 = vpop.f32.mrb[0].mxu0
      %v5945 = vpop.f32.mrb[0].mxu0
      %v5946 = vadd.f32 %v5657, %v5945
      %v5947 = vpop.f32.mrb[0].mxu0
      %5948 = vmatprep.mubr.bf16.mxu0 0
      %5949 = vmatmul.mubr.bf16.gmra.mrb[0].mxu0 %v3763
      %v5950 = vpop.f32.mrb[0].mxu0
      %v5951 = vadd.f32 %v5662, %v5950
      %v5952 = vpop.f32.mrb[0].mxu0
      %v5953 = vpop.f32.mrb[0].mxu0
      %v5954 = vadd.f32 %v5665, %v5953
      %v5955 = vpop.f32.mrb[0].mxu0
      %5956 = vmatprep.mubr.bf16.mxu0 0
      %5957 = vmatmul.mubr.bf16.gmra.mrb[0].mxu0 %v3772
      %v5958 = vpop.f32.mrb[0].mxu0
      %v5959 = vadd.f32 %v5670, %v5958
      %v5960 = vpop.f32.mrb[0].mxu0
      %v5961 = vpop.f32.mrb[0].mxu0
      %v5962 = vadd.f32 %v5673, %v5961
      %v5963 = vpop.f32.mrb[0].mxu0
      %5964 = vmatprep.mubr.bf16.mxu0 0
      %5965 = vmatmul.mubr.bf16.gmra.mrb[0].mxu0 %v3781
      %v5966 = vpop.f32.mrb[0].mxu0
      %v5967 = vadd.f32 %v5678, %v5966
      %v5968 = vpop.f32.mrb[0].mxu0
      %v5969 = vpop.f32.mrb[0].mxu0
      %v5970 = vadd.f32 %v5681, %v5969
      %v5971 = vpop.f32.mrb[0].mxu0
      %5972 = vmatprep.mubr.bf16.mxu0 0
      %5973 = vmatmul.mubr.bf16.gmra.mrb[0].mxu0 %v3790
      %v5974 = vpop.f32.mrb[0].mxu0
      %v5975 = vadd.f32 %v5686, %v5974
      %v5976 = vpop.f32.mrb[0].mxu0
      %v5977 = vpop.f32.mrb[0].mxu0
      %v5978 = vadd.f32 %v5689, %v5977
      %v5979 = vpop.f32.mrb[0].mxu0
      %5980 = vmatprep.mubr.bf16.mxu0 0
      %5981 = vmatmul.mubr.bf16.gmra.mrb[0].mxu0 %v3799
      %v5982 = vpop.f32.mrb[0].mxu0
      %v5983 = vadd.f32 %v5694, %v5982
      %v5984 = vpop.f32.mrb[0].mxu0
      %v5985 = vpop.f32.mrb[0].mxu0
      %v5986 = vadd.f32 %v5697, %v5985
      %v5987 = vpop.f32.mrb[0].mxu0
      %5988 = vmatprep.mubr.bf16.mxu0 0
      %5989 = vmatmul.mubr.bf16.gmra.mrb[0].mxu0 %v3808
      %v5990 = vpop.f32.mrb[0].mxu0
      %v5991 = vadd.f32 %v5702, %v5990
      %v5992 = vpop.f32.mrb[0].mxu0
      %v5993 = vpop.f32.mrb[0].mxu0
      %v5994 = vadd.f32 %v5705, %v5993
      %v5995 = vpop.f32.mrb[0].mxu0
      %5996 = vmatprep.mubr.bf16.mxu0 0
      %5997 = vmatmul.mubr.bf16.gmra.mrb[0].mxu0 %v3817
      %v5998 = vpop.f32.mrb[0].mxu0
      %v5999 = vadd.f32 %v5710, %v5998
      %v6000 = vpop.f32.mrb[0].mxu0
      %v6001 = vpop.f32.mrb[0].mxu0
      %v6002 = vadd.f32 %v5713, %v6001
      %v6003 = vpop.f32.mrb[0].mxu0
      %6004 = vmatprep.mubr.bf16.mxu0 0
      %6005 = vmatmul.mubr.bf16.gmra.mrb[0].mxu0 %v3826
      %v6006 = vpop.f32.mrb[0].mxu0
      %v6007 = vadd.f32 %v5718, %v6006
      %v6008 = vpop.f32.mrb[0].mxu0
      %v6009 = vpop.f32.mrb[0].mxu0
      %v6010 = vadd.f32 %v5721, %v6009
      %v6011 = vpop.f32.mrb[0].mxu0
      %6012 = vmatprep.mubr.bf16.mxu0 0
      %6013 = vmatmul.mubr.bf16.gmra.mrb[0].mxu0 %v3835
      %v6014 = vpop.f32.mrb[0].mxu0
      %v6015 = vadd.f32 %v5726, %v6014
      %v6016 = vpop.f32.mrb[0].mxu0
      %v6017 = vpop.f32.mrb[0].mxu0
      %v6018 = vadd.f32 %v5729, %v6017
      %v6019 = vpop.f32.mrb[0].mxu0
      %6020 = vmatprep.mubr.bf16.mxu0 0
      %6021 = vmatmul.mubr.bf16.gmra.mrb[0].mxu0 %v3844
      %v6022 = vpop.f32.mrb[0].mxu0
      %v6023 = vadd.f32 %v5734, %v6022
      %v6024 = vpop.f32.mrb[0].mxu0
      %v6025 = vpop.f32.mrb[0].mxu0
      %v6026 = vadd.f32 %v5737, %v6025
      %v6027 = vpop.f32.mrb[0].mxu0
      %6028 = vmatprep.mubr.bf16.mxu0 0
      %6029 = vmatmul.mubr.bf16.gmra.mrb[0].mxu0 %v3853
      %v6030 = vpop.f32.mrb[0].mxu0
      %v6031 = vadd.f32 %v5742, %v6030
      %v6032 = vpop.f32.mrb[0].mxu0
      %v6033 = vpop.f32.mrb[0].mxu0
      %v6034 = vadd.f32 %v5745, %v6033
      %v6035 = vpop.f32.mrb[0].mxu0
      %6036 = vmatprep.mubr.bf16.mxu0 0
      %6037 = vmatmul.mubr.bf16.gmra.mrb[0].mxu0 %v3862
      %v6038 = vpop.f32.mrb[0].mxu0
      %v6039 = vadd.f32 %v5750, %v6038
      %v6040 = vpop.f32.mrb[0].mxu0
      %v6041 = vpop.f32.mrb[0].mxu0
      %v6042 = vadd.f32 %v5753, %v6041
      %v6043 = vpop.f32.mrb[0].mxu0
      %6044 = vmatprep.mubr.bf16.mxu0 0
      %6045 = vmatmul.mubr.bf16.gmra.mrb[0].mxu0 %v3871
      %v6046 = vpop.f32.mrb[0].mxu0
      %v6047 = vadd.f32 %v5758, %v6046
      %v6048 = vpop.f32.mrb[0].mxu0
      %v6049 = vpop.f32.mrb[0].mxu0
      %v6050 = vadd.f32 %v5761, %v6049
      %v6051 = vpop.f32.mrb[0].mxu0
      %6052 = vmatprep.mubr.bf16.mxu0 0
      %6053 = vmatmul.mubr.bf16.gmra.mrb[0].mxu0 %v3880
      %v6054 = vpop.f32.mrb[0].mxu0
      %v6055 = vadd.f32 %v5766, %v6054
      %v6056 = vpop.f32.mrb[0].mxu0
      %v6057 = vpop.f32.mrb[0].mxu0
      %v6058 = vadd.f32 %v5769, %v6057
      %v6059 = vpop.f32.mrb[0].mxu0
      %6060 = vmatprep.mubr.bf16.mxu0 0
      %6061 = vmatmul.mubr.bf16.gmra.mrb[0].mxu0 %v3889
      %v6062 = vpop.f32.mrb[0].mxu0
      %v6063 = vadd.f32 %v5774, %v6062
      %v6064 = vpop.f32.mrb[0].mxu0
      %v6065 = vpop.f32.mrb[0].mxu0
      %v6066 = vadd.f32 %v5777, %v6065
      %v6067 = vpop.f32.mrb[0].mxu0
      %6068 = vmatprep.mubr.bf16.mxu0 0
      %6069 = vmatmul.mubr.bf16.gmra.mrb[0].mxu0 %v3898
      %v6070 = vpop.f32.mrb[0].mxu0
      %v6071 = vadd.f32 %v5782, %v6070
      %v6072 = vpop.f32.mrb[0].mxu0
      %v6073 = vpop.f32.mrb[0].mxu0
      %v6074 = vadd.f32 %v5785, %v6073
      %v6075 = vpop.f32.mrb[0].mxu0
      %6076 = vmatprep.mubr.bf16.mxu0 0
      %6077 = vmatmul.mubr.bf16.gmra.mrb[0].mxu0 %v3907
      %v6078 = vpop.f32.mrb[0].mxu0
      %v6079 = vadd.f32 %v5790, %v6078
      %v6080 = vpop.f32.mrb[0].mxu0
      %v6081 = vpop.f32.mrb[0].mxu0
      %v6082 = vadd.f32 %v5793, %v6081
      %v6083 = vpop.f32.mrb[0].mxu0
      %6084 = vmatprep.mubr.bf16.mxu0 0
      %6085 = vmatmul.mubr.bf16.gmra.mrb[0].mxu0 %v3916
      %v6086 = vpop.f32.mrb[0].mxu0
      %v6087 = vadd.f32 %v5798, %v6086
      %v6088 = vpop.f32.mrb[0].mxu0
      %v6089 = vpop.f32.mrb[0].mxu0
      %v6090 = vadd.f32 %v5801, %v6089
      %v6091 = vpop.f32.mrb[0].mxu0
      %6092 = vmatprep.mubr.bf16.mxu0 0
      %6093 = vmatmul.mubr.bf16.gmra.mrb[0].mxu0 %v3925
      %v6094 = vpop.f32.mrb[0].mxu0
      %v6095 = vadd.f32 %v5806, %v6094
      %v6096 = vpop.f32.mrb[0].mxu0
      %v6097 = vpop.f32.mrb[0].mxu0
      %v6098 = vadd.f32 %v5809, %v6097
      %v6099 = vpop.f32.mrb[0].mxu0
      %6100 = vmatprep.mubr.bf16.mxu0 0
      %6101 = vmatmul.mubr.bf16.gmra.mrb[0].mxu0 %v3934
      %v6102 = vpop.f32.mrb[0].mxu0
      %v6103 = vadd.f32 %v5814, %v6102
      %v6104 = vpop.f32.mrb[0].mxu0
      %v6105 = vpop.f32.mrb[0].mxu0
      %v6106 = vadd.f32 %v5817, %v6105
      %v6107 = vpop.f32.mrb[0].mxu0
      %6108 = vmatprep.mubr.bf16.mxu0 0
      %6109 = vmatmul.mubr.bf16.gmra.mrb[0].mxu0 %v3943
      %v6110 = vpop.f32.mrb[0].mxu0
      %v6111 = vadd.f32 %v5822, %v6110
      %v6112 = vpop.f32.mrb[0].mxu0
      %v6113 = vpop.f32.mrb[0].mxu0
      %v6114 = vadd.f32 %v5825, %v6113
      %v6115 = vpop.f32.mrb[0].mxu0
      %6116 = vmatprep.mubr.bf16.mxu0 0
      %6117 = vmatmul.mubr.bf16.gmra.mrb[0].mxu0 %v3952
      %v6118 = vpop.f32.mrb[0].mxu0
      %v6119 = vadd.f32 %v5830, %v6118
      %v6120 = vpop.f32.mrb[0].mxu0
      %v6121 = vpop.f32.mrb[0].mxu0
      %v6122 = vadd.f32 %v5833, %v6121
      %v6123 = vpop.f32.mrb[0].mxu0
      %6124 = vmatprep.mubr.bf16.mxu0 0
      %6125 = vmatmul.mubr.bf16.gmra.mrb[0].mxu0 %v3961
      %v6126 = vpop.f32.mrb[0].mxu0
      %v6127 = vadd.f32 %v5838, %v6126
      %v6128 = vpop.f32.mrb[0].mxu0
      %v6129 = vpop.f32.mrb[0].mxu0
      %v6130 = vadd.f32 %v5841, %v6129
      %v6131 = vpop.f32.mrb[0].mxu0
      %6132 = vmatprep.mubr.bf16.mxu0 0
      %6133 = vmatmul.mubr.bf16.gmra.mrb[0].mxu0 %v3970
      %v6134 = vpop.f32.mrb[0].mxu0
      %v6135 = vadd.f32 %v5846, %v6134
      %v6136 = vpop.f32.mrb[0].mxu0
      %v6137 = vpop.f32.mrb[0].mxu0
      %v6138 = vadd.f32 %v5849, %v6137
      %v6139 = vpop.f32.mrb[0].mxu0
      %6140 = vmatprep.mubr.bf16.mxu0 0
      %6141 = vmatmul.mubr.bf16.gmra.mrb[0].mxu0 %v3979
      %v6142 = vpop.f32.mrb[0].mxu0
      %v6143 = vadd.f32 %v5854, %v6142
      %v6144 = vpop.f32.mrb[0].mxu0
      %v6145 = vpop.f32.mrb[0].mxu0
      %v6146 = vadd.f32 %v5857, %v6145
      %v6147 = vpop.f32.mrb[0].mxu0
      %6148 = vmatprep.mubr.bf16.mxu0 0
      %6149 = vmatmul.mubr.bf16.gmra.mrb[0].mxu0 %v3988
      %v6150 = vpop.f32.mrb[0].mxu0
      %v6151 = vadd.f32 %v5862, %v6150
      %v6152 = vpop.f32.mrb[0].mxu0
      %v6153 = vpop.f32.mrb[0].mxu0
      %v6154 = vadd.f32 %v5865, %v6153
      %v6155 = vpop.f32.mrb[0].mxu0
      %6156 = vmatprep.mubr.bf16.mxu0 0
      %6157 = vmatmul.mubr.bf16.gmra.mrb[0].mxu0 %v3997
      %v6158 = vpop.f32.mrb[0].mxu0
      %v6159 = vadd.f32 %v5870, %v6158
      %v6160 = vpop.f32.mrb[0].mxu0
      %v6161 = vpop.f32.mrb[0].mxu0
      %v6162 = vadd.f32 %v5873, %v6161
      %v6163 = vpop.f32.mrb[0].mxu0
      %6164 = vmatprep.mubr.bf16.mxu0 0
      %6165 = vmatmul.mubr.bf16.gmra.mrb[0].mxu0 %v4006
      %v6166 = vpop.f32.mrb[0].mxu0
      %v6167 = vadd.f32 %v5878, %v6166
      %v6168 = vpop.f32.mrb[0].mxu0
      %v6169 = vpop.f32.mrb[0].mxu0
      %v6170 = vadd.f32 %v5881, %v6169
      %v6171 = vpop.f32.mrb[0].mxu0
      %6172 = vmatprep.mubr.bf16.mxu0 0
      %6173 = vmatmul.mubr.bf16.gmra.mrb[0].mxu0 %v4015
      %v6174 = vpop.f32.mrb[0].mxu0
      %v6175 = vadd.f32 %v5886, %v6174
      %v6176 = vpop.f32.mrb[0].mxu0
      %v6177 = vpop.f32.mrb[0].mxu0
      %v6178 = vadd.f32 %v5889, %v6177
      %v6179 = vpop.f32.mrb[0].mxu0
      %6180 = vdwg.mxu0
      %v6181 = vadd.f32 %v1595, %v5927
      %v6182 = vadd.f32 %v1598, %v5930
      %v6183 = vadd.f32 %v1603, %v5935
      %v6184 = vadd.f32 %v1606, %v5938
      %v6185 = vadd.f32 %v1611, %v5943
      %v6186 = vadd.f32 %v1614, %v5946
      %v6187 = vadd.f32 %v1619, %v5951
      %v6188 = vadd.f32 %v1622, %v5954
      %v6189 = vadd.f32 %v1627, %v5959
      %v6190 = vadd.f32 %v1630, %v5962
      %v6191 = vadd.f32 %v1635, %v5967
      %v6192 = vadd.f32 %v1638, %v5970
      %v6193 = vadd.f32 %v1643, %v5975
      %v6194 = vadd.f32 %v1646, %v5978
      %v6195 = vadd.f32 %v1651, %v5983
      %v6196 = vadd.f32 %v1654, %v5986
      %v6197 = vadd.f32 %v1659, %v5991
      %v6198 = vadd.f32 %v1662, %v5994
      %v6199 = vadd.f32 %v1667, %v5999
      %v6200 = vadd.f32 %v1670, %v6002
      %v6201 = vadd.f32 %v1675, %v6007
      %v6202 = vadd.f32 %v1678, %v6010
      %v6203 = vadd.f32 %v1683, %v6015
      %v6204 = vadd.f32 %v1686, %v6018
      %v6205 = vadd.f32 %v1691, %v6023
      %v6206 = vadd.f32 %v1694, %v6026
      %v6207 = vadd.f32 %v1699, %v6031
      %v6208 = vadd.f32 %v1702, %v6034
      %v6209 = vadd.f32 %v1707, %v6039
      %v6210 = vadd.f32 %v1710, %v6042
      %v6211 = vadd.f32 %v1715, %v6047
      %v6212 = vadd.f32 %v1718, %v6050
      %v6213 = vadd.f32 %v1723, %v6055
      %v6214 = vadd.f32 %v1726, %v6058
      %v6215 = vadd.f32 %v1731, %v6063
      %v6216 = vadd.f32 %v1734, %v6066
      %v6217 = vadd.f32 %v1739, %v6071
      %v6218 = vadd.f32 %v1742, %v6074
      %v6219 = vadd.f32 %v1747, %v6079
      %v6220 = vadd.f32 %v1750, %v6082
      %v6221 = vadd.f32 %v1755, %v6087
      %v6222 = vadd.f32 %v1758, %v6090
      %v6223 = vadd.f32 %v1763, %v6095
      %v6224 = vadd.f32 %v1766, %v6098
      %v6225 = vadd.f32 %v1771, %v6103
      %v6226 = vadd.f32 %v1774, %v6106
      %v6227 = vadd.f32 %v1779, %v6111
      %v6228 = vadd.f32 %v1782, %v6114
      %v6229 = vadd.f32 %v1787, %v6119
      %v6230 = vadd.f32 %v1790, %v6122
      %v6231 = vadd.f32 %v1795, %v6127
      %v6232 = vadd.f32 %v1798, %v6130
      %v6233 = vadd.f32 %v1803, %v6135
      %v6234 = vadd.f32 %v1806, %v6138
      %v6235 = vadd.f32 %v1811, %v6143
      %v6236 = vadd.f32 %v1814, %v6146
      %v6237 = vadd.f32 %v1819, %v6151
      %v6238 = vadd.f32 %v1822, %v6154
      %v6239 = vadd.f32 %v1827, %v6159
      %v6240 = vadd.f32 %v1830, %v6162
      %v6241 = vadd.f32 %v1835, %v6167
      %v6242 = vadd.f32 %v1838, %v6170
      %v6243 = vadd.f32 %v1843, %v6175
      %v6244 = vadd.f32 %v1846, %v6178
      %v6245 = vmax.f32 %v6181, 0.0
      %v6246 = vmax.f32 %v6182, 0.0
      %v6247 = vmax.f32 %v6183, 0.0
      %v6248 = vmax.f32 %v6184, 0.0
      %v6249 = vmax.f32 %v6185, 0.0
      %v6250 = vmax.f32 %v6186, 0.0
      %v6251 = vmax.f32 %v6187, 0.0
      %v6252 = vmax.f32 %v6188, 0.0
      %v6253 = vmax.f32 %v6189, 0.0
      %v6254 = vmax.f32 %v6190, 0.0
      %v6255 = vmax.f32 %v6191, 0.0
      %v6256 = vmax.f32 %v6192, 0.0
      %v6257 = vmax.f32 %v6193, 0.0
      %v6258 = vmax.f32 %v6194, 0.0
      %v6259 = vmax.f32 %v6195, 0.0
      %v6260 = vmax.f32 %v6196, 0.0
      %v6261 = vmax.f32 %v6197, 0.0
      %v6262 = vmax.f32 %v6198, 0.0
      %v6263 = vmax.f32 %v6199, 0.0
      %v6264 = vmax.f32 %v6200, 0.0
      %v6265 = vmax.f32 %v6201, 0.0
      %v6266 = vmax.f32 %v6202, 0.0
      %v6267 = vmax.f32 %v6203, 0.0
      %v6268 = vmax.f32 %v6204, 0.0
      %v6269 = vmax.f32 %v6205, 0.0
      %v6270 = vmax.f32 %v6206, 0.0
      %v6271 = vmax.f32 %v6207, 0.0
      %v6272 = vmax.f32 %v6208, 0.0
      %v6273 = vmax.f32 %v6209, 0.0
      %v6274 = vmax.f32 %v6210, 0.0
      %v6275 = vmax.f32 %v6211, 0.0
      %v6276 = vmax.f32 %v6212, 0.0
      %v6277 = vmax.f32 %v6213, 0.0
      %v6278 = vmax.f32 %v6214, 0.0
      %v6279 = vmax.f32 %v6215, 0.0
      %v6280 = vmax.f32 %v6216, 0.0
      %v6281 = vmax.f32 %v6217, 0.0
      %v6282 = vmax.f32 %v6218, 0.0
      %v6283 = vmax.f32 %v6219, 0.0
      %v6284 = vmax.f32 %v6220, 0.0
      %v6285 = vmax.f32 %v6221, 0.0
      %v6286 = vmax.f32 %v6222, 0.0
      %v6287 = vmax.f32 %v6223, 0.0
      %v6288 = vmax.f32 %v6224, 0.0
      %v6289 = vmax.f32 %v6225, 0.0
      %v6290 = vmax.f32 %v6226, 0.0
      %v6291 = vmax.f32 %v6227, 0.0
      %v6292 = vmax.f32 %v6228, 0.0
      %v6293 = vmax.f32 %v6229, 0.0
      %v6294 = vmax.f32 %v6230, 0.0
      %v6295 = vmax.f32 %v6231, 0.0
      %v6296 = vmax.f32 %v6232, 0.0
      %v6297 = vmax.f32 %v6233, 0.0
      %v6298 = vmax.f32 %v6234, 0.0
      %v6299 = vmax.f32 %v6235, 0.0
      %v6300 = vmax.f32 %v6236, 0.0
      %v6301 = vmax.f32 %v6237, 0.0
      %v6302 = vmax.f32 %v6238, 0.0
      %v6303 = vmax.f32 %v6239, 0.0
      %v6304 = vmax.f32 %v6240, 0.0
      %v6305 = vmax.f32 %v6241, 0.0
      %v6306 = vmax.f32 %v6242, 0.0
      %v6307 = vmax.f32 %v6243, 0.0
      %v6308 = vmax.f32 %v6244, 0.0
      %v6309 = vpack.c.bf16 %v6245, %v6245
      %v6310 = vpack.c.bf16 %v6246, %v6246
      %v6311 = vpack.c.bf16 %v6247, %v6247
      %v6312 = vpack.c.bf16 %v6248, %v6248
      %v6313 = vpack.c.bf16 %v6249, %v6249
      %v6314 = vpack.c.bf16 %v6250, %v6250
      %v6315 = vpack.c.bf16 %v6251, %v6251
      %v6316 = vpack.c.bf16 %v6252, %v6252
      %v6317 = vpack.c.bf16 %v6253, %v6253
      %v6318 = vpack.c.bf16 %v6254, %v6254
      %v6319 = vpack.c.bf16 %v6255, %v6255
      %v6320 = vpack.c.bf16 %v6256, %v6256
      %v6321 = vpack.c.bf16 %v6257, %v6257
      %v6322 = vpack.c.bf16 %v6258, %v6258
      %v6323 = vpack.c.bf16 %v6259, %v6259
      %v6324 = vpack.c.bf16 %v6260, %v6260
      %v6325 = vpack.c.bf16 %v6261, %v6261
      %v6326 = vpack.c.bf16 %v6262, %v6262
      %v6327 = vpack.c.bf16 %v6263, %v6263
      %v6328 = vpack.c.bf16 %v6264, %v6264
      %v6329 = vpack.c.bf16 %v6265, %v6265
      %v6330 = vpack.c.bf16 %v6266, %v6266
      %v6331 = vpack.c.bf16 %v6267, %v6267
      %v6332 = vpack.c.bf16 %v6268, %v6268
      %v6333 = vpack.c.bf16 %v6269, %v6269
      %v6334 = vpack.c.bf16 %v6270, %v6270
      %v6335 = vpack.c.bf16 %v6271, %v6271
      %v6336 = vpack.c.bf16 %v6272, %v6272
      %v6337 = vpack.c.bf16 %v6273, %v6273
      %v6338 = vpack.c.bf16 %v6274, %v6274
      %v6339 = vpack.c.bf16 %v6275, %v6275
      %v6340 = vpack.c.bf16 %v6276, %v6276
      %v6341 = vpack.c.bf16 %v6277, %v6277
      %v6342 = vpack.c.bf16 %v6278, %v6278
      %v6343 = vpack.c.bf16 %v6279, %v6279
      %v6344 = vpack.c.bf16 %v6280, %v6280
      %v6345 = vpack.c.bf16 %v6281, %v6281
      %v6346 = vpack.c.bf16 %v6282, %v6282
      %v6347 = vpack.c.bf16 %v6283, %v6283
      %v6348 = vpack.c.bf16 %v6284, %v6284
      %v6349 = vpack.c.bf16 %v6285, %v6285
      %v6350 = vpack.c.bf16 %v6286, %v6286
      %v6351 = vpack.c.bf16 %v6287, %v6287
      %v6352 = vpack.c.bf16 %v6288, %v6288
      %v6353 = vpack.c.bf16 %v6289, %v6289
      %v6354 = vpack.c.bf16 %v6290, %v6290
      %v6355 = vpack.c.bf16 %v6291, %v6291
      %v6356 = vpack.c.bf16 %v6292, %v6292
      %v6357 = vpack.c.bf16 %v6293, %v6293
      %v6358 = vpack.c.bf16 %v6294, %v6294
      %v6359 = vpack.c.bf16 %v6295, %v6295
      %v6360 = vpack.c.bf16 %v6296, %v6296
      %v6361 = vpack.c.bf16 %v6297, %v6297
      %v6362 = vpack.c.bf16 %v6298, %v6298
      %v6363 = vpack.c.bf16 %v6299, %v6299
      %v6364 = vpack.c.bf16 %v6300, %v6300
      %v6365 = vpack.c.bf16 %v6301, %v6301
      %v6366 = vpack.c.bf16 %v6302, %v6302
      %v6367 = vpack.c.bf16 %v6303, %v6303
      %v6368 = vpack.c.bf16 %v6304, %v6304
      %v6369 = vpack.c.bf16 %v6305, %v6305
      %v6370 = vpack.c.bf16 %v6306, %v6306
      %v6371 = vpack.c.bf16 %v6307, %v6307
      %v6372 = vpack.c.bf16 %v6308, %v6308
      %6373 = vst [vmem:[%s340] sm:$0xf] %v6309
      %6374 = vst [vmem:[%s340 + $0x4] sm:$0xf] %v6310
      %6375 = vst [vmem:[%s340 + $0x8] sm:$0xf] %v6311
      %6376 = vst [vmem:[%s340 + $0xc] sm:$0xf] %v6312
      %6377 = vst [vmem:[%s340 + $0x10] sm:$0xf] %v6313
      %6378 = vst [vmem:[%s340 + $0x14] sm:$0xf] %v6314
      %6379 = vst [vmem:[%s340 + $0x18] sm:$0xf] %v6315
      %6380 = vst [vmem:[%s340 + $0x1c] sm:$0xf] %v6316
      %6381 = vst [vmem:[%s340 + $0x20] sm:$0xf] %v6317
      %6382 = vst [vmem:[%s340 + $0x24] sm:$0xf] %v6318
      %6383 = vst [vmem:[%s340 + $0x28] sm:$0xf] %v6319
      %6384 = vst [vmem:[%s340 + $0x2c] sm:$0xf] %v6320
      %6385 = vst [vmem:[%s340 + $0x30] sm:$0xf] %v6321
      %6386 = vst [vmem:[%s340 + $0x34] sm:$0xf] %v6322
      %6387 = vst [vmem:[%s340 + $0x38] sm:$0xf] %v6323
      %6388 = vst [vmem:[%s340 + $0x3c] sm:$0xf] %v6324
      %6389 = vst [vmem:[%s340 + $0x40] sm:$0xf] %v6325
      %6390 = vst [vmem:[%s340 + $0x44] sm:$0xf] %v6326
      %6391 = vst [vmem:[%s340 + $0x48] sm:$0xf] %v6327
      %6392 = vst [vmem:[%s340 + $0x4c] sm:$0xf] %v6328
      %6393 = vst [vmem:[%s340 + $0x50] sm:$0xf] %v6329
      %6394 = vst [vmem:[%s340 + $0x54] sm:$0xf] %v6330
      %6395 = vst [vmem:[%s340 + $0x58] sm:$0xf] %v6331
      %6396 = vst [vmem:[%s340 + $0x5c] sm:$0xf] %v6332
      %6397 = vst [vmem:[%s340 + $0x60] sm:$0xf] %v6333
      %6398 = vst [vmem:[%s340 + $0x64] sm:$0xf] %v6334
      %6399 = vst [vmem:[%s340 + $0x68] sm:$0xf] %v6335
      %6400 = vst [vmem:[%s340 + $0x6c] sm:$0xf] %v6336
      %6401 = vst [vmem:[%s340 + $0x70] sm:$0xf] %v6337
      %6402 = vst [vmem:[%s340 + $0x74] sm:$0xf] %v6338
      %6403 = vst [vmem:[%s340 + $0x78] sm:$0xf] %v6339
      %6404 = vst [vmem:[%s340 + $0x7c] sm:$0xf] %v6340
      %6405 = vst [vmem:[%s340 + $0x80] sm:$0xf] %v6341
      %6406 = vst [vmem:[%s340 + $0x84] sm:$0xf] %v6342
      %6407 = vst [vmem:[%s340 + $0x88] sm:$0xf] %v6343
      %6408 = vst [vmem:[%s340 + $0x8c] sm:$0xf] %v6344
      %6409 = vst [vmem:[%s340 + $0x90] sm:$0xf] %v6345
      %6410 = vst [vmem:[%s340 + $0x94] sm:$0xf] %v6346
      %6411 = vst [vmem:[%s340 + $0x98] sm:$0xf] %v6347
      %6412 = vst [vmem:[%s340 + $0x9c] sm:$0xf] %v6348
      %6413 = vst [vmem:[%s340 + $0xa0] sm:$0xf] %v6349
      %6414 = vst [vmem:[%s340 + $0xa4] sm:$0xf] %v6350
      %6415 = vst [vmem:[%s340 + $0xa8] sm:$0xf] %v6351
      %6416 = vst [vmem:[%s340 + $0xac] sm:$0xf] %v6352
      %6417 = vst [vmem:[%s340 + $0xb0] sm:$0xf] %v6353
      %6418 = vst [vmem:[%s340 + $0xb4] sm:$0xf] %v6354
      %6419 = vst [vmem:[%s340 + $0xb8] sm:$0xf] %v6355
      %6420 = vst [vmem:[%s340 + $0xbc] sm:$0xf] %v6356
      %6421 = vst [vmem:[%s340 + $0xc0] sm:$0xf] %v6357
      %6422 = vst [vmem:[%s340 + $0xc4] sm:$0xf] %v6358
      %6423 = vst [vmem:[%s340 + $0xc8] sm:$0xf] %v6359
      %6424 = vst [vmem:[%s340 + $0xcc] sm:$0xf] %v6360
      %6425 = vst [vmem:[%s340 + $0xd0] sm:$0xf] %v6361
      %6426 = vst [vmem:[%s340 + $0xd4] sm:$0xf] %v6362
      %6427 = vst [vmem:[%s340 + $0xd8] sm:$0xf] %v6363
      %6428 = vst [vmem:[%s340 + $0xdc] sm:$0xf] %v6364
      %6429 = vst [vmem:[%s340 + $0xe0] sm:$0xf] %v6365
      %6430 = vst [vmem:[%s340 + $0xe4] sm:$0xf] %v6366
      %6431 = vst [vmem:[%s340 + $0xe8] sm:$0xf] %v6367
      %6432 = vst [vmem:[%s340 + $0xec] sm:$0xf] %v6368
      %6433 = vst [vmem:[%s340 + $0xf0] sm:$0xf] %v6369
      %6434 = vst [vmem:[%s340 + $0xf4] sm:$0xf] %v6370
      %6435 = vst [vmem:[%s340 + $0xf8] sm:$0xf] %v6371
      %6436 = vst [vmem:[%s340 + $0xfc] sm:$0xf] %v6372
      %p6437 = scmp.lt.s32.totalorder %s22, 1
      %s6438 = scalar_select %p6437, %s22, 1
      %p6439 = scmp.lt.s32.totalorder %s23, 0
      %s6440 = scalar_select %p6439, %s23, 0
      %s6441 = smul.addr %s6438, 64
      %s6442 = sadd.s32 %s6440, %s6441
      %s6443 = smul.addr %s6442, 4
      %s6444 = scalar_lea.vmem %s7, %s6443
      // Predicated region
      $region53: #{_down_layer_forward_impl.1} parent=47 // pred_check
        %p6445 = pneg %p211
      $region54: #{_down_layer_forward_impl.1} parent=47 // pred_check_branch
        %6447 = sbr.rel (%p6445) target = $region56
      $region55: #{_down_layer_forward_impl.1} parent=47 // pred_region
        _
      $region56: #{_down_layer_forward_impl.1} parent=47 // pred_fallthru
        _
    $region48: #{_down_layer_forward_impl.1} parent=5 // pred_fallthru
      _
    %p6448 = scmp.le.s32.totalorder 2, %s13
    // Predicated region
    $region57: #{_down_layer_forward_impl.1} parent=5 // pred_check
      %p6449 = pneg %p6448
    $region58: #{_down_layer_forward_impl.1} parent=5 // pred_check_branch
      %6451 = sbr.rel (%p6449) target = $region60
    $region59: #{_down_layer_forward_impl.1} parent=5 // pred_region
      %s6452 = ssub.s32 %s13, 2
      // Predicated region
      $region61: #{_down_layer_forward_impl.1} parent=59 // pred_check
        %p6453 = pneg %p217
      $region62: #{_down_layer_forward_impl.1} parent=59 // pred_check_branch
        %6455 = sbr.rel (%p6453) target = $region64
      $region63: #{_down_layer_forward_impl.1} parent=59 // pred_region
        %p6456 = scmp.lt.s32.totalorder %s24, 1
        %s6457 = scalar_select %p6456, %s24, 1
        %p6458 = scmp.lt.s32.totalorder %s25, 0
        %s6459 = scalar_select %p6458, %s25, 0
        %s6460 = smul.addr %s6457, 64
        %s6461 = sadd.s32 %s6459, %s6460
        %s6462 = smul.addr %s6461, 4
        %s6463 = scalar_lea.vmem %s7, %s6462
      $region64: #{_down_layer_forward_impl.1} parent=59 // pred_fallthru
        _
    $region60: #{_down_layer_forward_impl.1} parent=5 // pred_fallthru
      _
  $region6: #{_down_layer_forward_impl.1} parent=0 // loop_footer
    %s17 = sadd.s32 1, %s13
  $region7: #{_down_layer_forward_impl.1} parent=0 // loop_footer_branch
    %12 = sbr.rel target = $region3
  $region8: #{_down_layer_forward_impl.1} parent=0 // loop_exit
    _

// kernel: _down_layer_forward_impl.1
$region0: #{_down_layer_forward_impl.1}
  #allocation0 [shape = 'u32[]', space=smem, size = 0x4, offset = 0x4, fixed_abs, tag = 'smem constant byte address 0x4 - core index']
  #allocation1 [shape = 'u32[144,128]{1,0:T(1,128)}', space=vmem, size = 0x12000, scoped, tag = 'internal scratch']
  #allocation2 [shape = 'bf16[10,10,8,128]{3,2,1,0:T(8,128)(2,1)}', space=vmem, size = 0x32000, scoped, tag = 'scratch operand']
  %s0 = inlined_call_operand.vmem [shape: bf16[2,8,8,8,4], index: 0, kind: input, shape index: {}]
  %s1 = inlined_call_operand.vmem [shape: bf16[2,8,8,8,64], index: 1, kind: input, shape index: {}]
  %s2 = inlined_call_operand.vmem [shape: bf16[4,128], index: 2, kind: input, shape index: {}]
  %s3 = inlined_call_operand.vmem [shape: bf16[64,128], index: 3, kind: input, shape index: {}]
  %s4 = inlined_call_operand.vmem [shape: f32[1,128], index: 4, kind: input, shape index: {}]
  %s5 = inlined_call_operand.vmem [shape: bf16[1152,128], index: 5, kind: input, shape index: {}]
  %s6 = inlined_call_operand.vmem [shape: f32[1,128], index: 6, kind: input, shape index: {}]
  %s7 = inlined_call_operand.vmem [shape: bf16[2,8,8,8,128], index: 7, kind: output, shape index: {}]
  %s8 = sld [smem:[#allocation0]]
  $region65: #{_down_layer_forward_impl.1} parent=0
    _
  %s10 = ssub.s32 1, %s8
  %s11 = scalar_select 0, %s10, %s8
  loop: start=0, step=1, limit=4
  $region2: #{_down_layer_forward_impl.1} parent=0 // loop_pre_header
    _
  $region3: #{_down_layer_forward_impl.1} parent=0 // loop_header
    %s13 = sphi 0, %s17
    %p14 = scmp.ge.s32.totalorder %s13, 4
    %s20 = sphi 0, %s32
    %s21 = sphi 0, %s28
    %s22 = sphi 0, %s20
    %s23 = sphi 0, %s21
    %s24 = sphi 0, %s22
    %s25 = sphi 0, %s23
    %s37 = sphi 0, %s39
    %s40 = sphi 0, %s37
    %s41 = sphi 0, %s40
    %s57 = sphi 0, %s41
    %s65 = sphi 0, %s67
    %s68 = sphi 0, %s65
    %s69 = sphi 0, %s68
    %s85 = sphi 0, %s69
    %s89 = sphi 0, %s89
    %s91 = sphi 0, %s89
    %s92 = sphi 0, %s91
    %s106 = sphi 0, %s92
    %s110 = sphi 0, %s110
    %s112 = sphi 0, %s110
    %s113 = sphi 0, %s112
    %s127 = sphi 0, %s113
    %s131 = sphi 0, %s131
    %s133 = sphi 0, %s131
    %s134 = sphi 0, %s133
    %s148 = sphi 0, %s134
    %s152 = sphi 0, %s152
    %s154 = sphi 0, %s152
    %s155 = sphi 0, %s154
    %s169 = sphi 0, %s155
    %s173 = sphi 0, %s173
    %s175 = sphi 0, %s173
    %s176 = sphi 0, %s175
    %s190 = sphi 0, %s176
    %s198 = sphi 0, %s200
    %s201 = sphi 0, %s198
    %s202 = sphi 0, %s201
    %s218 = sphi 0, %s202
  $region4: #{_down_layer_forward_impl.1} parent=0 // loop_header_branch
    %16 = sbr.rel (%p14) target = $region8
  $region5: #{_down_layer_forward_impl.1} parent=0 // loop_body
    %s18 = ssub.s32 %s13, 1
    %s19 = ssub.s32 %s13, 2
    %s26 = sadd.s32 1, %s21
    %p27 = scmp.ge.s32.totalorder %s26, 1
    %s28 = scalar_select %p27, 0, %s26
    %s29 = sadd.s32 1, %s20
    %s30 = scalar_select %p27, %s29, %s20
    %p31 = scmp.ge.s32.totalorder %s30, 2
    %s32 = scalar_select %p31, 0, %s30
    %s33 = ssub.s32 %s20, %s32
    %s34 = ssub.s32 %s21, %s28
    %s35 = sor.u32 %s33, %s34
    %p36 = scmp.eq.s32.totalorder %s35, 0
    %s38 = sadd.s32 %s37, 1
    %s39 = scalar_select %p36, %s37, %s38
    %p42 = pneg %p36
    %p43 = scmp.eq.s32.totalorder %s13, 1
    %p44 = por %p42, %p43
    %p45 = scmp.ne.s32.totalorder %s37, %s40
    %p46 = scmp.eq.s32.totalorder %s13, 0
    %p47 = por %p45, %p46
    %p48 = scmp.ne.s32.totalorder %s37, %s40
    %p49 = scmp.eq.s32.totalorder %s18, 1
    %p50 = por %p48, %p49
    %p51 = scmp.ne.s32.totalorder %s40, %s41
    %p52 = scmp.eq.s32.totalorder %s18, 0
    %p53 = por %p51, %p52
    %p54 = scmp.ne.s32.totalorder %s40, %s41
    %p55 = scmp.eq.s32.totalorder %s19, 1
    %p56 = por %p54, %p55
    %p58 = scmp.ne.s32.totalorder %s41, %s57
    %p59 = scmp.eq.s32.totalorder %s19, 0
    %p60 = por %p58, %p59
    %s61 = ssub.s32 %s20, %s32
    %s62 = ssub.s32 %s21, %s28
    %s63 = sor.u32 %s61, %s62
    %p64 = scmp.eq.s32.totalorder %s63, 0
    %s66 = sadd.s32 %s65, 1
    %s67 = scalar_select %p64, %s65, %s66
    %p70 = pneg %p64
    %p71 = scmp.eq.s32.totalorder %s13, 1
    %p72 = por %p70, %p71
    %p73 = scmp.ne.s32.totalorder %s65, %s68
    %p74 = scmp.eq.s32.totalorder %s13, 0
    %p75 = por %p73, %p74
    %p76 = scmp.ne.s32.totalorder %s65, %s68
    %p77 = scmp.eq.s32.totalorder %s18, 1
    %p78 = por %p76, %p77
    %p79 = scmp.ne.s32.totalorder %s68, %s69
    %p80 = scmp.eq.s32.totalorder %s18, 0
    %p81 = por %p79, %p80
    %p82 = scmp.ne.s32.totalorder %s68, %s69
    %p83 = scmp.eq.s32.totalorder %s19, 1
    %p84 = por %p82, %p83
    %p86 = scmp.ne.s32.totalorder %s69, %s85
    %p87 = scmp.eq.s32.totalorder %s19, 0
    %p88 = por %p86, %p87
    %s90 = sadd.s32 %s89, 1
    %p93 = scmp.eq.s32.totalorder %s13, 1
    %p94 = scmp.ne.s32.totalorder %s89, %s91
    %p95 = scmp.eq.s32.totalorder %s13, 0
    %p96 = por %p94, %p95
    %p97 = scmp.ne.s32.totalorder %s89, %s91
    %p98 = scmp.eq.s32.totalorder %s18, 1
    %p99 = por %p97, %p98
    %p100 = scmp.ne.s32.totalorder %s91, %s92
    %p101 = scmp.eq.s32.totalorder %s18, 0
    %p102 = por %p100, %p101
    %p103 = scmp.ne.s32.totalorder %s91, %s92
    %p104 = scmp.eq.s32.totalorder %s19, 1
    %p105 = por %p103, %p104
    %p107 = scmp.ne.s32.totalorder %s92, %s106
    %p108 = scmp.eq.s32.totalorder %s19, 0
    %p109 = por %p107, %p108
    %s111 = sadd.s32 %s110, 1
    %p114 = scmp.eq.s32.totalorder %s13, 1
    %p115 = scmp.ne.s32.totalorder %s110, %s112
    %p116 = scmp.eq.s32.totalorder %s13, 0
    %p117 = por %p115, %p116
    %p118 = scmp.ne.s32.totalorder %s110, %s112
    %p119 = scmp.eq.s32.totalorder %s18, 1
    %p120 = por %p118, %p119
    %p121 = scmp.ne.s32.totalorder %s112, %s113
    %p122 = scmp.eq.s32.totalorder %s18, 0
    %p123 = por %p121, %p122
    %p124 = scmp.ne.s32.totalorder %s112, %s113
    %p125 = scmp.eq.s32.totalorder %s19, 1
    %p126 = por %p124, %p125
    %p128 = scmp.ne.s32.totalorder %s113, %s127
    %p129 = scmp.eq.s32.totalorder %s19, 0
    %p130 = por %p128, %p129
    %s132 = sadd.s32 %s131, 1
    %p135 = scmp.eq.s32.totalorder %s13, 1
    %p136 = scmp.ne.s32.totalorder %s131, %s133
    %p137 = scmp.eq.s32.totalorder %s13, 0
    %p138 = por %p136, %p137
    %p139 = scmp.ne.s32.totalorder %s131, %s133
    %p140 = scmp.eq.s32.totalorder %s18, 1
    %p141 = por %p139, %p140
    %p142 = scmp.ne.s32.totalorder %s133, %s134
    %p143 = scmp.eq.s32.totalorder %s18, 0
    %p144 = por %p142, %p143
    %p145 = scmp.ne.s32.totalorder %s133, %s134
    %p146 = scmp.eq.s32.totalorder %s19, 1
    %p147 = por %p145, %p146
    %p149 = scmp.ne.s32.totalorder %s134, %s148
    %p150 = scmp.eq.s32.totalorder %s19, 0
    %p151 = por %p149, %p150
    %s153 = sadd.s32 %s152, 1
    %p156 = scmp.eq.s32.totalorder %s13, 1
    %p157 = scmp.ne.s32.totalorder %s152, %s154
    %p158 = scmp.eq.s32.totalorder %s13, 0
    %p159 = por %p157, %p158
    %p160 = scmp.ne.s32.totalorder %s152, %s154
    %p161 = scmp.eq.s32.totalorder %s18, 1
    %p162 = por %p160, %p161
    %p163 = scmp.ne.s32.totalorder %s154, %s155
    %p164 = scmp.eq.s32.totalorder %s18, 0
    %p165 = por %p163, %p164
    %p166 = scmp.ne.s32.totalorder %s154, %s155
    %p167 = scmp.eq.s32.totalorder %s19, 1
    %p168 = por %p166, %p167
    %p170 = scmp.ne.s32.totalorder %s155, %s169
    %p171 = scmp.eq.s32.totalorder %s19, 0
    %p172 = por %p170, %p171
    %s174 = sadd.s32 %s173, 1
    %p177 = scmp.eq.s32.totalorder %s13, 1
    %p178 = scmp.ne.s32.totalorder %s173, %s175
    %p179 = scmp.eq.s32.totalorder %s13, 0
    %p180 = por %p178, %p179
    %p181 = scmp.ne.s32.totalorder %s173, %s175
    %p182 = scmp.eq.s32.totalorder %s18, 1
    %p183 = por %p181, %p182
    %p184 = scmp.ne.s32.totalorder %s175, %s176
    %p185 = scmp.eq.s32.totalorder %s18, 0
    %p186 = por %p184, %p185
    %p187 = scmp.ne.s32.totalorder %s175, %s176
    %p188 = scmp.eq.s32.totalorder %s19, 1
    %p189 = por %p187, %p188
    %p191 = scmp.ne.s32.totalorder %s176, %s190
    %p192 = scmp.eq.s32.totalorder %s19, 0
    %p193 = por %p191, %p192
    %s194 = ssub.s32 %s20, %s32
    %s195 = ssub.s32 %s21, %s28
    %s196 = sor.u32 %s194, %s195
    %p197 = scmp.eq.s32.totalorder %s196, 0
    %s199 = sadd.s32 %s198, 1
    %s200 = scalar_select %p197, %s198, %s199
    %p203 = pneg %p197
    %p204 = scmp.eq.s32.totalorder %s13, 1
    %p205 = por %p203, %p204
    %p206 = scmp.ne.s32.totalorder %s198, %s201
    %p207 = scmp.eq.s32.totalorder %s13, 0
    %p208 = por %p206, %p207
    %p209 = scmp.ne.s32.totalorder %s198, %s201
    %p210 = scmp.eq.s32.totalorder %s18, 1
    %p211 = por %p209, %p210
    %p212 = scmp.ne.s32.totalorder %s201, %s202
    %p213 = scmp.eq.s32.totalorder %s18, 0
    %p214 = por %p212, %p213
    %p215 = scmp.ne.s32.totalorder %s201, %s202
    %p216 = scmp.eq.s32.totalorder %s19, 1
    %p217 = por %p215, %p216
    %p219 = scmp.ne.s32.totalorder %s202, %s218
    %p220 = scmp.eq.s32.totalorder %s19, 0
    %p221 = por %p219, %p220
    %p222 = scmp.le.s32.totalorder 1, %s13
    %p223 = scmp.lt.s32.totalorder %s13, 3
    %p224 = pnand %p222, %p223
    %p225 = pneg %p224
    // Predicated region
    $region9: #{_down_layer_forward_impl.1} parent=5 // pred_check
      _
    $region10: #{_down_layer_forward_impl.1} parent=5 // pred_check_branch
      %227 = sbr.rel (%p224) target = $region12
    $region11: #{_down_layer_forward_impl.1} parent=5 // pred_region
      %s228 = ssub.s32 %s13, 1
      // Predicated region
      $region13: #{_down_layer_forward_impl.1} parent=11 // pred_check
        %p229 = pneg %p102
      $region14: #{_down_layer_forward_impl.1} parent=11 // pred_check_branch
        %231 = sbr.rel (%p229) target = $region16
      $region15: #{_down_layer_forward_impl.1} parent=11 // pred_region
        _
      $region16: #{_down_layer_forward_impl.1} parent=11 // pred_fallthru
        _
      // Predicated region
      $region17: #{_down_layer_forward_impl.1} parent=11 // pred_check
        %p232 = pneg %p123
      $region18: #{_down_layer_forward_impl.1} parent=11 // pred_check_branch
        %234 = sbr.rel (%p232) target = $region20
      $region19: #{_down_layer_forward_impl.1} parent=11 // pred_region
        _
      $region20: #{_down_layer_forward_impl.1} parent=11 // pred_fallthru
        _
      // Predicated region
      $region21: #{_down_layer_forward_impl.1} parent=11 // pred_check
        %p235 = pneg %p144
      $region22: #{_down_layer_forward_impl.1} parent=11 // pred_check_branch
        %237 = sbr.rel (%p235) target = $region24
      $region23: #{_down_layer_forward_impl.1} parent=11 // pred_region
        _
      $region24: #{_down_layer_forward_impl.1} parent=11 // pred_fallthru
        _
      // Predicated region
      $region25: #{_down_layer_forward_impl.1} parent=11 // pred_check
        %p238 = pneg %p165
      $region26: #{_down_layer_forward_impl.1} parent=11 // pred_check_branch
        %240 = sbr.rel (%p238) target = $region28
      $region27: #{_down_layer_forward_impl.1} parent=11 // pred_region
        _
      $region28: #{_down_layer_forward_impl.1} parent=11 // pred_fallthru
        _
      // Predicated region
      $region29: #{_down_layer_forward_impl.1} parent=11 // pred_check
        %p241 = pneg %p186
      $region30: #{_down_layer_forward_impl.1} parent=11 // pred_check_branch
        %243 = sbr.rel (%p241) target = $region32
      $region31: #{_down_layer_forward_impl.1} parent=11 // pred_region
        _
      $region32: #{_down_layer_forward_impl.1} parent=11 // pred_fallthru
        _
    $region12: #{_down_layer_forward_impl.1} parent=5 // pred_fallthru
      _
    %p244 = scmp.lt.s32.totalorder %s13, 2
    // Predicated region
    $region33: #{_down_layer_forward_impl.1} parent=5 // pred_check
      %p245 = pneg %p244
    $region34: #{_down_layer_forward_impl.1} parent=5 // pred_check_branch
      %247 = sbr.rel (%p245) target = $region36
    $region35: #{_down_layer_forward_impl.1} parent=5 // pred_region
      // Predicated region
      $region37: #{_down_layer_forward_impl.1} parent=35 // pred_check
        %p248 = pneg %p47
      $region38: #{_down_layer_forward_impl.1} parent=35 // pred_check_branch
        %250 = sbr.rel (%p248) target = $region40
      $region39: #{_down_layer_forward_impl.1} parent=35 // pred_region
        %p251 = scmp.lt.s32.totalorder %s20, 1
        %s252 = scalar_select %p251, %s20, 1
        %p253 = scmp.lt.s32.totalorder %s21, 0
        %s254 = scalar_select %p253, %s21, 0
        %s255 = smul.addr %s252, 64
        %s256 = sadd.s32 %s254, %s255
        %s257 = smul.addr %s256, 4
        %s258 = scalar_lea.vmem %s0, %s257
      $region40: #{_down_layer_forward_impl.1} parent=35 // pred_fallthru
        _
      // Predicated region
      $region41: #{_down_layer_forward_impl.1} parent=35 // pred_check
        %p259 = pneg %p75
      $region42: #{_down_layer_forward_impl.1} parent=35 // pred_check_branch
        %261 = sbr.rel (%p259) target = $region44
      $region43: #{_down_layer_forward_impl.1} parent=35 // pred_region
        %p262 = scmp.lt.s32.totalorder %s20, 1
        %s263 = scalar_select %p262, %s20, 1
        %p264 = scmp.lt.s32.totalorder %s21, 0
        %s265 = scalar_select %p264, %s21, 0
        %s266 = smul.addr %s263, 64
        %s267 = sadd.s32 %s265, %s266
        %s268 = smul.addr %s267, 4
        %s269 = scalar_lea.vmem %s1, %s268
      $region44: #{_down_layer_forward_impl.1} parent=35 // pred_fallthru
        _
    $region36: #{_down_layer_forward_impl.1} parent=5 // pred_fallthru
      _
    %p270 = scmp.le.s32.totalorder 1, %s13
    %p271 = scmp.lt.s32.totalorder %s13, 3
    %p272 = pnand %p270, %p271
    %p273 = pneg %p272
    // Predicated region
    $region45: #{_down_layer_forward_impl.1} parent=5 // pred_check
      _
    $region46: #{_down_layer_forward_impl.1} parent=5 // pred_check_branch
      %275 = sbr.rel (%p272) target = $region48
    $region47: #{_down_layer_forward_impl.1} parent=5 // pred_region
      %s276 = ssub.s32 %s13, 1
      %p277 = scmp.lt.s32.totalorder %s22, 1
      %s278 = scalar_select %p277, %s22, 1
      %p279 = scmp.lt.s32.totalorder %s23, 0
      %s280 = scalar_select %p279, %s23, 0
      %s281 = smul.addr %s278, 64
      %s282 = sadd.s32 %s280, %s281
      %s283 = smul.addr %s282, 4
      %s284 = scalar_lea.vmem %s0, %s283
      %p285 = pneg %p53
      %p286 = pneg %p50
      %p287 = scmp.lt.s32.totalorder %s22, 1
      %s288 = scalar_select %p287, %s22, 1
      %p289 = scmp.lt.s32.totalorder %s23, 0
      %s290 = scalar_select %p289, %s23, 0
      %s291 = smul.addr %s288, 64
      %s292 = sadd.s32 %s290, %s291
      %s293 = smul.addr %s292, 4
      %s294 = scalar_lea.vmem %s1, %s293
      %p295 = pneg %p81
      %p296 = pneg %p78
      %p297 = pneg %p102
      %p298 = pneg %p99
      %p299 = pneg %p123
      %p300 = pneg %p120
      %p301 = pneg %p144
      %p302 = pneg %p141
      %p303 = pneg %p165
      %p304 = pneg %p162
      %p305 = pneg %p186
      %p306 = pneg %p183
      %p307 = pneg %p214
      %p308 = pneg %p211
      %p309 = scmp.lt.s32.totalorder %s22, 1
      %s310 = scalar_select %p309, %s22, 1
      %p311 = scmp.lt.s32.totalorder %s23, 0
      %s312 = scalar_select %p311, %s23, 0
      %s313 = smul.addr %s310, 64
      %s314 = sadd.s32 %s312, %s313
      %s315 = smul.addr %s314, 4
      %s316 = scalar_lea.vmem %s7, %s315
      %p317 = scmp.lt.s32.totalorder %s22, 1
      %s318 = scalar_select %p317, %s22, 1
      %p319 = scmp.lt.s32.totalorder %s23, 0
      %s320 = scalar_select %p319, %s23, 0
      %s321 = smul.addr %s318, 64
      %s322 = sadd.s32 %s320, %s321
      %s323 = smul.addr %s322, 4
      %s324 = scalar_lea.vmem %s0, %s323
      %p325 = scmp.lt.s32.totalorder %s22, 1
      %s326 = scalar_select %p325, %s22, 1
      %p327 = scmp.lt.s32.totalorder %s23, 0
      %s328 = scalar_select %p327, %s23, 0
      %s329 = smul.addr %s326, 64
      %s330 = sadd.s32 %s328, %s329
      %s331 = smul.addr %s330, 4
      %s332 = scalar_lea.vmem %s1, %s331
      %p333 = scmp.lt.s32.totalorder %s22, 1
      %s334 = scalar_select %p333, %s22, 1
      %p335 = scmp.lt.s32.totalorder %s23, 0
      %s336 = scalar_select %p335, %s23, 0
      %s337 = smul.addr %s334, 64
      %s338 = sadd.s32 %s336, %s337
      %s339 = smul.addr %s338, 4
      %s340 = scalar_lea.vmem %s7, %s339
      %v342 = vld [vmem:[%s332] sm:$0xf]
      %v343 = vld [vmem:[%s332 + $0x4] sm:$0xf]
      %v344 = vld [vmem:[%s332 + $0x8] sm:$0xf]
      %v345 = vld [vmem:[%s332 + $0xc] sm:$0xf]
      %v346 = vld [vmem:[%s332 + $0x10] sm:$0xf]
      %v347 = vld [vmem:[%s332 + $0x14] sm:$0xf]
      %v348 = vld [vmem:[%s332 + $0x18] sm:$0xf]
      %v349 = vld [vmem:[%s332 + $0x1c] sm:$0xf]
      %v350 = vld [vmem:[%s332 + $0x20] sm:$0xf]
      %v351 = vld [vmem:[%s332 + $0x24] sm:$0xf]
      %v352 = vld [vmem:[%s332 + $0x28] sm:$0xf]
      %v353 = vld [vmem:[%s332 + $0x2c] sm:$0xf]
      %v354 = vld [vmem:[%s332 + $0x30] sm:$0xf]
      %v355 = vld [vmem:[%s332 + $0x34] sm:$0xf]
      %v356 = vld [vmem:[%s332 + $0x38] sm:$0xf]
      %v357 = vld [vmem:[%s332 + $0x3c] sm:$0xf]
      %v358 = vld [vmem:[%s332 + $0x40] sm:$0xf]
      %v359 = vld [vmem:[%s332 + $0x44] sm:$0xf]
      %v360 = vld [vmem:[%s332 + $0x48] sm:$0xf]
      %v361 = vld [vmem:[%s332 + $0x4c] sm:$0xf]
      %v362 = vld [vmem:[%s332 + $0x50] sm:$0xf]
      %v363 = vld [vmem:[%s332 + $0x54] sm:$0xf]
      %v364 = vld [vmem:[%s332 + $0x58] sm:$0xf]
      %v365 = vld [vmem:[%s332 + $0x5c] sm:$0xf]
      %v366 = vld [vmem:[%s332 + $0x60] sm:$0xf]
      %v367 = vld [vmem:[%s332 + $0x64] sm:$0xf]
      %v368 = vld [vmem:[%s332 + $0x68] sm:$0xf]
      %v369 = vld [vmem:[%s332 + $0x6c] sm:$0xf]
      %v370 = vld [vmem:[%s332 + $0x70] sm:$0xf]
      %v371 = vld [vmem:[%s332 + $0x74] sm:$0xf]
      %v372 = vld [vmem:[%s332 + $0x78] sm:$0xf]
      %v373 = vld [vmem:[%s332 + $0x7c] sm:$0xf]
      %v374 = vld [vmem:[%s332 + $0x80] sm:$0xf]
      %v375 = vld [vmem:[%s332 + $0x84] sm:$0xf]
      %v376 = vld [vmem:[%s332 + $0x88] sm:$0xf]
      %v377 = vld [vmem:[%s332 + $0x8c] sm:$0xf]
      %v378 = vld [vmem:[%s332 + $0x90] sm:$0xf]
      %v379 = vld [vmem:[%s332 + $0x94] sm:$0xf]
      %v380 = vld [vmem:[%s332 + $0x98] sm:$0xf]
      %v381 = vld [vmem:[%s332 + $0x9c] sm:$0xf]
      %v382 = vld [vmem:[%s332 + $0xa0] sm:$0xf]
      %v383 = vld [vmem:[%s332 + $0xa4] sm:$0xf]
      %v384 = vld [vmem:[%s332 + $0xa8] sm:$0xf]
      %v385 = vld [vmem:[%s332 + $0xac] sm:$0xf]
      %v386 = vld [vmem:[%s332 + $0xb0] sm:$0xf]
      %v387 = vld [vmem:[%s332 + $0xb4] sm:$0xf]
      %v388 = vld [vmem:[%s332 + $0xb8] sm:$0xf]
      %v389 = vld [vmem:[%s332 + $0xbc] sm:$0xf]
      %v390 = vld [vmem:[%s332 + $0xc0] sm:$0xf]
      %v391 = vld [vmem:[%s332 + $0xc4] sm:$0xf]
      %v392 = vld [vmem:[%s332 + $0xc8] sm:$0xf]
      %v393 = vld [vmem:[%s332 + $0xcc] sm:$0xf]
      %v394 = vld [vmem:[%s332 + $0xd0] sm:$0xf]
      %v395 = vld [vmem:[%s332 + $0xd4] sm:$0xf]
      %v396 = vld [vmem:[%s332 + $0xd8] sm:$0xf]
      %v397 = vld [vmem:[%s332 + $0xdc] sm:$0xf]
      %v398 = vld [vmem:[%s332 + $0xe0] sm:$0xf]
      %v399 = vld [vmem:[%s332 + $0xe4] sm:$0xf]
      %v400 = vld [vmem:[%s332 + $0xe8] sm:$0xf]
      %v401 = vld [vmem:[%s332 + $0xec] sm:$0xf]
      %v402 = vld [vmem:[%s332 + $0xf0] sm:$0xf]
      %v403 = vld [vmem:[%s332 + $0xf4] sm:$0xf]
      %v404 = vld [vmem:[%s332 + $0xf8] sm:$0xf]
      %v405 = vld [vmem:[%s332 + $0xfc] sm:$0xf]
      %v406 = vld [vmem:[%s3] sm:$0xf]
      %v407 = vld [vmem:[%s3 + $0x4] sm:$0xf]
      %v408 = vld [vmem:[%s3 + $0x8] sm:$0xf]
      %v409 = vld [vmem:[%s3 + $0xc] sm:$0xf]
      %v410 = vld [vmem:[%s3 + $0x10] sm:$0xf]
      %v411 = vld [vmem:[%s3 + $0x14] sm:$0xf]
      %v412 = vld [vmem:[%s3 + $0x18] sm:$0xf]
      %v413 = vld [vmem:[%s3 + $0x1c] sm:$0xf]
      %v414 = vld [vmem:[%s4] sm:$0x1]
      %v416 = vlaneseq
      %v417 = vshrl.u32 %v416, 7
      %v418 = vsub.s32 0, %v417
      %v419 = vrot.slane %v414, %v418
      %v485 = vunpack.c.l.b16 %v342
      %v486 = vunpack.c.l.b16 %v343
      %v487 = vunpack.c.l.b16 %v344
      %v488 = vunpack.c.l.b16 %v345
      %v489 = vunpack.c.l.b16 %v346
      %v490 = vunpack.c.l.b16 %v347
      %v491 = vunpack.c.l.b16 %v348
      %v492 = vunpack.c.l.b16 %v349
      %v493 = vunpack.c.l.b16 %v350
      %v494 = vunpack.c.l.b16 %v351
      %v495 = vunpack.c.l.b16 %v352
      %v496 = vunpack.c.l.b16 %v353
      %v497 = vunpack.c.l.b16 %v354
      %v498 = vunpack.c.l.b16 %v355
      %v499 = vunpack.c.l.b16 %v356
      %v500 = vunpack.c.l.b16 %v357
      %v501 = vunpack.c.l.b16 %v358
      %v502 = vunpack.c.l.b16 %v359
      %v503 = vunpack.c.l.b16 %v360
      %v504 = vunpack.c.l.b16 %v361
      %v505 = vunpack.c.l.b16 %v362
      %v506 = vunpack.c.l.b16 %v363
      %v507 = vunpack.c.l.b16 %v364
      %v508 = vunpack.c.l.b16 %v365
      %v509 = vunpack.c.l.b16 %v366
      %v510 = vunpack.c.l.b16 %v367
      %v511 = vunpack.c.l.b16 %v368
      %v512 = vunpack.c.l.b16 %v369
      %v513 = vunpack.c.l.b16 %v370
      %v514 = vunpack.c.l.b16 %v371
      %v515 = vunpack.c.l.b16 %v372
      %v516 = vunpack.c.l.b16 %v373
      %v517 = vunpack.c.l.b16 %v374
      %v518 = vunpack.c.l.b16 %v375
      %v519 = vunpack.c.l.b16 %v376
      %v520 = vunpack.c.l.b16 %v377
      %v521 = vunpack.c.l.b16 %v378
      %v522 = vunpack.c.l.b16 %v379
      %v523 = vunpack.c.l.b16 %v380
      %v524 = vunpack.c.l.b16 %v381
      %v525 = vunpack.c.l.b16 %v382
      %v526 = vunpack.c.l.b16 %v383
      %v527 = vunpack.c.l.b16 %v384
      %v528 = vunpack.c.l.b16 %v385
      %v529 = vunpack.c.l.b16 %v386
      %v530 = vunpack.c.l.b16 %v387
      %v531 = vunpack.c.l.b16 %v388
      %v532 = vunpack.c.l.b16 %v389
      %v533 = vunpack.c.l.b16 %v390
      %v534 = vunpack.c.l.b16 %v391
      %v535 = vunpack.c.l.b16 %v392
      %v536 = vunpack.c.l.b16 %v393
      %v537 = vunpack.c.l.b16 %v394
      %v538 = vunpack.c.l.b16 %v395
      %v539 = vunpack.c.l.b16 %v396
      %v540 = vunpack.c.l.b16 %v397
      %v541 = vunpack.c.l.b16 %v398
      %v542 = vunpack.c.l.b16 %v399
      %v543 = vunpack.c.l.b16 %v400
      %v544 = vunpack.c.l.b16 %v401
      %v545 = vunpack.c.l.b16 %v402
      %v546 = vunpack.c.l.b16 %v403
      %v547 = vunpack.c.l.b16 %v404
      %v548 = vunpack.c.l.b16 %v405
      %v549 = vpack.c.b16 %v486, %v485
      %v550 = vpack.c.b16 %v488, %v487
      %v551 = vpack.c.b16 %v490, %v489
      %v552 = vpack.c.b16 %v492, %v491
      %v553 = vpack.c.b16 %v494, %v493
      %v554 = vpack.c.b16 %v496, %v495
      %v555 = vpack.c.b16 %v498, %v497
      %v556 = vpack.c.b16 %v500, %v499
      %v557 = vpack.c.b16 %v502, %v501
      %v558 = vpack.c.b16 %v504, %v503
      %v559 = vpack.c.b16 %v506, %v505
      %v560 = vpack.c.b16 %v508, %v507
      %v561 = vpack.c.b16 %v510, %v509
      %v562 = vpack.c.b16 %v512, %v511
      %v563 = vpack.c.b16 %v514, %v513
      %v564 = vpack.c.b16 %v516, %v515
      %v565 = vpack.c.b16 %v518, %v517
      %v566 = vpack.c.b16 %v520, %v519
      %v567 = vpack.c.b16 %v522, %v521
      %v568 = vpack.c.b16 %v524, %v523
      %v569 = vpack.c.b16 %v526, %v525
      %v570 = vpack.c.b16 %v528, %v527
      %v571 = vpack.c.b16 %v530, %v529
      %v572 = vpack.c.b16 %v532, %v531
      %v573 = vpack.c.b16 %v534, %v533
      %v574 = vpack.c.b16 %v536, %v535
      %v575 = vpack.c.b16 %v538, %v537
      %v576 = vpack.c.b16 %v540, %v539
      %v577 = vpack.c.b16 %v542, %v541
      %v578 = vpack.c.b16 %v544, %v543
      %v579 = vpack.c.b16 %v546, %v545
      %v580 = vpack.c.b16 %v548, %v547
      %v589 = vunpack.c.l.b16 %v406
      %v590 = vunpack.c.l.b16 %v407
      %v591 = vunpack.c.l.b16 %v408
      %v592 = vunpack.c.l.b16 %v409
      %v593 = vunpack.c.l.b16 %v410
      %v594 = vunpack.c.l.b16 %v411
      %v595 = vunpack.c.l.b16 %v412
      %v596 = vunpack.c.l.b16 %v413
      %v597 = vpack.c.b16 %v590, %v589
      %v598 = vpack.c.b16 %v592, %v591
      %v599 = vpack.c.b16 %v594, %v593
      %v600 = vpack.c.b16 %v596, %v595
      %vm605 = vcmask 523264
      %v607 = vsel %vm605, %v549, 0
      %v610 = vsel %vm605, %v550, 0
      %v613 = vsel %vm605, %v551, 0
      %v616 = vsel %vm605, %v552, 0
      %v619 = vsel %vm605, %v553, 0
      %v622 = vsel %vm605, %v554, 0
      %v625 = vsel %vm605, %v555, 0
      %v628 = vsel %vm605, %v556, 0
      %v631 = vsel %vm605, %v557, 0
      %v634 = vsel %vm605, %v558, 0
      %v637 = vsel %vm605, %v559, 0
      %v640 = vsel %vm605, %v560, 0
      %v643 = vsel %vm605, %v561, 0
      %v646 = vsel %vm605, %v562, 0
      %v649 = vsel %vm605, %v563, 0
      %v652 = vsel %vm605, %v564, 0
      %v655 = vsel %vm605, %v565, 0
      %v658 = vsel %vm605, %v566, 0
      %v661 = vsel %vm605, %v567, 0
      %v664 = vsel %vm605, %v568, 0
      %v667 = vsel %vm605, %v569, 0
      %v670 = vsel %vm605, %v570, 0
      %v673 = vsel %vm605, %v571, 0
      %v676 = vsel %vm605, %v572, 0
      %v679 = vsel %vm605, %v573, 0
      %v682 = vsel %vm605, %v574, 0
      %v685 = vsel %vm605, %v575, 0
      %v688 = vsel %vm605, %v576, 0
      %v691 = vsel %vm605, %v577, 0
      %v694 = vsel %vm605, %v578, 0
      %v697 = vsel %vm605, %v579, 0
      %v700 = vsel %vm605, %v580, 0
      %702 = vmatprep.subr.bf16.mxu0 0
      %703 = vmatpush1.bf16.msra.mxu0 %v597
      %704 = vmatprep.subr.bf16.mxu0 0
      %705 = vmatpush1.bf16.msra.mxu0 %v598
      %706 = vmatprep.subr.bf16.mxu0 0
      %707 = vmatpush1.bf16.msra.mxu0 %v599
      %708 = vmatprep.subr.bf16.mxu0 0
      %709 = vmatpush1.bf16.msra.mxu0 %v600
      %710 = vmatprep.subr.bf16.mxu0 0
      %711 = vmatpush1.bf16.msra.mxu0 0
      %712 = vmatprep.subr.bf16.mxu0 0
      %713 = vmatpush1.bf16.msra.mxu0 0
      %714 = vmatprep.subr.bf16.mxu0 0
      %715 = vmatpush1.bf16.msra.mxu0 0
      %716 = vmatprep.subr.bf16.mxu0 0
      %717 = vmatpush1.bf16.msra.mxu0 0
      %718 = vmatprep.subr.bf16.mxu0 0
      %719 = vmatpush1.bf16.msra.mxu0 0
      %720 = vmatprep.subr.bf16.mxu0 0
      %721 = vmatpush1.bf16.msra.mxu0 0
      %722 = vmatprep.subr.bf16.mxu0 0
      %723 = vmatpush1.bf16.msra.mxu0 0
      %724 = vmatprep.subr.bf16.mxu0 0
      %725 = vmatpush1.bf16.msra.mxu0 0
      %726 = vmatprep.subr.bf16.mxu0 0
      %727 = vmatpush1.bf16.msra.mxu0 0
      %728 = vmatprep.subr.bf16.mxu0 0
      %729 = vmatpush1.bf16.msra.mxu0 0
      %730 = vmatprep.subr.bf16.mxu0 0
      %731 = vmatpush1.bf16.msra.mxu0 0
      %732 = vmatprep.subr.bf16.mxu0 0
      %733 = vmatpush1.bf16.msra.mxu0 0
      %734 = vmatprep.mubr.bf16.mxu0 0
      %735 = vmatmul.mubr.bf16.gmra.mrb[0].mxu0 %v607
      %v736 = vpop.f32.mrb[0].mxu0
      %v737 = vadd.f32 %v419, %v736
      %v738 = vpop.f32.mrb[0].mxu0
      %v739 = vpop.f32.mrb[0].mxu0
      %v740 = vadd.f32 %v419, %v739
      %v741 = vpop.f32.mrb[0].mxu0
      %742 = vmatprep.mubr.bf16.mxu0 0
      %743 = vmatmul.mubr.bf16.gmra.mrb[0].mxu0 %v610
      %v744 = vpop.f32.mrb[0].mxu0
      %v745 = vadd.f32 %v419, %v744
      %v746 = vpop.f32.mrb[0].mxu0
      %v747 = vpop.f32.mrb[0].mxu0
      %v748 = vadd.f32 %v419, %v747
      %v749 = vpop.f32.mrb[0].mxu0
      %750 = vmatprep.mubr.bf16.mxu0 0
      %751 = vmatmul.mubr.bf16.gmra.mrb[0].mxu0 %v613
      %v752 = vpop.f32.mrb[0].mxu0
      %v753 = vadd.f32 %v419, %v752
      %v754 = vpop.f32.mrb[0].mxu0
      %v755 = vpop.f32.mrb[0].mxu0
      %v756 = vadd.f32 %v419, %v755
      %v757 = vpop.f32.mrb[0].mxu0
      %758 = vmatprep.mubr.bf16.mxu0 0
      %759 = vmatmul.mubr.bf16.gmra.mrb[0].mxu0 %v616
      %v760 = vpop.f32.mrb[0].mxu0
      %v761 = vadd.f32 %v419, %v760
      %v762 = vpop.f32.mrb[0].mxu0
      %v763 = vpop.f32.mrb[0].mxu0
      %v764 = vadd.f32 %v419, %v763
      %v765 = vpop.f32.mrb[0].mxu0
      %766 = vmatprep.mubr.bf16.mxu0 0
      %767 = vmatmul.mubr.bf16.gmra.mrb[0].mxu0 %v619
      %v768 = vpop.f32.mrb[0].mxu0
      %v769 = vadd.f32 %v419, %v768
      %v770 = vpop.f32.mrb[0].mxu0
      %v771 = vpop.f32.mrb[0].mxu0
      %v772 = vadd.f32 %v419, %v771
      %v773 = vpop.f32.mrb[0].mxu0
      %774 = vmatprep.mubr.bf16.mxu0 0
      %775 = vmatmul.mubr.bf16.gmra.mrb[0].mxu0 %v622
      %v776 = vpop.f32.mrb[0].mxu0
      %v777 = vadd.f32 %v419, %v776
      %v778 = vpop.f32.mrb[0].mxu0
      %v779 = vpop.f32.mrb[0].mxu0
      %v780 = vadd.f32 %v419, %v779
      %v781 = vpop.f32.mrb[0].mxu0
      %782 = vmatprep.mubr.bf16.mxu0 0
      %783 = vmatmul.mubr.bf16.gmra.mrb[0].mxu0 %v625
      %v784 = vpop.f32.mrb[0].mxu0
      %v785 = vadd.f32 %v419, %v784
      %v786 = vpop.f32.mrb[0].mxu0
      %v787 = vpop.f32.mrb[0].mxu0
      %v788 = vadd.f32 %v419, %v787
      %v789 = vpop.f32.mrb[0].mxu0
      %790 = vmatprep.mubr.bf16.mxu0 0
      %791 = vmatmul.mubr.bf16.gmra.mrb[0].mxu0 %v628
      %v792 = vpop.f32.mrb[0].mxu0
      %v793 = vadd.f32 %v419, %v792
      %v794 = vpop.f32.mrb[0].mxu0
      %v795 = vpop.f32.mrb[0].mxu0
      %v796 = vadd.f32 %v419, %v795
      %v797 = vpop.f32.mrb[0].mxu0
      %798 = vmatprep.mubr.bf16.mxu0 0
      %799 = vmatmul.mubr.bf16.gmra.mrb[0].mxu0 %v631
      %v800 = vpop.f32.mrb[0].mxu0
      %v801 = vadd.f32 %v419, %v800
      %v802 = vpop.f32.mrb[0].mxu0
      %v803 = vpop.f32.mrb[0].mxu0
      %v804 = vadd.f32 %v419, %v803
      %v805 = vpop.f32.mrb[0].mxu0
      %806 = vmatprep.mubr.bf16.mxu0 0
      %807 = vmatmul.mubr.bf16.gmra.mrb[0].mxu0 %v634
      %v808 = vpop.f32.mrb[0].mxu0
      %v809 = vadd.f32 %v419, %v808
      %v810 = vpop.f32.mrb[0].mxu0
      %v811 = vpop.f32.mrb[0].mxu0
      %v812 = vadd.f32 %v419, %v811
      %v813 = vpop.f32.mrb[0].mxu0
      %814 = vmatprep.mubr.bf16.mxu0 0
      %815 = vmatmul.mubr.bf16.gmra.mrb[0].mxu0 %v637
      %v816 = vpop.f32.mrb[0].mxu0
      %v817 = vadd.f32 %v419, %v816
      %v818 = vpop.f32.mrb[0].mxu0
      %v819 = vpop.f32.mrb[0].mxu0
      %v820 = vadd.f32 %v419, %v819
      %v821 = vpop.f32.mrb[0].mxu0
      %822 = vmatprep.mubr.bf16.mxu0 0
      %823 = vmatmul.mubr.bf16.gmra.mrb[0].mxu0 %v640
      %v824 = vpop.f32.mrb[0].mxu0
      %v825 = vadd.f32 %v419, %v824
      %v826 = vpop.f32.mrb[0].mxu0
      %v827 = vpop.f32.mrb[0].mxu0
      %v828 = vadd.f32 %v419, %v827
      %v829 = vpop.f32.mrb[0].mxu0
      %830 = vmatprep.mubr.bf16.mxu0 0
      %831 = vmatmul.mubr.bf16.gmra.mrb[0].mxu0 %v643
      %v832 = vpop.f32.mrb[0].mxu0
      %v833 = vadd.f32 %v419, %v832
      %v834 = vpop.f32.mrb[0].mxu0
      %v835 = vpop.f32.mrb[0].mxu0
      %v836 = vadd.f32 %v419, %v835
      %v837 = vpop.f32.mrb[0].mxu0
      %838 = vmatprep.mubr.bf16.mxu0 0
      %839 = vmatmul.mubr.bf16.gmra.mrb[0].mxu0 %v646
      %v840 = vpop.f32.mrb[0].mxu0
      %v841 = vadd.f32 %v419, %v840
      %v842 = vpop.f32.mrb[0].mxu0
      %v843 = vpop.f32.mrb[0].mxu0
      %v844 = vadd.f32 %v419, %v843
      %v845 = vpop.f32.mrb[0].mxu0
      %846 = vmatprep.mubr.bf16.mxu0 0
      %847 = vmatmul.mubr.bf16.gmra.mrb[0].mxu0 %v649
      %v848 = vpop.f32.mrb[0].mxu0
      %v849 = vadd.f32 %v419, %v848
      %v850 = vpop.f32.mrb[0].mxu0
      %v851 = vpop.f32.mrb[0].mxu0
      %v852 = vadd.f32 %v419, %v851
      %v853 = vpop.f32.mrb[0].mxu0
      %854 = vmatprep.mubr.bf16.mxu0 0
      %855 = vmatmul.mubr.bf16.gmra.mrb[0].mxu0 %v652
      %v856 = vpop.f32.mrb[0].mxu0
      %v857 = vadd.f32 %v419, %v856
      %v858 = vpop.f32.mrb[0].mxu0
      %v859 = vpop.f32.mrb[0].mxu0
      %v860 = vadd.f32 %v419, %v859
      %v861 = vpop.f32.mrb[0].mxu0
      %862 = vmatprep.mubr.bf16.mxu0 0
      %863 = vmatmul.mubr.bf16.gmra.mrb[0].mxu0 %v655
      %v864 = vpop.f32.mrb[0].mxu0
      %v865 = vadd.f32 %v419, %v864
      %v866 = vpop.f32.mrb[0].mxu0
      %v867 = vpop.f32.mrb[0].mxu0
      %v868 = vadd.f32 %v419, %v867
      %v869 = vpop.f32.mrb[0].mxu0
      %870 = vmatprep.mubr.bf16.mxu0 0
      %871 = vmatmul.mubr.bf16.gmra.mrb[0].mxu0 %v658
      %v872 = vpop.f32.mrb[0].mxu0
      %v873 = vadd.f32 %v419, %v872
      %v874 = vpop.f32.mrb[0].mxu0
      %v875 = vpop.f32.mrb[0].mxu0
      %v876 = vadd.f32 %v419, %v875
      %v877 = vpop.f32.mrb[0].mxu0
      %878 = vmatprep.mubr.bf16.mxu0 0
      %879 = vmatmul.mubr.bf16.gmra.mrb[0].mxu0 %v661
      %v880 = vpop.f32.mrb[0].mxu0
      %v881 = vadd.f32 %v419, %v880
      %v882 = vpop.f32.mrb[0].mxu0
      %v883 = vpop.f32.mrb[0].mxu0
      %v884 = vadd.f32 %v419, %v883
      %v885 = vpop.f32.mrb[0].mxu0
      %886 = vmatprep.mubr.bf16.mxu0 0
      %887 = vmatmul.mubr.bf16.gmra.mrb[0].mxu0 %v664
      %v888 = vpop.f32.mrb[0].mxu0
      %v889 = vadd.f32 %v419, %v888
      %v890 = vpop.f32.mrb[0].mxu0
      %v891 = vpop.f32.mrb[0].mxu0
      %v892 = vadd.f32 %v419, %v891
      %v893 = vpop.f32.mrb[0].mxu0
      %894 = vmatprep.mubr.bf16.mxu0 0
      %895 = vmatmul.mubr.bf16.gmra.mrb[0].mxu0 %v667
      %v896 = vpop.f32.mrb[0].mxu0
      %v897 = vadd.f32 %v419, %v896
      %v898 = vpop.f32.mrb[0].mxu0
      %v899 = vpop.f32.mrb[0].mxu0
      %v900 = vadd.f32 %v419, %v899
      %v901 = vpop.f32.mrb[0].mxu0
      %902 = vmatprep.mubr.bf16.mxu0 0
      %903 = vmatmul.mubr.bf16.gmra.mrb[0].mxu0 %v670
      %v904 = vpop.f32.mrb[0].mxu0
      %v905 = vadd.f32 %v419, %v904
      %v906 = vpop.f32.mrb[0].mxu0
      %v907 = vpop.f32.mrb[0].mxu0
      %v908 = vadd.f32 %v419, %v907
      %v909 = vpop.f32.mrb[0].mxu0
      %910 = vmatprep.mubr.bf16.mxu0 0
      %911 = vmatmul.mubr.bf16.gmra.mrb[0].mxu0 %v673
      %v912 = vpop.f32.mrb[0].mxu0
      %v913 = vadd.f32 %v419, %v912
      %v914 = vpop.f32.mrb[0].mxu0
      %v915 = vpop.f32.mrb[0].mxu0
      %v916 = vadd.f32 %v419, %v915
      %v917 = vpop.f32.mrb[0].mxu0
      %918 = vmatprep.mubr.bf16.mxu0 0
      %919 = vmatmul.mubr.bf16.gmra.mrb[0].mxu0 %v676
      %v920 = vpop.f32.mrb[0].mxu0
      %v921 = vadd.f32 %v419, %v920
      %v922 = vpop.f32.mrb[0].mxu0
      %v923 = vpop.f32.mrb[0].mxu0
      %v924 = vadd.f32 %v419, %v923
      %v925 = vpop.f32.mrb[0].mxu0
      %926 = vmatprep.mubr.bf16.mxu0 0
      %927 = vmatmul.mubr.bf16.gmra.mrb[0].mxu0 %v679
      %v928 = vpop.f32.mrb[0].mxu0
      %v929 = vadd.f32 %v419, %v928
      %v930 = vpop.f32.mrb[0].mxu0
      %v931 = vpop.f32.mrb[0].mxu0
      %v932 = vadd.f32 %v419, %v931
      %v933 = vpop.f32.mrb[0].mxu0
      %934 = vmatprep.mubr.bf16.mxu0 0
      %935 = vmatmul.mubr.bf16.gmra.mrb[0].mxu0 %v682
      %v936 = vpop.f32.mrb[0].mxu0
      %v937 = vadd.f32 %v419, %v936
      %v938 = vpop.f32.mrb[0].mxu0
      %v939 = vpop.f32.mrb[0].mxu0
      %v940 = vadd.f32 %v419, %v939
      %v941 = vpop.f32.mrb[0].mxu0
      %942 = vmatprep.mubr.bf16.mxu0 0
      %943 = vmatmul.mubr.bf16.gmra.mrb[0].mxu0 %v685
      %v944 = vpop.f32.mrb[0].mxu0
      %v945 = vadd.f32 %v419, %v944
      %v946 = vpop.f32.mrb[0].mxu0
      %v947 = vpop.f32.mrb[0].mxu0
      %v948 = vadd.f32 %v419, %v947
      %v949 = vpop.f32.mrb[0].mxu0
      %950 = vmatprep.mubr.bf16.mxu0 0
      %951 = vmatmul.mubr.bf16.gmra.mrb[0].mxu0 %v688
      %v952 = vpop.f32.mrb[0].mxu0
      %v953 = vadd.f32 %v419, %v952
      %v954 = vpop.f32.mrb[0].mxu0
      %v955 = vpop.f32.mrb[0].mxu0
      %v956 = vadd.f32 %v419, %v955
      %v957 = vpop.f32.mrb[0].mxu0
      %958 = vmatprep.mubr.bf16.mxu0 0
      %959 = vmatmul.mubr.bf16.gmra.mrb[0].mxu0 %v691
      %v960 = vpop.f32.mrb[0].mxu0
      %v961 = vadd.f32 %v419, %v960
      %v962 = vpop.f32.mrb[0].mxu0
      %v963 = vpop.f32.mrb[0].mxu0
      %v964 = vadd.f32 %v419, %v963
      %v965 = vpop.f32.mrb[0].mxu0
      %966 = vmatprep.mubr.bf16.mxu0 0
      %967 = vmatmul.mubr.bf16.gmra.mrb[0].mxu0 %v694
      %v968 = vpop.f32.mrb[0].mxu0
      %v969 = vadd.f32 %v419, %v968
      %v970 = vpop.f32.mrb[0].mxu0
      %v971 = vpop.f32.mrb[0].mxu0
      %v972 = vadd.f32 %v419, %v971
      %v973 = vpop.f32.mrb[0].mxu0
      %974 = vmatprep.mubr.bf16.mxu0 0
      %975 = vmatmul.mubr.bf16.gmra.mrb[0].mxu0 %v697
      %v976 = vpop.f32.mrb[0].mxu0
      %v977 = vadd.f32 %v419, %v976
      %v978 = vpop.f32.mrb[0].mxu0
      %v979 = vpop.f32.mrb[0].mxu0
      %v980 = vadd.f32 %v419, %v979
      %v981 = vpop.f32.mrb[0].mxu0
      %982 = vmatprep.mubr.bf16.mxu0 0
      %983 = vmatmul.mubr.bf16.gmra.mrb[0].mxu0 %v700
      %v984 = vpop.f32.mrb[0].mxu0
      %v985 = vadd.f32 %v419, %v984
      %v986 = vpop.f32.mrb[0].mxu0
      %v987 = vpop.f32.mrb[0].mxu0
      %v988 = vadd.f32 %v419, %v987
      %v989 = vpop.f32.mrb[0].mxu0
      %990 = vdwg.mxu0
      %v991 = vmax.f32 %v737, 0.0
      %v992 = vmax.f32 %v740, 0.0
      %v993 = vmax.f32 %v745, 0.0
      %v994 = vmax.f32 %v748, 0.0
      %v995 = vmax.f32 %v753, 0.0
      %v996 = vmax.f32 %v756, 0.0
      %v997 = vmax.f32 %v761, 0.0
      %v998 = vmax.f32 %v764, 0.0
      %v999 = vmax.f32 %v769, 0.0
      %v1000 = vmax.f32 %v772, 0.0
      %v1001 = vmax.f32 %v777, 0.0
      %v1002 = vmax.f32 %v780, 0.0
      %v1003 = vmax.f32 %v785, 0.0
      %v1004 = vmax.f32 %v788, 0.0
      %v1005 = vmax.f32 %v793, 0.0
      %v1006 = vmax.f32 %v796, 0.0
      %v1007 = vmax.f32 %v801, 0.0
      %v1008 = vmax.f32 %v804, 0.0
      %v1009 = vmax.f32 %v809, 0.0
      %v1010 = vmax.f32 %v812, 0.0
      %v1011 = vmax.f32 %v817, 0.0
      %v1012 = vmax.f32 %v820, 0.0
      %v1013 = vmax.f32 %v825, 0.0
      %v1014 = vmax.f32 %v828, 0.0
      %v1015 = vmax.f32 %v833, 0.0
      %v1016 = vmax.f32 %v836, 0.0
      %v1017 = vmax.f32 %v841, 0.0
      %v1018 = vmax.f32 %v844, 0.0
      %v1019 = vmax.f32 %v849, 0.0
      %v1020 = vmax.f32 %v852, 0.0
      %v1021 = vmax.f32 %v857, 0.0
      %v1022 = vmax.f32 %v860, 0.0
      %v1023 = vmax.f32 %v865, 0.0
      %v1024 = vmax.f32 %v868, 0.0
      %v1025 = vmax.f32 %v873, 0.0
      %v1026 = vmax.f32 %v876, 0.0
      %v1027 = vmax.f32 %v881, 0.0
      %v1028 = vmax.f32 %v884, 0.0
      %v1029 = vmax.f32 %v889, 0.0
      %v1030 = vmax.f32 %v892, 0.0
      %v1031 = vmax.f32 %v897, 0.0
      %v1032 = vmax.f32 %v900, 0.0
      %v1033 = vmax.f32 %v905, 0.0
      %v1034 = vmax.f32 %v908, 0.0
      %v1035 = vmax.f32 %v913, 0.0
      %v1036 = vmax.f32 %v916, 0.0
      %v1037 = vmax.f32 %v921, 0.0
      %v1038 = vmax.f32 %v924, 0.0
      %v1039 = vmax.f32 %v929, 0.0
      %v1040 = vmax.f32 %v932, 0.0
      %v1041 = vmax.f32 %v937, 0.0
      %v1042 = vmax.f32 %v940, 0.0
      %v1043 = vmax.f32 %v945, 0.0
      %v1044 = vmax.f32 %v948, 0.0
      %v1045 = vmax.f32 %v953, 0.0
      %v1046 = vmax.f32 %v956, 0.0
      %v1047 = vmax.f32 %v961, 0.0
      %v1048 = vmax.f32 %v964, 0.0
      %v1049 = vmax.f32 %v969, 0.0
      %v1050 = vmax.f32 %v972, 0.0
      %v1051 = vmax.f32 %v977, 0.0
      %v1052 = vmax.f32 %v980, 0.0
      %v1053 = vmax.f32 %v985, 0.0
      %v1054 = vmax.f32 %v988, 0.0
      %p1055 = scmp.eq.s32.totalorder %s23, 0
      // Predicated region
      $region49: #{_down_layer_forward_impl.1} parent=47 // pred_check
        %p1056 = pneg %p1055
      $region50: #{_down_layer_forward_impl.1} parent=47 // pred_check_branch
        %1058 = sbr.rel (%p1056) target = $region52
      $region51: #{_down_layer_forward_impl.1} parent=47 // pred_region
        %1059 = vst [vmem:[#allocation2] sm:$0xf] 0
        %1060 = vst [vmem:[#allocation2 + $0x4] sm:$0xf] 0
        %1061 = vst [vmem:[#allocation2 + $0x8] sm:$0xf] 0
        %1062 = vst [vmem:[#allocation2 + $0xc] sm:$0xf] 0
        %1063 = vst [vmem:[#allocation2 + $0x10] sm:$0xf] 0
        %1064 = vst [vmem:[#allocation2 + $0x14] sm:$0xf] 0
        %1065 = vst [vmem:[#allocation2 + $0x18] sm:$0xf] 0
        %1066 = vst [vmem:[#allocation2 + $0x1c] sm:$0xf] 0
        %1067 = vst [vmem:[#allocation2 + $0x20] sm:$0xf] 0
        %1068 = vst [vmem:[#allocation2 + $0x24] sm:$0xf] 0
        %s1069 = scalar_lea.vmem [#allocation2], 360
        %1070 = vst [vmem:[%s1069] sm:$0xf] 0
        %1071 = vst [vmem:[%s1069 + $0x4] sm:$0xf] 0
        %1072 = vst [vmem:[%s1069 + $0x8] sm:$0xf] 0
        %1073 = vst [vmem:[%s1069 + $0xc] sm:$0xf] 0
        %1074 = vst [vmem:[%s1069 + $0x10] sm:$0xf] 0
        %1075 = vst [vmem:[%s1069 + $0x14] sm:$0xf] 0
        %1076 = vst [vmem:[%s1069 + $0x18] sm:$0xf] 0
        %1077 = vst [vmem:[%s1069 + $0x1c] sm:$0xf] 0
        %1078 = vst [vmem:[%s1069 + $0x20] sm:$0xf] 0
        %1079 = vst [vmem:[%s1069 + $0x24] sm:$0xf] 0
        %s1080 = scalar_lea.vmem [#allocation2], 40
        %1081 = vst [vmem:[%s1080] sm:$0xf] 0
        %1082 = vst [vmem:[%s1080 + $0x28] sm:$0xf] 0
        %1083 = vst [vmem:[%s1080 + $0x50] sm:$0xf] 0
        %1084 = vst [vmem:[%s1080 + $0x78] sm:$0xf] 0
        %1085 = vst [vmem:[%s1080 + $0xa0] sm:$0xf] 0
        %1086 = vst [vmem:[%s1080 + $0xc8] sm:$0xf] 0
        %1087 = vst [vmem:[%s1080 + $0xf0] sm:$0xf] 0
        %1088 = vst [vmem:[%s1080 + $0x118] sm:$0xf] 0
        %s1089 = scalar_lea.vmem [#allocation2], 76
        %1090 = vst [vmem:[%s1089] sm:$0xf] 0
        %1091 = vst [vmem:[%s1089 + $0x28] sm:$0xf] 0
        %1092 = vst [vmem:[%s1089 + $0x50] sm:$0xf] 0
        %1093 = vst [vmem:[%s1089 + $0x78] sm:$0xf] 0
        %1094 = vst [vmem:[%s1089 + $0xa0] sm:$0xf] 0
        %1095 = vst [vmem:[%s1089 + $0xc8] sm:$0xf] 0
        %1096 = vst [vmem:[%s1089 + $0xf0] sm:$0xf] 0
        %1097 = vst [vmem:[%s1089 + $0x118] sm:$0xf] 0
      $region52: #{_down_layer_forward_impl.1} parent=47 // pred_fallthru
        _
      %v1098 = vpack.c.bf16 %v991, %v991
      %v1099 = vpack.c.bf16 %v992, %v992
      %v1100 = vpack.c.bf16 %v993, %v993
      %v1101 = vpack.c.bf16 %v994, %v994
      %v1102 = vpack.c.bf16 %v995, %v995
      %v1103 = vpack.c.bf16 %v996, %v996
      %v1104 = vpack.c.bf16 %v997, %v997
      %v1105 = vpack.c.bf16 %v998, %v998
      %v1106 = vpack.c.bf16 %v999, %v999
      %v1107 = vpack.c.bf16 %v1000, %v1000
      %v1108 = vpack.c.bf16 %v1001, %v1001
      %v1109 = vpack.c.bf16 %v1002, %v1002
      %v1110 = vpack.c.bf16 %v1003, %v1003
      %v1111 = vpack.c.bf16 %v1004, %v1004
      %v1112 = vpack.c.bf16 %v1005, %v1005
      %v1113 = vpack.c.bf16 %v1006, %v1006
      %v1114 = vpack.c.bf16 %v1007, %v1007
      %v1115 = vpack.c.bf16 %v1008, %v1008
      %v1116 = vpack.c.bf16 %v1009, %v1009
      %v1117 = vpack.c.bf16 %v1010, %v1010
      %v1118 = vpack.c.bf16 %v1011, %v1011
      %v1119 = vpack.c.bf16 %v1012, %v1012
      %v1120 = vpack.c.bf16 %v1013, %v1013
      %v1121 = vpack.c.bf16 %v1014, %v1014
      %v1122 = vpack.c.bf16 %v1015, %v1015
      %v1123 = vpack.c.bf16 %v1016, %v1016
      %v1124 = vpack.c.bf16 %v1017, %v1017
      %v1125 = vpack.c.bf16 %v1018, %v1018
      %v1126 = vpack.c.bf16 %v1019, %v1019
      %v1127 = vpack.c.bf16 %v1020, %v1020
      %v1128 = vpack.c.bf16 %v1021, %v1021
      %v1129 = vpack.c.bf16 %v1022, %v1022
      %v1130 = vpack.c.bf16 %v1023, %v1023
      %v1131 = vpack.c.bf16 %v1024, %v1024
      %v1132 = vpack.c.bf16 %v1025, %v1025
      %v1133 = vpack.c.bf16 %v1026, %v1026
      %v1134 = vpack.c.bf16 %v1027, %v1027
      %v1135 = vpack.c.bf16 %v1028, %v1028
      %v1136 = vpack.c.bf16 %v1029, %v1029
      %v1137 = vpack.c.bf16 %v1030, %v1030
      %v1138 = vpack.c.bf16 %v1031, %v1031
      %v1139 = vpack.c.bf16 %v1032, %v1032
      %v1140 = vpack.c.bf16 %v1033, %v1033
      %v1141 = vpack.c.bf16 %v1034, %v1034
      %v1142 = vpack.c.bf16 %v1035, %v1035
      %v1143 = vpack.c.bf16 %v1036, %v1036
      %v1144 = vpack.c.bf16 %v1037, %v1037
      %v1145 = vpack.c.bf16 %v1038, %v1038
      %v1146 = vpack.c.bf16 %v1039, %v1039
      %v1147 = vpack.c.bf16 %v1040, %v1040
      %v1148 = vpack.c.bf16 %v1041, %v1041
      %v1149 = vpack.c.bf16 %v1042, %v1042
      %v1150 = vpack.c.bf16 %v1043, %v1043
      %v1151 = vpack.c.bf16 %v1044, %v1044
      %v1152 = vpack.c.bf16 %v1045, %v1045
      %v1153 = vpack.c.bf16 %v1046, %v1046
      %v1154 = vpack.c.bf16 %v1047, %v1047
      %v1155 = vpack.c.bf16 %v1048, %v1048
      %v1156 = vpack.c.bf16 %v1049, %v1049
      %v1157 = vpack.c.bf16 %v1050, %v1050
      %v1158 = vpack.c.bf16 %v1051, %v1051
      %v1159 = vpack.c.bf16 %v1052, %v1052
      %v1160 = vpack.c.bf16 %v1053, %v1053
      %v1161 = vpack.c.bf16 %v1054, %v1054
      %s1162 = scalar_lea.vmem [#allocation2], 44
      %1163 = vst [vmem:[%s1162] sm:$0xf] %v1098
      %1164 = vst [vmem:[%s1162 + $0x4] sm:$0xf] %v1099
      %1165 = vst [vmem:[%s1162 + $0x8] sm:$0xf] %v1100
      %1166 = vst [vmem:[%s1162 + $0xc] sm:$0xf] %v1101
      %1167 = vst [vmem:[%s1162 + $0x10] sm:$0xf] %v1102
      %1168 = vst [vmem:[%s1162 + $0x14] sm:$0xf] %v1103
      %1169 = vst [vmem:[%s1162 + $0x18] sm:$0xf] %v1104
      %1170 = vst [vmem:[%s1162 + $0x1c] sm:$0xf] %v1105
      %1171 = vst [vmem:[%s1162 + $0x28] sm:$0xf] %v1106
      %1172 = vst [vmem:[%s1162 + $0x2c] sm:$0xf] %v1107
      %1173 = vst [vmem:[%s1162 + $0x30] sm:$0xf] %v1108
      %1174 = vst [vmem:[%s1162 + $0x34] sm:$0xf] %v1109
      %1175 = vst [vmem:[%s1162 + $0x38] sm:$0xf] %v1110
      %1176 = vst [vmem:[%s1162 + $0x3c] sm:$0xf] %v1111
      %1177 = vst [vmem:[%s1162 + $0x40] sm:$0xf] %v1112
      %1178 = vst [vmem:[%s1162 + $0x44] sm:$0xf] %v1113
      %1179 = vst [vmem:[%s1162 + $0x50] sm:$0xf] %v1114
      %1180 = vst [vmem:[%s1162 + $0x54] sm:$0xf] %v1115
      %1181 = vst [vmem:[%s1162 + $0x58] sm:$0xf] %v1116
      %1182 = vst [vmem:[%s1162 + $0x5c] sm:$0xf] %v1117
      %1183 = vst [vmem:[%s1162 + $0x60] sm:$0xf] %v1118
      %1184 = vst [vmem:[%s1162 + $0x64] sm:$0xf] %v1119
      %1185 = vst [vmem:[%s1162 + $0x68] sm:$0xf] %v1120
      %1186 = vst [vmem:[%s1162 + $0x6c] sm:$0xf] %v1121
      %1187 = vst [vmem:[%s1162 + $0x78] sm:$0xf] %v1122
      %1188 = vst [vmem:[%s1162 + $0x7c] sm:$0xf] %v1123
      %1189 = vst [vmem:[%s1162 + $0x80] sm:$0xf] %v1124
      %1190 = vst [vmem:[%s1162 + $0x84] sm:$0xf] %v1125
      %1191 = vst [vmem:[%s1162 + $0x88] sm:$0xf] %v1126
      %1192 = vst [vmem:[%s1162 + $0x8c] sm:$0xf] %v1127
      %1193 = vst [vmem:[%s1162 + $0x90] sm:$0xf] %v1128
      %1194 = vst [vmem:[%s1162 + $0x94] sm:$0xf] %v1129
      %1195 = vst [vmem:[%s1162 + $0xa0] sm:$0xf] %v1130
      %1196 = vst [vmem:[%s1162 + $0xa4] sm:$0xf] %v1131
      %1197 = vst [vmem:[%s1162 + $0xa8] sm:$0xf] %v1132
      %1198 = vst [vmem:[%s1162 + $0xac] sm:$0xf] %v1133
      %1199 = vst [vmem:[%s1162 + $0xb0] sm:$0xf] %v1134
      %1200 = vst [vmem:[%s1162 + $0xb4] sm:$0xf] %v1135
      %1201 = vst [vmem:[%s1162 + $0xb8] sm:$0xf] %v1136
      %1202 = vst [vmem:[%s1162 + $0xbc] sm:$0xf] %v1137
      %1203 = vst [vmem:[%s1162 + $0xc8] sm:$0xf] %v1138
      %1204 = vst [vmem:[%s1162 + $0xcc] sm:$0xf] %v1139
      %1205 = vst [vmem:[%s1162 + $0xd0] sm:$0xf] %v1140
      %1206 = vst [vmem:[%s1162 + $0xd4] sm:$0xf] %v1141
      %1207 = vst [vmem:[%s1162 + $0xd8] sm:$0xf] %v1142
      %1208 = vst [vmem:[%s1162 + $0xdc] sm:$0xf] %v1143
      %1209 = vst [vmem:[%s1162 + $0xe0] sm:$0xf] %v1144
      %1210 = vst [vmem:[%s1162 + $0xe4] sm:$0xf] %v1145
      %1211 = vst [vmem:[%s1162 + $0xf0] sm:$0xf] %v1146
      %1212 = vst [vmem:[%s1162 + $0xf4] sm:$0xf] %v1147
      %1213 = vst [vmem:[%s1162 + $0xf8] sm:$0xf] %v1148
      %1214 = vst [vmem:[%s1162 + $0xfc] sm:$0xf] %v1149
      %1215 = vst [vmem:[%s1162 + $0x100] sm:$0xf] %v1150
      %1216 = vst [vmem:[%s1162 + $0x104] sm:$0xf] %v1151
      %1217 = vst [vmem:[%s1162 + $0x108] sm:$0xf] %v1152
      %1218 = vst [vmem:[%s1162 + $0x10c] sm:$0xf] %v1153
      %1219 = vst [vmem:[%s1162 + $0x118] sm:$0xf] %v1154
      %1220 = vst [vmem:[%s1162 + $0x11c] sm:$0xf] %v1155
      %1221 = vst [vmem:[%s1162 + $0x120] sm:$0xf] %v1156
      %1222 = vst [vmem:[%s1162 + $0x124] sm:$0xf] %v1157
      %1223 = vst [vmem:[%s1162 + $0x128] sm:$0xf] %v1158
      %1224 = vst [vmem:[%s1162 + $0x12c] sm:$0xf] %v1159
      %1225 = vst [vmem:[%s1162 + $0x130] sm:$0xf] %v1160
      %1226 = vst [vmem:[%s1162 + $0x134] sm:$0xf] %v1161
      %v1227 = vld [vmem:[%s324] sm:$0xf]
      %v1228 = vld [vmem:[%s324 + $0x4] sm:$0xf]
      %v1229 = vld [vmem:[%s324 + $0x8] sm:$0xf]
      %v1230 = vld [vmem:[%s324 + $0xc] sm:$0xf]
      %v1231 = vld [vmem:[%s324 + $0x10] sm:$0xf]
      %v1232 = vld [vmem:[%s324 + $0x14] sm:$0xf]
      %v1233 = vld [vmem:[%s324 + $0x18] sm:$0xf]
      %v1234 = vld [vmem:[%s324 + $0x1c] sm:$0xf]
      %v1235 = vld [vmem:[%s324 + $0x20] sm:$0xf]
      %v1236 = vld [vmem:[%s324 + $0x24] sm:$0xf]
      %v1237 = vld [vmem:[%s324 + $0x28] sm:$0xf]
      %v1238 = vld [vmem:[%s324 + $0x2c] sm:$0xf]
      %v1239 = vld [vmem:[%s324 + $0x30] sm:$0xf]
      %v1240 = vld [vmem:[%s324 + $0x34] sm:$0xf]
      %v1241 = vld [vmem:[%s324 + $0x38] sm:$0xf]
      %v1242 = vld [vmem:[%s324 + $0x3c] sm:$0xf]
      %v1243 = vld [vmem:[%s324 + $0x40] sm:$0xf]
      %v1244 = vld [vmem:[%s324 + $0x44] sm:$0xf]
      %v1245 = vld [vmem:[%s324 + $0x48] sm:$0xf]
      %v1246 = vld [vmem:[%s324 + $0x4c] sm:$0xf]
      %v1247 = vld [vmem:[%s324 + $0x50] sm:$0xf]
      %v1248 = vld [vmem:[%s324 + $0x54] sm:$0xf]
      %v1249 = vld [vmem:[%s324 + $0x58] sm:$0xf]
      %v1250 = vld [vmem:[%s324 + $0x5c] sm:$0xf]
      %v1251 = vld [vmem:[%s324 + $0x60] sm:$0xf]
      %v1252 = vld [vmem:[%s324 + $0x64] sm:$0xf]
      %v1253 = vld [vmem:[%s324 + $0x68] sm:$0xf]
      %v1254 = vld [vmem:[%s324 + $0x6c] sm:$0xf]
      %v1255 = vld [vmem:[%s324 + $0x70] sm:$0xf]
      %v1256 = vld [vmem:[%s324 + $0x74] sm:$0xf]
      %v1257 = vld [vmem:[%s324 + $0x78] sm:$0xf]
      %v1258 = vld [vmem:[%s324 + $0x7c] sm:$0xf]
      %v1259 = vld [vmem:[%s324 + $0x80] sm:$0xf]
      %v1260 = vld [vmem:[%s324 + $0x84] sm:$0xf]
      %v1261 = vld [vmem:[%s324 + $0x88] sm:$0xf]
      %v1262 = vld [vmem:[%s324 + $0x8c] sm:$0xf]
      %v1263 = vld [vmem:[%s324 + $0x90] sm:$0xf]
      %v1264 = vld [vmem:[%s324 + $0x94] sm:$0xf]
      %v1265 = vld [vmem:[%s324 + $0x98] sm:$0xf]
      %v1266 = vld [vmem:[%s324 + $0x9c] sm:$0xf]
      %v1267 = vld [vmem:[%s324 + $0xa0] sm:$0xf]
      %v1268 = vld [vmem:[%s324 + $0xa4] sm:$0xf]
      %v1269 = vld [vmem:[%s324 + $0xa8] sm:$0xf]
      %v1270 = vld [vmem:[%s324 + $0xac] sm:$0xf]
      %v1271 = vld [vmem:[%s324 + $0xb0] sm:$0xf]
      %v1272 = vld [vmem:[%s324 + $0xb4] sm:$0xf]
      %v1273 = vld [vmem:[%s324 + $0xb8] sm:$0xf]
      %v1274 = vld [vmem:[%s324 + $0xbc] sm:$0xf]
      %v1275 = vld [vmem:[%s324 + $0xc0] sm:$0xf]
      %v1276 = vld [vmem:[%s324 + $0xc4] sm:$0xf]
      %v1277 = vld [vmem:[%s324 + $0xc8] sm:$0xf]
      %v1278 = vld [vmem:[%s324 + $0xcc] sm:$0xf]
      %v1279 = vld [vmem:[%s324 + $0xd0] sm:$0xf]
      %v1280 = vld [vmem:[%s324 + $0xd4] sm:$0xf]
      %v1281 = vld [vmem:[%s324 + $0xd8] sm:$0xf]
      %v1282 = vld [vmem:[%s324 + $0xdc] sm:$0xf]
      %v1283 = vld [vmem:[%s324 + $0xe0] sm:$0xf]
      %v1284 = vld [vmem:[%s324 + $0xe4] sm:$0xf]
      %v1285 = vld [vmem:[%s324 + $0xe8] sm:$0xf]
      %v1286 = vld [vmem:[%s324 + $0xec] sm:$0xf]
      %v1287 = vld [vmem:[%s324 + $0xf0] sm:$0xf]
      %v1288 = vld [vmem:[%s324 + $0xf4] sm:$0xf]
      %v1289 = vld [vmem:[%s324 + $0xf8] sm:$0xf]
      %v1290 = vld [vmem:[%s324 + $0xfc] sm:$0xf]
      %v1291 = vld [vmem:[%s2] sm:$0x3]
      %v1292 = vld [vmem:[%s6] sm:$0x1]
      %v1294 = vlaneseq
      %v1295 = vshrl.u32 %v1294, 7
      %v1296 = vsub.s32 0, %v1295
      %v1297 = vrot.slane %v1292, %v1296
      %v1363 = vunpack.c.l.b16 %v1227
      %v1364 = vunpack.c.l.b16 %v1228
      %v1365 = vunpack.c.l.b16 %v1229
      %v1366 = vunpack.c.l.b16 %v1230
      %v1367 = vunpack.c.l.b16 %v1231
      %v1368 = vunpack.c.l.b16 %v1232
      %v1369 = vunpack.c.l.b16 %v1233
      %v1370 = vunpack.c.l.b16 %v1234
      %v1371 = vunpack.c.l.b16 %v1235
      %v1372 = vunpack.c.l.b16 %v1236
      %v1373 = vunpack.c.l.b16 %v1237
      %v1374 = vunpack.c.l.b16 %v1238
      %v1375 = vunpack.c.l.b16 %v1239
      %v1376 = vunpack.c.l.b16 %v1240
      %v1377 = vunpack.c.l.b16 %v1241
      %v1378 = vunpack.c.l.b16 %v1242
      %v1379 = vunpack.c.l.b16 %v1243
      %v1380 = vunpack.c.l.b16 %v1244
      %v1381 = vunpack.c.l.b16 %v1245
      %v1382 = vunpack.c.l.b16 %v1246
      %v1383 = vunpack.c.l.b16 %v1247
      %v1384 = vunpack.c.l.b16 %v1248
      %v1385 = vunpack.c.l.b16 %v1249
      %v1386 = vunpack.c.l.b16 %v1250
      %v1387 = vunpack.c.l.b16 %v1251
      %v1388 = vunpack.c.l.b16 %v1252
      %v1389 = vunpack.c.l.b16 %v1253
      %v1390 = vunpack.c.l.b16 %v1254
      %v1391 = vunpack.c.l.b16 %v1255
      %v1392 = vunpack.c.l.b16 %v1256
      %v1393 = vunpack.c.l.b16 %v1257
      %v1394 = vunpack.c.l.b16 %v1258
      %v1395 = vunpack.c.l.b16 %v1259
      %v1396 = vunpack.c.l.b16 %v1260
      %v1397 = vunpack.c.l.b16 %v1261
      %v1398 = vunpack.c.l.b16 %v1262
      %v1399 = vunpack.c.l.b16 %v1263
      %v1400 = vunpack.c.l.b16 %v1264
      %v1401 = vunpack.c.l.b16 %v1265
      %v1402 = vunpack.c.l.b16 %v1266
      %v1403 = vunpack.c.l.b16 %v1267
      %v1404 = vunpack.c.l.b16 %v1268
      %v1405 = vunpack.c.l.b16 %v1269
      %v1406 = vunpack.c.l.b16 %v1270
      %v1407 = vunpack.c.l.b16 %v1271
      %v1408 = vunpack.c.l.b16 %v1272
      %v1409 = vunpack.c.l.b16 %v1273
      %v1410 = vunpack.c.l.b16 %v1274
      %v1411 = vunpack.c.l.b16 %v1275
      %v1412 = vunpack.c.l.b16 %v1276
      %v1413 = vunpack.c.l.b16 %v1277
      %v1414 = vunpack.c.l.b16 %v1278
      %v1415 = vunpack.c.l.b16 %v1279
      %v1416 = vunpack.c.l.b16 %v1280
      %v1417 = vunpack.c.l.b16 %v1281
      %v1418 = vunpack.c.l.b16 %v1282
      %v1419 = vunpack.c.l.b16 %v1283
      %v1420 = vunpack.c.l.b16 %v1284
      %v1421 = vunpack.c.l.b16 %v1285
      %v1422 = vunpack.c.l.b16 %v1286
      %v1423 = vunpack.c.l.b16 %v1287
      %v1424 = vunpack.c.l.b16 %v1288
      %v1425 = vunpack.c.l.b16 %v1289
      %v1426 = vunpack.c.l.b16 %v1290
      %v1427 = vpack.c.b16 %v1364, %v1363
      %v1428 = vpack.c.b16 %v1366, %v1365
      %v1429 = vpack.c.b16 %v1368, %v1367
      %v1430 = vpack.c.b16 %v1370, %v1369
      %v1431 = vpack.c.b16 %v1372, %v1371
      %v1432 = vpack.c.b16 %v1374, %v1373
      %v1433 = vpack.c.b16 %v1376, %v1375
      %v1434 = vpack.c.b16 %v1378, %v1377
      %v1435 = vpack.c.b16 %v1380, %v1379
      %v1436 = vpack.c.b16 %v1382, %v1381
      %v1437 = vpack.c.b16 %v1384, %v1383
      %v1438 = vpack.c.b16 %v1386, %v1385
      %v1439 = vpack.c.b16 %v1388, %v1387
      %v1440 = vpack.c.b16 %v1390, %v1389
      %v1441 = vpack.c.b16 %v1392, %v1391
      %v1442 = vpack.c.b16 %v1394, %v1393
      %v1443 = vpack.c.b16 %v1396, %v1395
      %v1444 = vpack.c.b16 %v1398, %v1397
      %v1445 = vpack.c.b16 %v1400, %v1399
      %v1446 = vpack.c.b16 %v1402, %v1401
      %v1447 = vpack.c.b16 %v1404, %v1403
      %v1448 = vpack.c.b16 %v1406, %v1405
      %v1449 = vpack.c.b16 %v1408, %v1407
      %v1450 = vpack.c.b16 %v1410, %v1409
      %v1451 = vpack.c.b16 %v1412, %v1411
      %v1452 = vpack.c.b16 %v1414, %v1413
      %v1453 = vpack.c.b16 %v1416, %v1415
      %v1454 = vpack.c.b16 %v1418, %v1417
      %v1455 = vpack.c.b16 %v1420, %v1419
      %v1456 = vpack.c.b16 %v1422, %v1421
      %v1457 = vpack.c.b16 %v1424, %v1423
      %v1458 = vpack.c.b16 %v1426, %v1425
      %vm1459 = vcmask 31744
      %v1461 = vsel %vm1459, %v1427, 0
      %v1464 = vsel %vm1459, %v1428, 0
      %v1467 = vsel %vm1459, %v1429, 0
      %v1470 = vsel %vm1459, %v1430, 0
      %v1473 = vsel %vm1459, %v1431, 0
      %v1476 = vsel %vm1459, %v1432, 0
      %v1479 = vsel %vm1459, %v1433, 0
      %v1482 = vsel %vm1459, %v1434, 0
      %v1485 = vsel %vm1459, %v1435, 0
      %v1488 = vsel %vm1459, %v1436, 0
      %v1491 = vsel %vm1459, %v1437, 0
      %v1494 = vsel %vm1459, %v1438, 0
      %v1497 = vsel %vm1459, %v1439, 0
      %v1500 = vsel %vm1459, %v1440, 0
      %v1503 = vsel %vm1459, %v1441, 0
      %v1506 = vsel %vm1459, %v1442, 0
      %v1509 = vsel %vm1459, %v1443, 0
      %v1512 = vsel %vm1459, %v1444, 0
      %v1515 = vsel %vm1459, %v1445, 0
      %v1518 = vsel %vm1459, %v1446, 0
      %v1521 = vsel %vm1459, %v1447, 0
      %v1524 = vsel %vm1459, %v1448, 0
      %v1527 = vsel %vm1459, %v1449, 0
      %v1530 = vsel %vm1459, %v1450, 0
      %v1533 = vsel %vm1459, %v1451, 0
      %v1536 = vsel %vm1459, %v1452, 0
      %v1539 = vsel %vm1459, %v1453, 0
      %v1542 = vsel %vm1459, %v1454, 0
      %v1545 = vsel %vm1459, %v1455, 0
      %v1548 = vsel %vm1459, %v1456, 0
      %v1551 = vsel %vm1459, %v1457, 0
      %v1554 = vsel %vm1459, %v1458, 0
      %vm1556 = vcmask 1041408
      %v1558 = vsel %vm1556, %v1291, 0
      %1560 = vmatprep.subr.bf16.mxu0 0
      %1561 = vmatpush1.bf16.msra.mxu0 %v1558
      %1562 = vmatprep.subr.bf16.mxu0 0
      %1563 = vmatpush1.bf16.msra.mxu0 0
      %1564 = vmatprep.subr.bf16.mxu0 0
      %1565 = vmatpush1.bf16.msra.mxu0 0
      %1566 = vmatprep.subr.bf16.mxu0 0
      %1567 = vmatpush1.bf16.msra.mxu0 0
      %1568 = vmatprep.subr.bf16.mxu0 0
      %1569 = vmatpush1.bf16.msra.mxu0 0
      %1570 = vmatprep.subr.bf16.mxu0 0
      %1571 = vmatpush1.bf16.msra.mxu0 0
      %1572 = vmatprep.subr.bf16.mxu0 0
      %1573 = vmatpush1.bf16.msra.mxu0 0
      %1574 = vmatprep.subr.bf16.mxu0 0
      %1575 = vmatpush1.bf16.msra.mxu0 0
      %1576 = vmatprep.subr.bf16.mxu0 0
      %1577 = vmatpush1.bf16.msra.mxu0 0
      %1578 = vmatprep.subr.bf16.mxu0 0
      %1579 = vmatpush1.bf16.msra.mxu0 0
      %1580 = vmatprep.subr.bf16.mxu0 0
      %1581 = vmatpush1.bf16.msra.mxu0 0
      %1582 = vmatprep.subr.bf16.mxu0 0
      %1583 = vmatpush1.bf16.msra.mxu0 0
      %1584 = vmatprep.subr.bf16.mxu0 0
      %1585 = vmatpush1.bf16.msra.mxu0 0
      %1586 = vmatprep.subr.bf16.mxu0 0
      %1587 = vmatpush1.bf16.msra.mxu0 0
      %1588 = vmatprep.subr.bf16.mxu0 0
      %1589 = vmatpush1.bf16.msra.mxu0 0
      %1590 = vmatprep.subr.bf16.mxu0 0
      %1591 = vmatpush1.bf16.msra.mxu0 0
      %1592 = vmatprep.mubr.bf16.mxu0 0
      %1593 = vmatmul.mubr.bf16.gmra.mrb[0].mxu0 %v1461
      %v1594 = vpop.f32.mrb[0].mxu0
      %v1595 = vadd.f32 %v1297, %v1594
      %v1596 = vpop.f32.mrb[0].mxu0
      %v1597 = vpop.f32.mrb[0].mxu0
      %v1598 = vadd.f32 %v1297, %v1597
      %v1599 = vpop.f32.mrb[0].mxu0
      %1600 = vmatprep.mubr.bf16.mxu0 0
      %1601 = vmatmul.mubr.bf16.gmra.mrb[0].mxu0 %v1464
      %v1602 = vpop.f32.mrb[0].mxu0
      %v1603 = vadd.f32 %v1297, %v1602
      %v1604 = vpop.f32.mrb[0].mxu0
      %v1605 = vpop.f32.mrb[0].mxu0
      %v1606 = vadd.f32 %v1297, %v1605
      %v1607 = vpop.f32.mrb[0].mxu0
      %1608 = vmatprep.mubr.bf16.mxu0 0
      %1609 = vmatmul.mubr.bf16.gmra.mrb[0].mxu0 %v1467
      %v1610 = vpop.f32.mrb[0].mxu0
      %v1611 = vadd.f32 %v1297, %v1610
      %v1612 = vpop.f32.mrb[0].mxu0
      %v1613 = vpop.f32.mrb[0].mxu0
      %v1614 = vadd.f32 %v1297, %v1613
      %v1615 = vpop.f32.mrb[0].mxu0
      %1616 = vmatprep.mubr.bf16.mxu0 0
      %1617 = vmatmul.mubr.bf16.gmra.mrb[0].mxu0 %v1470
      %v1618 = vpop.f32.mrb[0].mxu0
      %v1619 = vadd.f32 %v1297, %v1618
      %v1620 = vpop.f32.mrb[0].mxu0
      %v1621 = vpop.f32.mrb[0].mxu0
      %v1622 = vadd.f32 %v1297, %v1621
      %v1623 = vpop.f32.mrb[0].mxu0
      %1624 = vmatprep.mubr.bf16.mxu0 0
      %1625 = vmatmul.mubr.bf16.gmra.mrb[0].mxu0 %v1473
      %v1626 = vpop.f32.mrb[0].mxu0
      %v1627 = vadd.f32 %v1297, %v1626
      %v1628 = vpop.f32.mrb[0].mxu0
      %v1629 = vpop.f32.mrb[0].mxu0
      %v1630 = vadd.f32 %v1297, %v1629
      %v1631 = vpop.f32.mrb[0].mxu0
      %1632 = vmatprep.mubr.bf16.mxu0 0
      %1633 = vmatmul.mubr.bf16.gmra.mrb[0].mxu0 %v1476
      %v1634 = vpop.f32.mrb[0].mxu0
      %v1635 = vadd.f32 %v1297, %v1634
      %v1636 = vpop.f32.mrb[0].mxu0
      %v1637 = vpop.f32.mrb[0].mxu0
      %v1638 = vadd.f32 %v1297, %v1637
      %v1639 = vpop.f32.mrb[0].mxu0
      %1640 = vmatprep.mubr.bf16.mxu0 0
      %1641 = vmatmul.mubr.bf16.gmra.mrb[0].mxu0 %v1479
      %v1642 = vpop.f32.mrb[0].mxu0
      %v1643 = vadd.f32 %v1297, %v1642
      %v1644 = vpop.f32.mrb[0].mxu0
      %v1645 = vpop.f32.mrb[0].mxu0
      %v1646 = vadd.f32 %v1297, %v1645
      %v1647 = vpop.f32.mrb[0].mxu0
      %1648 = vmatprep.mubr.bf16.mxu0 0
      %1649 = vmatmul.mubr.bf16.gmra.mrb[0].mxu0 %v1482
      %v1650 = vpop.f32.mrb[0].mxu0
      %v1651 = vadd.f32 %v1297, %v1650
      %v1652 = vpop.f32.mrb[0].mxu0
      %v1653 = vpop.f32.mrb[0].mxu0
      %v1654 = vadd.f32 %v1297, %v1653
      %v1655 = vpop.f32.mrb[0].mxu0
      %1656 = vmatprep.mubr.bf16.mxu0 0
      %1657 = vmatmul.mubr.bf16.gmra.mrb[0].mxu0 %v1485
      %v1658 = vpop.f32.mrb[0].mxu0
      %v1659 = vadd.f32 %v1297, %v1658
      %v1660 = vpop.f32.mrb[0].mxu0
      %v1661 = vpop.f32.mrb[0].mxu0
      %v1662 = vadd.f32 %v1297, %v1661
      %v1663 = vpop.f32.mrb[0].mxu0
      %1664 = vmatprep.mubr.bf16.mxu0 0
      %1665 = vmatmul.mubr.bf16.gmra.mrb[0].mxu0 %v1488
      %v1666 = vpop.f32.mrb[0].mxu0
      %v1667 = vadd.f32 %v1297, %v1666
      %v1668 = vpop.f32.mrb[0].mxu0
      %v1669 = vpop.f32.mrb[0].mxu0
      %v1670 = vadd.f32 %v1297, %v1669
      %v1671 = vpop.f32.mrb[0].mxu0
      %1672 = vmatprep.mubr.bf16.mxu0 0
      %1673 = vmatmul.mubr.bf16.gmra.mrb[0].mxu0 %v1491
      %v1674 = vpop.f32.mrb[0].mxu0
      %v1675 = vadd.f32 %v1297, %v1674
      %v1676 = vpop.f32.mrb[0].mxu0
      %v1677 = vpop.f32.mrb[0].mxu0
      %v1678 = vadd.f32 %v1297, %v1677
      %v1679 = vpop.f32.mrb[0].mxu0
      %1680 = vmatprep.mubr.bf16.mxu0 0
      %1681 = vmatmul.mubr.bf16.gmra.mrb[0].mxu0 %v1494
      %v1682 = vpop.f32.mrb[0].mxu0
      %v1683 = vadd.f32 %v1297, %v1682
      %v1684 = vpop.f32.mrb[0].mxu0
      %v1685 = vpop.f32.mrb[0].mxu0
      %v1686 = vadd.f32 %v1297, %v1685
      %v1687 = vpop.f32.mrb[0].mxu0
      %1688 = vmatprep.mubr.bf16.mxu0 0
      %1689 = vmatmul.mubr.bf16.gmra.mrb[0].mxu0 %v1497
      %v1690 = vpop.f32.mrb[0].mxu0
      %v1691 = vadd.f32 %v1297, %v1690
      %v1692 = vpop.f32.mrb[0].mxu0
      %v1693 = vpop.f32.mrb[0].mxu0
      %v1694 = vadd.f32 %v1297, %v1693
      %v1695 = vpop.f32.mrb[0].mxu0
      %1696 = vmatprep.mubr.bf16.mxu0 0
      %1697 = vmatmul.mubr.bf16.gmra.mrb[0].mxu0 %v1500
      %v1698 = vpop.f32.mrb[0].mxu0
      %v1699 = vadd.f32 %v1297, %v1698
      %v1700 = vpop.f32.mrb[0].mxu0
      %v1701 = vpop.f32.mrb[0].mxu0
      %v1702 = vadd.f32 %v1297, %v1701
      %v1703 = vpop.f32.mrb[0].mxu0
      %1704 = vmatprep.mubr.bf16.mxu0 0
      %1705 = vmatmul.mubr.bf16.gmra.mrb[0].mxu0 %v1503
      %v1706 = vpop.f32.mrb[0].mxu0
      %v1707 = vadd.f32 %v1297, %v1706
      %v1708 = vpop.f32.mrb[0].mxu0
      %v1709 = vpop.f32.mrb[0].mxu0
      %v1710 = vadd.f32 %v1297, %v1709
      %v1711 = vpop.f32.mrb[0].mxu0
      %1712 = vmatprep.mubr.bf16.mxu0 0
      %1713 = vmatmul.mubr.bf16.gmra.mrb[0].mxu0 %v1506
      %v1714 = vpop.f32.mrb[0].mxu0
      %v1715 = vadd.f32 %v1297, %v1714
      %v1716 = vpop.f32.mrb[0].mxu0
      %v1717 = vpop.f32.mrb[0].mxu0
      %v1718 = vadd.f32 %v1297, %v1717
      %v1719 = vpop.f32.mrb[0].mxu0
      %1720 = vmatprep.mubr.bf16.mxu0 0
      %1721 = vmatmul.mubr.bf16.gmra.mrb[0].mxu0 %v1509
      %v1722 = vpop.f32.mrb[0].mxu0
      %v1723 = vadd.f32 %v1297, %v1722
      %v1724 = vpop.f32.mrb[0].mxu0
      %v1725 = vpop.f32.mrb[0].mxu0
      %v1726 = vadd.f32 %v1297, %v1725
      %v1727 = vpop.f32.mrb[0].mxu0
      %1728 = vmatprep.mubr.bf16.mxu0 0
      %1729 = vmatmul.mubr.bf16.gmra.mrb[0].mxu0 %v1512
      %v1730 = vpop.f32.mrb[0].mxu0
      %v1731 = vadd.f32 %v1297, %v1730
      %v1732 = vpop.f32.mrb[0].mxu0
      %v1733 = vpop.f32.mrb[0].mxu0
      %v1734 = vadd.f32 %v1297, %v1733
      %v1735 = vpop.f32.mrb[0].mxu0
      %1736 = vmatprep.mubr.bf16.mxu0 0
      %1737 = vmatmul.mubr.bf16.gmra.mrb[0].mxu0 %v1515
      %v1738 = vpop.f32.mrb[0].mxu0
      %v1739 = vadd.f32 %v1297, %v1738
      %v1740 = vpop.f32.mrb[0].mxu0
      %v1741 = vpop.f32.mrb[0].mxu0
      %v1742 = vadd.f32 %v1297, %v1741
      %v1743 = vpop.f32.mrb[0].mxu0
      %1744 = vmatprep.mubr.bf16.mxu0 0
      %1745 = vmatmul.mubr.bf16.gmra.mrb[0].mxu0 %v1518
      %v1746 = vpop.f32.mrb[0].mxu0
      %v1747 = vadd.f32 %v1297, %v1746
      %v1748 = vpop.f32.mrb[0].mxu0
      %v1749 = vpop.f32.mrb[0].mxu0
      %v1750 = vadd.f32 %v1297, %v1749
      %v1751 = vpop.f32.mrb[0].mxu0
      %1752 = vmatprep.mubr.bf16.mxu0 0
      %1753 = vmatmul.mubr.bf16.gmra.mrb[0].mxu0 %v1521
      %v1754 = vpop.f32.mrb[0].mxu0
      %v1755 = vadd.f32 %v1297, %v1754
      %v1756 = vpop.f32.mrb[0].mxu0
      %v1757 = vpop.f32.mrb[0].mxu0
      %v1758 = vadd.f32 %v1297, %v1757
      %v1759 = vpop.f32.mrb[0].mxu0
      %1760 = vmatprep.mubr.bf16.mxu0 0
      %1761 = vmatmul.mubr.bf16.gmra.mrb[0].mxu0 %v1524
      %v1762 = vpop.f32.mrb[0].mxu0
      %v1763 = vadd.f32 %v1297, %v1762
      %v1764 = vpop.f32.mrb[0].mxu0
      %v1765 = vpop.f32.mrb[0].mxu0
      %v1766 = vadd.f32 %v1297, %v1765
      %v1767 = vpop.f32.mrb[0].mxu0
      %1768 = vmatprep.mubr.bf16.mxu0 0
      %1769 = vmatmul.mubr.bf16.gmra.mrb[0].mxu0 %v1527
      %v1770 = vpop.f32.mrb[0].mxu0
      %v1771 = vadd.f32 %v1297, %v1770
      %v1772 = vpop.f32.mrb[0].mxu0
      %v1773 = vpop.f32.mrb[0].mxu0
      %v1774 = vadd.f32 %v1297, %v1773
      %v1775 = vpop.f32.mrb[0].mxu0
      %1776 = vmatprep.mubr.bf16.mxu0 0
      %1777 = vmatmul.mubr.bf16.gmra.mrb[0].mxu0 %v1530
      %v1778 = vpop.f32.mrb[0].mxu0
      %v1779 = vadd.f32 %v1297, %v1778
      %v1780 = vpop.f32.mrb[0].mxu0
      %v1781 = vpop.f32.mrb[0].mxu0
      %v1782 = vadd.f32 %v1297, %v1781
      %v1783 = vpop.f32.mrb[0].mxu0
      %1784 = vmatprep.mubr.bf16.mxu0 0
      %1785 = vmatmul.mubr.bf16.gmra.mrb[0].mxu0 %v1533
      %v1786 = vpop.f32.mrb[0].mxu0
      %v1787 = vadd.f32 %v1297, %v1786
      %v1788 = vpop.f32.mrb[0].mxu0
      %v1789 = vpop.f32.mrb[0].mxu0
      %v1790 = vadd.f32 %v1297, %v1789
      %v1791 = vpop.f32.mrb[0].mxu0
      %1792 = vmatprep.mubr.bf16.mxu0 0
      %1793 = vmatmul.mubr.bf16.gmra.mrb[0].mxu0 %v1536
      %v1794 = vpop.f32.mrb[0].mxu0
      %v1795 = vadd.f32 %v1297, %v1794
      %v1796 = vpop.f32.mrb[0].mxu0
      %v1797 = vpop.f32.mrb[0].mxu0
      %v1798 = vadd.f32 %v1297, %v1797
      %v1799 = vpop.f32.mrb[0].mxu0
      %1800 = vmatprep.mubr.bf16.mxu0 0
      %1801 = vmatmul.mubr.bf16.gmra.mrb[0].mxu0 %v1539
      %v1802 = vpop.f32.mrb[0].mxu0
      %v1803 = vadd.f32 %v1297, %v1802
      %v1804 = vpop.f32.mrb[0].mxu0
      %v1805 = vpop.f32.mrb[0].mxu0
      %v1806 = vadd.f32 %v1297, %v1805
      %v1807 = vpop.f32.mrb[0].mxu0
      %1808 = vmatprep.mubr.bf16.mxu0 0
      %1809 = vmatmul.mubr.bf16.gmra.mrb[0].mxu0 %v1542
      %v1810 = vpop.f32.mrb[0].mxu0
      %v1811 = vadd.f32 %v1297, %v1810
      %v1812 = vpop.f32.mrb[0].mxu0
      %v1813 = vpop.f32.mrb[0].mxu0
      %v1814 = vadd.f32 %v1297, %v1813
      %v1815 = vpop.f32.mrb[0].mxu0
      %1816 = vmatprep.mubr.bf16.mxu0 0
      %1817 = vmatmul.mubr.bf16.gmra.mrb[0].mxu0 %v1545
      %v1818 = vpop.f32.mrb[0].mxu0
      %v1819 = vadd.f32 %v1297, %v1818
      %v1820 = vpop.f32.mrb[0].mxu0
      %v1821 = vpop.f32.mrb[0].mxu0
      %v1822 = vadd.f32 %v1297, %v1821
      %v1823 = vpop.f32.mrb[0].mxu0
      %1824 = vmatprep.mubr.bf16.mxu0 0
      %1825 = vmatmul.mubr.bf16.gmra.mrb[0].mxu0 %v1548
      %v1826 = vpop.f32.mrb[0].mxu0
      %v1827 = vadd.f32 %v1297, %v1826
      %v1828 = vpop.f32.mrb[0].mxu0
      %v1829 = vpop.f32.mrb[0].mxu0
      %v1830 = vadd.f32 %v1297, %v1829
      %v1831 = vpop.f32.mrb[0].mxu0
      %1832 = vmatprep.mubr.bf16.mxu0 0
      %1833 = vmatmul.mubr.bf16.gmra.mrb[0].mxu0 %v1551
      %v1834 = vpop.f32.mrb[0].mxu0
      %v1835 = vadd.f32 %v1297, %v1834
      %v1836 = vpop.f32.mrb[0].mxu0
      %v1837 = vpop.f32.mrb[0].mxu0
      %v1838 = vadd.f32 %v1297, %v1837
      %v1839 = vpop.f32.mrb[0].mxu0
      %1840 = vmatprep.mubr.bf16.mxu0 0
      %1841 = vmatmul.mubr.bf16.gmra.mrb[0].mxu0 %v1554
      %v1842 = vpop.f32.mrb[0].mxu0
      %v1843 = vadd.f32 %v1297, %v1842
      %v1844 = vpop.f32.mrb[0].mxu0
      %v1845 = vpop.f32.mrb[0].mxu0
      %v1846 = vadd.f32 %v1297, %v1845
      %v1847 = vpop.f32.mrb[0].mxu0
      %1848 = vdwg.mxu0
      %v1849 = vld [vmem:[#allocation2] sm:$0xf]
      %v1850 = vld [vmem:[#allocation2 + $0x4] sm:$0xf]
      %v1851 = vld [vmem:[#allocation2 + $0x8] sm:$0xf]
      %v1852 = vld [vmem:[#allocation2 + $0xc] sm:$0xf]
      %v1853 = vld [vmem:[#allocation2 + $0x10] sm:$0xf]
      %v1854 = vld [vmem:[#allocation2 + $0x14] sm:$0xf]
      %v1855 = vld [vmem:[#allocation2 + $0x18] sm:$0xf]
      %v1856 = vld [vmem:[#allocation2 + $0x1c] sm:$0xf]
      %v1857 = vld [vmem:[#allocation2 + $0x28] sm:$0xf]
      %v1858 = vld [vmem:[#allocation2 + $0x2c] sm:$0xf]
      %v1859 = vld [vmem:[#allocation2 + $0x30] sm:$0xf]
      %v1860 = vld [vmem:[#allocation2 + $0x34] sm:$0xf]
      %v1861 = vld [vmem:[#allocation2 + $0x38] sm:$0xf]
      %v1862 = vld [vmem:[#allocation2 + $0x3c] sm:$0xf]
      %v1863 = vld [vmem:[#allocation2 + $0x40] sm:$0xf]
      %v1864 = vld [vmem:[#allocation2 + $0x44] sm:$0xf]
      %v1865 = vld [vmem:[#allocation2 + $0x50] sm:$0xf]
      %v1866 = vld [vmem:[#allocation2 + $0x54] sm:$0xf]
      %v1867 = vld [vmem:[#allocation2 + $0x58] sm:$0xf]
      %v1868 = vld [vmem:[#allocation2 + $0x5c] sm:$0xf]
      %v1869 = vld [vmem:[#allocation2 + $0x60] sm:$0xf]
      %v1870 = vld [vmem:[#allocation2 + $0x64] sm:$0xf]
      %v1871 = vld [vmem:[#allocation2 + $0x68] sm:$0xf]
      %v1872 = vld [vmem:[#allocation2 + $0x6c] sm:$0xf]
      %v1873 = vld [vmem:[#allocation2 + $0x78] sm:$0xf]
      %v1874 = vld [vmem:[#allocation2 + $0x7c] sm:$0xf]
      %v1875 = vld [vmem:[#allocation2 + $0x80] sm:$0xf]
      %v1876 = vld [vmem:[#allocation2 + $0x84] sm:$0xf]
      %v1877 = vld [vmem:[#allocation2 + $0x88] sm:$0xf]
      %v1878 = vld [vmem:[#allocation2 + $0x8c] sm:$0xf]
      %v1879 = vld [vmem:[#allocation2 + $0x90] sm:$0xf]
      %v1880 = vld [vmem:[#allocation2 + $0x94] sm:$0xf]
      %v1881 = vld [vmem:[#allocation2 + $0xa0] sm:$0xf]
      %v1882 = vld [vmem:[#allocation2 + $0xa4] sm:$0xf]
      %v1883 = vld [vmem:[#allocation2 + $0xa8] sm:$0xf]
      %v1884 = vld [vmem:[#allocation2 + $0xac] sm:$0xf]
      %v1885 = vld [vmem:[#allocation2 + $0xb0] sm:$0xf]
      %v1886 = vld [vmem:[#allocation2 + $0xb4] sm:$0xf]
      %v1887 = vld [vmem:[#allocation2 + $0xb8] sm:$0xf]
      %v1888 = vld [vmem:[#allocation2 + $0xbc] sm:$0xf]
      %v1889 = vld [vmem:[#allocation2 + $0xc8] sm:$0xf]
      %v1890 = vld [vmem:[#allocation2 + $0xcc] sm:$0xf]
      %v1891 = vld [vmem:[#allocation2 + $0xd0] sm:$0xf]
      %v1892 = vld [vmem:[#allocation2 + $0xd4] sm:$0xf]
      %v1893 = vld [vmem:[#allocation2 + $0xd8] sm:$0xf]
      %v1894 = vld [vmem:[#allocation2 + $0xdc] sm:$0xf]
      %v1895 = vld [vmem:[#allocation2 + $0xe0] sm:$0xf]
      %v1896 = vld [vmem:[#allocation2 + $0xe4] sm:$0xf]
      %v1897 = vld [vmem:[#allocation2 + $0xf0] sm:$0xf]
      %v1898 = vld [vmem:[#allocation2 + $0xf4] sm:$0xf]
      %v1899 = vld [vmem:[#allocation2 + $0xf8] sm:$0xf]
      %v1900 = vld [vmem:[#allocation2 + $0xfc] sm:$0xf]
      %v1901 = vld [vmem:[#allocation2 + $0x100] sm:$0xf]
      %v1902 = vld [vmem:[#allocation2 + $0x104] sm:$0xf]
      %v1903 = vld [vmem:[#allocation2 + $0x108] sm:$0xf]
      %v1904 = vld [vmem:[#allocation2 + $0x10c] sm:$0xf]
      %v1905 = vld [vmem:[#allocation2 + $0x118] sm:$0xf]
      %v1906 = vld [vmem:[#allocation2 + $0x11c] sm:$0xf]
      %v1907 = vld [vmem:[#allocation2 + $0x120] sm:$0xf]
      %v1908 = vld [vmem:[#allocation2 + $0x124] sm:$0xf]
      %v1909 = vld [vmem:[#allocation2 + $0x128] sm:$0xf]
      %v1910 = vld [vmem:[#allocation2 + $0x12c] sm:$0xf]
      %v1911 = vld [vmem:[#allocation2 + $0x130] sm:$0xf]
      %v1912 = vld [vmem:[#allocation2 + $0x134] sm:$0xf]
      %s1913 = scalar_lea.vmem [#allocation2], 4
      %v1914 = vld [vmem:[%s1913] sm:$0xf]
      %v1915 = vld [vmem:[%s1913 + $0x4] sm:$0xf]
      %v1916 = vld [vmem:[%s1913 + $0x8] sm:$0xf]
      %v1917 = vld [vmem:[%s1913 + $0xc] sm:$0xf]
      %v1918 = vld [vmem:[%s1913 + $0x10] sm:$0xf]
      %v1919 = vld [vmem:[%s1913 + $0x14] sm:$0xf]
      %v1920 = vld [vmem:[%s1913 + $0x18] sm:$0xf]
      %v1921 = vld [vmem:[%s1913 + $0x1c] sm:$0xf]
      %v1922 = vld [vmem:[%s1913 + $0x28] sm:$0xf]
      %v1923 = vld [vmem:[%s1913 + $0x2c] sm:$0xf]
      %v1924 = vld [vmem:[%s1913 + $0x30] sm:$0xf]
      %v1925 = vld [vmem:[%s1913 + $0x34] sm:$0xf]
      %v1926 = vld [vmem:[%s1913 + $0x38] sm:$0xf]
      %v1927 = vld [vmem:[%s1913 + $0x3c] sm:$0xf]
      %v1928 = vld [vmem:[%s1913 + $0x40] sm:$0xf]
      %v1929 = vld [vmem:[%s1913 + $0x44] sm:$0xf]
      %v1930 = vld [vmem:[%s1913 + $0x50] sm:$0xf]
      %v1931 = vld [vmem:[%s1913 + $0x54] sm:$0xf]
      %v1932 = vld [vmem:[%s1913 + $0x58] sm:$0xf]
      %v1933 = vld [vmem:[%s1913 + $0x5c] sm:$0xf]
      %v1934 = vld [vmem:[%s1913 + $0x60] sm:$0xf]
      %v1935 = vld [vmem:[%s1913 + $0x64] sm:$0xf]
      %v1936 = vld [vmem:[%s1913 + $0x68] sm:$0xf]
      %v1937 = vld [vmem:[%s1913 + $0x6c] sm:$0xf]
      %v1938 = vld [vmem:[%s1913 + $0x78] sm:$0xf]
      %v1939 = vld [vmem:[%s1913 + $0x7c] sm:$0xf]
      %v1940 = vld [vmem:[%s1913 + $0x80] sm:$0xf]
      %v1941 = vld [vmem:[%s1913 + $0x84] sm:$0xf]
      %v1942 = vld [vmem:[%s1913 + $0x88] sm:$0xf]
      %v1943 = vld [vmem:[%s1913 + $0x8c] sm:$0xf]
      %v1944 = vld [vmem:[%s1913 + $0x90] sm:$0xf]
      %v1945 = vld [vmem:[%s1913 + $0x94] sm:$0xf]
      %v1946 = vld [vmem:[%s1913 + $0xa0] sm:$0xf]
      %v1947 = vld [vmem:[%s1913 + $0xa4] sm:$0xf]
      %v1948 = vld [vmem:[%s1913 + $0xa8] sm:$0xf]
      %v1949 = vld [vmem:[%s1913 + $0xac] sm:$0xf]
      %v1950 = vld [vmem:[%s1913 + $0xb0] sm:$0xf]
      %v1951 = vld [vmem:[%s1913 + $0xb4] sm:$0xf]
      %v1952 = vld [vmem:[%s1913 + $0xb8] sm:$0xf]
      %v1953 = vld [vmem:[%s1913 + $0xbc] sm:$0xf]
      %v1954 = vld [vmem:[%s1913 + $0xc8] sm:$0xf]
      %v1955 = vld [vmem:[%s1913 + $0xcc] sm:$0xf]
      %v1956 = vld [vmem:[%s1913 + $0xd0] sm:$0xf]
      %v1957 = vld [vmem:[%s1913 + $0xd4] sm:$0xf]
      %v1958 = vld [vmem:[%s1913 + $0xd8] sm:$0xf]
      %v1959 = vld [vmem:[%s1913 + $0xdc] sm:$0xf]
      %v1960 = vld [vmem:[%s1913 + $0xe0] sm:$0xf]
      %v1961 = vld [vmem:[%s1913 + $0xe4] sm:$0xf]
      %v1962 = vld [vmem:[%s1913 + $0xf0] sm:$0xf]
      %v1963 = vld [vmem:[%s1913 + $0xf4] sm:$0xf]
      %v1964 = vld [vmem:[%s1913 + $0xf8] sm:$0xf]
      %v1965 = vld [vmem:[%s1913 + $0xfc] sm:$0xf]
      %v1966 = vld [vmem:[%s1913 + $0x100] sm:$0xf]
      %v1967 = vld [vmem:[%s1913 + $0x104] sm:$0xf]
      %v1968 = vld [vmem:[%s1913 + $0x108] sm:$0xf]
      %v1969 = vld [vmem:[%s1913 + $0x10c] sm:$0xf]
      %v1970 = vld [vmem:[%s1913 + $0x118] sm:$0xf]
      %v1971 = vld [vmem:[%s1913 + $0x11c] sm:$0xf]
      %v1972 = vld [vmem:[%s1913 + $0x120] sm:$0xf]
      %v1973 = vld [vmem:[%s1913 + $0x124] sm:$0xf]
      %v1974 = vld [vmem:[%s1913 + $0x128] sm:$0xf]
      %v1975 = vld [vmem:[%s1913 + $0x12c] sm:$0xf]
      %v1976 = vld [vmem:[%s1913 + $0x130] sm:$0xf]
      %v1977 = vld [vmem:[%s1913 + $0x134] sm:$0xf]
      %s1978 = scalar_lea.vmem [#allocation2], 8
      %v1979 = vld [vmem:[%s1978] sm:$0xf]
      %v1980 = vld [vmem:[%s1978 + $0x4] sm:$0xf]
      %v1981 = vld [vmem:[%s1978 + $0x8] sm:$0xf]
      %v1982 = vld [vmem:[%s1978 + $0xc] sm:$0xf]
      %v1983 = vld [vmem:[%s1978 + $0x10] sm:$0xf]
      %v1984 = vld [vmem:[%s1978 + $0x14] sm:$0xf]
      %v1985 = vld [vmem:[%s1978 + $0x18] sm:$0xf]
      %v1986 = vld [vmem:[%s1978 + $0x1c] sm:$0xf]
      %v1987 = vld [vmem:[%s1978 + $0x28] sm:$0xf]
      %v1988 = vld [vmem:[%s1978 + $0x2c] sm:$0xf]
      %v1989 = vld [vmem:[%s1978 + $0x30] sm:$0xf]
      %v1990 = vld [vmem:[%s1978 + $0x34] sm:$0xf]
      %v1991 = vld [vmem:[%s1978 + $0x38] sm:$0xf]
      %v1992 = vld [vmem:[%s1978 + $0x3c] sm:$0xf]
      %v1993 = vld [vmem:[%s1978 + $0x40] sm:$0xf]
      %v1994 = vld [vmem:[%s1978 + $0x44] sm:$0xf]
      %v1995 = vld [vmem:[%s1978 + $0x50] sm:$0xf]
      %v1996 = vld [vmem:[%s1978 + $0x54] sm:$0xf]
      %v1997 = vld [vmem:[%s1978 + $0x58] sm:$0xf]
      %v1998 = vld [vmem:[%s1978 + $0x5c] sm:$0xf]
      %v1999 = vld [vmem:[%s1978 + $0x60] sm:$0xf]
      %v2000 = vld [vmem:[%s1978 + $0x64] sm:$0xf]
      %v2001 = vld [vmem:[%s1978 + $0x68] sm:$0xf]
      %v2002 = vld [vmem:[%s1978 + $0x6c] sm:$0xf]
      %v2003 = vld [vmem:[%s1978 + $0x78] sm:$0xf]
      %v2004 = vld [vmem:[%s1978 + $0x7c] sm:$0xf]
      %v2005 = vld [vmem:[%s1978 + $0x80] sm:$0xf]
      %v2006 = vld [vmem:[%s1978 + $0x84] sm:$0xf]
      %v2007 = vld [vmem:[%s1978 + $0x88] sm:$0xf]
      %v2008 = vld [vmem:[%s1978 + $0x8c] sm:$0xf]
      %v2009 = vld [vmem:[%s1978 + $0x90] sm:$0xf]
      %v2010 = vld [vmem:[%s1978 + $0x94] sm:$0xf]
      %v2011 = vld [vmem:[%s1978 + $0xa0] sm:$0xf]
      %v2012 = vld [vmem:[%s1978 + $0xa4] sm:$0xf]
      %v2013 = vld [vmem:[%s1978 + $0xa8] sm:$0xf]
      %v2014 = vld [vmem:[%s1978 + $0xac] sm:$0xf]
      %v2015 = vld [vmem:[%s1978 + $0xb0] sm:$0xf]
      %v2016 = vld [vmem:[%s1978 + $0xb4] sm:$0xf]
      %v2017 = vld [vmem:[%s1978 + $0xb8] sm:$0xf]
      %v2018 = vld [vmem:[%s1978 + $0xbc] sm:$0xf]
      %v2019 = vld [vmem:[%s1978 + $0xc8] sm:$0xf]
      %v2020 = vld [vmem:[%s1978 + $0xcc] sm:$0xf]
      %v2021 = vld [vmem:[%s1978 + $0xd0] sm:$0xf]
      %v2022 = vld [vmem:[%s1978 + $0xd4] sm:$0xf]
      %v2023 = vld [vmem:[%s1978 + $0xd8] sm:$0xf]
      %v2024 = vld [vmem:[%s1978 + $0xdc] sm:$0xf]
      %v2025 = vld [vmem:[%s1978 + $0xe0] sm:$0xf]
      %v2026 = vld [vmem:[%s1978 + $0xe4] sm:$0xf]
      %v2027 = vld [vmem:[%s1978 + $0xf0] sm:$0xf]
      %v2028 = vld [vmem:[%s1978 + $0xf4] sm:$0xf]
      %v2029 = vld [vmem:[%s1978 + $0xf8] sm:$0xf]
      %v2030 = vld [vmem:[%s1978 + $0xfc] sm:$0xf]
      %v2031 = vld [vmem:[%s1978 + $0x100] sm:$0xf]
      %v2032 = vld [vmem:[%s1978 + $0x104] sm:$0xf]
      %v2033 = vld [vmem:[%s1978 + $0x108] sm:$0xf]
      %v2034 = vld [vmem:[%s1978 + $0x10c] sm:$0xf]
      %v2035 = vld [vmem:[%s1978 + $0x118] sm:$0xf]
      %v2036 = vld [vmem:[%s1978 + $0x11c] sm:$0xf]
      %v2037 = vld [vmem:[%s1978 + $0x120] sm:$0xf]
      %v2038 = vld [vmem:[%s1978 + $0x124] sm:$0xf]
      %v2039 = vld [vmem:[%s1978 + $0x128] sm:$0xf]
      %v2040 = vld [vmem:[%s1978 + $0x12c] sm:$0xf]
      %v2041 = vld [vmem:[%s1978 + $0x130] sm:$0xf]
      %v2042 = vld [vmem:[%s1978 + $0x134] sm:$0xf]
      %s2043 = scalar_lea.vmem [#allocation2], 40
      %v2044 = vld [vmem:[%s2043] sm:$0xf]
      %v2045 = vld [vmem:[%s2043 + $0x4] sm:$0xf]
      %v2046 = vld [vmem:[%s2043 + $0x8] sm:$0xf]
      %v2047 = vld [vmem:[%s2043 + $0xc] sm:$0xf]
      %v2048 = vld [vmem:[%s2043 + $0x10] sm:$0xf]
      %v2049 = vld [vmem:[%s2043 + $0x14] sm:$0xf]
      %v2050 = vld [vmem:[%s2043 + $0x18] sm:$0xf]
      %v2051 = vld [vmem:[%s2043 + $0x1c] sm:$0xf]
      %v2052 = vld [vmem:[%s2043 + $0x28] sm:$0xf]
      %v2053 = vld [vmem:[%s2043 + $0x2c] sm:$0xf]
      %v2054 = vld [vmem:[%s2043 + $0x30] sm:$0xf]
      %v2055 = vld [vmem:[%s2043 + $0x34] sm:$0xf]
      %v2056 = vld [vmem:[%s2043 + $0x38] sm:$0xf]
      %v2057 = vld [vmem:[%s2043 + $0x3c] sm:$0xf]
      %v2058 = vld [vmem:[%s2043 + $0x40] sm:$0xf]
      %v2059 = vld [vmem:[%s2043 + $0x44] sm:$0xf]
      %v2060 = vld [vmem:[%s2043 + $0x50] sm:$0xf]
      %v2061 = vld [vmem:[%s2043 + $0x54] sm:$0xf]
      %v2062 = vld [vmem:[%s2043 + $0x58] sm:$0xf]
      %v2063 = vld [vmem:[%s2043 + $0x5c] sm:$0xf]
      %v2064 = vld [vmem:[%s2043 + $0x60] sm:$0xf]
      %v2065 = vld [vmem:[%s2043 + $0x64] sm:$0xf]
      %v2066 = vld [vmem:[%s2043 + $0x68] sm:$0xf]
      %v2067 = vld [vmem:[%s2043 + $0x6c] sm:$0xf]
      %v2068 = vld [vmem:[%s2043 + $0x78] sm:$0xf]
      %v2069 = vld [vmem:[%s2043 + $0x7c] sm:$0xf]
      %v2070 = vld [vmem:[%s2043 + $0x80] sm:$0xf]
      %v2071 = vld [vmem:[%s2043 + $0x84] sm:$0xf]
      %v2072 = vld [vmem:[%s2043 + $0x88] sm:$0xf]
      %v2073 = vld [vmem:[%s2043 + $0x8c] sm:$0xf]
      %v2074 = vld [vmem:[%s2043 + $0x90] sm:$0xf]
      %v2075 = vld [vmem:[%s2043 + $0x94] sm:$0xf]
      %v2076 = vld [vmem:[%s2043 + $0xa0] sm:$0xf]
      %v2077 = vld [vmem:[%s2043 + $0xa4] sm:$0xf]
      %v2078 = vld [vmem:[%s2043 + $0xa8] sm:$0xf]
      %v2079 = vld [vmem:[%s2043 + $0xac] sm:$0xf]
      %v2080 = vld [vmem:[%s2043 + $0xb0] sm:$0xf]
      %v2081 = vld [vmem:[%s2043 + $0xb4] sm:$0xf]
      %v2082 = vld [vmem:[%s2043 + $0xb8] sm:$0xf]
      %v2083 = vld [vmem:[%s2043 + $0xbc] sm:$0xf]
      %v2084 = vld [vmem:[%s2043 + $0xc8] sm:$0xf]
      %v2085 = vld [vmem:[%s2043 + $0xcc] sm:$0xf]
      %v2086 = vld [vmem:[%s2043 + $0xd0] sm:$0xf]
      %v2087 = vld [vmem:[%s2043 + $0xd4] sm:$0xf]
      %v2088 = vld [vmem:[%s2043 + $0xd8] sm:$0xf]
      %v2089 = vld [vmem:[%s2043 + $0xdc] sm:$0xf]
      %v2090 = vld [vmem:[%s2043 + $0xe0] sm:$0xf]
      %v2091 = vld [vmem:[%s2043 + $0xe4] sm:$0xf]
      %v2092 = vld [vmem:[%s2043 + $0xf0] sm:$0xf]
      %v2093 = vld [vmem:[%s2043 + $0xf4] sm:$0xf]
      %v2094 = vld [vmem:[%s2043 + $0xf8] sm:$0xf]
      %v2095 = vld [vmem:[%s2043 + $0xfc] sm:$0xf]
      %v2096 = vld [vmem:[%s2043 + $0x100] sm:$0xf]
      %v2097 = vld [vmem:[%s2043 + $0x104] sm:$0xf]
      %v2098 = vld [vmem:[%s2043 + $0x108] sm:$0xf]
      %v2099 = vld [vmem:[%s2043 + $0x10c] sm:$0xf]
      %v2100 = vld [vmem:[%s2043 + $0x118] sm:$0xf]
      %v2101 = vld [vmem:[%s2043 + $0x11c] sm:$0xf]
      %v2102 = vld [vmem:[%s2043 + $0x120] sm:$0xf]
      %v2103 = vld [vmem:[%s2043 + $0x124] sm:$0xf]
      %v2104 = vld [vmem:[%s2043 + $0x128] sm:$0xf]
      %v2105 = vld [vmem:[%s2043 + $0x12c] sm:$0xf]
      %v2106 = vld [vmem:[%s2043 + $0x130] sm:$0xf]
      %v2107 = vld [vmem:[%s2043 + $0x134] sm:$0xf]
      %v2108 = vld [vmem:[%s1162] sm:$0xf]
      %v2109 = vld [vmem:[%s1162 + $0x4] sm:$0xf]
      %v2110 = vld [vmem:[%s1162 + $0x8] sm:$0xf]
      %v2111 = vld [vmem:[%s1162 + $0xc] sm:$0xf]
      %v2112 = vld [vmem:[%s1162 + $0x10] sm:$0xf]
      %v2113 = vld [vmem:[%s1162 + $0x14] sm:$0xf]
      %v2114 = vld [vmem:[%s1162 + $0x18] sm:$0xf]
      %v2115 = vld [vmem:[%s1162 + $0x1c] sm:$0xf]
      %v2116 = vld [vmem:[%s1162 + $0x28] sm:$0xf]
      %v2117 = vld [vmem:[%s1162 + $0x2c] sm:$0xf]
      %v2118 = vld [vmem:[%s1162 + $0x30] sm:$0xf]
      %v2119 = vld [vmem:[%s1162 + $0x34] sm:$0xf]
      %v2120 = vld [vmem:[%s1162 + $0x38] sm:$0xf]
      %v2121 = vld [vmem:[%s1162 + $0x3c] sm:$0xf]
      %v2122 = vld [vmem:[%s1162 + $0x40] sm:$0xf]
      %v2123 = vld [vmem:[%s1162 + $0x44] sm:$0xf]
      %v2124 = vld [vmem:[%s1162 + $0x50] sm:$0xf]
      %v2125 = vld [vmem:[%s1162 + $0x54] sm:$0xf]
      %v2126 = vld [vmem:[%s1162 + $0x58] sm:$0xf]
      %v2127 = vld [vmem:[%s1162 + $0x5c] sm:$0xf]
      %v2128 = vld [vmem:[%s1162 + $0x60] sm:$0xf]
      %v2129 = vld [vmem:[%s1162 + $0x64] sm:$0xf]
      %v2130 = vld [vmem:[%s1162 + $0x68] sm:$0xf]
      %v2131 = vld [vmem:[%s1162 + $0x6c] sm:$0xf]
      %v2132 = vld [vmem:[%s1162 + $0x78] sm:$0xf]
      %v2133 = vld [vmem:[%s1162 + $0x7c] sm:$0xf]
      %v2134 = vld [vmem:[%s1162 + $0x80] sm:$0xf]
      %v2135 = vld [vmem:[%s1162 + $0x84] sm:$0xf]
      %v2136 = vld [vmem:[%s1162 + $0x88] sm:$0xf]
      %v2137 = vld [vmem:[%s1162 + $0x8c] sm:$0xf]
      %v2138 = vld [vmem:[%s1162 + $0x90] sm:$0xf]
      %v2139 = vld [vmem:[%s1162 + $0x94] sm:$0xf]
      %v2140 = vld [vmem:[%s1162 + $0xa0] sm:$0xf]
      %v2141 = vld [vmem:[%s1162 + $0xa4] sm:$0xf]
      %v2142 = vld [vmem:[%s1162 + $0xa8] sm:$0xf]
      %v2143 = vld [vmem:[%s1162 + $0xac] sm:$0xf]
      %v2144 = vld [vmem:[%s1162 + $0xb0] sm:$0xf]
      %v2145 = vld [vmem:[%s1162 + $0xb4] sm:$0xf]
      %v2146 = vld [vmem:[%s1162 + $0xb8] sm:$0xf]
      %v2147 = vld [vmem:[%s1162 + $0xbc] sm:$0xf]
      %v2148 = vld [vmem:[%s1162 + $0xc8] sm:$0xf]
      %v2149 = vld [vmem:[%s1162 + $0xcc] sm:$0xf]
      %v2150 = vld [vmem:[%s1162 + $0xd0] sm:$0xf]
      %v2151 = vld [vmem:[%s1162 + $0xd4] sm:$0xf]
      %v2152 = vld [vmem:[%s1162 + $0xd8] sm:$0xf]
      %v2153 = vld [vmem:[%s1162 + $0xdc] sm:$0xf]
      %v2154 = vld [vmem:[%s1162 + $0xe0] sm:$0xf]
      %v2155 = vld [vmem:[%s1162 + $0xe4] sm:$0xf]
      %v2156 = vld [vmem:[%s1162 + $0xf0] sm:$0xf]
      %v2157 = vld [vmem:[%s1162 + $0xf4] sm:$0xf]
      %v2158 = vld [vmem:[%s1162 + $0xf8] sm:$0xf]
      %v2159 = vld [vmem:[%s1162 + $0xfc] sm:$0xf]
      %v2160 = vld [vmem:[%s1162 + $0x100] sm:$0xf]
      %v2161 = vld [vmem:[%s1162 + $0x104] sm:$0xf]
      %v2162 = vld [vmem:[%s1162 + $0x108] sm:$0xf]
      %v2163 = vld [vmem:[%s1162 + $0x10c] sm:$0xf]
      %v2164 = vld [vmem:[%s1162 + $0x118] sm:$0xf]
      %v2165 = vld [vmem:[%s1162 + $0x11c] sm:$0xf]
      %v2166 = vld [vmem:[%s1162 + $0x120] sm:$0xf]
      %v2167 = vld [vmem:[%s1162 + $0x124] sm:$0xf]
      %v2168 = vld [vmem:[%s1162 + $0x128] sm:$0xf]
      %v2169 = vld [vmem:[%s1162 + $0x12c] sm:$0xf]
      %v2170 = vld [vmem:[%s1162 + $0x130] sm:$0xf]
      %v2171 = vld [vmem:[%s1162 + $0x134] sm:$0xf]
      %s2172 = scalar_lea.vmem [#allocation2], 48
      %v2173 = vld [vmem:[%s2172] sm:$0xf]
      %v2174 = vld [vmem:[%s2172 + $0x4] sm:$0xf]
      %v2175 = vld [vmem:[%s2172 + $0x8] sm:$0xf]
      %v2176 = vld [vmem:[%s2172 + $0xc] sm:$0xf]
      %v2177 = vld [vmem:[%s2172 + $0x10] sm:$0xf]
      %v2178 = vld [vmem:[%s2172 + $0x14] sm:$0xf]
      %v2179 = vld [vmem:[%s2172 + $0x18] sm:$0xf]
      %v2180 = vld [vmem:[%s2172 + $0x1c] sm:$0xf]
      %v2181 = vld [vmem:[%s2172 + $0x28] sm:$0xf]
      %v2182 = vld [vmem:[%s2172 + $0x2c] sm:$0xf]
      %v2183 = vld [vmem:[%s2172 + $0x30] sm:$0xf]
      %v2184 = vld [vmem:[%s2172 + $0x34] sm:$0xf]
      %v2185 = vld [vmem:[%s2172 + $0x38] sm:$0xf]
      %v2186 = vld [vmem:[%s2172 + $0x3c] sm:$0xf]
      %v2187 = vld [vmem:[%s2172 + $0x40] sm:$0xf]
      %v2188 = vld [vmem:[%s2172 + $0x44] sm:$0xf]
      %v2189 = vld [vmem:[%s2172 + $0x50] sm:$0xf]
      %v2190 = vld [vmem:[%s2172 + $0x54] sm:$0xf]
      %v2191 = vld [vmem:[%s2172 + $0x58] sm:$0xf]
      %v2192 = vld [vmem:[%s2172 + $0x5c] sm:$0xf]
      %v2193 = vld [vmem:[%s2172 + $0x60] sm:$0xf]
      %v2194 = vld [vmem:[%s2172 + $0x64] sm:$0xf]
      %v2195 = vld [vmem:[%s2172 + $0x68] sm:$0xf]
      %v2196 = vld [vmem:[%s2172 + $0x6c] sm:$0xf]
      %v2197 = vld [vmem:[%s2172 + $0x78] sm:$0xf]
      %v2198 = vld [vmem:[%s2172 + $0x7c] sm:$0xf]
      %v2199 = vld [vmem:[%s2172 + $0x80] sm:$0xf]
      %v2200 = vld [vmem:[%s2172 + $0x84] sm:$0xf]
      %v2201 = vld [vmem:[%s2172 + $0x88] sm:$0xf]
      %v2202 = vld [vmem:[%s2172 + $0x8c] sm:$0xf]
      %v2203 = vld [vmem:[%s2172 + $0x90] sm:$0xf]
      %v2204 = vld [vmem:[%s2172 + $0x94] sm:$0xf]
      %v2205 = vld [vmem:[%s2172 + $0xa0] sm:$0xf]
      %v2206 = vld [vmem:[%s2172 + $0xa4] sm:$0xf]
      %v2207 = vld [vmem:[%s2172 + $0xa8] sm:$0xf]
      %v2208 = vld [vmem:[%s2172 + $0xac] sm:$0xf]
      %v2209 = vld [vmem:[%s2172 + $0xb0] sm:$0xf]
      %v2210 = vld [vmem:[%s2172 + $0xb4] sm:$0xf]
      %v2211 = vld [vmem:[%s2172 + $0xb8] sm:$0xf]
      %v2212 = vld [vmem:[%s2172 + $0xbc] sm:$0xf]
      %v2213 = vld [vmem:[%s2172 + $0xc8] sm:$0xf]
      %v2214 = vld [vmem:[%s2172 + $0xcc] sm:$0xf]
      %v2215 = vld [vmem:[%s2172 + $0xd0] sm:$0xf]
      %v2216 = vld [vmem:[%s2172 + $0xd4] sm:$0xf]
      %v2217 = vld [vmem:[%s2172 + $0xd8] sm:$0xf]
      %v2218 = vld [vmem:[%s2172 + $0xdc] sm:$0xf]
      %v2219 = vld [vmem:[%s2172 + $0xe0] sm:$0xf]
      %v2220 = vld [vmem:[%s2172 + $0xe4] sm:$0xf]
      %v2221 = vld [vmem:[%s2172 + $0xf0] sm:$0xf]
      %v2222 = vld [vmem:[%s2172 + $0xf4] sm:$0xf]
      %v2223 = vld [vmem:[%s2172 + $0xf8] sm:$0xf]
      %v2224 = vld [vmem:[%s2172 + $0xfc] sm:$0xf]
      %v2225 = vld [vmem:[%s2172 + $0x100] sm:$0xf]
      %v2226 = vld [vmem:[%s2172 + $0x104] sm:$0xf]
      %v2227 = vld [vmem:[%s2172 + $0x108] sm:$0xf]
      %v2228 = vld [vmem:[%s2172 + $0x10c] sm:$0xf]
      %v2229 = vld [vmem:[%s2172 + $0x118] sm:$0xf]
      %v2230 = vld [vmem:[%s2172 + $0x11c] sm:$0xf]
      %v2231 = vld [vmem:[%s2172 + $0x120] sm:$0xf]
      %v2232 = vld [vmem:[%s2172 + $0x124] sm:$0xf]
      %v2233 = vld [vmem:[%s2172 + $0x128] sm:$0xf]
      %v2234 = vld [vmem:[%s2172 + $0x12c] sm:$0xf]
      %v2235 = vld [vmem:[%s2172 + $0x130] sm:$0xf]
      %v2236 = vld [vmem:[%s2172 + $0x134] sm:$0xf]
      %s2237 = scalar_lea.vmem [#allocation2], 80
      %v2238 = vld [vmem:[%s2237] sm:$0xf]
      %v2239 = vld [vmem:[%s2237 + $0x4] sm:$0xf]
      %v2240 = vld [vmem:[%s2237 + $0x8] sm:$0xf]
      %v2241 = vld [vmem:[%s2237 + $0xc] sm:$0xf]
      %v2242 = vld [vmem:[%s2237 + $0x10] sm:$0xf]
      %v2243 = vld [vmem:[%s2237 + $0x14] sm:$0xf]
      %v2244 = vld [vmem:[%s2237 + $0x18] sm:$0xf]
      %v2245 = vld [vmem:[%s2237 + $0x1c] sm:$0xf]
      %v2246 = vld [vmem:[%s2237 + $0x28] sm:$0xf]
      %v2247 = vld [vmem:[%s2237 + $0x2c] sm:$0xf]
      %v2248 = vld [vmem:[%s2237 + $0x30] sm:$0xf]
      %v2249 = vld [vmem:[%s2237 + $0x34] sm:$0xf]
      %v2250 = vld [vmem:[%s2237 + $0x38] sm:$0xf]
      %v2251 = vld [vmem:[%s2237 + $0x3c] sm:$0xf]
      %v2252 = vld [vmem:[%s2237 + $0x40] sm:$0xf]
      %v2253 = vld [vmem:[%s2237 + $0x44] sm:$0xf]
      %v2254 = vld [vmem:[%s2237 + $0x50] sm:$0xf]
      %v2255 = vld [vmem:[%s2237 + $0x54] sm:$0xf]
      %v2256 = vld [vmem:[%s2237 + $0x58] sm:$0xf]
      %v2257 = vld [vmem:[%s2237 + $0x5c] sm:$0xf]
      %v2258 = vld [vmem:[%s2237 + $0x60] sm:$0xf]
      %v2259 = vld [vmem:[%s2237 + $0x64] sm:$0xf]
      %v2260 = vld [vmem:[%s2237 + $0x68] sm:$0xf]
      %v2261 = vld [vmem:[%s2237 + $0x6c] sm:$0xf]
      %v2262 = vld [vmem:[%s2237 + $0x78] sm:$0xf]
      %v2263 = vld [vmem:[%s2237 + $0x7c] sm:$0xf]
      %v2264 = vld [vmem:[%s2237 + $0x80] sm:$0xf]
      %v2265 = vld [vmem:[%s2237 + $0x84] sm:$0xf]
      %v2266 = vld [vmem:[%s2237 + $0x88] sm:$0xf]
      %v2267 = vld [vmem:[%s2237 + $0x8c] sm:$0xf]
      %v2268 = vld [vmem:[%s2237 + $0x90] sm:$0xf]
      %v2269 = vld [vmem:[%s2237 + $0x94] sm:$0xf]
      %v2270 = vld [vmem:[%s2237 + $0xa0] sm:$0xf]
      %v2271 = vld [vmem:[%s2237 + $0xa4] sm:$0xf]
      %v2272 = vld [vmem:[%s2237 + $0xa8] sm:$0xf]
      %v2273 = vld [vmem:[%s2237 + $0xac] sm:$0xf]
      %v2274 = vld [vmem:[%s2237 + $0xb0] sm:$0xf]
      %v2275 = vld [vmem:[%s2237 + $0xb4] sm:$0xf]
      %v2276 = vld [vmem:[%s2237 + $0xb8] sm:$0xf]
      %v2277 = vld [vmem:[%s2237 + $0xbc] sm:$0xf]
      %v2278 = vld [vmem:[%s2237 + $0xc8] sm:$0xf]
      %v2279 = vld [vmem:[%s2237 + $0xcc] sm:$0xf]
      %v2280 = vld [vmem:[%s2237 + $0xd0] sm:$0xf]
      %v2281 = vld [vmem:[%s2237 + $0xd4] sm:$0xf]
      %v2282 = vld [vmem:[%s2237 + $0xd8] sm:$0xf]
      %v2283 = vld [vmem:[%s2237 + $0xdc] sm:$0xf]
      %v2284 = vld [vmem:[%s2237 + $0xe0] sm:$0xf]
      %v2285 = vld [vmem:[%s2237 + $0xe4] sm:$0xf]
      %v2286 = vld [vmem:[%s2237 + $0xf0] sm:$0xf]
      %v2287 = vld [vmem:[%s2237 + $0xf4] sm:$0xf]
      %v2288 = vld [vmem:[%s2237 + $0xf8] sm:$0xf]
      %v2289 = vld [vmem:[%s2237 + $0xfc] sm:$0xf]
      %v2290 = vld [vmem:[%s2237 + $0x100] sm:$0xf]
      %v2291 = vld [vmem:[%s2237 + $0x104] sm:$0xf]
      %v2292 = vld [vmem:[%s2237 + $0x108] sm:$0xf]
      %v2293 = vld [vmem:[%s2237 + $0x10c] sm:$0xf]
      %v2294 = vld [vmem:[%s2237 + $0x118] sm:$0xf]
      %v2295 = vld [vmem:[%s2237 + $0x11c] sm:$0xf]
      %v2296 = vld [vmem:[%s2237 + $0x120] sm:$0xf]
      %v2297 = vld [vmem:[%s2237 + $0x124] sm:$0xf]
      %v2298 = vld [vmem:[%s2237 + $0x128] sm:$0xf]
      %v2299 = vld [vmem:[%s2237 + $0x12c] sm:$0xf]
      %v2300 = vld [vmem:[%s2237 + $0x130] sm:$0xf]
      %v2301 = vld [vmem:[%s2237 + $0x134] sm:$0xf]
      %s2302 = scalar_lea.vmem [#allocation2], 84
      %v2303 = vld [vmem:[%s2302] sm:$0xf]
      %v2304 = vld [vmem:[%s2302 + $0x4] sm:$0xf]
      %v2305 = vld [vmem:[%s2302 + $0x8] sm:$0xf]
      %v2306 = vld [vmem:[%s2302 + $0xc] sm:$0xf]
      %v2307 = vld [vmem:[%s2302 + $0x10] sm:$0xf]
      %v2308 = vld [vmem:[%s2302 + $0x14] sm:$0xf]
      %v2309 = vld [vmem:[%s2302 + $0x18] sm:$0xf]
      %v2310 = vld [vmem:[%s2302 + $0x1c] sm:$0xf]
      %v2311 = vld [vmem:[%s2302 + $0x28] sm:$0xf]
      %v2312 = vld [vmem:[%s2302 + $0x2c] sm:$0xf]
      %v2313 = vld [vmem:[%s2302 + $0x30] sm:$0xf]
      %v2314 = vld [vmem:[%s2302 + $0x34] sm:$0xf]
      %v2315 = vld [vmem:[%s2302 + $0x38] sm:$0xf]
      %v2316 = vld [vmem:[%s2302 + $0x3c] sm:$0xf]
      %v2317 = vld [vmem:[%s2302 + $0x40] sm:$0xf]
      %v2318 = vld [vmem:[%s2302 + $0x44] sm:$0xf]
      %v2319 = vld [vmem:[%s2302 + $0x50] sm:$0xf]
      %v2320 = vld [vmem:[%s2302 + $0x54] sm:$0xf]
      %v2321 = vld [vmem:[%s2302 + $0x58] sm:$0xf]
      %v2322 = vld [vmem:[%s2302 + $0x5c] sm:$0xf]
      %v2323 = vld [vmem:[%s2302 + $0x60] sm:$0xf]
      %v2324 = vld [vmem:[%s2302 + $0x64] sm:$0xf]
      %v2325 = vld [vmem:[%s2302 + $0x68] sm:$0xf]
      %v2326 = vld [vmem:[%s2302 + $0x6c] sm:$0xf]
      %v2327 = vld [vmem:[%s2302 + $0x78] sm:$0xf]
      %v2328 = vld [vmem:[%s2302 + $0x7c] sm:$0xf]
      %v2329 = vld [vmem:[%s2302 + $0x80] sm:$0xf]
      %v2330 = vld [vmem:[%s2302 + $0x84] sm:$0xf]
      %v2331 = vld [vmem:[%s2302 + $0x88] sm:$0xf]
      %v2332 = vld [vmem:[%s2302 + $0x8c] sm:$0xf]
      %v2333 = vld [vmem:[%s2302 + $0x90] sm:$0xf]
      %v2334 = vld [vmem:[%s2302 + $0x94] sm:$0xf]
      %v2335 = vld [vmem:[%s2302 + $0xa0] sm:$0xf]
      %v2336 = vld [vmem:[%s2302 + $0xa4] sm:$0xf]
      %v2337 = vld [vmem:[%s2302 + $0xa8] sm:$0xf]
      %v2338 = vld [vmem:[%s2302 + $0xac] sm:$0xf]
      %v2339 = vld [vmem:[%s2302 + $0xb0] sm:$0xf]
      %v2340 = vld [vmem:[%s2302 + $0xb4] sm:$0xf]
      %v2341 = vld [vmem:[%s2302 + $0xb8] sm:$0xf]
      %v2342 = vld [vmem:[%s2302 + $0xbc] sm:$0xf]
      %v2343 = vld [vmem:[%s2302 + $0xc8] sm:$0xf]
      %v2344 = vld [vmem:[%s2302 + $0xcc] sm:$0xf]
      %v2345 = vld [vmem:[%s2302 + $0xd0] sm:$0xf]
      %v2346 = vld [vmem:[%s2302 + $0xd4] sm:$0xf]
      %v2347 = vld [vmem:[%s2302 + $0xd8] sm:$0xf]
      %v2348 = vld [vmem:[%s2302 + $0xdc] sm:$0xf]
      %v2349 = vld [vmem:[%s2302 + $0xe0] sm:$0xf]
      %v2350 = vld [vmem:[%s2302 + $0xe4] sm:$0xf]
      %v2351 = vld [vmem:[%s2302 + $0xf0] sm:$0xf]
      %v2352 = vld [vmem:[%s2302 + $0xf4] sm:$0xf]
      %v2353 = vld [vmem:[%s2302 + $0xf8] sm:$0xf]
      %v2354 = vld [vmem:[%s2302 + $0xfc] sm:$0xf]
      %v2355 = vld [vmem:[%s2302 + $0x100] sm:$0xf]
      %v2356 = vld [vmem:[%s2302 + $0x104] sm:$0xf]
      %v2357 = vld [vmem:[%s2302 + $0x108] sm:$0xf]
      %v2358 = vld [vmem:[%s2302 + $0x10c] sm:$0xf]
      %v2359 = vld [vmem:[%s2302 + $0x118] sm:$0xf]
      %v2360 = vld [vmem:[%s2302 + $0x11c] sm:$0xf]
      %v2361 = vld [vmem:[%s2302 + $0x120] sm:$0xf]
      %v2362 = vld [vmem:[%s2302 + $0x124] sm:$0xf]
      %v2363 = vld [vmem:[%s2302 + $0x128] sm:$0xf]
      %v2364 = vld [vmem:[%s2302 + $0x12c] sm:$0xf]
      %v2365 = vld [vmem:[%s2302 + $0x130] sm:$0xf]
      %v2366 = vld [vmem:[%s2302 + $0x134] sm:$0xf]
      %s2367 = scalar_lea.vmem [#allocation2], 88
      %v2368 = vld [vmem:[%s2367] sm:$0xf]
      %v2369 = vld [vmem:[%s2367 + $0x4] sm:$0xf]
      %v2370 = vld [vmem:[%s2367 + $0x8] sm:$0xf]
      %v2371 = vld [vmem:[%s2367 + $0xc] sm:$0xf]
      %v2372 = vld [vmem:[%s2367 + $0x10] sm:$0xf]
      %v2373 = vld [vmem:[%s2367 + $0x14] sm:$0xf]
      %v2374 = vld [vmem:[%s2367 + $0x18] sm:$0xf]
      %v2375 = vld [vmem:[%s2367 + $0x1c] sm:$0xf]
      %v2376 = vld [vmem:[%s2367 + $0x28] sm:$0xf]
      %v2377 = vld [vmem:[%s2367 + $0x2c] sm:$0xf]
      %v2378 = vld [vmem:[%s2367 + $0x30] sm:$0xf]
      %v2379 = vld [vmem:[%s2367 + $0x34] sm:$0xf]
      %v2380 = vld [vmem:[%s2367 + $0x38] sm:$0xf]
      %v2381 = vld [vmem:[%s2367 + $0x3c] sm:$0xf]
      %v2382 = vld [vmem:[%s2367 + $0x40] sm:$0xf]
      %v2383 = vld [vmem:[%s2367 + $0x44] sm:$0xf]
      %v2384 = vld [vmem:[%s2367 + $0x50] sm:$0xf]
      %v2385 = vld [vmem:[%s2367 + $0x54] sm:$0xf]
      %v2386 = vld [vmem:[%s2367 + $0x58] sm:$0xf]
      %v2387 = vld [vmem:[%s2367 + $0x5c] sm:$0xf]
      %v2388 = vld [vmem:[%s2367 + $0x60] sm:$0xf]
      %v2389 = vld [vmem:[%s2367 + $0x64] sm:$0xf]
      %v2390 = vld [vmem:[%s2367 + $0x68] sm:$0xf]
      %v2391 = vld [vmem:[%s2367 + $0x6c] sm:$0xf]
      %v2392 = vld [vmem:[%s2367 + $0x78] sm:$0xf]
      %v2393 = vld [vmem:[%s2367 + $0x7c] sm:$0xf]
      %v2394 = vld [vmem:[%s2367 + $0x80] sm:$0xf]
      %v2395 = vld [vmem:[%s2367 + $0x84] sm:$0xf]
      %v2396 = vld [vmem:[%s2367 + $0x88] sm:$0xf]
      %v2397 = vld [vmem:[%s2367 + $0x8c] sm:$0xf]
      %v2398 = vld [vmem:[%s2367 + $0x90] sm:$0xf]
      %v2399 = vld [vmem:[%s2367 + $0x94] sm:$0xf]
      %v2400 = vld [vmem:[%s2367 + $0xa0] sm:$0xf]
      %v2401 = vld [vmem:[%s2367 + $0xa4] sm:$0xf]
      %v2402 = vld [vmem:[%s2367 + $0xa8] sm:$0xf]
      %v2403 = vld [vmem:[%s2367 + $0xac] sm:$0xf]
      %v2404 = vld [vmem:[%s2367 + $0xb0] sm:$0xf]
      %v2405 = vld [vmem:[%s2367 + $0xb4] sm:$0xf]
      %v2406 = vld [vmem:[%s2367 + $0xb8] sm:$0xf]
      %v2407 = vld [vmem:[%s2367 + $0xbc] sm:$0xf]
      %v2408 = vld [vmem:[%s2367 + $0xc8] sm:$0xf]
      %v2409 = vld [vmem:[%s2367 + $0xcc] sm:$0xf]
      %v2410 = vld [vmem:[%s2367 + $0xd0] sm:$0xf]
      %v2411 = vld [vmem:[%s2367 + $0xd4] sm:$0xf]
      %v2412 = vld [vmem:[%s2367 + $0xd8] sm:$0xf]
      %v2413 = vld [vmem:[%s2367 + $0xdc] sm:$0xf]
      %v2414 = vld [vmem:[%s2367 + $0xe0] sm:$0xf]
      %v2415 = vld [vmem:[%s2367 + $0xe4] sm:$0xf]
      %v2416 = vld [vmem:[%s2367 + $0xf0] sm:$0xf]
      %v2417 = vld [vmem:[%s2367 + $0xf4] sm:$0xf]
      %v2418 = vld [vmem:[%s2367 + $0xf8] sm:$0xf]
      %v2419 = vld [vmem:[%s2367 + $0xfc] sm:$0xf]
      %v2420 = vld [vmem:[%s2367 + $0x100] sm:$0xf]
      %v2421 = vld [vmem:[%s2367 + $0x104] sm:$0xf]
      %v2422 = vld [vmem:[%s2367 + $0x108] sm:$0xf]
      %v2423 = vld [vmem:[%s2367 + $0x10c] sm:$0xf]
      %v2424 = vld [vmem:[%s2367 + $0x118] sm:$0xf]
      %v2425 = vld [vmem:[%s2367 + $0x11c] sm:$0xf]
      %v2426 = vld [vmem:[%s2367 + $0x120] sm:$0xf]
      %v2427 = vld [vmem:[%s2367 + $0x124] sm:$0xf]
      %v2428 = vld [vmem:[%s2367 + $0x128] sm:$0xf]
      %v2429 = vld [vmem:[%s2367 + $0x12c] sm:$0xf]
      %v2430 = vld [vmem:[%s2367 + $0x130] sm:$0xf]
      %v2431 = vld [vmem:[%s2367 + $0x134] sm:$0xf]
      %v3008 = vunpack.c.l.b16 %v1849
      %v3009 = vunpack.c.l.b16 %v1914
      %v3010 = vunpack.c.l.b16 %v1979
      %v3011 = vunpack.c.l.b16 %v2044
      %v3012 = vunpack.c.l.b16 %v2108
      %v3013 = vunpack.c.l.b16 %v2173
      %v3014 = vunpack.c.l.b16 %v2238
      %v3015 = vunpack.c.l.b16 %v2303
      %v3016 = vunpack.c.l.b16 %v2368
      %v3017 = vunpack.c.l.b16 %v1850
      %v3018 = vunpack.c.l.b16 %v1915
      %v3019 = vunpack.c.l.b16 %v1980
      %v3020 = vunpack.c.l.b16 %v2045
      %v3021 = vunpack.c.l.b16 %v2109
      %v3022 = vunpack.c.l.b16 %v2174
      %v3023 = vunpack.c.l.b16 %v2239
      %v3024 = vunpack.c.l.b16 %v2304
      %v3025 = vunpack.c.l.b16 %v2369
      %v3026 = vunpack.c.l.b16 %v1851
      %v3027 = vunpack.c.l.b16 %v1916
      %v3028 = vunpack.c.l.b16 %v1981
      %v3029 = vunpack.c.l.b16 %v2046
      %v3030 = vunpack.c.l.b16 %v2110
      %v3031 = vunpack.c.l.b16 %v2175
      %v3032 = vunpack.c.l.b16 %v2240
      %v3033 = vunpack.c.l.b16 %v2305
      %v3034 = vunpack.c.l.b16 %v2370
      %v3035 = vunpack.c.l.b16 %v1852
      %v3036 = vunpack.c.l.b16 %v1917
      %v3037 = vunpack.c.l.b16 %v1982
      %v3038 = vunpack.c.l.b16 %v2047
      %v3039 = vunpack.c.l.b16 %v2111
      %v3040 = vunpack.c.l.b16 %v2176
      %v3041 = vunpack.c.l.b16 %v2241
      %v3042 = vunpack.c.l.b16 %v2306
      %v3043 = vunpack.c.l.b16 %v2371
      %v3044 = vunpack.c.l.b16 %v1853
      %v3045 = vunpack.c.l.b16 %v1918
      %v3046 = vunpack.c.l.b16 %v1983
      %v3047 = vunpack.c.l.b16 %v2048
      %v3048 = vunpack.c.l.b16 %v2112
      %v3049 = vunpack.c.l.b16 %v2177
      %v3050 = vunpack.c.l.b16 %v2242
      %v3051 = vunpack.c.l.b16 %v2307
      %v3052 = vunpack.c.l.b16 %v2372
      %v3053 = vunpack.c.l.b16 %v1854
      %v3054 = vunpack.c.l.b16 %v1919
      %v3055 = vunpack.c.l.b16 %v1984
      %v3056 = vunpack.c.l.b16 %v2049
      %v3057 = vunpack.c.l.b16 %v2113
      %v3058 = vunpack.c.l.b16 %v2178
      %v3059 = vunpack.c.l.b16 %v2243
      %v3060 = vunpack.c.l.b16 %v2308
      %v3061 = vunpack.c.l.b16 %v2373
      %v3062 = vunpack.c.l.b16 %v1855
      %v3063 = vunpack.c.l.b16 %v1920
      %v3064 = vunpack.c.l.b16 %v1985
      %v3065 = vunpack.c.l.b16 %v2050
      %v3066 = vunpack.c.l.b16 %v2114
      %v3067 = vunpack.c.l.b16 %v2179
      %v3068 = vunpack.c.l.b16 %v2244
      %v3069 = vunpack.c.l.b16 %v2309
      %v3070 = vunpack.c.l.b16 %v2374
      %v3071 = vunpack.c.l.b16 %v1856
      %v3072 = vunpack.c.l.b16 %v1921
      %v3073 = vunpack.c.l.b16 %v1986
      %v3074 = vunpack.c.l.b16 %v2051
      %v3075 = vunpack.c.l.b16 %v2115
      %v3076 = vunpack.c.l.b16 %v2180
      %v3077 = vunpack.c.l.b16 %v2245
      %v3078 = vunpack.c.l.b16 %v2310
      %v3079 = vunpack.c.l.b16 %v2375
      %v3080 = vunpack.c.l.b16 %v1857
      %v3081 = vunpack.c.l.b16 %v1922
      %v3082 = vunpack.c.l.b16 %v1987
      %v3083 = vunpack.c.l.b16 %v2052
      %v3084 = vunpack.c.l.b16 %v2116
      %v3085 = vunpack.c.l.b16 %v2181
      %v3086 = vunpack.c.l.b16 %v2246
      %v3087 = vunpack.c.l.b16 %v2311
      %v3088 = vunpack.c.l.b16 %v2376
      %v3089 = vunpack.c.l.b16 %v1858
      %v3090 = vunpack.c.l.b16 %v1923
      %v3091 = vunpack.c.l.b16 %v1988
      %v3092 = vunpack.c.l.b16 %v2053
      %v3093 = vunpack.c.l.b16 %v2117
      %v3094 = vunpack.c.l.b16 %v2182
      %v3095 = vunpack.c.l.b16 %v2247
      %v3096 = vunpack.c.l.b16 %v2312
      %v3097 = vunpack.c.l.b16 %v2377
      %v3098 = vunpack.c.l.b16 %v1859
      %v3099 = vunpack.c.l.b16 %v1924
      %v3100 = vunpack.c.l.b16 %v1989
      %v3101 = vunpack.c.l.b16 %v2054
      %v3102 = vunpack.c.l.b16 %v2118
      %v3103 = vunpack.c.l.b16 %v2183
      %v3104 = vunpack.c.l.b16 %v2248
      %v3105 = vunpack.c.l.b16 %v2313
      %v3106 = vunpack.c.l.b16 %v2378
      %v3107 = vunpack.c.l.b16 %v1860
      %v3108 = vunpack.c.l.b16 %v1925
      %v3109 = vunpack.c.l.b16 %v1990
      %v3110 = vunpack.c.l.b16 %v2055
      %v3111 = vunpack.c.l.b16 %v2119
      %v3112 = vunpack.c.l.b16 %v2184
      %v3113 = vunpack.c.l.b16 %v2249
      %v3114 = vunpack.c.l.b16 %v2314
      %v3115 = vunpack.c.l.b16 %v2379
      %v3116 = vunpack.c.l.b16 %v1861
      %v3117 = vunpack.c.l.b16 %v1926
      %v3118 = vunpack.c.l.b16 %v1991
      %v3119 = vunpack.c.l.b16 %v2056
      %v3120 = vunpack.c.l.b16 %v2120
      %v3121 = vunpack.c.l.b16 %v2185
      %v3122 = vunpack.c.l.b16 %v2250
      %v3123 = vunpack.c.l.b16 %v2315
      %v3124 = vunpack.c.l.b16 %v2380
      %v3125 = vunpack.c.l.b16 %v1862
      %v3126 = vunpack.c.l.b16 %v1927
      %v3127 = vunpack.c.l.b16 %v1992
      %v3128 = vunpack.c.l.b16 %v2057
      %v3129 = vunpack.c.l.b16 %v2121
      %v3130 = vunpack.c.l.b16 %v2186
      %v3131 = vunpack.c.l.b16 %v2251
      %v3132 = vunpack.c.l.b16 %v2316
      %v3133 = vunpack.c.l.b16 %v2381
      %v3134 = vunpack.c.l.b16 %v1863
      %v3135 = vunpack.c.l.b16 %v1928
      %v3136 = vunpack.c.l.b16 %v1993
      %v3137 = vunpack.c.l.b16 %v2058
      %v3138 = vunpack.c.l.b16 %v2122
      %v3139 = vunpack.c.l.b16 %v2187
      %v3140 = vunpack.c.l.b16 %v2252
      %v3141 = vunpack.c.l.b16 %v2317
      %v3142 = vunpack.c.l.b16 %v2382
      %v3143 = vunpack.c.l.b16 %v1864
      %v3144 = vunpack.c.l.b16 %v1929
      %v3145 = vunpack.c.l.b16 %v1994
      %v3146 = vunpack.c.l.b16 %v2059
      %v3147 = vunpack.c.l.b16 %v2123
      %v3148 = vunpack.c.l.b16 %v2188
      %v3149 = vunpack.c.l.b16 %v2253
      %v3150 = vunpack.c.l.b16 %v2318
      %v3151 = vunpack.c.l.b16 %v2383
      %v3152 = vunpack.c.l.b16 %v1865
      %v3153 = vunpack.c.l.b16 %v1930
      %v3154 = vunpack.c.l.b16 %v1995
      %v3155 = vunpack.c.l.b16 %v2060
      %v3156 = vunpack.c.l.b16 %v2124
      %v3157 = vunpack.c.l.b16 %v2189
      %v3158 = vunpack.c.l.b16 %v2254
      %v3159 = vunpack.c.l.b16 %v2319
      %v3160 = vunpack.c.l.b16 %v2384
      %v3161 = vunpack.c.l.b16 %v1866
      %v3162 = vunpack.c.l.b16 %v1931
      %v3163 = vunpack.c.l.b16 %v1996
      %v3164 = vunpack.c.l.b16 %v2061
      %v3165 = vunpack.c.l.b16 %v2125
      %v3166 = vunpack.c.l.b16 %v2190
      %v3167 = vunpack.c.l.b16 %v2255
      %v3168 = vunpack.c.l.b16 %v2320
      %v3169 = vunpack.c.l.b16 %v2385
      %v3170 = vunpack.c.l.b16 %v1867
      %v3171 = vunpack.c.l.b16 %v1932
      %v3172 = vunpack.c.l.b16 %v1997
      %v3173 = vunpack.c.l.b16 %v2062
      %v3174 = vunpack.c.l.b16 %v2126
      %v3175 = vunpack.c.l.b16 %v2191
      %v3176 = vunpack.c.l.b16 %v2256
      %v3177 = vunpack.c.l.b16 %v2321
      %v3178 = vunpack.c.l.b16 %v2386
      %v3179 = vunpack.c.l.b16 %v1868
      %v3180 = vunpack.c.l.b16 %v1933
      %v3181 = vunpack.c.l.b16 %v1998
      %v3182 = vunpack.c.l.b16 %v2063
      %v3183 = vunpack.c.l.b16 %v2127
      %v3184 = vunpack.c.l.b16 %v2192
      %v3185 = vunpack.c.l.b16 %v2257
      %v3186 = vunpack.c.l.b16 %v2322
      %v3187 = vunpack.c.l.b16 %v2387
      %v3188 = vunpack.c.l.b16 %v1869
      %v3189 = vunpack.c.l.b16 %v1934
      %v3190 = vunpack.c.l.b16 %v1999
      %v3191 = vunpack.c.l.b16 %v2064
      %v3192 = vunpack.c.l.b16 %v2128
      %v3193 = vunpack.c.l.b16 %v2193
      %v3194 = vunpack.c.l.b16 %v2258
      %v3195 = vunpack.c.l.b16 %v2323
      %v3196 = vunpack.c.l.b16 %v2388
      %v3197 = vunpack.c.l.b16 %v1870
      %v3198 = vunpack.c.l.b16 %v1935
      %v3199 = vunpack.c.l.b16 %v2000
      %v3200 = vunpack.c.l.b16 %v2065
      %v3201 = vunpack.c.l.b16 %v2129
      %v3202 = vunpack.c.l.b16 %v2194
      %v3203 = vunpack.c.l.b16 %v2259
      %v3204 = vunpack.c.l.b16 %v2324
      %v3205 = vunpack.c.l.b16 %v2389
      %v3206 = vunpack.c.l.b16 %v1871
      %v3207 = vunpack.c.l.b16 %v1936
      %v3208 = vunpack.c.l.b16 %v2001
      %v3209 = vunpack.c.l.b16 %v2066
      %v3210 = vunpack.c.l.b16 %v2130
      %v3211 = vunpack.c.l.b16 %v2195
      %v3212 = vunpack.c.l.b16 %v2260
      %v3213 = vunpack.c.l.b16 %v2325
      %v3214 = vunpack.c.l.b16 %v2390
      %v3215 = vunpack.c.l.b16 %v1872
      %v3216 = vunpack.c.l.b16 %v1937
      %v3217 = vunpack.c.l.b16 %v2002
      %v3218 = vunpack.c.l.b16 %v2067
      %v3219 = vunpack.c.l.b16 %v2131
      %v3220 = vunpack.c.l.b16 %v2196
      %v3221 = vunpack.c.l.b16 %v2261
      %v3222 = vunpack.c.l.b16 %v2326
      %v3223 = vunpack.c.l.b16 %v2391
      %v3224 = vunpack.c.l.b16 %v1873
      %v3225 = vunpack.c.l.b16 %v1938
      %v3226 = vunpack.c.l.b16 %v2003
      %v3227 = vunpack.c.l.b16 %v2068
      %v3228 = vunpack.c.l.b16 %v2132
      %v3229 = vunpack.c.l.b16 %v2197
      %v3230 = vunpack.c.l.b16 %v2262
      %v3231 = vunpack.c.l.b16 %v2327
      %v3232 = vunpack.c.l.b16 %v2392
      %v3233 = vunpack.c.l.b16 %v1874
      %v3234 = vunpack.c.l.b16 %v1939
      %v3235 = vunpack.c.l.b16 %v2004
      %v3236 = vunpack.c.l.b16 %v2069
      %v3237 = vunpack.c.l.b16 %v2133
      %v3238 = vunpack.c.l.b16 %v2198
      %v3239 = vunpack.c.l.b16 %v2263
      %v3240 = vunpack.c.l.b16 %v2328
      %v3241 = vunpack.c.l.b16 %v2393
      %v3242 = vunpack.c.l.b16 %v1875
      %v3243 = vunpack.c.l.b16 %v1940
      %v3244 = vunpack.c.l.b16 %v2005
      %v3245 = vunpack.c.l.b16 %v2070
      %v3246 = vunpack.c.l.b16 %v2134
      %v3247 = vunpack.c.l.b16 %v2199
      %v3248 = vunpack.c.l.b16 %v2264
      %v3249 = vunpack.c.l.b16 %v2329
      %v3250 = vunpack.c.l.b16 %v2394
      %v3251 = vunpack.c.l.b16 %v1876
      %v3252 = vunpack.c.l.b16 %v1941
      %v3253 = vunpack.c.l.b16 %v2006
      %v3254 = vunpack.c.l.b16 %v2071
      %v3255 = vunpack.c.l.b16 %v2135
      %v3256 = vunpack.c.l.b16 %v2200
      %v3257 = vunpack.c.l.b16 %v2265
      %v3258 = vunpack.c.l.b16 %v2330
      %v3259 = vunpack.c.l.b16 %v2395
      %v3260 = vunpack.c.l.b16 %v1877
      %v3261 = vunpack.c.l.b16 %v1942
      %v3262 = vunpack.c.l.b16 %v2007
      %v3263 = vunpack.c.l.b16 %v2072
      %v3264 = vunpack.c.l.b16 %v2136
      %v3265 = vunpack.c.l.b16 %v2201
      %v3266 = vunpack.c.l.b16 %v2266
      %v3267 = vunpack.c.l.b16 %v2331
      %v3268 = vunpack.c.l.b16 %v2396
      %v3269 = vunpack.c.l.b16 %v1878
      %v3270 = vunpack.c.l.b16 %v1943
      %v3271 = vunpack.c.l.b16 %v2008
      %v3272 = vunpack.c.l.b16 %v2073
      %v3273 = vunpack.c.l.b16 %v2137
      %v3274 = vunpack.c.l.b16 %v2202
      %v3275 = vunpack.c.l.b16 %v2267
      %v3276 = vunpack.c.l.b16 %v2332
      %v3277 = vunpack.c.l.b16 %v2397
      %v3278 = vunpack.c.l.b16 %v1879
      %v3279 = vunpack.c.l.b16 %v1944
      %v3280 = vunpack.c.l.b16 %v2009
      %v3281 = vunpack.c.l.b16 %v2074
      %v3282 = vunpack.c.l.b16 %v2138
      %v3283 = vunpack.c.l.b16 %v2203
      %v3284 = vunpack.c.l.b16 %v2268
      %v3285 = vunpack.c.l.b16 %v2333
      %v3286 = vunpack.c.l.b16 %v2398
      %v3287 = vunpack.c.l.b16 %v1880
      %v3288 = vunpack.c.l.b16 %v1945
      %v3289 = vunpack.c.l.b16 %v2010
      %v3290 = vunpack.c.l.b16 %v2075
      %v3291 = vunpack.c.l.b16 %v2139
      %v3292 = vunpack.c.l.b16 %v2204
      %v3293 = vunpack.c.l.b16 %v2269
      %v3294 = vunpack.c.l.b16 %v2334
      %v3295 = vunpack.c.l.b16 %v2399
      %v3296 = vunpack.c.l.b16 %v1881
      %v3297 = vunpack.c.l.b16 %v1946
      %v3298 = vunpack.c.l.b16 %v2011
      %v3299 = vunpack.c.l.b16 %v2076
      %v3300 = vunpack.c.l.b16 %v2140
      %v3301 = vunpack.c.l.b16 %v2205
      %v3302 = vunpack.c.l.b16 %v2270
      %v3303 = vunpack.c.l.b16 %v2335
      %v3304 = vunpack.c.l.b16 %v2400
      %v3305 = vunpack.c.l.b16 %v1882
      %v3306 = vunpack.c.l.b16 %v1947
      %v3307 = vunpack.c.l.b16 %v2012
      %v3308 = vunpack.c.l.b16 %v2077
      %v3309 = vunpack.c.l.b16 %v2141
      %v3310 = vunpack.c.l.b16 %v2206
      %v3311 = vunpack.c.l.b16 %v2271
      %v3312 = vunpack.c.l.b16 %v2336
      %v3313 = vunpack.c.l.b16 %v2401
      %v3314 = vunpack.c.l.b16 %v1883
      %v3315 = vunpack.c.l.b16 %v1948
      %v3316 = vunpack.c.l.b16 %v2013
      %v3317 = vunpack.c.l.b16 %v2078
      %v3318 = vunpack.c.l.b16 %v2142
      %v3319 = vunpack.c.l.b16 %v2207
      %v3320 = vunpack.c.l.b16 %v2272
      %v3321 = vunpack.c.l.b16 %v2337
      %v3322 = vunpack.c.l.b16 %v2402
      %v3323 = vunpack.c.l.b16 %v1884
      %v3324 = vunpack.c.l.b16 %v1949
      %v3325 = vunpack.c.l.b16 %v2014
      %v3326 = vunpack.c.l.b16 %v2079
      %v3327 = vunpack.c.l.b16 %v2143
      %v3328 = vunpack.c.l.b16 %v2208
      %v3329 = vunpack.c.l.b16 %v2273
      %v3330 = vunpack.c.l.b16 %v2338
      %v3331 = vunpack.c.l.b16 %v2403
      %v3332 = vunpack.c.l.b16 %v1885
      %v3333 = vunpack.c.l.b16 %v1950
      %v3334 = vunpack.c.l.b16 %v2015
      %v3335 = vunpack.c.l.b16 %v2080
      %v3336 = vunpack.c.l.b16 %v2144
      %v3337 = vunpack.c.l.b16 %v2209
      %v3338 = vunpack.c.l.b16 %v2274
      %v3339 = vunpack.c.l.b16 %v2339
      %v3340 = vunpack.c.l.b16 %v2404
      %v3341 = vunpack.c.l.b16 %v1886
      %v3342 = vunpack.c.l.b16 %v1951
      %v3343 = vunpack.c.l.b16 %v2016
      %v3344 = vunpack.c.l.b16 %v2081
      %v3345 = vunpack.c.l.b16 %v2145
      %v3346 = vunpack.c.l.b16 %v2210
      %v3347 = vunpack.c.l.b16 %v2275
      %v3348 = vunpack.c.l.b16 %v2340
      %v3349 = vunpack.c.l.b16 %v2405
      %v3350 = vunpack.c.l.b16 %v1887
      %v3351 = vunpack.c.l.b16 %v1952
      %v3352 = vunpack.c.l.b16 %v2017
      %v3353 = vunpack.c.l.b16 %v2082
      %v3354 = vunpack.c.l.b16 %v2146
      %v3355 = vunpack.c.l.b16 %v2211
      %v3356 = vunpack.c.l.b16 %v2276
      %v3357 = vunpack.c.l.b16 %v2341
      %v3358 = vunpack.c.l.b16 %v2406
      %v3359 = vunpack.c.l.b16 %v1888
      %v3360 = vunpack.c.l.b16 %v1953
      %v3361 = vunpack.c.l.b16 %v2018
      %v3362 = vunpack.c.l.b16 %v2083
      %v3363 = vunpack.c.l.b16 %v2147
      %v3364 = vunpack.c.l.b16 %v2212
      %v3365 = vunpack.c.l.b16 %v2277
      %v3366 = vunpack.c.l.b16 %v2342
      %v3367 = vunpack.c.l.b16 %v2407
      %v3368 = vunpack.c.l.b16 %v1889
      %v3369 = vunpack.c.l.b16 %v1954
      %v3370 = vunpack.c.l.b16 %v2019
      %v3371 = vunpack.c.l.b16 %v2084
      %v3372 = vunpack.c.l.b16 %v2148
      %v3373 = vunpack.c.l.b16 %v2213
      %v3374 = vunpack.c.l.b16 %v2278
      %v3375 = vunpack.c.l.b16 %v2343
      %v3376 = vunpack.c.l.b16 %v2408
      %v3377 = vunpack.c.l.b16 %v1890
      %v3378 = vunpack.c.l.b16 %v1955
      %v3379 = vunpack.c.l.b16 %v2020
      %v3380 = vunpack.c.l.b16 %v2085
      %v3381 = vunpack.c.l.b16 %v2149
      %v3382 = vunpack.c.l.b16 %v2214
      %v3383 = vunpack.c.l.b16 %v2279
      %v3384 = vunpack.c.l.b16 %v2344
      %v3385 = vunpack.c.l.b16 %v2409
      %v3386 = vunpack.c.l.b16 %v1891
      %v3387 = vunpack.c.l.b16 %v1956
      %v3388 = vunpack.c.l.b16 %v2021
      %v3389 = vunpack.c.l.b16 %v2086
      %v3390 = vunpack.c.l.b16 %v2150
      %v3391 = vunpack.c.l.b16 %v2215
      %v3392 = vunpack.c.l.b16 %v2280
      %v3393 = vunpack.c.l.b16 %v2345
      %v3394 = vunpack.c.l.b16 %v2410
      %v3395 = vunpack.c.l.b16 %v1892
      %v3396 = vunpack.c.l.b16 %v1957
      %v3397 = vunpack.c.l.b16 %v2022
      %v3398 = vunpack.c.l.b16 %v2087
      %v3399 = vunpack.c.l.b16 %v2151
      %v3400 = vunpack.c.l.b16 %v2216
      %v3401 = vunpack.c.l.b16 %v2281
      %v3402 = vunpack.c.l.b16 %v2346
      %v3403 = vunpack.c.l.b16 %v2411
      %v3404 = vunpack.c.l.b16 %v1893
      %v3405 = vunpack.c.l.b16 %v1958
      %v3406 = vunpack.c.l.b16 %v2023
      %v3407 = vunpack.c.l.b16 %v2088
      %v3408 = vunpack.c.l.b16 %v2152
      %v3409 = vunpack.c.l.b16 %v2217
      %v3410 = vunpack.c.l.b16 %v2282
      %v3411 = vunpack.c.l.b16 %v2347
      %v3412 = vunpack.c.l.b16 %v2412
      %v3413 = vunpack.c.l.b16 %v1894
      %v3414 = vunpack.c.l.b16 %v1959
      %v3415 = vunpack.c.l.b16 %v2024
      %v3416 = vunpack.c.l.b16 %v2089
      %v3417 = vunpack.c.l.b16 %v2153
      %v3418 = vunpack.c.l.b16 %v2218
      %v3419 = vunpack.c.l.b16 %v2283
      %v3420 = vunpack.c.l.b16 %v2348
      %v3421 = vunpack.c.l.b16 %v2413
      %v3422 = vunpack.c.l.b16 %v1895
      %v3423 = vunpack.c.l.b16 %v1960
      %v3424 = vunpack.c.l.b16 %v2025
      %v3425 = vunpack.c.l.b16 %v2090
      %v3426 = vunpack.c.l.b16 %v2154
      %v3427 = vunpack.c.l.b16 %v2219
      %v3428 = vunpack.c.l.b16 %v2284
      %v3429 = vunpack.c.l.b16 %v2349
      %v3430 = vunpack.c.l.b16 %v2414
      %v3431 = vunpack.c.l.b16 %v1896
      %v3432 = vunpack.c.l.b16 %v1961
      %v3433 = vunpack.c.l.b16 %v2026
      %v3434 = vunpack.c.l.b16 %v2091
      %v3435 = vunpack.c.l.b16 %v2155
      %v3436 = vunpack.c.l.b16 %v2220
      %v3437 = vunpack.c.l.b16 %v2285
      %v3438 = vunpack.c.l.b16 %v2350
      %v3439 = vunpack.c.l.b16 %v2415
      %v3440 = vunpack.c.l.b16 %v1897
      %v3441 = vunpack.c.l.b16 %v1962
      %v3442 = vunpack.c.l.b16 %v2027
      %v3443 = vunpack.c.l.b16 %v2092
      %v3444 = vunpack.c.l.b16 %v2156
      %v3445 = vunpack.c.l.b16 %v2221
      %v3446 = vunpack.c.l.b16 %v2286
      %v3447 = vunpack.c.l.b16 %v2351
      %v3448 = vunpack.c.l.b16 %v2416
      %v3449 = vunpack.c.l.b16 %v1898
      %v3450 = vunpack.c.l.b16 %v1963
      %v3451 = vunpack.c.l.b16 %v2028
      %v3452 = vunpack.c.l.b16 %v2093
      %v3453 = vunpack.c.l.b16 %v2157
      %v3454 = vunpack.c.l.b16 %v2222
      %v3455 = vunpack.c.l.b16 %v2287
      %v3456 = vunpack.c.l.b16 %v2352
      %v3457 = vunpack.c.l.b16 %v2417
      %v3458 = vunpack.c.l.b16 %v1899
      %v3459 = vunpack.c.l.b16 %v1964
      %v3460 = vunpack.c.l.b16 %v2029
      %v3461 = vunpack.c.l.b16 %v2094
      %v3462 = vunpack.c.l.b16 %v2158
      %v3463 = vunpack.c.l.b16 %v2223
      %v3464 = vunpack.c.l.b16 %v2288
      %v3465 = vunpack.c.l.b16 %v2353
      %v3466 = vunpack.c.l.b16 %v2418
      %v3467 = vunpack.c.l.b16 %v1900
      %v3468 = vunpack.c.l.b16 %v1965
      %v3469 = vunpack.c.l.b16 %v2030
      %v3470 = vunpack.c.l.b16 %v2095
      %v3471 = vunpack.c.l.b16 %v2159
      %v3472 = vunpack.c.l.b16 %v2224
      %v3473 = vunpack.c.l.b16 %v2289
      %v3474 = vunpack.c.l.b16 %v2354
      %v3475 = vunpack.c.l.b16 %v2419
      %v3476 = vunpack.c.l.b16 %v1901
      %v3477 = vunpack.c.l.b16 %v1966
      %v3478 = vunpack.c.l.b16 %v2031
      %v3479 = vunpack.c.l.b16 %v2096
      %v3480 = vunpack.c.l.b16 %v2160
      %v3481 = vunpack.c.l.b16 %v2225
      %v3482 = vunpack.c.l.b16 %v2290
      %v3483 = vunpack.c.l.b16 %v2355
      %v3484 = vunpack.c.l.b16 %v2420
      %v3485 = vunpack.c.l.b16 %v1902
      %v3486 = vunpack.c.l.b16 %v1967
      %v3487 = vunpack.c.l.b16 %v2032
      %v3488 = vunpack.c.l.b16 %v2097
      %v3489 = vunpack.c.l.b16 %v2161
      %v3490 = vunpack.c.l.b16 %v2226
      %v3491 = vunpack.c.l.b16 %v2291
      %v3492 = vunpack.c.l.b16 %v2356
      %v3493 = vunpack.c.l.b16 %v2421
      %v3494 = vunpack.c.l.b16 %v1903
      %v3495 = vunpack.c.l.b16 %v1968
      %v3496 = vunpack.c.l.b16 %v2033
      %v3497 = vunpack.c.l.b16 %v2098
      %v3498 = vunpack.c.l.b16 %v2162
      %v3499 = vunpack.c.l.b16 %v2227
      %v3500 = vunpack.c.l.b16 %v2292
      %v3501 = vunpack.c.l.b16 %v2357
      %v3502 = vunpack.c.l.b16 %v2422
      %v3503 = vunpack.c.l.b16 %v1904
      %v3504 = vunpack.c.l.b16 %v1969
      %v3505 = vunpack.c.l.b16 %v2034
      %v3506 = vunpack.c.l.b16 %v2099
      %v3507 = vunpack.c.l.b16 %v2163
      %v3508 = vunpack.c.l.b16 %v2228
      %v3509 = vunpack.c.l.b16 %v2293
      %v3510 = vunpack.c.l.b16 %v2358
      %v3511 = vunpack.c.l.b16 %v2423
      %v3512 = vunpack.c.l.b16 %v1905
      %v3513 = vunpack.c.l.b16 %v1970
      %v3514 = vunpack.c.l.b16 %v2035
      %v3515 = vunpack.c.l.b16 %v2100
      %v3516 = vunpack.c.l.b16 %v2164
      %v3517 = vunpack.c.l.b16 %v2229
      %v3518 = vunpack.c.l.b16 %v2294
      %v3519 = vunpack.c.l.b16 %v2359
      %v3520 = vunpack.c.l.b16 %v2424
      %v3521 = vunpack.c.l.b16 %v1906
      %v3522 = vunpack.c.l.b16 %v1971
      %v3523 = vunpack.c.l.b16 %v2036
      %v3524 = vunpack.c.l.b16 %v2101
      %v3525 = vunpack.c.l.b16 %v2165
      %v3526 = vunpack.c.l.b16 %v2230
      %v3527 = vunpack.c.l.b16 %v2295
      %v3528 = vunpack.c.l.b16 %v2360
      %v3529 = vunpack.c.l.b16 %v2425
      %v3530 = vunpack.c.l.b16 %v1907
      %v3531 = vunpack.c.l.b16 %v1972
      %v3532 = vunpack.c.l.b16 %v2037
      %v3533 = vunpack.c.l.b16 %v2102
      %v3534 = vunpack.c.l.b16 %v2166
      %v3535 = vunpack.c.l.b16 %v2231
      %v3536 = vunpack.c.l.b16 %v2296
      %v3537 = vunpack.c.l.b16 %v2361
      %v3538 = vunpack.c.l.b16 %v2426
      %v3539 = vunpack.c.l.b16 %v1908
      %v3540 = vunpack.c.l.b16 %v1973
      %v3541 = vunpack.c.l.b16 %v2038
      %v3542 = vunpack.c.l.b16 %v2103
      %v3543 = vunpack.c.l.b16 %v2167
      %v3544 = vunpack.c.l.b16 %v2232
      %v3545 = vunpack.c.l.b16 %v2297
      %v3546 = vunpack.c.l.b16 %v2362
      %v3547 = vunpack.c.l.b16 %v2427
      %v3548 = vunpack.c.l.b16 %v1909
      %v3549 = vunpack.c.l.b16 %v1974
      %v3550 = vunpack.c.l.b16 %v2039
      %v3551 = vunpack.c.l.b16 %v2104
      %v3552 = vunpack.c.l.b16 %v2168
      %v3553 = vunpack.c.l.b16 %v2233
      %v3554 = vunpack.c.l.b16 %v2298
      %v3555 = vunpack.c.l.b16 %v2363
      %v3556 = vunpack.c.l.b16 %v2428
      %v3557 = vunpack.c.l.b16 %v1910
      %v3558 = vunpack.c.l.b16 %v1975
      %v3559 = vunpack.c.l.b16 %v2040
      %v3560 = vunpack.c.l.b16 %v2105
      %v3561 = vunpack.c.l.b16 %v2169
      %v3562 = vunpack.c.l.b16 %v2234
      %v3563 = vunpack.c.l.b16 %v2299
      %v3564 = vunpack.c.l.b16 %v2364
      %v3565 = vunpack.c.l.b16 %v2429
      %v3566 = vunpack.c.l.b16 %v1911
      %v3567 = vunpack.c.l.b16 %v1976
      %v3568 = vunpack.c.l.b16 %v2041
      %v3569 = vunpack.c.l.b16 %v2106
      %v3570 = vunpack.c.l.b16 %v2170
      %v3571 = vunpack.c.l.b16 %v2235
      %v3572 = vunpack.c.l.b16 %v2300
      %v3573 = vunpack.c.l.b16 %v2365
      %v3574 = vunpack.c.l.b16 %v2430
      %v3575 = vunpack.c.l.b16 %v1912
      %v3576 = vunpack.c.l.b16 %v1977
      %v3577 = vunpack.c.l.b16 %v2042
      %v3578 = vunpack.c.l.b16 %v2107
      %v3579 = vunpack.c.l.b16 %v2171
      %v3580 = vunpack.c.l.b16 %v2236
      %v3581 = vunpack.c.l.b16 %v2301
      %v3582 = vunpack.c.l.b16 %v2366
      %v3583 = vunpack.c.l.b16 %v2431
      %v3584 = vld [vmem:[%s5] sm:$0xf]
      %v3585 = vld [vmem:[%s5 + $0x4] sm:$0xf]
      %v3586 = vld [vmem:[%s5 + $0x8] sm:$0xf]
      %v3587 = vld [vmem:[%s5 + $0xc] sm:$0xf]
      %v3588 = vld [vmem:[%s5 + $0x10] sm:$0xf]
      %v3589 = vld [vmem:[%s5 + $0x14] sm:$0xf]
      %v3590 = vld [vmem:[%s5 + $0x18] sm:$0xf]
      %v3591 = vld [vmem:[%s5 + $0x1c] sm:$0xf]
      %v3592 = vld [vmem:[%s5 + $0x20] sm:$0xf]
      %v3593 = vld [vmem:[%s5 + $0x24] sm:$0xf]
      %v3594 = vld [vmem:[%s5 + $0x28] sm:$0xf]
      %v3595 = vld [vmem:[%s5 + $0x2c] sm:$0xf]
      %v3596 = vld [vmem:[%s5 + $0x30] sm:$0xf]
      %v3597 = vld [vmem:[%s5 + $0x34] sm:$0xf]
      %v3598 = vld [vmem:[%s5 + $0x38] sm:$0xf]
      %v3599 = vld [vmem:[%s5 + $0x3c] sm:$0xf]
      %v3600 = vld [vmem:[%s5 + $0x40] sm:$0xf]
      %v3601 = vld [vmem:[%s5 + $0x44] sm:$0xf]
      %v3602 = vld [vmem:[%s5 + $0x48] sm:$0xf]
      %v3603 = vld [vmem:[%s5 + $0x4c] sm:$0xf]
      %v3604 = vld [vmem:[%s5 + $0x50] sm:$0xf]
      %v3605 = vld [vmem:[%s5 + $0x54] sm:$0xf]
      %v3606 = vld [vmem:[%s5 + $0x58] sm:$0xf]
      %v3607 = vld [vmem:[%s5 + $0x5c] sm:$0xf]
      %v3608 = vld [vmem:[%s5 + $0x60] sm:$0xf]
      %v3609 = vld [vmem:[%s5 + $0x64] sm:$0xf]
      %v3610 = vld [vmem:[%s5 + $0x68] sm:$0xf]
      %v3611 = vld [vmem:[%s5 + $0x6c] sm:$0xf]
      %v3612 = vld [vmem:[%s5 + $0x70] sm:$0xf]
      %v3613 = vld [vmem:[%s5 + $0x74] sm:$0xf]
      %v3614 = vld [vmem:[%s5 + $0x78] sm:$0xf]
      %v3615 = vld [vmem:[%s5 + $0x7c] sm:$0xf]
      %v3616 = vld [vmem:[%s5 + $0x80] sm:$0xf]
      %v3617 = vld [vmem:[%s5 + $0x84] sm:$0xf]
      %v3618 = vld [vmem:[%s5 + $0x88] sm:$0xf]
      %v3619 = vld [vmem:[%s5 + $0x8c] sm:$0xf]
      %v3620 = vld [vmem:[%s5 + $0x90] sm:$0xf]
      %v3621 = vld [vmem:[%s5 + $0x94] sm:$0xf]
      %v3622 = vld [vmem:[%s5 + $0x98] sm:$0xf]
      %v3623 = vld [vmem:[%s5 + $0x9c] sm:$0xf]
      %v3624 = vld [vmem:[%s5 + $0xa0] sm:$0xf]
      %v3625 = vld [vmem:[%s5 + $0xa4] sm:$0xf]
      %v3626 = vld [vmem:[%s5 + $0xa8] sm:$0xf]
      %v3627 = vld [vmem:[%s5 + $0xac] sm:$0xf]
      %v3628 = vld [vmem:[%s5 + $0xb0] sm:$0xf]
      %v3629 = vld [vmem:[%s5 + $0xb4] sm:$0xf]
      %v3630 = vld [vmem:[%s5 + $0xb8] sm:$0xf]
      %v3631 = vld [vmem:[%s5 + $0xbc] sm:$0xf]
      %v3632 = vld [vmem:[%s5 + $0xc0] sm:$0xf]
      %v3633 = vld [vmem:[%s5 + $0xc4] sm:$0xf]
      %v3634 = vld [vmem:[%s5 + $0xc8] sm:$0xf]
      %v3635 = vld [vmem:[%s5 + $0xcc] sm:$0xf]
      %v3636 = vld [vmem:[%s5 + $0xd0] sm:$0xf]
      %v3637 = vld [vmem:[%s5 + $0xd4] sm:$0xf]
      %v3638 = vld [vmem:[%s5 + $0xd8] sm:$0xf]
      %v3639 = vld [vmem:[%s5 + $0xdc] sm:$0xf]
      %v3640 = vld [vmem:[%s5 + $0xe0] sm:$0xf]
      %v3641 = vld [vmem:[%s5 + $0xe4] sm:$0xf]
      %v3642 = vld [vmem:[%s5 + $0xe8] sm:$0xf]
      %v3643 = vld [vmem:[%s5 + $0xec] sm:$0xf]
      %v3644 = vld [vmem:[%s5 + $0xf0] sm:$0xf]
      %v3645 = vld [vmem:[%s5 + $0xf4] sm:$0xf]
      %v3646 = vld [vmem:[%s5 + $0xf8] sm:$0xf]
      %v3647 = vld [vmem:[%s5 + $0xfc] sm:$0xf]
      %v3648 = vld [vmem:[%s5 + $0x100] sm:$0xf]
      %v3649 = vld [vmem:[%s5 + $0x104] sm:$0xf]
      %v3650 = vld [vmem:[%s5 + $0x108] sm:$0xf]
      %v3651 = vld [vmem:[%s5 + $0x10c] sm:$0xf]
      %v3652 = vld [vmem:[%s5 + $0x110] sm:$0xf]
      %v3653 = vld [vmem:[%s5 + $0x114] sm:$0xf]
      %v3654 = vld [vmem:[%s5 + $0x118] sm:$0xf]
      %v3655 = vld [vmem:[%s5 + $0x11c] sm:$0xf]
      %v3656 = vld [vmem:[%s5 + $0x120] sm:$0xf]
      %v3657 = vld [vmem:[%s5 + $0x124] sm:$0xf]
      %v3658 = vld [vmem:[%s5 + $0x128] sm:$0xf]
      %v3659 = vld [vmem:[%s5 + $0x12c] sm:$0xf]
      %v3660 = vld [vmem:[%s5 + $0x130] sm:$0xf]
      %v3661 = vld [vmem:[%s5 + $0x134] sm:$0xf]
      %v3662 = vld [vmem:[%s5 + $0x138] sm:$0xf]
      %v3663 = vld [vmem:[%s5 + $0x13c] sm:$0xf]
      %v3664 = vld [vmem:[%s5 + $0x140] sm:$0xf]
      %v3665 = vld [vmem:[%s5 + $0x144] sm:$0xf]
      %v3666 = vld [vmem:[%s5 + $0x148] sm:$0xf]
      %v3667 = vld [vmem:[%s5 + $0x14c] sm:$0xf]
      %v3668 = vld [vmem:[%s5 + $0x150] sm:$0xf]
      %v3669 = vld [vmem:[%s5 + $0x154] sm:$0xf]
      %v3670 = vld [vmem:[%s5 + $0x158] sm:$0xf]
      %v3671 = vld [vmem:[%s5 + $0x15c] sm:$0xf]
      %v3672 = vld [vmem:[%s5 + $0x160] sm:$0xf]
      %v3673 = vld [vmem:[%s5 + $0x164] sm:$0xf]
      %v3674 = vld [vmem:[%s5 + $0x168] sm:$0xf]
      %v3675 = vld [vmem:[%s5 + $0x16c] sm:$0xf]
      %v3676 = vld [vmem:[%s5 + $0x170] sm:$0xf]
      %v3677 = vld [vmem:[%s5 + $0x174] sm:$0xf]
      %v3678 = vld [vmem:[%s5 + $0x178] sm:$0xf]
      %v3679 = vld [vmem:[%s5 + $0x17c] sm:$0xf]
      %v3680 = vld [vmem:[%s5 + $0x180] sm:$0xf]
      %v3681 = vld [vmem:[%s5 + $0x184] sm:$0xf]
      %v3682 = vld [vmem:[%s5 + $0x188] sm:$0xf]
      %v3683 = vld [vmem:[%s5 + $0x18c] sm:$0xf]
      %v3684 = vld [vmem:[%s5 + $0x190] sm:$0xf]
      %v3685 = vld [vmem:[%s5 + $0x194] sm:$0xf]
      %v3686 = vld [vmem:[%s5 + $0x198] sm:$0xf]
      %v3687 = vld [vmem:[%s5 + $0x19c] sm:$0xf]
      %v3688 = vld [vmem:[%s5 + $0x1a0] sm:$0xf]
      %v3689 = vld [vmem:[%s5 + $0x1a4] sm:$0xf]
      %v3690 = vld [vmem:[%s5 + $0x1a8] sm:$0xf]
      %v3691 = vld [vmem:[%s5 + $0x1ac] sm:$0xf]
      %v3692 = vld [vmem:[%s5 + $0x1b0] sm:$0xf]
      %v3693 = vld [vmem:[%s5 + $0x1b4] sm:$0xf]
      %v3694 = vld [vmem:[%s5 + $0x1b8] sm:$0xf]
      %v3695 = vld [vmem:[%s5 + $0x1bc] sm:$0xf]
      %v3696 = vld [vmem:[%s5 + $0x1c0] sm:$0xf]
      %v3697 = vld [vmem:[%s5 + $0x1c4] sm:$0xf]
      %v3698 = vld [vmem:[%s5 + $0x1c8] sm:$0xf]
      %v3699 = vld [vmem:[%s5 + $0x1cc] sm:$0xf]
      %v3700 = vld [vmem:[%s5 + $0x1d0] sm:$0xf]
      %v3701 = vld [vmem:[%s5 + $0x1d4] sm:$0xf]
      %v3702 = vld [vmem:[%s5 + $0x1d8] sm:$0xf]
      %v3703 = vld [vmem:[%s5 + $0x1dc] sm:$0xf]
      %v3704 = vld [vmem:[%s5 + $0x1e0] sm:$0xf]
      %v3705 = vld [vmem:[%s5 + $0x1e4] sm:$0xf]
      %v3706 = vld [vmem:[%s5 + $0x1e8] sm:$0xf]
      %v3707 = vld [vmem:[%s5 + $0x1ec] sm:$0xf]
      %v3708 = vld [vmem:[%s5 + $0x1f0] sm:$0xf]
      %v3709 = vld [vmem:[%s5 + $0x1f4] sm:$0xf]
      %v3710 = vld [vmem:[%s5 + $0x1f8] sm:$0xf]
      %v3711 = vld [vmem:[%s5 + $0x1fc] sm:$0xf]
      %v3712 = vld [vmem:[%s5 + $0x200] sm:$0xf]
      %v3713 = vld [vmem:[%s5 + $0x204] sm:$0xf]
      %v3714 = vld [vmem:[%s5 + $0x208] sm:$0xf]
      %v3715 = vld [vmem:[%s5 + $0x20c] sm:$0xf]
      %v3716 = vld [vmem:[%s5 + $0x210] sm:$0xf]
      %v3717 = vld [vmem:[%s5 + $0x214] sm:$0xf]
      %v3718 = vld [vmem:[%s5 + $0x218] sm:$0xf]
      %v3719 = vld [vmem:[%s5 + $0x21c] sm:$0xf]
      %v3720 = vld [vmem:[%s5 + $0x220] sm:$0xf]
      %v3721 = vld [vmem:[%s5 + $0x224] sm:$0xf]
      %v3722 = vld [vmem:[%s5 + $0x228] sm:$0xf]
      %v3723 = vld [vmem:[%s5 + $0x22c] sm:$0xf]
      %v3724 = vld [vmem:[%s5 + $0x230] sm:$0xf]
      %v3725 = vld [vmem:[%s5 + $0x234] sm:$0xf]
      %v3726 = vld [vmem:[%s5 + $0x238] sm:$0xf]
      %v3727 = vld [vmem:[%s5 + $0x23c] sm:$0xf]
      %v3728 = vpack.c.b16 %v3017, %v3008
      %v3729 = vpack.c.b16 %v3018, %v3009
      %v3730 = vpack.c.b16 %v3019, %v3010
      %v3731 = vpack.c.b16 %v3020, %v3011
      %v3732 = vpack.c.b16 %v3021, %v3012
      %v3733 = vpack.c.b16 %v3022, %v3013
      %v3734 = vpack.c.b16 %v3023, %v3014
      %v3735 = vpack.c.b16 %v3024, %v3015
      %v3736 = vpack.c.b16 %v3025, %v3016
      %v3737 = vpack.c.b16 %v3035, %v3026
      %v3738 = vpack.c.b16 %v3036, %v3027
      %v3739 = vpack.c.b16 %v3037, %v3028
      %v3740 = vpack.c.b16 %v3038, %v3029
      %v3741 = vpack.c.b16 %v3039, %v3030
      %v3742 = vpack.c.b16 %v3040, %v3031
      %v3743 = vpack.c.b16 %v3041, %v3032
      %v3744 = vpack.c.b16 %v3042, %v3033
      %v3745 = vpack.c.b16 %v3043, %v3034
      %v3746 = vpack.c.b16 %v3053, %v3044
      %v3747 = vpack.c.b16 %v3054, %v3045
      %v3748 = vpack.c.b16 %v3055, %v3046
      %v3749 = vpack.c.b16 %v3056, %v3047
      %v3750 = vpack.c.b16 %v3057, %v3048
      %v3751 = vpack.c.b16 %v3058, %v3049
      %v3752 = vpack.c.b16 %v3059, %v3050
      %v3753 = vpack.c.b16 %v3060, %v3051
      %v3754 = vpack.c.b16 %v3061, %v3052
      %v3755 = vpack.c.b16 %v3071, %v3062
      %v3756 = vpack.c.b16 %v3072, %v3063
      %v3757 = vpack.c.b16 %v3073, %v3064
      %v3758 = vpack.c.b16 %v3074, %v3065
      %v3759 = vpack.c.b16 %v3075, %v3066
      %v3760 = vpack.c.b16 %v3076, %v3067
      %v3761 = vpack.c.b16 %v3077, %v3068
      %v3762 = vpack.c.b16 %v3078, %v3069
      %v3763 = vpack.c.b16 %v3079, %v3070
      %v3764 = vpack.c.b16 %v3089, %v3080
      %v3765 = vpack.c.b16 %v3090, %v3081
      %v3766 = vpack.c.b16 %v3091, %v3082
      %v3767 = vpack.c.b16 %v3092, %v3083
      %v3768 = vpack.c.b16 %v3093, %v3084
      %v3769 = vpack.c.b16 %v3094, %v3085
      %v3770 = vpack.c.b16 %v3095, %v3086
      %v3771 = vpack.c.b16 %v3096, %v3087
      %v3772 = vpack.c.b16 %v3097, %v3088
      %v3773 = vpack.c.b16 %v3107, %v3098
      %v3774 = vpack.c.b16 %v3108, %v3099
      %v3775 = vpack.c.b16 %v3109, %v3100
      %v3776 = vpack.c.b16 %v3110, %v3101
      %v3777 = vpack.c.b16 %v3111, %v3102
      %v3778 = vpack.c.b16 %v3112, %v3103
      %v3779 = vpack.c.b16 %v3113, %v3104
      %v3780 = vpack.c.b16 %v3114, %v3105
      %v3781 = vpack.c.b16 %v3115, %v3106
      %v3782 = vpack.c.b16 %v3125, %v3116
      %v3783 = vpack.c.b16 %v3126, %v3117
      %v3784 = vpack.c.b16 %v3127, %v3118
      %v3785 = vpack.c.b16 %v3128, %v3119
      %v3786 = vpack.c.b16 %v3129, %v3120
      %v3787 = vpack.c.b16 %v3130, %v3121
      %v3788 = vpack.c.b16 %v3131, %v3122
      %v3789 = vpack.c.b16 %v3132, %v3123
      %v3790 = vpack.c.b16 %v3133, %v3124
      %v3791 = vpack.c.b16 %v3143, %v3134
      %v3792 = vpack.c.b16 %v3144, %v3135
      %v3793 = vpack.c.b16 %v3145, %v3136
      %v3794 = vpack.c.b16 %v3146, %v3137
      %v3795 = vpack.c.b16 %v3147, %v3138
      %v3796 = vpack.c.b16 %v3148, %v3139
      %v3797 = vpack.c.b16 %v3149, %v3140
      %v3798 = vpack.c.b16 %v3150, %v3141
      %v3799 = vpack.c.b16 %v3151, %v3142
      %v3800 = vpack.c.b16 %v3161, %v3152
      %v3801 = vpack.c.b16 %v3162, %v3153
      %v3802 = vpack.c.b16 %v3163, %v3154
      %v3803 = vpack.c.b16 %v3164, %v3155
      %v3804 = vpack.c.b16 %v3165, %v3156
      %v3805 = vpack.c.b16 %v3166, %v3157
      %v3806 = vpack.c.b16 %v3167, %v3158
      %v3807 = vpack.c.b16 %v3168, %v3159
      %v3808 = vpack.c.b16 %v3169, %v3160
      %v3809 = vpack.c.b16 %v3179, %v3170
      %v3810 = vpack.c.b16 %v3180, %v3171
      %v3811 = vpack.c.b16 %v3181, %v3172
      %v3812 = vpack.c.b16 %v3182, %v3173
      %v3813 = vpack.c.b16 %v3183, %v3174
      %v3814 = vpack.c.b16 %v3184, %v3175
      %v3815 = vpack.c.b16 %v3185, %v3176
      %v3816 = vpack.c.b16 %v3186, %v3177
      %v3817 = vpack.c.b16 %v3187, %v3178
      %v3818 = vpack.c.b16 %v3197, %v3188
      %v3819 = vpack.c.b16 %v3198, %v3189
      %v3820 = vpack.c.b16 %v3199, %v3190
      %v3821 = vpack.c.b16 %v3200, %v3191
      %v3822 = vpack.c.b16 %v3201, %v3192
      %v3823 = vpack.c.b16 %v3202, %v3193
      %v3824 = vpack.c.b16 %v3203, %v3194
      %v3825 = vpack.c.b16 %v3204, %v3195
      %v3826 = vpack.c.b16 %v3205, %v3196
      %v3827 = vpack.c.b16 %v3215, %v3206
      %v3828 = vpack.c.b16 %v3216, %v3207
      %v3829 = vpack.c.b16 %v3217, %v3208
      %v3830 = vpack.c.b16 %v3218, %v3209
      %v3831 = vpack.c.b16 %v3219, %v3210
      %v3832 = vpack.c.b16 %v3220, %v3211
      %v3833 = vpack.c.b16 %v3221, %v3212
      %v3834 = vpack.c.b16 %v3222, %v3213
      %v3835 = vpack.c.b16 %v3223, %v3214
      %v3836 = vpack.c.b16 %v3233, %v3224
      %v3837 = vpack.c.b16 %v3234, %v3225
      %v3838 = vpack.c.b16 %v3235, %v3226
      %v3839 = vpack.c.b16 %v3236, %v3227
      %v3840 = vpack.c.b16 %v3237, %v3228
      %v3841 = vpack.c.b16 %v3238, %v3229
      %v3842 = vpack.c.b16 %v3239, %v3230
      %v3843 = vpack.c.b16 %v3240, %v3231
      %v3844 = vpack.c.b16 %v3241, %v3232
      %v3845 = vpack.c.b16 %v3251, %v3242
      %v3846 = vpack.c.b16 %v3252, %v3243
      %v3847 = vpack.c.b16 %v3253, %v3244
      %v3848 = vpack.c.b16 %v3254, %v3245
      %v3849 = vpack.c.b16 %v3255, %v3246
      %v3850 = vpack.c.b16 %v3256, %v3247
      %v3851 = vpack.c.b16 %v3257, %v3248
      %v3852 = vpack.c.b16 %v3258, %v3249
      %v3853 = vpack.c.b16 %v3259, %v3250
      %v3854 = vpack.c.b16 %v3269, %v3260
      %v3855 = vpack.c.b16 %v3270, %v3261
      %v3856 = vpack.c.b16 %v3271, %v3262
      %v3857 = vpack.c.b16 %v3272, %v3263
      %v3858 = vpack.c.b16 %v3273, %v3264
      %v3859 = vpack.c.b16 %v3274, %v3265
      %v3860 = vpack.c.b16 %v3275, %v3266
      %v3861 = vpack.c.b16 %v3276, %v3267
      %v3862 = vpack.c.b16 %v3277, %v3268
      %v3863 = vpack.c.b16 %v3287, %v3278
      %v3864 = vpack.c.b16 %v3288, %v3279
      %v3865 = vpack.c.b16 %v3289, %v3280
      %v3866 = vpack.c.b16 %v3290, %v3281
      %v3867 = vpack.c.b16 %v3291, %v3282
      %v3868 = vpack.c.b16 %v3292, %v3283
      %v3869 = vpack.c.b16 %v3293, %v3284
      %v3870 = vpack.c.b16 %v3294, %v3285
      %v3871 = vpack.c.b16 %v3295, %v3286
      %v3872 = vpack.c.b16 %v3305, %v3296
      %v3873 = vpack.c.b16 %v3306, %v3297
      %v3874 = vpack.c.b16 %v3307, %v3298
      %v3875 = vpack.c.b16 %v3308, %v3299
      %v3876 = vpack.c.b16 %v3309, %v3300
      %v3877 = vpack.c.b16 %v3310, %v3301
      %v3878 = vpack.c.b16 %v3311, %v3302
      %v3879 = vpack.c.b16 %v3312, %v3303
      %v3880 = vpack.c.b16 %v3313, %v3304
      %v3881 = vpack.c.b16 %v3323, %v3314
      %v3882 = vpack.c.b16 %v3324, %v3315
      %v3883 = vpack.c.b16 %v3325, %v3316
      %v3884 = vpack.c.b16 %v3326, %v3317
      %v3885 = vpack.c.b16 %v3327, %v3318
      %v3886 = vpack.c.b16 %v3328, %v3319
      %v3887 = vpack.c.b16 %v3329, %v3320
      %v3888 = vpack.c.b16 %v3330, %v3321
      %v3889 = vpack.c.b16 %v3331, %v3322
      %v3890 = vpack.c.b16 %v3341, %v3332
      %v3891 = vpack.c.b16 %v3342, %v3333
      %v3892 = vpack.c.b16 %v3343, %v3334
      %v3893 = vpack.c.b16 %v3344, %v3335
      %v3894 = vpack.c.b16 %v3345, %v3336
      %v3895 = vpack.c.b16 %v3346, %v3337
      %v3896 = vpack.c.b16 %v3347, %v3338
      %v3897 = vpack.c.b16 %v3348, %v3339
      %v3898 = vpack.c.b16 %v3349, %v3340
      %v3899 = vpack.c.b16 %v3359, %v3350
      %v3900 = vpack.c.b16 %v3360, %v3351
      %v3901 = vpack.c.b16 %v3361, %v3352
      %v3902 = vpack.c.b16 %v3362, %v3353
      %v3903 = vpack.c.b16 %v3363, %v3354
      %v3904 = vpack.c.b16 %v3364, %v3355
      %v3905 = vpack.c.b16 %v3365, %v3356
      %v3906 = vpack.c.b16 %v3366, %v3357
      %v3907 = vpack.c.b16 %v3367, %v3358
      %v3908 = vpack.c.b16 %v3377, %v3368
      %v3909 = vpack.c.b16 %v3378, %v3369
      %v3910 = vpack.c.b16 %v3379, %v3370
      %v3911 = vpack.c.b16 %v3380, %v3371
      %v3912 = vpack.c.b16 %v3381, %v3372
      %v3913 = vpack.c.b16 %v3382, %v3373
      %v3914 = vpack.c.b16 %v3383, %v3374
      %v3915 = vpack.c.b16 %v3384, %v3375
      %v3916 = vpack.c.b16 %v3385, %v3376
      %v3917 = vpack.c.b16 %v3395, %v3386
      %v3918 = vpack.c.b16 %v3396, %v3387
      %v3919 = vpack.c.b16 %v3397, %v3388
      %v3920 = vpack.c.b16 %v3398, %v3389
      %v3921 = vpack.c.b16 %v3399, %v3390
      %v3922 = vpack.c.b16 %v3400, %v3391
      %v3923 = vpack.c.b16 %v3401, %v3392
      %v3924 = vpack.c.b16 %v3402, %v3393
      %v3925 = vpack.c.b16 %v3403, %v3394
      %v3926 = vpack.c.b16 %v3413, %v3404
      %v3927 = vpack.c.b16 %v3414, %v3405
      %v3928 = vpack.c.b16 %v3415, %v3406
      %v3929 = vpack.c.b16 %v3416, %v3407
      %v3930 = vpack.c.b16 %v3417, %v3408
      %v3931 = vpack.c.b16 %v3418, %v3409
      %v3932 = vpack.c.b16 %v3419, %v3410
      %v3933 = vpack.c.b16 %v3420, %v3411
      %v3934 = vpack.c.b16 %v3421, %v3412
      %v3935 = vpack.c.b16 %v3431, %v3422
      %v3936 = vpack.c.b16 %v3432, %v3423
      %v3937 = vpack.c.b16 %v3433, %v3424
      %v3938 = vpack.c.b16 %v3434, %v3425
      %v3939 = vpack.c.b16 %v3435, %v3426
      %v3940 = vpack.c.b16 %v3436, %v3427
      %v3941 = vpack.c.b16 %v3437, %v3428
      %v3942 = vpack.c.b16 %v3438, %v3429
      %v3943 = vpack.c.b16 %v3439, %v3430
      %v3944 = vpack.c.b16 %v3449, %v3440
      %v3945 = vpack.c.b16 %v3450, %v3441
      %v3946 = vpack.c.b16 %v3451, %v3442
      %v3947 = vpack.c.b16 %v3452, %v3443
      %v3948 = vpack.c.b16 %v3453, %v3444
      %v3949 = vpack.c.b16 %v3454, %v3445
      %v3950 = vpack.c.b16 %v3455, %v3446
      %v3951 = vpack.c.b16 %v3456, %v3447
      %v3952 = vpack.c.b16 %v3457, %v3448
      %v3953 = vpack.c.b16 %v3467, %v3458
      %v3954 = vpack.c.b16 %v3468, %v3459
      %v3955 = vpack.c.b16 %v3469, %v3460
      %v3956 = vpack.c.b16 %v3470, %v3461
      %v3957 = vpack.c.b16 %v3471, %v3462
      %v3958 = vpack.c.b16 %v3472, %v3463
      %v3959 = vpack.c.b16 %v3473, %v3464
      %v3960 = vpack.c.b16 %v3474, %v3465
      %v3961 = vpack.c.b16 %v3475, %v3466
      %v3962 = vpack.c.b16 %v3485, %v3476
      %v3963 = vpack.c.b16 %v3486, %v3477
      %v3964 = vpack.c.b16 %v3487, %v3478
      %v3965 = vpack.c.b16 %v3488, %v3479
      %v3966 = vpack.c.b16 %v3489, %v3480
      %v3967 = vpack.c.b16 %v3490, %v3481
      %v3968 = vpack.c.b16 %v3491, %v3482
      %v3969 = vpack.c.b16 %v3492, %v3483
      %v3970 = vpack.c.b16 %v3493, %v3484
      %v3971 = vpack.c.b16 %v3503, %v3494
      %v3972 = vpack.c.b16 %v3504, %v3495
      %v3973 = vpack.c.b16 %v3505, %v3496
      %v3974 = vpack.c.b16 %v3506, %v3497
      %v3975 = vpack.c.b16 %v3507, %v3498
      %v3976 = vpack.c.b16 %v3508, %v3499
      %v3977 = vpack.c.b16 %v3509, %v3500
      %v3978 = vpack.c.b16 %v3510, %v3501
      %v3979 = vpack.c.b16 %v3511, %v3502
      %v3980 = vpack.c.b16 %v3521, %v3512
      %v3981 = vpack.c.b16 %v3522, %v3513
      %v3982 = vpack.c.b16 %v3523, %v3514
      %v3983 = vpack.c.b16 %v3524, %v3515
      %v3984 = vpack.c.b16 %v3525, %v3516
      %v3985 = vpack.c.b16 %v3526, %v3517
      %v3986 = vpack.c.b16 %v3527, %v3518
      %v3987 = vpack.c.b16 %v3528, %v3519
      %v3988 = vpack.c.b16 %v3529, %v3520
      %v3989 = vpack.c.b16 %v3539, %v3530
      %v3990 = vpack.c.b16 %v3540, %v3531
      %v3991 = vpack.c.b16 %v3541, %v3532
      %v3992 = vpack.c.b16 %v3542, %v3533
      %v3993 = vpack.c.b16 %v3543, %v3534
      %v3994 = vpack.c.b16 %v3544, %v3535
      %v3995 = vpack.c.b16 %v3545, %v3536
      %v3996 = vpack.c.b16 %v3546, %v3537
      %v3997 = vpack.c.b16 %v3547, %v3538
      %v3998 = vpack.c.b16 %v3557, %v3548
      %v3999 = vpack.c.b16 %v3558, %v3549
      %v4000 = vpack.c.b16 %v3559, %v3550
      %v4001 = vpack.c.b16 %v3560, %v3551
      %v4002 = vpack.c.b16 %v3561, %v3552
      %v4003 = vpack.c.b16 %v3562, %v3553
      %v4004 = vpack.c.b16 %v3563, %v3554
      %v4005 = vpack.c.b16 %v3564, %v3555
      %v4006 = vpack.c.b16 %v3565, %v3556
      %v4007 = vpack.c.b16 %v3575, %v3566
      %v4008 = vpack.c.b16 %v3576, %v3567
      %v4009 = vpack.c.b16 %v3577, %v3568
      %v4010 = vpack.c.b16 %v3578, %v3569
      %v4011 = vpack.c.b16 %v3579, %v3570
      %v4012 = vpack.c.b16 %v3580, %v3571
      %v4013 = vpack.c.b16 %v3581, %v3572
      %v4014 = vpack.c.b16 %v3582, %v3573
      %v4015 = vpack.c.b16 %v3583, %v3574
      %v4448 = vunpack.c.l.b16 %v3584
      %v4449 = vunpack.c.l.b16 %v3585
      %v4450 = vunpack.c.l.b16 %v3586
      %v4451 = vunpack.c.l.b16 %v3587
      %v4452 = vunpack.c.l.b16 %v3588
      %v4453 = vunpack.c.l.b16 %v3589
      %v4454 = vunpack.c.l.b16 %v3590
      %v4455 = vunpack.c.l.b16 %v3591
      %v4456 = vunpack.c.l.b16 %v3592
      %v4457 = vunpack.c.l.b16 %v3593
      %v4458 = vunpack.c.l.b16 %v3594
      %v4459 = vunpack.c.l.b16 %v3595
      %v4460 = vunpack.c.l.b16 %v3596
      %v4461 = vunpack.c.l.b16 %v3597
      %v4462 = vunpack.c.l.b16 %v3598
      %v4463 = vunpack.c.l.b16 %v3599
      %v4464 = vunpack.c.l.b16 %v3600
      %v4465 = vunpack.c.l.b16 %v3601
      %v4466 = vunpack.c.l.b16 %v3602
      %v4467 = vunpack.c.l.b16 %v3603
      %v4468 = vunpack.c.l.b16 %v3604
      %v4469 = vunpack.c.l.b16 %v3605
      %v4470 = vunpack.c.l.b16 %v3606
      %v4471 = vunpack.c.l.b16 %v3607
      %v4472 = vunpack.c.l.b16 %v3608
      %v4473 = vunpack.c.l.b16 %v3609
      %v4474 = vunpack.c.l.b16 %v3610
      %v4475 = vunpack.c.l.b16 %v3611
      %v4476 = vunpack.c.l.b16 %v3612
      %v4477 = vunpack.c.l.b16 %v3613
      %v4478 = vunpack.c.l.b16 %v3614
      %v4479 = vunpack.c.l.b16 %v3615
      %v4480 = vunpack.c.l.b16 %v3616
      %v4481 = vunpack.c.l.b16 %v3617
      %v4482 = vunpack.c.l.b16 %v3618
      %v4483 = vunpack.c.l.b16 %v3619
      %v4484 = vunpack.c.l.b16 %v3620
      %v4485 = vunpack.c.l.b16 %v3621
      %v4486 = vunpack.c.l.b16 %v3622
      %v4487 = vunpack.c.l.b16 %v3623
      %v4488 = vunpack.c.l.b16 %v3624
      %v4489 = vunpack.c.l.b16 %v3625
      %v4490 = vunpack.c.l.b16 %v3626
      %v4491 = vunpack.c.l.b16 %v3627
      %v4492 = vunpack.c.l.b16 %v3628
      %v4493 = vunpack.c.l.b16 %v3629
      %v4494 = vunpack.c.l.b16 %v3630
      %v4495 = vunpack.c.l.b16 %v3631
      %v4496 = vunpack.c.l.b16 %v3632
      %v4497 = vunpack.c.l.b16 %v3633
      %v4498 = vunpack.c.l.b16 %v3634
      %v4499 = vunpack.c.l.b16 %v3635
      %v4500 = vunpack.c.l.b16 %v3636
      %v4501 = vunpack.c.l.b16 %v3637
      %v4502 = vunpack.c.l.b16 %v3638
      %v4503 = vunpack.c.l.b16 %v3639
      %v4504 = vunpack.c.l.b16 %v3640
      %v4505 = vunpack.c.l.b16 %v3641
      %v4506 = vunpack.c.l.b16 %v3642
      %v4507 = vunpack.c.l.b16 %v3643
      %v4508 = vunpack.c.l.b16 %v3644
      %v4509 = vunpack.c.l.b16 %v3645
      %v4510 = vunpack.c.l.b16 %v3646
      %v4511 = vunpack.c.l.b16 %v3647
      %v4512 = vunpack.c.l.b16 %v3648
      %v4513 = vunpack.c.l.b16 %v3649
      %v4514 = vunpack.c.l.b16 %v3650
      %v4515 = vunpack.c.l.b16 %v3651
      %v4516 = vunpack.c.l.b16 %v3652
      %v4517 = vunpack.c.l.b16 %v3653
      %v4518 = vunpack.c.l.b16 %v3654
      %v4519 = vunpack.c.l.b16 %v3655
      %v4520 = vunpack.c.l.b16 %v3656
      %v4521 = vunpack.c.l.b16 %v3657
      %v4522 = vunpack.c.l.b16 %v3658
      %v4523 = vunpack.c.l.b16 %v3659
      %v4524 = vunpack.c.l.b16 %v3660
      %v4525 = vunpack.c.l.b16 %v3661
      %v4526 = vunpack.c.l.b16 %v3662
      %v4527 = vunpack.c.l.b16 %v3663
      %v4528 = vunpack.c.l.b16 %v3664
      %v4529 = vunpack.c.l.b16 %v3665
      %v4530 = vunpack.c.l.b16 %v3666
      %v4531 = vunpack.c.l.b16 %v3667
      %v4532 = vunpack.c.l.b16 %v3668
      %v4533 = vunpack.c.l.b16 %v3669
      %v4534 = vunpack.c.l.b16 %v3670
      %v4535 = vunpack.c.l.b16 %v3671
      %v4536 = vunpack.c.l.b16 %v3672
      %v4537 = vunpack.c.l.b16 %v3673
      %v4538 = vunpack.c.l.b16 %v3674
      %v4539 = vunpack.c.l.b16 %v3675
      %v4540 = vunpack.c.l.b16 %v3676
      %v4541 = vunpack.c.l.b16 %v3677
      %v4542 = vunpack.c.l.b16 %v3678
      %v4543 = vunpack.c.l.b16 %v3679
      %v4544 = vunpack.c.l.b16 %v3680
      %v4545 = vunpack.c.l.b16 %v3681
      %v4546 = vunpack.c.l.b16 %v3682
      %v4547 = vunpack.c.l.b16 %v3683
      %v4548 = vunpack.c.l.b16 %v3684
      %v4549 = vunpack.c.l.b16 %v3685
      %v4550 = vunpack.c.l.b16 %v3686
      %v4551 = vunpack.c.l.b16 %v3687
      %v4552 = vunpack.c.l.b16 %v3688
      %v4553 = vunpack.c.l.b16 %v3689
      %v4554 = vunpack.c.l.b16 %v3690
      %v4555 = vunpack.c.l.b16 %v3691
      %v4556 = vunpack.c.l.b16 %v3692
      %v4557 = vunpack.c.l.b16 %v3693
      %v4558 = vunpack.c.l.b16 %v3694
      %v4559 = vunpack.c.l.b16 %v3695
      %v4560 = vunpack.c.l.b16 %v3696
      %v4561 = vunpack.c.l.b16 %v3697
      %v4562 = vunpack.c.l.b16 %v3698
      %v4563 = vunpack.c.l.b16 %v3699
      %v4564 = vunpack.c.l.b16 %v3700
      %v4565 = vunpack.c.l.b16 %v3701
      %v4566 = vunpack.c.l.b16 %v3702
      %v4567 = vunpack.c.l.b16 %v3703
      %v4568 = vunpack.c.l.b16 %v3704
      %v4569 = vunpack.c.l.b16 %v3705
      %v4570 = vunpack.c.l.b16 %v3706
      %v4571 = vunpack.c.l.b16 %v3707
      %v4572 = vunpack.c.l.b16 %v3708
      %v4573 = vunpack.c.l.b16 %v3709
      %v4574 = vunpack.c.l.b16 %v3710
      %v4575 = vunpack.c.l.b16 %v3711
      %v4576 = vunpack.c.l.b16 %v3712
      %v4577 = vunpack.c.l.b16 %v3713
      %v4578 = vunpack.c.l.b16 %v3714
      %v4579 = vunpack.c.l.b16 %v3715
      %v4580 = vunpack.c.l.b16 %v3716
      %v4581 = vunpack.c.l.b16 %v3717
      %v4582 = vunpack.c.l.b16 %v3718
      %v4583 = vunpack.c.l.b16 %v3719
      %v4584 = vunpack.c.l.b16 %v3720
      %v4585 = vunpack.c.l.b16 %v3721
      %v4586 = vunpack.c.l.b16 %v3722
      %v4587 = vunpack.c.l.b16 %v3723
      %v4588 = vunpack.c.l.b16 %v3724
      %v4589 = vunpack.c.l.b16 %v3725
      %v4590 = vunpack.c.l.b16 %v3726
      %v4591 = vunpack.c.l.b16 %v3727
      %v4592 = vpack.c.b16 %v4449, %v4448
      %v4593 = vpack.c.b16 %v4451, %v4450
      %v4594 = vpack.c.b16 %v4453, %v4452
      %v4595 = vpack.c.b16 %v4455, %v4454
      %v4596 = vpack.c.b16 %v4457, %v4456
      %v4597 = vpack.c.b16 %v4459, %v4458
      %v4598 = vpack.c.b16 %v4461, %v4460
      %v4599 = vpack.c.b16 %v4463, %v4462
      %v4600 = vpack.c.b16 %v4465, %v4464
      %v4601 = vpack.c.b16 %v4467, %v4466
      %v4602 = vpack.c.b16 %v4469, %v4468
      %v4603 = vpack.c.b16 %v4471, %v4470
      %v4604 = vpack.c.b16 %v4473, %v4472
      %v4605 = vpack.c.b16 %v4475, %v4474
      %v4606 = vpack.c.b16 %v4477, %v4476
      %v4607 = vpack.c.b16 %v4479, %v4478
      %v4608 = vpack.c.b16 %v4481, %v4480
      %v4609 = vpack.c.b16 %v4483, %v4482
      %v4610 = vpack.c.b16 %v4485, %v4484
      %v4611 = vpack.c.b16 %v4487, %v4486
      %v4612 = vpack.c.b16 %v4489, %v4488
      %v4613 = vpack.c.b16 %v4491, %v4490
      %v4614 = vpack.c.b16 %v4493, %v4492
      %v4615 = vpack.c.b16 %v4495, %v4494
      %v4616 = vpack.c.b16 %v4497, %v4496
      %v4617 = vpack.c.b16 %v4499, %v4498
      %v4618 = vpack.c.b16 %v4501, %v4500
      %v4619 = vpack.c.b16 %v4503, %v4502
      %v4620 = vpack.c.b16 %v4505, %v4504
      %v4621 = vpack.c.b16 %v4507, %v4506
      %v4622 = vpack.c.b16 %v4509, %v4508
      %v4623 = vpack.c.b16 %v4511, %v4510
      %v4624 = vpack.c.b16 %v4513, %v4512
      %v4625 = vpack.c.b16 %v4515, %v4514
      %v4626 = vpack.c.b16 %v4517, %v4516
      %v4627 = vpack.c.b16 %v4519, %v4518
      %v4628 = vpack.c.b16 %v4521, %v4520
      %v4629 = vpack.c.b16 %v4523, %v4522
      %v4630 = vpack.c.b16 %v4525, %v4524
      %v4631 = vpack.c.b16 %v4527, %v4526
      %v4632 = vpack.c.b16 %v4529, %v4528
      %v4633 = vpack.c.b16 %v4531, %v4530
      %v4634 = vpack.c.b16 %v4533, %v4532
      %v4635 = vpack.c.b16 %v4535, %v4534
      %v4636 = vpack.c.b16 %v4537, %v4536
      %v4637 = vpack.c.b16 %v4539, %v4538
      %v4638 = vpack.c.b16 %v4541, %v4540
      %v4639 = vpack.c.b16 %v4543, %v4542
      %v4640 = vpack.c.b16 %v4545, %v4544
      %v4641 = vpack.c.b16 %v4547, %v4546
      %v4642 = vpack.c.b16 %v4549, %v4548
      %v4643 = vpack.c.b16 %v4551, %v4550
      %v4644 = vpack.c.b16 %v4553, %v4552
      %v4645 = vpack.c.b16 %v4555, %v4554
      %v4646 = vpack.c.b16 %v4557, %v4556
      %v4647 = vpack.c.b16 %v4559, %v4558
      %v4648 = vpack.c.b16 %v4561, %v4560
      %v4649 = vpack.c.b16 %v4563, %v4562
      %v4650 = vpack.c.b16 %v4565, %v4564
      %v4651 = vpack.c.b16 %v4567, %v4566
      %v4652 = vpack.c.b16 %v4569, %v4568
      %v4653 = vpack.c.b16 %v4571, %v4570
      %v4654 = vpack.c.b16 %v4573, %v4572
      %v4655 = vpack.c.b16 %v4575, %v4574
      %v4656 = vpack.c.b16 %v4577, %v4576
      %v4657 = vpack.c.b16 %v4579, %v4578
      %v4658 = vpack.c.b16 %v4581, %v4580
      %v4659 = vpack.c.b16 %v4583, %v4582
      %v4660 = vpack.c.b16 %v4585, %v4584
      %v4661 = vpack.c.b16 %v4587, %v4586
      %v4662 = vpack.c.b16 %v4589, %v4588
      %v4663 = vpack.c.b16 %v4591, %v4590
      %4736 = vmatprep.subr.bf16.mxu0 0
      %4737 = vmatpush1.bf16.msra.mxu0 %v4592
      %4738 = vmatprep.subr.bf16.mxu0 0
      %4739 = vmatpush1.bf16.msra.mxu0 %v4593
      %4740 = vmatprep.subr.bf16.mxu0 0
      %4741 = vmatpush1.bf16.msra.mxu0 %v4594
      %4742 = vmatprep.subr.bf16.mxu0 0
      %4743 = vmatpush1.bf16.msra.mxu0 %v4595
      %4744 = vmatprep.subr.bf16.mxu0 0
      %4745 = vmatpush1.bf16.msra.mxu0 %v4596
      %4746 = vmatprep.subr.bf16.mxu0 0
      %4747 = vmatpush1.bf16.msra.mxu0 %v4597
      %4748 = vmatprep.subr.bf16.mxu0 0
      %4749 = vmatpush1.bf16.msra.mxu0 %v4598
      %4750 = vmatprep.subr.bf16.mxu0 0
      %4751 = vmatpush1.bf16.msra.mxu0 %v4599
      %4752 = vmatprep.subr.bf16.mxu0 0
      %4753 = vmatpush1.bf16.msra.mxu0 %v4600
      %4754 = vmatprep.subr.bf16.mxu0 0
      %4755 = vmatpush1.bf16.msra.mxu0 %v4601
      %4756 = vmatprep.subr.bf16.mxu0 0
      %4757 = vmatpush1.bf16.msra.mxu0 %v4602
      %4758 = vmatprep.subr.bf16.mxu0 0
      %4759 = vmatpush1.bf16.msra.mxu0 %v4603
      %4760 = vmatprep.subr.bf16.mxu0 0
      %4761 = vmatpush1.bf16.msra.mxu0 %v4604
      %4762 = vmatprep.subr.bf16.mxu0 0
      %4763 = vmatpush1.bf16.msra.mxu0 %v4605
      %4764 = vmatprep.subr.bf16.mxu0 0
      %4765 = vmatpush1.bf16.msra.mxu0 %v4606
      %4766 = vmatprep.subr.bf16.mxu0 0
      %4767 = vmatpush1.bf16.msra.mxu0 %v4607
      %4768 = vmatprep.mubr.bf16.mxu0 %v3729
      %4769 = vmatmul.mubr.bf16.gmra.mrb[0].mxu0 %v3728
      %v4770 = vpop.f32.mrb[0].mxu0
      %v4771 = vadd.f32 0.0, %v4770
      %v4772 = vpop.f32.mrb[0].mxu0
      %v4773 = vpop.f32.mrb[0].mxu0
      %v4774 = vadd.f32 0.0, %v4773
      %v4775 = vpop.f32.mrb[0].mxu0
      %4776 = vmatprep.mubr.bf16.mxu0 %v3738
      %4777 = vmatmul.mubr.bf16.gmra.mrb[0].mxu0 %v3737
      %v4778 = vpop.f32.mrb[0].mxu0
      %v4779 = vadd.f32 0.0, %v4778
      %v4780 = vpop.f32.mrb[0].mxu0
      %v4781 = vpop.f32.mrb[0].mxu0
      %v4782 = vadd.f32 0.0, %v4781
      %v4783 = vpop.f32.mrb[0].mxu0
      %4784 = vmatprep.mubr.bf16.mxu0 %v3747
      %4785 = vmatmul.mubr.bf16.gmra.mrb[0].mxu0 %v3746
      %v4786 = vpop.f32.mrb[0].mxu0
      %v4787 = vadd.f32 0.0, %v4786
      %v4788 = vpop.f32.mrb[0].mxu0
      %v4789 = vpop.f32.mrb[0].mxu0
      %v4790 = vadd.f32 0.0, %v4789
      %v4791 = vpop.f32.mrb[0].mxu0
      %4792 = vmatprep.mubr.bf16.mxu0 %v3756
      %4793 = vmatmul.mubr.bf16.gmra.mrb[0].mxu0 %v3755
      %v4794 = vpop.f32.mrb[0].mxu0
      %v4795 = vadd.f32 0.0, %v4794
      %v4796 = vpop.f32.mrb[0].mxu0
      %v4797 = vpop.f32.mrb[0].mxu0
      %v4798 = vadd.f32 0.0, %v4797
      %v4799 = vpop.f32.mrb[0].mxu0
      %4800 = vmatprep.mubr.bf16.mxu0 %v3765
      %4801 = vmatmul.mubr.bf16.gmra.mrb[0].mxu0 %v3764
      %v4802 = vpop.f32.mrb[0].mxu0
      %v4803 = vadd.f32 0.0, %v4802
      %v4804 = vpop.f32.mrb[0].mxu0
      %v4805 = vpop.f32.mrb[0].mxu0
      %v4806 = vadd.f32 0.0, %v4805
      %v4807 = vpop.f32.mrb[0].mxu0
      %4808 = vmatprep.mubr.bf16.mxu0 %v3774
      %4809 = vmatmul.mubr.bf16.gmra.mrb[0].mxu0 %v3773
      %v4810 = vpop.f32.mrb[0].mxu0
      %v4811 = vadd.f32 0.0, %v4810
      %v4812 = vpop.f32.mrb[0].mxu0
      %v4813 = vpop.f32.mrb[0].mxu0
      %v4814 = vadd.f32 0.0, %v4813
      %v4815 = vpop.f32.mrb[0].mxu0
      %4816 = vmatprep.mubr.bf16.mxu0 %v3783
      %4817 = vmatmul.mubr.bf16.gmra.mrb[0].mxu0 %v3782
      %v4818 = vpop.f32.mrb[0].mxu0
      %v4819 = vadd.f32 0.0, %v4818
      %v4820 = vpop.f32.mrb[0].mxu0
      %v4821 = vpop.f32.mrb[0].mxu0
      %v4822 = vadd.f32 0.0, %v4821
      %v4823 = vpop.f32.mrb[0].mxu0
      %4824 = vmatprep.mubr.bf16.mxu0 %v3792
      %4825 = vmatmul.mubr.bf16.gmra.mrb[0].mxu0 %v3791
      %v4826 = vpop.f32.mrb[0].mxu0
      %v4827 = vadd.f32 0.0, %v4826
      %v4828 = vpop.f32.mrb[0].mxu0
      %v4829 = vpop.f32.mrb[0].mxu0
      %v4830 = vadd.f32 0.0, %v4829
      %v4831 = vpop.f32.mrb[0].mxu0
      %4832 = vmatprep.mubr.bf16.mxu0 %v3801
      %4833 = vmatmul.mubr.bf16.gmra.mrb[0].mxu0 %v3800
      %v4834 = vpop.f32.mrb[0].mxu0
      %v4835 = vadd.f32 0.0, %v4834
      %v4836 = vpop.f32.mrb[0].mxu0
      %v4837 = vpop.f32.mrb[0].mxu0
      %v4838 = vadd.f32 0.0, %v4837
      %v4839 = vpop.f32.mrb[0].mxu0
      %4840 = vmatprep.mubr.bf16.mxu0 %v3810
      %4841 = vmatmul.mubr.bf16.gmra.mrb[0].mxu0 %v3809
      %v4842 = vpop.f32.mrb[0].mxu0
      %v4843 = vadd.f32 0.0, %v4842
      %v4844 = vpop.f32.mrb[0].mxu0
      %v4845 = vpop.f32.mrb[0].mxu0
      %v4846 = vadd.f32 0.0, %v4845
      %v4847 = vpop.f32.mrb[0].mxu0
      %4848 = vmatprep.mubr.bf16.mxu0 %v3819
      %4849 = vmatmul.mubr.bf16.gmra.mrb[0].mxu0 %v3818
      %v4850 = vpop.f32.mrb[0].mxu0
      %v4851 = vadd.f32 0.0, %v4850
      %v4852 = vpop.f32.mrb[0].mxu0
      %v4853 = vpop.f32.mrb[0].mxu0
      %v4854 = vadd.f32 0.0, %v4853
      %v4855 = vpop.f32.mrb[0].mxu0
      %4856 = vmatprep.mubr.bf16.mxu0 %v3828
      %4857 = vmatmul.mubr.bf16.gmra.mrb[0].mxu0 %v3827
      %v4858 = vpop.f32.mrb[0].mxu0
      %v4859 = vadd.f32 0.0, %v4858
      %v4860 = vpop.f32.mrb[0].mxu0
      %v4861 = vpop.f32.mrb[0].mxu0
      %v4862 = vadd.f32 0.0, %v4861
      %v4863 = vpop.f32.mrb[0].mxu0
      %4864 = vmatprep.mubr.bf16.mxu0 %v3837
      %4865 = vmatmul.mubr.bf16.gmra.mrb[0].mxu0 %v3836
      %v4866 = vpop.f32.mrb[0].mxu0
      %v4867 = vadd.f32 0.0, %v4866
      %v4868 = vpop.f32.mrb[0].mxu0
      %v4869 = vpop.f32.mrb[0].mxu0
      %v4870 = vadd.f32 0.0, %v4869
      %v4871 = vpop.f32.mrb[0].mxu0
      %4872 = vmatprep.mubr.bf16.mxu0 %v3846
      %4873 = vmatmul.mubr.bf16.gmra.mrb[0].mxu0 %v3845
      %v4874 = vpop.f32.mrb[0].mxu0
      %v4875 = vadd.f32 0.0, %v4874
      %v4876 = vpop.f32.mrb[0].mxu0
      %v4877 = vpop.f32.mrb[0].mxu0
      %v4878 = vadd.f32 0.0, %v4877
      %v4879 = vpop.f32.mrb[0].mxu0
      %4880 = vmatprep.mubr.bf16.mxu0 %v3855
      %4881 = vmatmul.mubr.bf16.gmra.mrb[0].mxu0 %v3854
      %v4882 = vpop.f32.mrb[0].mxu0
      %v4883 = vadd.f32 0.0, %v4882
      %v4884 = vpop.f32.mrb[0].mxu0
      %v4885 = vpop.f32.mrb[0].mxu0
      %v4886 = vadd.f32 0.0, %v4885
      %v4887 = vpop.f32.mrb[0].mxu0
      %4888 = vmatprep.mubr.bf16.mxu0 %v3864
      %4889 = vmatmul.mubr.bf16.gmra.mrb[0].mxu0 %v3863
      %v4890 = vpop.f32.mrb[0].mxu0
      %v4891 = vadd.f32 0.0, %v4890
      %v4892 = vpop.f32.mrb[0].mxu0
      %v4893 = vpop.f32.mrb[0].mxu0
      %v4894 = vadd.f32 0.0, %v4893
      %v4895 = vpop.f32.mrb[0].mxu0
      %4896 = vmatprep.mubr.bf16.mxu0 %v3873
      %4897 = vmatmul.mubr.bf16.gmra.mrb[0].mxu0 %v3872
      %v4898 = vpop.f32.mrb[0].mxu0
      %v4899 = vadd.f32 0.0, %v4898
      %v4900 = vpop.f32.mrb[0].mxu0
      %v4901 = vpop.f32.mrb[0].mxu0
      %v4902 = vadd.f32 0.0, %v4901
      %v4903 = vpop.f32.mrb[0].mxu0
      %4904 = vmatprep.mubr.bf16.mxu0 %v3882
      %4905 = vmatmul.mubr.bf16.gmra.mrb[0].mxu0 %v3881
      %v4906 = vpop.f32.mrb[0].mxu0
      %v4907 = vadd.f32 0.0, %v4906
      %v4908 = vpop.f32.mrb[0].mxu0
      %v4909 = vpop.f32.mrb[0].mxu0
      %v4910 = vadd.f32 0.0, %v4909
      %v4911 = vpop.f32.mrb[0].mxu0
      %4912 = vmatprep.mubr.bf16.mxu0 %v3891
      %4913 = vmatmul.mubr.bf16.gmra.mrb[0].mxu0 %v3890
      %v4914 = vpop.f32.mrb[0].mxu0
      %v4915 = vadd.f32 0.0, %v4914
      %v4916 = vpop.f32.mrb[0].mxu0
      %v4917 = vpop.f32.mrb[0].mxu0
      %v4918 = vadd.f32 0.0, %v4917
      %v4919 = vpop.f32.mrb[0].mxu0
      %4920 = vmatprep.mubr.bf16.mxu0 %v3900
      %4921 = vmatmul.mubr.bf16.gmra.mrb[0].mxu0 %v3899
      %v4922 = vpop.f32.mrb[0].mxu0
      %v4923 = vadd.f32 0.0, %v4922
      %v4924 = vpop.f32.mrb[0].mxu0
      %v4925 = vpop.f32.mrb[0].mxu0
      %v4926 = vadd.f32 0.0, %v4925
      %v4927 = vpop.f32.mrb[0].mxu0
      %4928 = vmatprep.mubr.bf16.mxu0 %v3909
      %4929 = vmatmul.mubr.bf16.gmra.mrb[0].mxu0 %v3908
      %v4930 = vpop.f32.mrb[0].mxu0
      %v4931 = vadd.f32 0.0, %v4930
      %v4932 = vpop.f32.mrb[0].mxu0
      %v4933 = vpop.f32.mrb[0].mxu0
      %v4934 = vadd.f32 0.0, %v4933
      %v4935 = vpop.f32.mrb[0].mxu0
      %4936 = vmatprep.mubr.bf16.mxu0 %v3918
      %4937 = vmatmul.mubr.bf16.gmra.mrb[0].mxu0 %v3917
      %v4938 = vpop.f32.mrb[0].mxu0
      %v4939 = vadd.f32 0.0, %v4938
      %v4940 = vpop.f32.mrb[0].mxu0
      %v4941 = vpop.f32.mrb[0].mxu0
      %v4942 = vadd.f32 0.0, %v4941
      %v4943 = vpop.f32.mrb[0].mxu0
      %4944 = vmatprep.mubr.bf16.mxu0 %v3927
      %4945 = vmatmul.mubr.bf16.gmra.mrb[0].mxu0 %v3926
      %v4946 = vpop.f32.mrb[0].mxu0
      %v4947 = vadd.f32 0.0, %v4946
      %v4948 = vpop.f32.mrb[0].mxu0
      %v4949 = vpop.f32.mrb[0].mxu0
      %v4950 = vadd.f32 0.0, %v4949
      %v4951 = vpop.f32.mrb[0].mxu0
      %4952 = vmatprep.mubr.bf16.mxu0 %v3936
      %4953 = vmatmul.mubr.bf16.gmra.mrb[0].mxu0 %v3935
      %v4954 = vpop.f32.mrb[0].mxu0
      %v4955 = vadd.f32 0.0, %v4954
      %v4956 = vpop.f32.mrb[0].mxu0
      %v4957 = vpop.f32.mrb[0].mxu0
      %v4958 = vadd.f32 0.0, %v4957
      %v4959 = vpop.f32.mrb[0].mxu0
      %4960 = vmatprep.mubr.bf16.mxu0 %v3945
      %4961 = vmatmul.mubr.bf16.gmra.mrb[0].mxu0 %v3944
      %v4962 = vpop.f32.mrb[0].mxu0
      %v4963 = vadd.f32 0.0, %v4962
      %v4964 = vpop.f32.mrb[0].mxu0
      %v4965 = vpop.f32.mrb[0].mxu0
      %v4966 = vadd.f32 0.0, %v4965
      %v4967 = vpop.f32.mrb[0].mxu0
      %4968 = vmatprep.mubr.bf16.mxu0 %v3954
      %4969 = vmatmul.mubr.bf16.gmra.mrb[0].mxu0 %v3953
      %v4970 = vpop.f32.mrb[0].mxu0
      %v4971 = vadd.f32 0.0, %v4970
      %v4972 = vpop.f32.mrb[0].mxu0
      %v4973 = vpop.f32.mrb[0].mxu0
      %v4974 = vadd.f32 0.0, %v4973
      %v4975 = vpop.f32.mrb[0].mxu0
      %4976 = vmatprep.mubr.bf16.mxu0 %v3963
      %4977 = vmatmul.mubr.bf16.gmra.mrb[0].mxu0 %v3962
      %v4978 = vpop.f32.mrb[0].mxu0
      %v4979 = vadd.f32 0.0, %v4978
      %v4980 = vpop.f32.mrb[0].mxu0
      %v4981 = vpop.f32.mrb[0].mxu0
      %v4982 = vadd.f32 0.0, %v4981
      %v4983 = vpop.f32.mrb[0].mxu0
      %4984 = vmatprep.mubr.bf16.mxu0 %v3972
      %4985 = vmatmul.mubr.bf16.gmra.mrb[0].mxu0 %v3971
      %v4986 = vpop.f32.mrb[0].mxu0
      %v4987 = vadd.f32 0.0, %v4986
      %v4988 = vpop.f32.mrb[0].mxu0
      %v4989 = vpop.f32.mrb[0].mxu0
      %v4990 = vadd.f32 0.0, %v4989
      %v4991 = vpop.f32.mrb[0].mxu0
      %4992 = vmatprep.mubr.bf16.mxu0 %v3981
      %4993 = vmatmul.mubr.bf16.gmra.mrb[0].mxu0 %v3980
      %v4994 = vpop.f32.mrb[0].mxu0
      %v4995 = vadd.f32 0.0, %v4994
      %v4996 = vpop.f32.mrb[0].mxu0
      %v4997 = vpop.f32.mrb[0].mxu0
      %v4998 = vadd.f32 0.0, %v4997
      %v4999 = vpop.f32.mrb[0].mxu0
      %5000 = vmatprep.mubr.bf16.mxu0 %v3990
      %5001 = vmatmul.mubr.bf16.gmra.mrb[0].mxu0 %v3989
      %v5002 = vpop.f32.mrb[0].mxu0
      %v5003 = vadd.f32 0.0, %v5002
      %v5004 = vpop.f32.mrb[0].mxu0
      %v5005 = vpop.f32.mrb[0].mxu0
      %v5006 = vadd.f32 0.0, %v5005
      %v5007 = vpop.f32.mrb[0].mxu0
      %5008 = vmatprep.mubr.bf16.mxu0 %v3999
      %5009 = vmatmul.mubr.bf16.gmra.mrb[0].mxu0 %v3998
      %v5010 = vpop.f32.mrb[0].mxu0
      %v5011 = vadd.f32 0.0, %v5010
      %v5012 = vpop.f32.mrb[0].mxu0
      %v5013 = vpop.f32.mrb[0].mxu0
      %v5014 = vadd.f32 0.0, %v5013
      %v5015 = vpop.f32.mrb[0].mxu0
      %5016 = vmatprep.mubr.bf16.mxu0 %v4008
      %5017 = vmatmul.mubr.bf16.gmra.mrb[0].mxu0 %v4007
      %v5018 = vpop.f32.mrb[0].mxu0
      %v5019 = vadd.f32 0.0, %v5018
      %v5020 = vpop.f32.mrb[0].mxu0
      %v5021 = vpop.f32.mrb[0].mxu0
      %v5022 = vadd.f32 0.0, %v5021
      %v5023 = vpop.f32.mrb[0].mxu0
      %5024 = vdwg.mxu0
      %5025 = vmatprep.subr.bf16.mxu0 0
      %5026 = vmatpush1.bf16.msra.mxu0 %v4608
      %5027 = vmatprep.subr.bf16.mxu0 0
      %5028 = vmatpush1.bf16.msra.mxu0 %v4609
      %5029 = vmatprep.subr.bf16.mxu0 0
      %5030 = vmatpush1.bf16.msra.mxu0 %v4610
      %5031 = vmatprep.subr.bf16.mxu0 0
      %5032 = vmatpush1.bf16.msra.mxu0 %v4611
      %5033 = vmatprep.subr.bf16.mxu0 0
      %5034 = vmatpush1.bf16.msra.mxu0 %v4612
      %5035 = vmatprep.subr.bf16.mxu0 0
      %5036 = vmatpush1.bf16.msra.mxu0 %v4613
      %5037 = vmatprep.subr.bf16.mxu0 0
      %5038 = vmatpush1.bf16.msra.mxu0 %v4614
      %5039 = vmatprep.subr.bf16.mxu0 0
      %5040 = vmatpush1.bf16.msra.mxu0 %v4615
      %5041 = vmatprep.subr.bf16.mxu0 0
      %5042 = vmatpush1.bf16.msra.mxu0 %v4616
      %5043 = vmatprep.subr.bf16.mxu0 0
      %5044 = vmatpush1.bf16.msra.mxu0 %v4617
      %5045 = vmatprep.subr.bf16.mxu0 0
      %5046 = vmatpush1.bf16.msra.mxu0 %v4618
      %5047 = vmatprep.subr.bf16.mxu0 0
      %5048 = vmatpush1.bf16.msra.mxu0 %v4619
      %5049 = vmatprep.subr.bf16.mxu0 0
      %5050 = vmatpush1.bf16.msra.mxu0 %v4620
      %5051 = vmatprep.subr.bf16.mxu0 0
      %5052 = vmatpush1.bf16.msra.mxu0 %v4621
      %5053 = vmatprep.subr.bf16.mxu0 0
      %5054 = vmatpush1.bf16.msra.mxu0 %v4622
      %5055 = vmatprep.subr.bf16.mxu0 0
      %5056 = vmatpush1.bf16.msra.mxu0 %v4623
      %5057 = vmatprep.mubr.bf16.mxu0 %v3731
      %5058 = vmatmul.mubr.bf16.gmra.mrb[0].mxu0 %v3730
      %v5059 = vpop.f32.mrb[0].mxu0
      %v5060 = vadd.f32 %v4771, %v5059
      %v5061 = vpop.f32.mrb[0].mxu0
      %v5062 = vpop.f32.mrb[0].mxu0
      %v5063 = vadd.f32 %v4774, %v5062
      %v5064 = vpop.f32.mrb[0].mxu0
      %5065 = vmatprep.mubr.bf16.mxu0 %v3740
      %5066 = vmatmul.mubr.bf16.gmra.mrb[0].mxu0 %v3739
      %v5067 = vpop.f32.mrb[0].mxu0
      %v5068 = vadd.f32 %v4779, %v5067
      %v5069 = vpop.f32.mrb[0].mxu0
      %v5070 = vpop.f32.mrb[0].mxu0
      %v5071 = vadd.f32 %v4782, %v5070
      %v5072 = vpop.f32.mrb[0].mxu0
      %5073 = vmatprep.mubr.bf16.mxu0 %v3749
      %5074 = vmatmul.mubr.bf16.gmra.mrb[0].mxu0 %v3748
      %v5075 = vpop.f32.mrb[0].mxu0
      %v5076 = vadd.f32 %v4787, %v5075
      %v5077 = vpop.f32.mrb[0].mxu0
      %v5078 = vpop.f32.mrb[0].mxu0
      %v5079 = vadd.f32 %v4790, %v5078
      %v5080 = vpop.f32.mrb[0].mxu0
      %5081 = vmatprep.mubr.bf16.mxu0 %v3758
      %5082 = vmatmul.mubr.bf16.gmra.mrb[0].mxu0 %v3757
      %v5083 = vpop.f32.mrb[0].mxu0
      %v5084 = vadd.f32 %v4795, %v5083
      %v5085 = vpop.f32.mrb[0].mxu0
      %v5086 = vpop.f32.mrb[0].mxu0
      %v5087 = vadd.f32 %v4798, %v5086
      %v5088 = vpop.f32.mrb[0].mxu0
      %5089 = vmatprep.mubr.bf16.mxu0 %v3767
      %5090 = vmatmul.mubr.bf16.gmra.mrb[0].mxu0 %v3766
      %v5091 = vpop.f32.mrb[0].mxu0
      %v5092 = vadd.f32 %v4803, %v5091
      %v5093 = vpop.f32.mrb[0].mxu0
      %v5094 = vpop.f32.mrb[0].mxu0
      %v5095 = vadd.f32 %v4806, %v5094
      %v5096 = vpop.f32.mrb[0].mxu0
      %5097 = vmatprep.mubr.bf16.mxu0 %v3776
      %5098 = vmatmul.mubr.bf16.gmra.mrb[0].mxu0 %v3775
      %v5099 = vpop.f32.mrb[0].mxu0
      %v5100 = vadd.f32 %v4811, %v5099
      %v5101 = vpop.f32.mrb[0].mxu0
      %v5102 = vpop.f32.mrb[0].mxu0
      %v5103 = vadd.f32 %v4814, %v5102
      %v5104 = vpop.f32.mrb[0].mxu0
      %5105 = vmatprep.mubr.bf16.mxu0 %v3785
      %5106 = vmatmul.mubr.bf16.gmra.mrb[0].mxu0 %v3784
      %v5107 = vpop.f32.mrb[0].mxu0
      %v5108 = vadd.f32 %v4819, %v5107
      %v5109 = vpop.f32.mrb[0].mxu0
      %v5110 = vpop.f32.mrb[0].mxu0
      %v5111 = vadd.f32 %v4822, %v5110
      %v5112 = vpop.f32.mrb[0].mxu0
      %5113 = vmatprep.mubr.bf16.mxu0 %v3794
      %5114 = vmatmul.mubr.bf16.gmra.mrb[0].mxu0 %v3793
      %v5115 = vpop.f32.mrb[0].mxu0
      %v5116 = vadd.f32 %v4827, %v5115
      %v5117 = vpop.f32.mrb[0].mxu0
      %v5118 = vpop.f32.mrb[0].mxu0
      %v5119 = vadd.f32 %v4830, %v5118
      %v5120 = vpop.f32.mrb[0].mxu0
      %5121 = vmatprep.mubr.bf16.mxu0 %v3803
      %5122 = vmatmul.mubr.bf16.gmra.mrb[0].mxu0 %v3802
      %v5123 = vpop.f32.mrb[0].mxu0
      %v5124 = vadd.f32 %v4835, %v5123
      %v5125 = vpop.f32.mrb[0].mxu0
      %v5126 = vpop.f32.mrb[0].mxu0
      %v5127 = vadd.f32 %v4838, %v5126
      %v5128 = vpop.f32.mrb[0].mxu0
      %5129 = vmatprep.mubr.bf16.mxu0 %v3812
      %5130 = vmatmul.mubr.bf16.gmra.mrb[0].mxu0 %v3811
      %v5131 = vpop.f32.mrb[0].mxu0
      %v5132 = vadd.f32 %v4843, %v5131
      %v5133 = vpop.f32.mrb[0].mxu0
      %v5134 = vpop.f32.mrb[0].mxu0
      %v5135 = vadd.f32 %v4846, %v5134
      %v5136 = vpop.f32.mrb[0].mxu0
      %5137 = vmatprep.mubr.bf16.mxu0 %v3821
      %5138 = vmatmul.mubr.bf16.gmra.mrb[0].mxu0 %v3820
      %v5139 = vpop.f32.mrb[0].mxu0
      %v5140 = vadd.f32 %v4851, %v5139
      %v5141 = vpop.f32.mrb[0].mxu0
      %v5142 = vpop.f32.mrb[0].mxu0
      %v5143 = vadd.f32 %v4854, %v5142
      %v5144 = vpop.f32.mrb[0].mxu0
      %5145 = vmatprep.mubr.bf16.mxu0 %v3830
      %5146 = vmatmul.mubr.bf16.gmra.mrb[0].mxu0 %v3829
      %v5147 = vpop.f32.mrb[0].mxu0
      %v5148 = vadd.f32 %v4859, %v5147
      %v5149 = vpop.f32.mrb[0].mxu0
      %v5150 = vpop.f32.mrb[0].mxu0
      %v5151 = vadd.f32 %v4862, %v5150
      %v5152 = vpop.f32.mrb[0].mxu0
      %5153 = vmatprep.mubr.bf16.mxu0 %v3839
      %5154 = vmatmul.mubr.bf16.gmra.mrb[0].mxu0 %v3838
      %v5155 = vpop.f32.mrb[0].mxu0
      %v5156 = vadd.f32 %v4867, %v5155
      %v5157 = vpop.f32.mrb[0].mxu0
      %v5158 = vpop.f32.mrb[0].mxu0
      %v5159 = vadd.f32 %v4870, %v5158
      %v5160 = vpop.f32.mrb[0].mxu0
      %5161 = vmatprep.mubr.bf16.mxu0 %v3848
      %5162 = vmatmul.mubr.bf16.gmra.mrb[0].mxu0 %v3847
      %v5163 = vpop.f32.mrb[0].mxu0
      %v5164 = vadd.f32 %v4875, %v5163
      %v5165 = vpop.f32.mrb[0].mxu0
      %v5166 = vpop.f32.mrb[0].mxu0
      %v5167 = vadd.f32 %v4878, %v5166
      %v5168 = vpop.f32.mrb[0].mxu0
      %5169 = vmatprep.mubr.bf16.mxu0 %v3857
      %5170 = vmatmul.mubr.bf16.gmra.mrb[0].mxu0 %v3856
      %v5171 = vpop.f32.mrb[0].mxu0
      %v5172 = vadd.f32 %v4883, %v5171
      %v5173 = vpop.f32.mrb[0].mxu0
      %v5174 = vpop.f32.mrb[0].mxu0
      %v5175 = vadd.f32 %v4886, %v5174
      %v5176 = vpop.f32.mrb[0].mxu0
      %5177 = vmatprep.mubr.bf16.mxu0 %v3866
      %5178 = vmatmul.mubr.bf16.gmra.mrb[0].mxu0 %v3865
      %v5179 = vpop.f32.mrb[0].mxu0
      %v5180 = vadd.f32 %v4891, %v5179
      %v5181 = vpop.f32.mrb[0].mxu0
      %v5182 = vpop.f32.mrb[0].mxu0
      %v5183 = vadd.f32 %v4894, %v5182
      %v5184 = vpop.f32.mrb[0].mxu0
      %5185 = vmatprep.mubr.bf16.mxu0 %v3875
      %5186 = vmatmul.mubr.bf16.gmra.mrb[0].mxu0 %v3874
      %v5187 = vpop.f32.mrb[0].mxu0
      %v5188 = vadd.f32 %v4899, %v5187
      %v5189 = vpop.f32.mrb[0].mxu0
      %v5190 = vpop.f32.mrb[0].mxu0
      %v5191 = vadd.f32 %v4902, %v5190
      %v5192 = vpop.f32.mrb[0].mxu0
      %5193 = vmatprep.mubr.bf16.mxu0 %v3884
      %5194 = vmatmul.mubr.bf16.gmra.mrb[0].mxu0 %v3883
      %v5195 = vpop.f32.mrb[0].mxu0
      %v5196 = vadd.f32 %v4907, %v5195
      %v5197 = vpop.f32.mrb[0].mxu0
      %v5198 = vpop.f32.mrb[0].mxu0
      %v5199 = vadd.f32 %v4910, %v5198
      %v5200 = vpop.f32.mrb[0].mxu0
      %5201 = vmatprep.mubr.bf16.mxu0 %v3893
      %5202 = vmatmul.mubr.bf16.gmra.mrb[0].mxu0 %v3892
      %v5203 = vpop.f32.mrb[0].mxu0
      %v5204 = vadd.f32 %v4915, %v5203
      %v5205 = vpop.f32.mrb[0].mxu0
      %v5206 = vpop.f32.mrb[0].mxu0
      %v5207 = vadd.f32 %v4918, %v5206
      %v5208 = vpop.f32.mrb[0].mxu0
      %5209 = vmatprep.mubr.bf16.mxu0 %v3902
      %5210 = vmatmul.mubr.bf16.gmra.mrb[0].mxu0 %v3901
      %v5211 = vpop.f32.mrb[0].mxu0
      %v5212 = vadd.f32 %v4923, %v5211
      %v5213 = vpop.f32.mrb[0].mxu0
      %v5214 = vpop.f32.mrb[0].mxu0
      %v5215 = vadd.f32 %v4926, %v5214
      %v5216 = vpop.f32.mrb[0].mxu0
      %5217 = vmatprep.mubr.bf16.mxu0 %v3911
      %5218 = vmatmul.mubr.bf16.gmra.mrb[0].mxu0 %v3910
      %v5219 = vpop.f32.mrb[0].mxu0
      %v5220 = vadd.f32 %v4931, %v5219
      %v5221 = vpop.f32.mrb[0].mxu0
      %v5222 = vpop.f32.mrb[0].mxu0
      %v5223 = vadd.f32 %v4934, %v5222
      %v5224 = vpop.f32.mrb[0].mxu0
      %5225 = vmatprep.mubr.bf16.mxu0 %v3920
      %5226 = vmatmul.mubr.bf16.gmra.mrb[0].mxu0 %v3919
      %v5227 = vpop.f32.mrb[0].mxu0
      %v5228 = vadd.f32 %v4939, %v5227
      %v5229 = vpop.f32.mrb[0].mxu0
      %v5230 = vpop.f32.mrb[0].mxu0
      %v5231 = vadd.f32 %v4942, %v5230
      %v5232 = vpop.f32.mrb[0].mxu0
      %5233 = vmatprep.mubr.bf16.mxu0 %v3929
      %5234 = vmatmul.mubr.bf16.gmra.mrb[0].mxu0 %v3928
      %v5235 = vpop.f32.mrb[0].mxu0
      %v5236 = vadd.f32 %v4947, %v5235
      %v5237 = vpop.f32.mrb[0].mxu0
      %v5238 = vpop.f32.mrb[0].mxu0
      %v5239 = vadd.f32 %v4950, %v5238
      %v5240 = vpop.f32.mrb[0].mxu0
      %5241 = vmatprep.mubr.bf16.mxu0 %v3938
      %5242 = vmatmul.mubr.bf16.gmra.mrb[0].mxu0 %v3937
      %v5243 = vpop.f32.mrb[0].mxu0
      %v5244 = vadd.f32 %v4955, %v5243
      %v5245 = vpop.f32.mrb[0].mxu0
      %v5246 = vpop.f32.mrb[0].mxu0
      %v5247 = vadd.f32 %v4958, %v5246
      %v5248 = vpop.f32.mrb[0].mxu0
      %5249 = vmatprep.mubr.bf16.mxu0 %v3947
      %5250 = vmatmul.mubr.bf16.gmra.mrb[0].mxu0 %v3946
      %v5251 = vpop.f32.mrb[0].mxu0
      %v5252 = vadd.f32 %v4963, %v5251
      %v5253 = vpop.f32.mrb[0].mxu0
      %v5254 = vpop.f32.mrb[0].mxu0
      %v5255 = vadd.f32 %v4966, %v5254
      %v5256 = vpop.f32.mrb[0].mxu0
      %5257 = vmatprep.mubr.bf16.mxu0 %v3956
      %5258 = vmatmul.mubr.bf16.gmra.mrb[0].mxu0 %v3955
      %v5259 = vpop.f32.mrb[0].mxu0
      %v5260 = vadd.f32 %v4971, %v5259
      %v5261 = vpop.f32.mrb[0].mxu0
      %v5262 = vpop.f32.mrb[0].mxu0
      %v5263 = vadd.f32 %v4974, %v5262
      %v5264 = vpop.f32.mrb[0].mxu0
      %5265 = vmatprep.mubr.bf16.mxu0 %v3965
      %5266 = vmatmul.mubr.bf16.gmra.mrb[0].mxu0 %v3964
      %v5267 = vpop.f32.mrb[0].mxu0
      %v5268 = vadd.f32 %v4979, %v5267
      %v5269 = vpop.f32.mrb[0].mxu0
      %v5270 = vpop.f32.mrb[0].mxu0
      %v5271 = vadd.f32 %v4982, %v5270
      %v5272 = vpop.f32.mrb[0].mxu0
      %5273 = vmatprep.mubr.bf16.mxu0 %v3974
      %5274 = vmatmul.mubr.bf16.gmra.mrb[0].mxu0 %v3973
      %v5275 = vpop.f32.mrb[0].mxu0
      %v5276 = vadd.f32 %v4987, %v5275
      %v5277 = vpop.f32.mrb[0].mxu0
      %v5278 = vpop.f32.mrb[0].mxu0
      %v5279 = vadd.f32 %v4990, %v5278
      %v5280 = vpop.f32.mrb[0].mxu0
      %5281 = vmatprep.mubr.bf16.mxu0 %v3983
      %5282 = vmatmul.mubr.bf16.gmra.mrb[0].mxu0 %v3982
      %v5283 = vpop.f32.mrb[0].mxu0
      %v5284 = vadd.f32 %v4995, %v5283
      %v5285 = vpop.f32.mrb[0].mxu0
      %v5286 = vpop.f32.mrb[0].mxu0
      %v5287 = vadd.f32 %v4998, %v5286
      %v5288 = vpop.f32.mrb[0].mxu0
      %5289 = vmatprep.mubr.bf16.mxu0 %v3992
      %5290 = vmatmul.mubr.bf16.gmra.mrb[0].mxu0 %v3991
      %v5291 = vpop.f32.mrb[0].mxu0
      %v5292 = vadd.f32 %v5003, %v5291
      %v5293 = vpop.f32.mrb[0].mxu0
      %v5294 = vpop.f32.mrb[0].mxu0
      %v5295 = vadd.f32 %v5006, %v5294
      %v5296 = vpop.f32.mrb[0].mxu0
      %5297 = vmatprep.mubr.bf16.mxu0 %v4001
      %5298 = vmatmul.mubr.bf16.gmra.mrb[0].mxu0 %v4000
      %v5299 = vpop.f32.mrb[0].mxu0
      %v5300 = vadd.f32 %v5011, %v5299
      %v5301 = vpop.f32.mrb[0].mxu0
      %v5302 = vpop.f32.mrb[0].mxu0
      %v5303 = vadd.f32 %v5014, %v5302
      %v5304 = vpop.f32.mrb[0].mxu0
      %5305 = vmatprep.mubr.bf16.mxu0 %v4010
      %5306 = vmatmul.mubr.bf16.gmra.mrb[0].mxu0 %v4009
      %v5307 = vpop.f32.mrb[0].mxu0
      %v5308 = vadd.f32 %v5019, %v5307
      %v5309 = vpop.f32.mrb[0].mxu0
      %v5310 = vpop.f32.mrb[0].mxu0
      %v5311 = vadd.f32 %v5022, %v5310
      %v5312 = vpop.f32.mrb[0].mxu0
      %5313 = vdwg.mxu0
      %5314 = vmatprep.subr.bf16.mxu0 0
      %5315 = vmatpush1.bf16.msra.mxu0 %v4624
      %5316 = vmatprep.subr.bf16.mxu0 0
      %5317 = vmatpush1.bf16.msra.mxu0 %v4625
      %5318 = vmatprep.subr.bf16.mxu0 0
      %5319 = vmatpush1.bf16.msra.mxu0 %v4626
      %5320 = vmatprep.subr.bf16.mxu0 0
      %5321 = vmatpush1.bf16.msra.mxu0 %v4627
      %5322 = vmatprep.subr.bf16.mxu0 0
      %5323 = vmatpush1.bf16.msra.mxu0 %v4628
      %5324 = vmatprep.subr.bf16.mxu0 0
      %5325 = vmatpush1.bf16.msra.mxu0 %v4629
      %5326 = vmatprep.subr.bf16.mxu0 0
      %5327 = vmatpush1.bf16.msra.mxu0 %v4630
      %5328 = vmatprep.subr.bf16.mxu0 0
      %5329 = vmatpush1.bf16.msra.mxu0 %v4631
      %5330 = vmatprep.subr.bf16.mxu0 0
      %5331 = vmatpush1.bf16.msra.mxu0 %v4632
      %5332 = vmatprep.subr.bf16.mxu0 0
      %5333 = vmatpush1.bf16.msra.mxu0 %v4633
      %5334 = vmatprep.subr.bf16.mxu0 0
      %5335 = vmatpush1.bf16.msra.mxu0 %v4634
      %5336 = vmatprep.subr.bf16.mxu0 0
      %5337 = vmatpush1.bf16.msra.mxu0 %v4635
      %5338 = vmatprep.subr.bf16.mxu0 0
      %5339 = vmatpush1.bf16.msra.mxu0 %v4636
      %5340 = vmatprep.subr.bf16.mxu0 0
      %5341 = vmatpush1.bf16.msra.mxu0 %v4637
      %5342 = vmatprep.subr.bf16.mxu0 0
      %5343 = vmatpush1.bf16.msra.mxu0 %v4638
      %5344 = vmatprep.subr.bf16.mxu0 0
      %5345 = vmatpush1.bf16.msra.mxu0 %v4639
      %5346 = vmatprep.mubr.bf16.mxu0 %v3733
      %5347 = vmatmul.mubr.bf16.gmra.mrb[0].mxu0 %v3732
      %v5348 = vpop.f32.mrb[0].mxu0
      %v5349 = vadd.f32 %v5060, %v5348
      %v5350 = vpop.f32.mrb[0].mxu0
      %v5351 = vpop.f32.mrb[0].mxu0
      %v5352 = vadd.f32 %v5063, %v5351
      %v5353 = vpop.f32.mrb[0].mxu0
      %5354 = vmatprep.mubr.bf16.mxu0 %v3742
      %5355 = vmatmul.mubr.bf16.gmra.mrb[0].mxu0 %v3741
      %v5356 = vpop.f32.mrb[0].mxu0
      %v5357 = vadd.f32 %v5068, %v5356
      %v5358 = vpop.f32.mrb[0].mxu0
      %v5359 = vpop.f32.mrb[0].mxu0
      %v5360 = vadd.f32 %v5071, %v5359
      %v5361 = vpop.f32.mrb[0].mxu0
      %5362 = vmatprep.mubr.bf16.mxu0 %v3751
      %5363 = vmatmul.mubr.bf16.gmra.mrb[0].mxu0 %v3750
      %v5364 = vpop.f32.mrb[0].mxu0
      %v5365 = vadd.f32 %v5076, %v5364
      %v5366 = vpop.f32.mrb[0].mxu0
      %v5367 = vpop.f32.mrb[0].mxu0
      %v5368 = vadd.f32 %v5079, %v5367
      %v5369 = vpop.f32.mrb[0].mxu0
      %5370 = vmatprep.mubr.bf16.mxu0 %v3760
      %5371 = vmatmul.mubr.bf16.gmra.mrb[0].mxu0 %v3759
      %v5372 = vpop.f32.mrb[0].mxu0
      %v5373 = vadd.f32 %v5084, %v5372
      %v5374 = vpop.f32.mrb[0].mxu0
      %v5375 = vpop.f32.mrb[0].mxu0
      %v5376 = vadd.f32 %v5087, %v5375
      %v5377 = vpop.f32.mrb[0].mxu0
      %5378 = vmatprep.mubr.bf16.mxu0 %v3769
      %5379 = vmatmul.mubr.bf16.gmra.mrb[0].mxu0 %v3768
      %v5380 = vpop.f32.mrb[0].mxu0
      %v5381 = vadd.f32 %v5092, %v5380
      %v5382 = vpop.f32.mrb[0].mxu0
      %v5383 = vpop.f32.mrb[0].mxu0
      %v5384 = vadd.f32 %v5095, %v5383
      %v5385 = vpop.f32.mrb[0].mxu0
      %5386 = vmatprep.mubr.bf16.mxu0 %v3778
      %5387 = vmatmul.mubr.bf16.gmra.mrb[0].mxu0 %v3777
      %v5388 = vpop.f32.mrb[0].mxu0
      %v5389 = vadd.f32 %v5100, %v5388
      %v5390 = vpop.f32.mrb[0].mxu0
      %v5391 = vpop.f32.mrb[0].mxu0
      %v5392 = vadd.f32 %v5103, %v5391
      %v5393 = vpop.f32.mrb[0].mxu0
      %5394 = vmatprep.mubr.bf16.mxu0 %v3787
      %5395 = vmatmul.mubr.bf16.gmra.mrb[0].mxu0 %v3786
      %v5396 = vpop.f32.mrb[0].mxu0
      %v5397 = vadd.f32 %v5108, %v5396
      %v5398 = vpop.f32.mrb[0].mxu0
      %v5399 = vpop.f32.mrb[0].mxu0
      %v5400 = vadd.f32 %v5111, %v5399
      %v5401 = vpop.f32.mrb[0].mxu0
      %5402 = vmatprep.mubr.bf16.mxu0 %v3796
      %5403 = vmatmul.mubr.bf16.gmra.mrb[0].mxu0 %v3795
      %v5404 = vpop.f32.mrb[0].mxu0
      %v5405 = vadd.f32 %v5116, %v5404
      %v5406 = vpop.f32.mrb[0].mxu0
      %v5407 = vpop.f32.mrb[0].mxu0
      %v5408 = vadd.f32 %v5119, %v5407
      %v5409 = vpop.f32.mrb[0].mxu0
      %5410 = vmatprep.mubr.bf16.mxu0 %v3805
      %5411 = vmatmul.mubr.bf16.gmra.mrb[0].mxu0 %v3804
      %v5412 = vpop.f32.mrb[0].mxu0
      %v5413 = vadd.f32 %v5124, %v5412
      %v5414 = vpop.f32.mrb[0].mxu0
      %v5415 = vpop.f32.mrb[0].mxu0
      %v5416 = vadd.f32 %v5127, %v5415
      %v5417 = vpop.f32.mrb[0].mxu0
      %5418 = vmatprep.mubr.bf16.mxu0 %v3814
      %5419 = vmatmul.mubr.bf16.gmra.mrb[0].mxu0 %v3813
      %v5420 = vpop.f32.mrb[0].mxu0
      %v5421 = vadd.f32 %v5132, %v5420
      %v5422 = vpop.f32.mrb[0].mxu0
      %v5423 = vpop.f32.mrb[0].mxu0
      %v5424 = vadd.f32 %v5135, %v5423
      %v5425 = vpop.f32.mrb[0].mxu0
      %5426 = vmatprep.mubr.bf16.mxu0 %v3823
      %5427 = vmatmul.mubr.bf16.gmra.mrb[0].mxu0 %v3822
      %v5428 = vpop.f32.mrb[0].mxu0
      %v5429 = vadd.f32 %v5140, %v5428
      %v5430 = vpop.f32.mrb[0].mxu0
      %v5431 = vpop.f32.mrb[0].mxu0
      %v5432 = vadd.f32 %v5143, %v5431
      %v5433 = vpop.f32.mrb[0].mxu0
      %5434 = vmatprep.mubr.bf16.mxu0 %v3832
      %5435 = vmatmul.mubr.bf16.gmra.mrb[0].mxu0 %v3831
      %v5436 = vpop.f32.mrb[0].mxu0
      %v5437 = vadd.f32 %v5148, %v5436
      %v5438 = vpop.f32.mrb[0].mxu0
      %v5439 = vpop.f32.mrb[0].mxu0
      %v5440 = vadd.f32 %v5151, %v5439
      %v5441 = vpop.f32.mrb[0].mxu0
      %5442 = vmatprep.mubr.bf16.mxu0 %v3841
      %5443 = vmatmul.mubr.bf16.gmra.mrb[0].mxu0 %v3840
      %v5444 = vpop.f32.mrb[0].mxu0
      %v5445 = vadd.f32 %v5156, %v5444
      %v5446 = vpop.f32.mrb[0].mxu0
      %v5447 = vpop.f32.mrb[0].mxu0
      %v5448 = vadd.f32 %v5159, %v5447
      %v5449 = vpop.f32.mrb[0].mxu0
      %5450 = vmatprep.mubr.bf16.mxu0 %v3850
      %5451 = vmatmul.mubr.bf16.gmra.mrb[0].mxu0 %v3849
      %v5452 = vpop.f32.mrb[0].mxu0
      %v5453 = vadd.f32 %v5164, %v5452
      %v5454 = vpop.f32.mrb[0].mxu0
      %v5455 = vpop.f32.mrb[0].mxu0
      %v5456 = vadd.f32 %v5167, %v5455
      %v5457 = vpop.f32.mrb[0].mxu0
      %5458 = vmatprep.mubr.bf16.mxu0 %v3859
      %5459 = vmatmul.mubr.bf16.gmra.mrb[0].mxu0 %v3858
      %v5460 = vpop.f32.mrb[0].mxu0
      %v5461 = vadd.f32 %v5172, %v5460
      %v5462 = vpop.f32.mrb[0].mxu0
      %v5463 = vpop.f32.mrb[0].mxu0
      %v5464 = vadd.f32 %v5175, %v5463
      %v5465 = vpop.f32.mrb[0].mxu0
      %5466 = vmatprep.mubr.bf16.mxu0 %v3868
      %5467 = vmatmul.mubr.bf16.gmra.mrb[0].mxu0 %v3867
      %v5468 = vpop.f32.mrb[0].mxu0
      %v5469 = vadd.f32 %v5180, %v5468
      %v5470 = vpop.f32.mrb[0].mxu0
      %v5471 = vpop.f32.mrb[0].mxu0
      %v5472 = vadd.f32 %v5183, %v5471
      %v5473 = vpop.f32.mrb[0].mxu0
      %5474 = vmatprep.mubr.bf16.mxu0 %v3877
      %5475 = vmatmul.mubr.bf16.gmra.mrb[0].mxu0 %v3876
      %v5476 = vpop.f32.mrb[0].mxu0
      %v5477 = vadd.f32 %v5188, %v5476
      %v5478 = vpop.f32.mrb[0].mxu0
      %v5479 = vpop.f32.mrb[0].mxu0
      %v5480 = vadd.f32 %v5191, %v5479
      %v5481 = vpop.f32.mrb[0].mxu0
      %5482 = vmatprep.mubr.bf16.mxu0 %v3886
      %5483 = vmatmul.mubr.bf16.gmra.mrb[0].mxu0 %v3885
      %v5484 = vpop.f32.mrb[0].mxu0
      %v5485 = vadd.f32 %v5196, %v5484
      %v5486 = vpop.f32.mrb[0].mxu0
      %v5487 = vpop.f32.mrb[0].mxu0
      %v5488 = vadd.f32 %v5199, %v5487
      %v5489 = vpop.f32.mrb[0].mxu0
      %5490 = vmatprep.mubr.bf16.mxu0 %v3895
      %5491 = vmatmul.mubr.bf16.gmra.mrb[0].mxu0 %v3894
      %v5492 = vpop.f32.mrb[0].mxu0
      %v5493 = vadd.f32 %v5204, %v5492
      %v5494 = vpop.f32.mrb[0].mxu0
      %v5495 = vpop.f32.mrb[0].mxu0
      %v5496 = vadd.f32 %v5207, %v5495
      %v5497 = vpop.f32.mrb[0].mxu0
      %5498 = vmatprep.mubr.bf16.mxu0 %v3904
      %5499 = vmatmul.mubr.bf16.gmra.mrb[0].mxu0 %v3903
      %v5500 = vpop.f32.mrb[0].mxu0
      %v5501 = vadd.f32 %v5212, %v5500
      %v5502 = vpop.f32.mrb[0].mxu0
      %v5503 = vpop.f32.mrb[0].mxu0
      %v5504 = vadd.f32 %v5215, %v5503
      %v5505 = vpop.f32.mrb[0].mxu0
      %5506 = vmatprep.mubr.bf16.mxu0 %v3913
      %5507 = vmatmul.mubr.bf16.gmra.mrb[0].mxu0 %v3912
      %v5508 = vpop.f32.mrb[0].mxu0
      %v5509 = vadd.f32 %v5220, %v5508
      %v5510 = vpop.f32.mrb[0].mxu0
      %v5511 = vpop.f32.mrb[0].mxu0
      %v5512 = vadd.f32 %v5223, %v5511
      %v5513 = vpop.f32.mrb[0].mxu0
      %5514 = vmatprep.mubr.bf16.mxu0 %v3922
      %5515 = vmatmul.mubr.bf16.gmra.mrb[0].mxu0 %v3921
      %v5516 = vpop.f32.mrb[0].mxu0
      %v5517 = vadd.f32 %v5228, %v5516
      %v5518 = vpop.f32.mrb[0].mxu0
      %v5519 = vpop.f32.mrb[0].mxu0
      %v5520 = vadd.f32 %v5231, %v5519
      %v5521 = vpop.f32.mrb[0].mxu0
      %5522 = vmatprep.mubr.bf16.mxu0 %v3931
      %5523 = vmatmul.mubr.bf16.gmra.mrb[0].mxu0 %v3930
      %v5524 = vpop.f32.mrb[0].mxu0
      %v5525 = vadd.f32 %v5236, %v5524
      %v5526 = vpop.f32.mrb[0].mxu0
      %v5527 = vpop.f32.mrb[0].mxu0
      %v5528 = vadd.f32 %v5239, %v5527
      %v5529 = vpop.f32.mrb[0].mxu0
      %5530 = vmatprep.mubr.bf16.mxu0 %v3940
      %5531 = vmatmul.mubr.bf16.gmra.mrb[0].mxu0 %v3939
      %v5532 = vpop.f32.mrb[0].mxu0
      %v5533 = vadd.f32 %v5244, %v5532
      %v5534 = vpop.f32.mrb[0].mxu0
      %v5535 = vpop.f32.mrb[0].mxu0
      %v5536 = vadd.f32 %v5247, %v5535
      %v5537 = vpop.f32.mrb[0].mxu0
      %5538 = vmatprep.mubr.bf16.mxu0 %v3949
      %5539 = vmatmul.mubr.bf16.gmra.mrb[0].mxu0 %v3948
      %v5540 = vpop.f32.mrb[0].mxu0
      %v5541 = vadd.f32 %v5252, %v5540
      %v5542 = vpop.f32.mrb[0].mxu0
      %v5543 = vpop.f32.mrb[0].mxu0
      %v5544 = vadd.f32 %v5255, %v5543
      %v5545 = vpop.f32.mrb[0].mxu0
      %5546 = vmatprep.mubr.bf16.mxu0 %v3958
      %5547 = vmatmul.mubr.bf16.gmra.mrb[0].mxu0 %v3957
      %v5548 = vpop.f32.mrb[0].mxu0
      %v5549 = vadd.f32 %v5260, %v5548
      %v5550 = vpop.f32.mrb[0].mxu0
      %v5551 = vpop.f32.mrb[0].mxu0
      %v5552 = vadd.f32 %v5263, %v5551
      %v5553 = vpop.f32.mrb[0].mxu0
      %5554 = vmatprep.mubr.bf16.mxu0 %v3967
      %5555 = vmatmul.mubr.bf16.gmra.mrb[0].mxu0 %v3966
      %v5556 = vpop.f32.mrb[0].mxu0
      %v5557 = vadd.f32 %v5268, %v5556
      %v5558 = vpop.f32.mrb[0].mxu0
      %v5559 = vpop.f32.mrb[0].mxu0
      %v5560 = vadd.f32 %v5271, %v5559
      %v5561 = vpop.f32.mrb[0].mxu0
      %5562 = vmatprep.mubr.bf16.mxu0 %v3976
      %5563 = vmatmul.mubr.bf16.gmra.mrb[0].mxu0 %v3975
      %v5564 = vpop.f32.mrb[0].mxu0
      %v5565 = vadd.f32 %v5276, %v5564
      %v5566 = vpop.f32.mrb[0].mxu0
      %v5567 = vpop.f32.mrb[0].mxu0
      %v5568 = vadd.f32 %v5279, %v5567
      %v5569 = vpop.f32.mrb[0].mxu0
      %5570 = vmatprep.mubr.bf16.mxu0 %v3985
      %5571 = vmatmul.mubr.bf16.gmra.mrb[0].mxu0 %v3984
      %v5572 = vpop.f32.mrb[0].mxu0
      %v5573 = vadd.f32 %v5284, %v5572
      %v5574 = vpop.f32.mrb[0].mxu0
      %v5575 = vpop.f32.mrb[0].mxu0
      %v5576 = vadd.f32 %v5287, %v5575
      %v5577 = vpop.f32.mrb[0].mxu0
      %5578 = vmatprep.mubr.bf16.mxu0 %v3994
      %5579 = vmatmul.mubr.bf16.gmra.mrb[0].mxu0 %v3993
      %v5580 = vpop.f32.mrb[0].mxu0
      %v5581 = vadd.f32 %v5292, %v5580
      %v5582 = vpop.f32.mrb[0].mxu0
      %v5583 = vpop.f32.mrb[0].mxu0
      %v5584 = vadd.f32 %v5295, %v5583
      %v5585 = vpop.f32.mrb[0].mxu0
      %5586 = vmatprep.mubr.bf16.mxu0 %v4003
      %5587 = vmatmul.mubr.bf16.gmra.mrb[0].mxu0 %v4002
      %v5588 = vpop.f32.mrb[0].mxu0
      %v5589 = vadd.f32 %v5300, %v5588
      %v5590 = vpop.f32.mrb[0].mxu0
      %v5591 = vpop.f32.mrb[0].mxu0
      %v5592 = vadd.f32 %v5303, %v5591
      %v5593 = vpop.f32.mrb[0].mxu0
      %5594 = vmatprep.mubr.bf16.mxu0 %v4012
      %5595 = vmatmul.mubr.bf16.gmra.mrb[0].mxu0 %v4011
      %v5596 = vpop.f32.mrb[0].mxu0
      %v5597 = vadd.f32 %v5308, %v5596
      %v5598 = vpop.f32.mrb[0].mxu0
      %v5599 = vpop.f32.mrb[0].mxu0
      %v5600 = vadd.f32 %v5311, %v5599
      %v5601 = vpop.f32.mrb[0].mxu0
      %5602 = vdwg.mxu0
      %5603 = vmatprep.subr.bf16.mxu0 0
      %5604 = vmatpush1.bf16.msra.mxu0 %v4640
      %5605 = vmatprep.subr.bf16.mxu0 0
      %5606 = vmatpush1.bf16.msra.mxu0 %v4641
      %5607 = vmatprep.subr.bf16.mxu0 0
      %5608 = vmatpush1.bf16.msra.mxu0 %v4642
      %5609 = vmatprep.subr.bf16.mxu0 0
      %5610 = vmatpush1.bf16.msra.mxu0 %v4643
      %5611 = vmatprep.subr.bf16.mxu0 0
      %5612 = vmatpush1.bf16.msra.mxu0 %v4644
      %5613 = vmatprep.subr.bf16.mxu0 0
      %5614 = vmatpush1.bf16.msra.mxu0 %v4645
      %5615 = vmatprep.subr.bf16.mxu0 0
      %5616 = vmatpush1.bf16.msra.mxu0 %v4646
      %5617 = vmatprep.subr.bf16.mxu0 0
      %5618 = vmatpush1.bf16.msra.mxu0 %v4647
      %5619 = vmatprep.subr.bf16.mxu0 0
      %5620 = vmatpush1.bf16.msra.mxu0 %v4648
      %5621 = vmatprep.subr.bf16.mxu0 0
      %5622 = vmatpush1.bf16.msra.mxu0 %v4649
      %5623 = vmatprep.subr.bf16.mxu0 0
      %5624 = vmatpush1.bf16.msra.mxu0 %v4650
      %5625 = vmatprep.subr.bf16.mxu0 0
      %5626 = vmatpush1.bf16.msra.mxu0 %v4651
      %5627 = vmatprep.subr.bf16.mxu0 0
      %5628 = vmatpush1.bf16.msra.mxu0 %v4652
      %5629 = vmatprep.subr.bf16.mxu0 0
      %5630 = vmatpush1.bf16.msra.mxu0 %v4653
      %5631 = vmatprep.subr.bf16.mxu0 0
      %5632 = vmatpush1.bf16.msra.mxu0 %v4654
      %5633 = vmatprep.subr.bf16.mxu0 0
      %5634 = vmatpush1.bf16.msra.mxu0 %v4655
      %5635 = vmatprep.mubr.bf16.mxu0 %v3735
      %5636 = vmatmul.mubr.bf16.gmra.mrb[0].mxu0 %v3734
      %v5637 = vpop.f32.mrb[0].mxu0
      %v5638 = vadd.f32 %v5349, %v5637
      %v5639 = vpop.f32.mrb[0].mxu0
      %v5640 = vpop.f32.mrb[0].mxu0
      %v5641 = vadd.f32 %v5352, %v5640
      %v5642 = vpop.f32.mrb[0].mxu0
      %5643 = vmatprep.mubr.bf16.mxu0 %v3744
      %5644 = vmatmul.mubr.bf16.gmra.mrb[0].mxu0 %v3743
      %v5645 = vpop.f32.mrb[0].mxu0
      %v5646 = vadd.f32 %v5357, %v5645
      %v5647 = vpop.f32.mrb[0].mxu0
      %v5648 = vpop.f32.mrb[0].mxu0
      %v5649 = vadd.f32 %v5360, %v5648
      %v5650 = vpop.f32.mrb[0].mxu0
      %5651 = vmatprep.mubr.bf16.mxu0 %v3753
      %5652 = vmatmul.mubr.bf16.gmra.mrb[0].mxu0 %v3752
      %v5653 = vpop.f32.mrb[0].mxu0
      %v5654 = vadd.f32 %v5365, %v5653
      %v5655 = vpop.f32.mrb[0].mxu0
      %v5656 = vpop.f32.mrb[0].mxu0
      %v5657 = vadd.f32 %v5368, %v5656
      %v5658 = vpop.f32.mrb[0].mxu0
      %5659 = vmatprep.mubr.bf16.mxu0 %v3762
      %5660 = vmatmul.mubr.bf16.gmra.mrb[0].mxu0 %v3761
      %v5661 = vpop.f32.mrb[0].mxu0
      %v5662 = vadd.f32 %v5373, %v5661
      %v5663 = vpop.f32.mrb[0].mxu0
      %v5664 = vpop.f32.mrb[0].mxu0
      %v5665 = vadd.f32 %v5376, %v5664
      %v5666 = vpop.f32.mrb[0].mxu0
      %5667 = vmatprep.mubr.bf16.mxu0 %v3771
      %5668 = vmatmul.mubr.bf16.gmra.mrb[0].mxu0 %v3770
      %v5669 = vpop.f32.mrb[0].mxu0
      %v5670 = vadd.f32 %v5381, %v5669
      %v5671 = vpop.f32.mrb[0].mxu0
      %v5672 = vpop.f32.mrb[0].mxu0
      %v5673 = vadd.f32 %v5384, %v5672
      %v5674 = vpop.f32.mrb[0].mxu0
      %5675 = vmatprep.mubr.bf16.mxu0 %v3780
      %5676 = vmatmul.mubr.bf16.gmra.mrb[0].mxu0 %v3779
      %v5677 = vpop.f32.mrb[0].mxu0
      %v5678 = vadd.f32 %v5389, %v5677
      %v5679 = vpop.f32.mrb[0].mxu0
      %v5680 = vpop.f32.mrb[0].mxu0
      %v5681 = vadd.f32 %v5392, %v5680
      %v5682 = vpop.f32.mrb[0].mxu0
      %5683 = vmatprep.mubr.bf16.mxu0 %v3789
      %5684 = vmatmul.mubr.bf16.gmra.mrb[0].mxu0 %v3788
      %v5685 = vpop.f32.mrb[0].mxu0
      %v5686 = vadd.f32 %v5397, %v5685
      %v5687 = vpop.f32.mrb[0].mxu0
      %v5688 = vpop.f32.mrb[0].mxu0
      %v5689 = vadd.f32 %v5400, %v5688
      %v5690 = vpop.f32.mrb[0].mxu0
      %5691 = vmatprep.mubr.bf16.mxu0 %v3798
      %5692 = vmatmul.mubr.bf16.gmra.mrb[0].mxu0 %v3797
      %v5693 = vpop.f32.mrb[0].mxu0
      %v5694 = vadd.f32 %v5405, %v5693
      %v5695 = vpop.f32.mrb[0].mxu0
      %v5696 = vpop.f32.mrb[0].mxu0
      %v5697 = vadd.f32 %v5408, %v5696
      %v5698 = vpop.f32.mrb[0].mxu0
      %5699 = vmatprep.mubr.bf16.mxu0 %v3807
      %5700 = vmatmul.mubr.bf16.gmra.mrb[0].mxu0 %v3806
      %v5701 = vpop.f32.mrb[0].mxu0
      %v5702 = vadd.f32 %v5413, %v5701
      %v5703 = vpop.f32.mrb[0].mxu0
      %v5704 = vpop.f32.mrb[0].mxu0
      %v5705 = vadd.f32 %v5416, %v5704
      %v5706 = vpop.f32.mrb[0].mxu0
      %5707 = vmatprep.mubr.bf16.mxu0 %v3816
      %5708 = vmatmul.mubr.bf16.gmra.mrb[0].mxu0 %v3815
      %v5709 = vpop.f32.mrb[0].mxu0
      %v5710 = vadd.f32 %v5421, %v5709
      %v5711 = vpop.f32.mrb[0].mxu0
      %v5712 = vpop.f32.mrb[0].mxu0
      %v5713 = vadd.f32 %v5424, %v5712
      %v5714 = vpop.f32.mrb[0].mxu0
      %5715 = vmatprep.mubr.bf16.mxu0 %v3825
      %5716 = vmatmul.mubr.bf16.gmra.mrb[0].mxu0 %v3824
      %v5717 = vpop.f32.mrb[0].mxu0
      %v5718 = vadd.f32 %v5429, %v5717
      %v5719 = vpop.f32.mrb[0].mxu0
      %v5720 = vpop.f32.mrb[0].mxu0
      %v5721 = vadd.f32 %v5432, %v5720
      %v5722 = vpop.f32.mrb[0].mxu0
      %5723 = vmatprep.mubr.bf16.mxu0 %v3834
      %5724 = vmatmul.mubr.bf16.gmra.mrb[0].mxu0 %v3833
      %v5725 = vpop.f32.mrb[0].mxu0
      %v5726 = vadd.f32 %v5437, %v5725
      %v5727 = vpop.f32.mrb[0].mxu0
      %v5728 = vpop.f32.mrb[0].mxu0
      %v5729 = vadd.f32 %v5440, %v5728
      %v5730 = vpop.f32.mrb[0].mxu0
      %5731 = vmatprep.mubr.bf16.mxu0 %v3843
      %5732 = vmatmul.mubr.bf16.gmra.mrb[0].mxu0 %v3842
      %v5733 = vpop.f32.mrb[0].mxu0
      %v5734 = vadd.f32 %v5445, %v5733
      %v5735 = vpop.f32.mrb[0].mxu0
      %v5736 = vpop.f32.mrb[0].mxu0
      %v5737 = vadd.f32 %v5448, %v5736
      %v5738 = vpop.f32.mrb[0].mxu0
      %5739 = vmatprep.mubr.bf16.mxu0 %v3852
      %5740 = vmatmul.mubr.bf16.gmra.mrb[0].mxu0 %v3851
      %v5741 = vpop.f32.mrb[0].mxu0
      %v5742 = vadd.f32 %v5453, %v5741
      %v5743 = vpop.f32.mrb[0].mxu0
      %v5744 = vpop.f32.mrb[0].mxu0
      %v5745 = vadd.f32 %v5456, %v5744
      %v5746 = vpop.f32.mrb[0].mxu0
      %5747 = vmatprep.mubr.bf16.mxu0 %v3861
      %5748 = vmatmul.mubr.bf16.gmra.mrb[0].mxu0 %v3860
      %v5749 = vpop.f32.mrb[0].mxu0
      %v5750 = vadd.f32 %v5461, %v5749
      %v5751 = vpop.f32.mrb[0].mxu0
      %v5752 = vpop.f32.mrb[0].mxu0
      %v5753 = vadd.f32 %v5464, %v5752
      %v5754 = vpop.f32.mrb[0].mxu0
      %5755 = vmatprep.mubr.bf16.mxu0 %v3870
      %5756 = vmatmul.mubr.bf16.gmra.mrb[0].mxu0 %v3869
      %v5757 = vpop.f32.mrb[0].mxu0
      %v5758 = vadd.f32 %v5469, %v5757
      %v5759 = vpop.f32.mrb[0].mxu0
      %v5760 = vpop.f32.mrb[0].mxu0
      %v5761 = vadd.f32 %v5472, %v5760
      %v5762 = vpop.f32.mrb[0].mxu0
      %5763 = vmatprep.mubr.bf16.mxu0 %v3879
      %5764 = vmatmul.mubr.bf16.gmra.mrb[0].mxu0 %v3878
      %v5765 = vpop.f32.mrb[0].mxu0
      %v5766 = vadd.f32 %v5477, %v5765
      %v5767 = vpop.f32.mrb[0].mxu0
      %v5768 = vpop.f32.mrb[0].mxu0
      %v5769 = vadd.f32 %v5480, %v5768
      %v5770 = vpop.f32.mrb[0].mxu0
      %5771 = vmatprep.mubr.bf16.mxu0 %v3888
      %5772 = vmatmul.mubr.bf16.gmra.mrb[0].mxu0 %v3887
      %v5773 = vpop.f32.mrb[0].mxu0
      %v5774 = vadd.f32 %v5485, %v5773
      %v5775 = vpop.f32.mrb[0].mxu0
      %v5776 = vpop.f32.mrb[0].mxu0
      %v5777 = vadd.f32 %v5488, %v5776
      %v5778 = vpop.f32.mrb[0].mxu0
      %5779 = vmatprep.mubr.bf16.mxu0 %v3897
      %5780 = vmatmul.mubr.bf16.gmra.mrb[0].mxu0 %v3896
      %v5781 = vpop.f32.mrb[0].mxu0
      %v5782 = vadd.f32 %v5493, %v5781
      %v5783 = vpop.f32.mrb[0].mxu0
      %v5784 = vpop.f32.mrb[0].mxu0
      %v5785 = vadd.f32 %v5496, %v5784
      %v5786 = vpop.f32.mrb[0].mxu0
      %5787 = vmatprep.mubr.bf16.mxu0 %v3906
      %5788 = vmatmul.mubr.bf16.gmra.mrb[0].mxu0 %v3905
      %v5789 = vpop.f32.mrb[0].mxu0
      %v5790 = vadd.f32 %v5501, %v5789
      %v5791 = vpop.f32.mrb[0].mxu0
      %v5792 = vpop.f32.mrb[0].mxu0
      %v5793 = vadd.f32 %v5504, %v5792
      %v5794 = vpop.f32.mrb[0].mxu0
      %5795 = vmatprep.mubr.bf16.mxu0 %v3915
      %5796 = vmatmul.mubr.bf16.gmra.mrb[0].mxu0 %v3914
      %v5797 = vpop.f32.mrb[0].mxu0
      %v5798 = vadd.f32 %v5509, %v5797
      %v5799 = vpop.f32.mrb[0].mxu0
      %v5800 = vpop.f32.mrb[0].mxu0
      %v5801 = vadd.f32 %v5512, %v5800
      %v5802 = vpop.f32.mrb[0].mxu0
      %5803 = vmatprep.mubr.bf16.mxu0 %v3924
      %5804 = vmatmul.mubr.bf16.gmra.mrb[0].mxu0 %v3923
      %v5805 = vpop.f32.mrb[0].mxu0
      %v5806 = vadd.f32 %v5517, %v5805
      %v5807 = vpop.f32.mrb[0].mxu0
      %v5808 = vpop.f32.mrb[0].mxu0
      %v5809 = vadd.f32 %v5520, %v5808
      %v5810 = vpop.f32.mrb[0].mxu0
      %5811 = vmatprep.mubr.bf16.mxu0 %v3933
      %5812 = vmatmul.mubr.bf16.gmra.mrb[0].mxu0 %v3932
      %v5813 = vpop.f32.mrb[0].mxu0
      %v5814 = vadd.f32 %v5525, %v5813
      %v5815 = vpop.f32.mrb[0].mxu0
      %v5816 = vpop.f32.mrb[0].mxu0
      %v5817 = vadd.f32 %v5528, %v5816
      %v5818 = vpop.f32.mrb[0].mxu0
      %5819 = vmatprep.mubr.bf16.mxu0 %v3942
      %5820 = vmatmul.mubr.bf16.gmra.mrb[0].mxu0 %v3941
      %v5821 = vpop.f32.mrb[0].mxu0
      %v5822 = vadd.f32 %v5533, %v5821
      %v5823 = vpop.f32.mrb[0].mxu0
      %v5824 = vpop.f32.mrb[0].mxu0
      %v5825 = vadd.f32 %v5536, %v5824
      %v5826 = vpop.f32.mrb[0].mxu0
      %5827 = vmatprep.mubr.bf16.mxu0 %v3951
      %5828 = vmatmul.mubr.bf16.gmra.mrb[0].mxu0 %v3950
      %v5829 = vpop.f32.mrb[0].mxu0
      %v5830 = vadd.f32 %v5541, %v5829
      %v5831 = vpop.f32.mrb[0].mxu0
      %v5832 = vpop.f32.mrb[0].mxu0
      %v5833 = vadd.f32 %v5544, %v5832
      %v5834 = vpop.f32.mrb[0].mxu0
      %5835 = vmatprep.mubr.bf16.mxu0 %v3960
      %5836 = vmatmul.mubr.bf16.gmra.mrb[0].mxu0 %v3959
      %v5837 = vpop.f32.mrb[0].mxu0
      %v5838 = vadd.f32 %v5549, %v5837
      %v5839 = vpop.f32.mrb[0].mxu0
      %v5840 = vpop.f32.mrb[0].mxu0
      %v5841 = vadd.f32 %v5552, %v5840
      %v5842 = vpop.f32.mrb[0].mxu0
      %5843 = vmatprep.mubr.bf16.mxu0 %v3969
      %5844 = vmatmul.mubr.bf16.gmra.mrb[0].mxu0 %v3968
      %v5845 = vpop.f32.mrb[0].mxu0
      %v5846 = vadd.f32 %v5557, %v5845
      %v5847 = vpop.f32.mrb[0].mxu0
      %v5848 = vpop.f32.mrb[0].mxu0
      %v5849 = vadd.f32 %v5560, %v5848
      %v5850 = vpop.f32.mrb[0].mxu0
      %5851 = vmatprep.mubr.bf16.mxu0 %v3978
      %5852 = vmatmul.mubr.bf16.gmra.mrb[0].mxu0 %v3977
      %v5853 = vpop.f32.mrb[0].mxu0
      %v5854 = vadd.f32 %v5565, %v5853
      %v5855 = vpop.f32.mrb[0].mxu0
      %v5856 = vpop.f32.mrb[0].mxu0
      %v5857 = vadd.f32 %v5568, %v5856
      %v5858 = vpop.f32.mrb[0].mxu0
      %5859 = vmatprep.mubr.bf16.mxu0 %v3987
      %5860 = vmatmul.mubr.bf16.gmra.mrb[0].mxu0 %v3986
      %v5861 = vpop.f32.mrb[0].mxu0
      %v5862 = vadd.f32 %v5573, %v5861
      %v5863 = vpop.f32.mrb[0].mxu0
      %v5864 = vpop.f32.mrb[0].mxu0
      %v5865 = vadd.f32 %v5576, %v5864
      %v5866 = vpop.f32.mrb[0].mxu0
      %5867 = vmatprep.mubr.bf16.mxu0 %v3996
      %5868 = vmatmul.mubr.bf16.gmra.mrb[0].mxu0 %v3995
      %v5869 = vpop.f32.mrb[0].mxu0
      %v5870 = vadd.f32 %v5581, %v5869
      %v5871 = vpop.f32.mrb[0].mxu0
      %v5872 = vpop.f32.mrb[0].mxu0
      %v5873 = vadd.f32 %v5584, %v5872
      %v5874 = vpop.f32.mrb[0].mxu0
      %5875 = vmatprep.mubr.bf16.mxu0 %v4005
      %5876 = vmatmul.mubr.bf16.gmra.mrb[0].mxu0 %v4004
      %v5877 = vpop.f32.mrb[0].mxu0
      %v5878 = vadd.f32 %v5589, %v5877
      %v5879 = vpop.f32.mrb[0].mxu0
      %v5880 = vpop.f32.mrb[0].mxu0
      %v5881 = vadd.f32 %v5592, %v5880
      %v5882 = vpop.f32.mrb[0].mxu0
      %5883 = vmatprep.mubr.bf16.mxu0 %v4014
      %5884 = vmatmul.mubr.bf16.gmra.mrb[0].mxu0 %v4013
      %v5885 = vpop.f32.mrb[0].mxu0
      %v5886 = vadd.f32 %v5597, %v5885
      %v5887 = vpop.f32.mrb[0].mxu0
      %v5888 = vpop.f32.mrb[0].mxu0
      %v5889 = vadd.f32 %v5600, %v5888
      %v5890 = vpop.f32.mrb[0].mxu0
      %5891 = vdwg.mxu0
      %5892 = vmatprep.subr.bf16.mxu0 0
      %5893 = vmatpush1.bf16.msra.mxu0 %v4656
      %5894 = vmatprep.subr.bf16.mxu0 0
      %5895 = vmatpush1.bf16.msra.mxu0 %v4657
      %5896 = vmatprep.subr.bf16.mxu0 0
      %5897 = vmatpush1.bf16.msra.mxu0 %v4658
      %5898 = vmatprep.subr.bf16.mxu0 0
      %5899 = vmatpush1.bf16.msra.mxu0 %v4659
      %5900 = vmatprep.subr.bf16.mxu0 0
      %5901 = vmatpush1.bf16.msra.mxu0 %v4660
      %5902 = vmatprep.subr.bf16.mxu0 0
      %5903 = vmatpush1.bf16.msra.mxu0 %v4661
      %5904 = vmatprep.subr.bf16.mxu0 0
      %5905 = vmatpush1.bf16.msra.mxu0 %v4662
      %5906 = vmatprep.subr.bf16.mxu0 0
      %5907 = vmatpush1.bf16.msra.mxu0 %v4663
      %5908 = vmatprep.subr.bf16.mxu0 0
      %5909 = vmatpush1.bf16.msra.mxu0 0
      %5910 = vmatprep.subr.bf16.mxu0 0
      %5911 = vmatpush1.bf16.msra.mxu0 0
      %5912 = vmatprep.subr.bf16.mxu0 0
      %5913 = vmatpush1.bf16.msra.mxu0 0
      %5914 = vmatprep.subr.bf16.mxu0 0
      %5915 = vmatpush1.bf16.msra.mxu0 0
      %5916 = vmatprep.subr.bf16.mxu0 0
      %5917 = vmatpush1.bf16.msra.mxu0 0
      %5918 = vmatprep.subr.bf16.mxu0 0
      %5919 = vmatpush1.bf16.msra.mxu0 0
      %5920 = vmatprep.subr.bf16.mxu0 0
      %5921 = vmatpush1.bf16.msra.mxu0 0
      %5922 = vmatprep.subr.bf16.mxu0 0
      %5923 = vmatpush1.bf16.msra.mxu0 0
      %5924 = vmatprep.mubr.bf16.mxu0 0
      %5925 = vmatmul.mubr.bf16.gmra.mrb[0].mxu0 %v3736
      %v5926 = vpop.f32.mrb[0].mxu0
      %v5927 = vadd.f32 %v5638, %v5926
      %v5928 = vpop.f32.mrb[0].mxu0
      %v5929 = vpop.f32.mrb[0].mxu0
      %v5930 = vadd.f32 %v5641, %v5929
      %v5931 = vpop.f32.mrb[0].mxu0
      %5932 = vmatprep.mubr.bf16.mxu0 0
      %5933 = vmatmul.mubr.bf16.gmra.mrb[0].mxu0 %v3745
      %v5934 = vpop.f32.mrb[0].mxu0
      %v5935 = vadd.f32 %v5646, %v5934
      %v5936 = vpop.f32.mrb[0].mxu0
      %v5937 = vpop.f32.mrb[0].mxu0
      %v5938 = vadd.f32 %v5649, %v5937
      %v5939 = vpop.f32.mrb[0].mxu0
      %5940 = vmatprep.mubr.bf16.mxu0 0
      %5941 = vmatmul.mubr.bf16.gmra.mrb[0].mxu0 %v3754
      %v5942 = vpop.f32.mrb[0].mxu0
      %v5943 = vadd.f32 %v5654, %v5942
      %v5944 = vpop.f32.mrb[0].mxu0
      %v5945 = vpop.f32.mrb[0].mxu0
      %v5946 = vadd.f32 %v5657, %v5945
      %v5947 = vpop.f32.mrb[0].mxu0
      %5948 = vmatprep.mubr.bf16.mxu0 0
      %5949 = vmatmul.mubr.bf16.gmra.mrb[0].mxu0 %v3763
      %v5950 = vpop.f32.mrb[0].mxu0
      %v5951 = vadd.f32 %v5662, %v5950
      %v5952 = vpop.f32.mrb[0].mxu0
      %v5953 = vpop.f32.mrb[0].mxu0
      %v5954 = vadd.f32 %v5665, %v5953
      %v5955 = vpop.f32.mrb[0].mxu0
      %5956 = vmatprep.mubr.bf16.mxu0 0
      %5957 = vmatmul.mubr.bf16.gmra.mrb[0].mxu0 %v3772
      %v5958 = vpop.f32.mrb[0].mxu0
      %v5959 = vadd.f32 %v5670, %v5958
      %v5960 = vpop.f32.mrb[0].mxu0
      %v5961 = vpop.f32.mrb[0].mxu0
      %v5962 = vadd.f32 %v5673, %v5961
      %v5963 = vpop.f32.mrb[0].mxu0
      %5964 = vmatprep.mubr.bf16.mxu0 0
      %5965 = vmatmul.mubr.bf16.gmra.mrb[0].mxu0 %v3781
      %v5966 = vpop.f32.mrb[0].mxu0
      %v5967 = vadd.f32 %v5678, %v5966
      %v5968 = vpop.f32.mrb[0].mxu0
      %v5969 = vpop.f32.mrb[0].mxu0
      %v5970 = vadd.f32 %v5681, %v5969
      %v5971 = vpop.f32.mrb[0].mxu0
      %5972 = vmatprep.mubr.bf16.mxu0 0
      %5973 = vmatmul.mubr.bf16.gmra.mrb[0].mxu0 %v3790
      %v5974 = vpop.f32.mrb[0].mxu0
      %v5975 = vadd.f32 %v5686, %v5974
      %v5976 = vpop.f32.mrb[0].mxu0
      %v5977 = vpop.f32.mrb[0].mxu0
      %v5978 = vadd.f32 %v5689, %v5977
      %v5979 = vpop.f32.mrb[0].mxu0
      %5980 = vmatprep.mubr.bf16.mxu0 0
      %5981 = vmatmul.mubr.bf16.gmra.mrb[0].mxu0 %v3799
      %v5982 = vpop.f32.mrb[0].mxu0
      %v5983 = vadd.f32 %v5694, %v5982
      %v5984 = vpop.f32.mrb[0].mxu0
      %v5985 = vpop.f32.mrb[0].mxu0
      %v5986 = vadd.f32 %v5697, %v5985
      %v5987 = vpop.f32.mrb[0].mxu0
      %5988 = vmatprep.mubr.bf16.mxu0 0
      %5989 = vmatmul.mubr.bf16.gmra.mrb[0].mxu0 %v3808
      %v5990 = vpop.f32.mrb[0].mxu0
      %v5991 = vadd.f32 %v5702, %v5990
      %v5992 = vpop.f32.mrb[0].mxu0
      %v5993 = vpop.f32.mrb[0].mxu0
      %v5994 = vadd.f32 %v5705, %v5993
      %v5995 = vpop.f32.mrb[0].mxu0
      %5996 = vmatprep.mubr.bf16.mxu0 0
      %5997 = vmatmul.mubr.bf16.gmra.mrb[0].mxu0 %v3817
      %v5998 = vpop.f32.mrb[0].mxu0
      %v5999 = vadd.f32 %v5710, %v5998
      %v6000 = vpop.f32.mrb[0].mxu0
      %v6001 = vpop.f32.mrb[0].mxu0
      %v6002 = vadd.f32 %v5713, %v6001
      %v6003 = vpop.f32.mrb[0].mxu0
      %6004 = vmatprep.mubr.bf16.mxu0 0
      %6005 = vmatmul.mubr.bf16.gmra.mrb[0].mxu0 %v3826
      %v6006 = vpop.f32.mrb[0].mxu0
      %v6007 = vadd.f32 %v5718, %v6006
      %v6008 = vpop.f32.mrb[0].mxu0
      %v6009 = vpop.f32.mrb[0].mxu0
      %v6010 = vadd.f32 %v5721, %v6009
      %v6011 = vpop.f32.mrb[0].mxu0
      %6012 = vmatprep.mubr.bf16.mxu0 0
      %6013 = vmatmul.mubr.bf16.gmra.mrb[0].mxu0 %v3835
      %v6014 = vpop.f32.mrb[0].mxu0
      %v6015 = vadd.f32 %v5726, %v6014
      %v6016 = vpop.f32.mrb[0].mxu0
      %v6017 = vpop.f32.mrb[0].mxu0
      %v6018 = vadd.f32 %v5729, %v6017
      %v6019 = vpop.f32.mrb[0].mxu0
      %6020 = vmatprep.mubr.bf16.mxu0 0
      %6021 = vmatmul.mubr.bf16.gmra.mrb[0].mxu0 %v3844
      %v6022 = vpop.f32.mrb[0].mxu0
      %v6023 = vadd.f32 %v5734, %v6022
      %v6024 = vpop.f32.mrb[0].mxu0
      %v6025 = vpop.f32.mrb[0].mxu0
      %v6026 = vadd.f32 %v5737, %v6025
      %v6027 = vpop.f32.mrb[0].mxu0
      %6028 = vmatprep.mubr.bf16.mxu0 0
      %6029 = vmatmul.mubr.bf16.gmra.mrb[0].mxu0 %v3853
      %v6030 = vpop.f32.mrb[0].mxu0
      %v6031 = vadd.f32 %v5742, %v6030
      %v6032 = vpop.f32.mrb[0].mxu0
      %v6033 = vpop.f32.mrb[0].mxu0
      %v6034 = vadd.f32 %v5745, %v6033
      %v6035 = vpop.f32.mrb[0].mxu0
      %6036 = vmatprep.mubr.bf16.mxu0 0
      %6037 = vmatmul.mubr.bf16.gmra.mrb[0].mxu0 %v3862
      %v6038 = vpop.f32.mrb[0].mxu0
      %v6039 = vadd.f32 %v5750, %v6038
      %v6040 = vpop.f32.mrb[0].mxu0
      %v6041 = vpop.f32.mrb[0].mxu0
      %v6042 = vadd.f32 %v5753, %v6041
      %v6043 = vpop.f32.mrb[0].mxu0
      %6044 = vmatprep.mubr.bf16.mxu0 0
      %6045 = vmatmul.mubr.bf16.gmra.mrb[0].mxu0 %v3871
      %v6046 = vpop.f32.mrb[0].mxu0
      %v6047 = vadd.f32 %v5758, %v6046
      %v6048 = vpop.f32.mrb[0].mxu0
      %v6049 = vpop.f32.mrb[0].mxu0
      %v6050 = vadd.f32 %v5761, %v6049
      %v6051 = vpop.f32.mrb[0].mxu0
      %6052 = vmatprep.mubr.bf16.mxu0 0
      %6053 = vmatmul.mubr.bf16.gmra.mrb[0].mxu0 %v3880
      %v6054 = vpop.f32.mrb[0].mxu0
      %v6055 = vadd.f32 %v5766, %v6054
      %v6056 = vpop.f32.mrb[0].mxu0
      %v6057 = vpop.f32.mrb[0].mxu0
      %v6058 = vadd.f32 %v5769, %v6057
      %v6059 = vpop.f32.mrb[0].mxu0
      %6060 = vmatprep.mubr.bf16.mxu0 0
      %6061 = vmatmul.mubr.bf16.gmra.mrb[0].mxu0 %v3889
      %v6062 = vpop.f32.mrb[0].mxu0
      %v6063 = vadd.f32 %v5774, %v6062
      %v6064 = vpop.f32.mrb[0].mxu0
      %v6065 = vpop.f32.mrb[0].mxu0
      %v6066 = vadd.f32 %v5777, %v6065
      %v6067 = vpop.f32.mrb[0].mxu0
      %6068 = vmatprep.mubr.bf16.mxu0 0
      %6069 = vmatmul.mubr.bf16.gmra.mrb[0].mxu0 %v3898
      %v6070 = vpop.f32.mrb[0].mxu0
      %v6071 = vadd.f32 %v5782, %v6070
      %v6072 = vpop.f32.mrb[0].mxu0
      %v6073 = vpop.f32.mrb[0].mxu0
      %v6074 = vadd.f32 %v5785, %v6073
      %v6075 = vpop.f32.mrb[0].mxu0
      %6076 = vmatprep.mubr.bf16.mxu0 0
      %6077 = vmatmul.mubr.bf16.gmra.mrb[0].mxu0 %v3907
      %v6078 = vpop.f32.mrb[0].mxu0
      %v6079 = vadd.f32 %v5790, %v6078
      %v6080 = vpop.f32.mrb[0].mxu0
      %v6081 = vpop.f32.mrb[0].mxu0
      %v6082 = vadd.f32 %v5793, %v6081
      %v6083 = vpop.f32.mrb[0].mxu0
      %6084 = vmatprep.mubr.bf16.mxu0 0
      %6085 = vmatmul.mubr.bf16.gmra.mrb[0].mxu0 %v3916
      %v6086 = vpop.f32.mrb[0].mxu0
      %v6087 = vadd.f32 %v5798, %v6086
      %v6088 = vpop.f32.mrb[0].mxu0
      %v6089 = vpop.f32.mrb[0].mxu0
      %v6090 = vadd.f32 %v5801, %v6089
      %v6091 = vpop.f32.mrb[0].mxu0
      %6092 = vmatprep.mubr.bf16.mxu0 0
      %6093 = vmatmul.mubr.bf16.gmra.mrb[0].mxu0 %v3925
      %v6094 = vpop.f32.mrb[0].mxu0
      %v6095 = vadd.f32 %v5806, %v6094
      %v6096 = vpop.f32.mrb[0].mxu0
      %v6097 = vpop.f32.mrb[0].mxu0
      %v6098 = vadd.f32 %v5809, %v6097
      %v6099 = vpop.f32.mrb[0].mxu0
      %6100 = vmatprep.mubr.bf16.mxu0 0
      %6101 = vmatmul.mubr.bf16.gmra.mrb[0].mxu0 %v3934
      %v6102 = vpop.f32.mrb[0].mxu0
      %v6103 = vadd.f32 %v5814, %v6102
      %v6104 = vpop.f32.mrb[0].mxu0
      %v6105 = vpop.f32.mrb[0].mxu0
      %v6106 = vadd.f32 %v5817, %v6105
      %v6107 = vpop.f32.mrb[0].mxu0
      %6108 = vmatprep.mubr.bf16.mxu0 0
      %6109 = vmatmul.mubr.bf16.gmra.mrb[0].mxu0 %v3943
      %v6110 = vpop.f32.mrb[0].mxu0
      %v6111 = vadd.f32 %v5822, %v6110
      %v6112 = vpop.f32.mrb[0].mxu0
      %v6113 = vpop.f32.mrb[0].mxu0
      %v6114 = vadd.f32 %v5825, %v6113
      %v6115 = vpop.f32.mrb[0].mxu0
      %6116 = vmatprep.mubr.bf16.mxu0 0
      %6117 = vmatmul.mubr.bf16.gmra.mrb[0].mxu0 %v3952
      %v6118 = vpop.f32.mrb[0].mxu0
      %v6119 = vadd.f32 %v5830, %v6118
      %v6120 = vpop.f32.mrb[0].mxu0
      %v6121 = vpop.f32.mrb[0].mxu0
      %v6122 = vadd.f32 %v5833, %v6121
      %v6123 = vpop.f32.mrb[0].mxu0
      %6124 = vmatprep.mubr.bf16.mxu0 0
      %6125 = vmatmul.mubr.bf16.gmra.mrb[0].mxu0 %v3961
      %v6126 = vpop.f32.mrb[0].mxu0
      %v6127 = vadd.f32 %v5838, %v6126
      %v6128 = vpop.f32.mrb[0].mxu0
      %v6129 = vpop.f32.mrb[0].mxu0
      %v6130 = vadd.f32 %v5841, %v6129
      %v6131 = vpop.f32.mrb[0].mxu0
      %6132 = vmatprep.mubr.bf16.mxu0 0
      %6133 = vmatmul.mubr.bf16.gmra.mrb[0].mxu0 %v3970
      %v6134 = vpop.f32.mrb[0].mxu0
      %v6135 = vadd.f32 %v5846, %v6134
      %v6136 = vpop.f32.mrb[0].mxu0
      %v6137 = vpop.f32.mrb[0].mxu0
      %v6138 = vadd.f32 %v5849, %v6137
      %v6139 = vpop.f32.mrb[0].mxu0
      %6140 = vmatprep.mubr.bf16.mxu0 0
      %6141 = vmatmul.mubr.bf16.gmra.mrb[0].mxu0 %v3979
      %v6142 = vpop.f32.mrb[0].mxu0
      %v6143 = vadd.f32 %v5854, %v6142
      %v6144 = vpop.f32.mrb[0].mxu0
      %v6145 = vpop.f32.mrb[0].mxu0
      %v6146 = vadd.f32 %v5857, %v6145
      %v6147 = vpop.f32.mrb[0].mxu0
      %6148 = vmatprep.mubr.bf16.mxu0 0
      %6149 = vmatmul.mubr.bf16.gmra.mrb[0].mxu0 %v3988
      %v6150 = vpop.f32.mrb[0].mxu0
      %v6151 = vadd.f32 %v5862, %v6150
      %v6152 = vpop.f32.mrb[0].mxu0
      %v6153 = vpop.f32.mrb[0].mxu0
      %v6154 = vadd.f32 %v5865, %v6153
      %v6155 = vpop.f32.mrb[0].mxu0
      %6156 = vmatprep.mubr.bf16.mxu0 0
      %6157 = vmatmul.mubr.bf16.gmra.mrb[0].mxu0 %v3997
      %v6158 = vpop.f32.mrb[0].mxu0
      %v6159 = vadd.f32 %v5870, %v6158
      %v6160 = vpop.f32.mrb[0].mxu0
      %v6161 = vpop.f32.mrb[0].mxu0
      %v6162 = vadd.f32 %v5873, %v6161
      %v6163 = vpop.f32.mrb[0].mxu0
      %6164 = vmatprep.mubr.bf16.mxu0 0
      %6165 = vmatmul.mubr.bf16.gmra.mrb[0].mxu0 %v4006
      %v6166 = vpop.f32.mrb[0].mxu0
      %v6167 = vadd.f32 %v5878, %v6166
      %v6168 = vpop.f32.mrb[0].mxu0
      %v6169 = vpop.f32.mrb[0].mxu0
      %v6170 = vadd.f32 %v5881, %v6169
      %v6171 = vpop.f32.mrb[0].mxu0
      %6172 = vmatprep.mubr.bf16.mxu0 0
      %6173 = vmatmul.mubr.bf16.gmra.mrb[0].mxu0 %v4015
      %v6174 = vpop.f32.mrb[0].mxu0
      %v6175 = vadd.f32 %v5886, %v6174
      %v6176 = vpop.f32.mrb[0].mxu0
      %v6177 = vpop.f32.mrb[0].mxu0
      %v6178 = vadd.f32 %v5889, %v6177
      %v6179 = vpop.f32.mrb[0].mxu0
      %6180 = vdwg.mxu0
      %v6181 = vadd.f32 %v1595, %v5927
      %v6182 = vadd.f32 %v1598, %v5930
      %v6183 = vadd.f32 %v1603, %v5935
      %v6184 = vadd.f32 %v1606, %v5938
      %v6185 = vadd.f32 %v1611, %v5943
      %v6186 = vadd.f32 %v1614, %v5946
      %v6187 = vadd.f32 %v1619, %v5951
      %v6188 = vadd.f32 %v1622, %v5954
      %v6189 = vadd.f32 %v1627, %v5959
      %v6190 = vadd.f32 %v1630, %v5962
      %v6191 = vadd.f32 %v1635, %v5967
      %v6192 = vadd.f32 %v1638, %v5970
      %v6193 = vadd.f32 %v1643, %v5975
      %v6194 = vadd.f32 %v1646, %v5978
      %v6195 = vadd.f32 %v1651, %v5983
      %v6196 = vadd.f32 %v1654, %v5986
      %v6197 = vadd.f32 %v1659, %v5991
      %v6198 = vadd.f32 %v1662, %v5994
      %v6199 = vadd.f32 %v1667, %v5999
      %v6200 = vadd.f32 %v1670, %v6002
      %v6201 = vadd.f32 %v1675, %v6007
      %v6202 = vadd.f32 %v1678, %v6010
      %v6203 = vadd.f32 %v1683, %v6015
      %v6204 = vadd.f32 %v1686, %v6018
      %v6205 = vadd.f32 %v1691, %v6023
      %v6206 = vadd.f32 %v1694, %v6026
      %v6207 = vadd.f32 %v1699, %v6031
      %v6208 = vadd.f32 %v1702, %v6034
      %v6209 = vadd.f32 %v1707, %v6039
      %v6210 = vadd.f32 %v1710, %v6042
      %v6211 = vadd.f32 %v1715, %v6047
      %v6212 = vadd.f32 %v1718, %v6050
      %v6213 = vadd.f32 %v1723, %v6055
      %v6214 = vadd.f32 %v1726, %v6058
      %v6215 = vadd.f32 %v1731, %v6063
      %v6216 = vadd.f32 %v1734, %v6066
      %v6217 = vadd.f32 %v1739, %v6071
      %v6218 = vadd.f32 %v1742, %v6074
      %v6219 = vadd.f32 %v1747, %v6079
      %v6220 = vadd.f32 %v1750, %v6082
      %v6221 = vadd.f32 %v1755, %v6087
      %v6222 = vadd.f32 %v1758, %v6090
      %v6223 = vadd.f32 %v1763, %v6095
      %v6224 = vadd.f32 %v1766, %v6098
      %v6225 = vadd.f32 %v1771, %v6103
      %v6226 = vadd.f32 %v1774, %v6106
      %v6227 = vadd.f32 %v1779, %v6111
      %v6228 = vadd.f32 %v1782, %v6114
      %v6229 = vadd.f32 %v1787, %v6119
      %v6230 = vadd.f32 %v1790, %v6122
      %v6231 = vadd.f32 %v1795, %v6127
      %v6232 = vadd.f32 %v1798, %v6130
      %v6233 = vadd.f32 %v1803, %v6135
      %v6234 = vadd.f32 %v1806, %v6138
      %v6235 = vadd.f32 %v1811, %v6143
      %v6236 = vadd.f32 %v1814, %v6146
      %v6237 = vadd.f32 %v1819, %v6151
      %v6238 = vadd.f32 %v1822, %v6154
      %v6239 = vadd.f32 %v1827, %v6159
      %v6240 = vadd.f32 %v1830, %v6162
      %v6241 = vadd.f32 %v1835, %v6167
      %v6242 = vadd.f32 %v1838, %v6170
      %v6243 = vadd.f32 %v1843, %v6175
      %v6244 = vadd.f32 %v1846, %v6178
      %v6245 = vmax.f32 %v6181, 0.0
      %v6246 = vmax.f32 %v6182, 0.0
      %v6247 = vmax.f32 %v6183, 0.0
      %v6248 = vmax.f32 %v6184, 0.0
      %v6249 = vmax.f32 %v6185, 0.0
      %v6250 = vmax.f32 %v6186, 0.0
      %v6251 = vmax.f32 %v6187, 0.0
      %v6252 = vmax.f32 %v6188, 0.0
      %v6253 = vmax.f32 %v6189, 0.0
      %v6254 = vmax.f32 %v6190, 0.0
      %v6255 = vmax.f32 %v6191, 0.0
      %v6256 = vmax.f32 %v6192, 0.0
      %v6257 = vmax.f32 %v6193, 0.0
      %v6258 = vmax.f32 %v6194, 0.0
      %v6259 = vmax.f32 %v6195, 0.0
      %v6260 = vmax.f32 %v6196, 0.0
      %v6261 = vmax.f32 %v6197, 0.0
      %v6262 = vmax.f32 %v6198, 0.0
      %v6263 = vmax.f32 %v6199, 0.0
      %v6264 = vmax.f32 %v6200, 0.0
      %v6265 = vmax.f32 %v6201, 0.0
      %v6266 = vmax.f32 %v6202, 0.0
      %v6267 = vmax.f32 %v6203, 0.0
      %v6268 = vmax.f32 %v6204, 0.0
      %v6269 = vmax.f32 %v6205, 0.0
      %v6270 = vmax.f32 %v6206, 0.0
      %v6271 = vmax.f32 %v6207, 0.0
      %v6272 = vmax.f32 %v6208, 0.0
      %v6273 = vmax.f32 %v6209, 0.0
      %v6274 = vmax.f32 %v6210, 0.0
      %v6275 = vmax.f32 %v6211, 0.0
      %v6276 = vmax.f32 %v6212, 0.0
      %v6277 = vmax.f32 %v6213, 0.0
      %v6278 = vmax.f32 %v6214, 0.0
      %v6279 = vmax.f32 %v6215, 0.0
      %v6280 = vmax.f32 %v6216, 0.0
      %v6281 = vmax.f32 %v6217, 0.0
      %v6282 = vmax.f32 %v6218, 0.0
      %v6283 = vmax.f32 %v6219, 0.0
      %v6284 = vmax.f32 %v6220, 0.0
      %v6285 = vmax.f32 %v6221, 0.0
      %v6286 = vmax.f32 %v6222, 0.0
      %v6287 = vmax.f32 %v6223, 0.0
      %v6288 = vmax.f32 %v6224, 0.0
      %v6289 = vmax.f32 %v6225, 0.0
      %v6290 = vmax.f32 %v6226, 0.0
      %v6291 = vmax.f32 %v6227, 0.0
      %v6292 = vmax.f32 %v6228, 0.0
      %v6293 = vmax.f32 %v6229, 0.0
      %v6294 = vmax.f32 %v6230, 0.0
      %v6295 = vmax.f32 %v6231, 0.0
      %v6296 = vmax.f32 %v6232, 0.0
      %v6297 = vmax.f32 %v6233, 0.0
      %v6298 = vmax.f32 %v6234, 0.0
      %v6299 = vmax.f32 %v6235, 0.0
      %v6300 = vmax.f32 %v6236, 0.0
      %v6301 = vmax.f32 %v6237, 0.0
      %v6302 = vmax.f32 %v6238, 0.0
      %v6303 = vmax.f32 %v6239, 0.0
      %v6304 = vmax.f32 %v6240, 0.0
      %v6305 = vmax.f32 %v6241, 0.0
      %v6306 = vmax.f32 %v6242, 0.0
      %v6307 = vmax.f32 %v6243, 0.0
      %v6308 = vmax.f32 %v6244, 0.0
      %v6309 = vpack.c.bf16 %v6245, %v6245
      %v6310 = vpack.c.bf16 %v6246, %v6246
      %v6311 = vpack.c.bf16 %v6247, %v6247
      %v6312 = vpack.c.bf16 %v6248, %v6248
      %v6313 = vpack.c.bf16 %v6249, %v6249
      %v6314 = vpack.c.bf16 %v6250, %v6250
      %v6315 = vpack.c.bf16 %v6251, %v6251
      %v6316 = vpack.c.bf16 %v6252, %v6252
      %v6317 = vpack.c.bf16 %v6253, %v6253
      %v6318 = vpack.c.bf16 %v6254, %v6254
      %v6319 = vpack.c.bf16 %v6255, %v6255
      %v6320 = vpack.c.bf16 %v6256, %v6256
      %v6321 = vpack.c.bf16 %v6257, %v6257
      %v6322 = vpack.c.bf16 %v6258, %v6258
      %v6323 = vpack.c.bf16 %v6259, %v6259
      %v6324 = vpack.c.bf16 %v6260, %v6260
      %v6325 = vpack.c.bf16 %v6261, %v6261
      %v6326 = vpack.c.bf16 %v6262, %v6262
      %v6327 = vpack.c.bf16 %v6263, %v6263
      %v6328 = vpack.c.bf16 %v6264, %v6264
      %v6329 = vpack.c.bf16 %v6265, %v6265
      %v6330 = vpack.c.bf16 %v6266, %v6266
      %v6331 = vpack.c.bf16 %v6267, %v6267
      %v6332 = vpack.c.bf16 %v6268, %v6268
      %v6333 = vpack.c.bf16 %v6269, %v6269
      %v6334 = vpack.c.bf16 %v6270, %v6270
      %v6335 = vpack.c.bf16 %v6271, %v6271
      %v6336 = vpack.c.bf16 %v6272, %v6272
      %v6337 = vpack.c.bf16 %v6273, %v6273
      %v6338 = vpack.c.bf16 %v6274, %v6274
      %v6339 = vpack.c.bf16 %v6275, %v6275
      %v6340 = vpack.c.bf16 %v6276, %v6276
      %v6341 = vpack.c.bf16 %v6277, %v6277
      %v6342 = vpack.c.bf16 %v6278, %v6278
      %v6343 = vpack.c.bf16 %v6279, %v6279
      %v6344 = vpack.c.bf16 %v6280, %v6280
      %v6345 = vpack.c.bf16 %v6281, %v6281
      %v6346 = vpack.c.bf16 %v6282, %v6282
      %v6347 = vpack.c.bf16 %v6283, %v6283
      %v6348 = vpack.c.bf16 %v6284, %v6284
      %v6349 = vpack.c.bf16 %v6285, %v6285
      %v6350 = vpack.c.bf16 %v6286, %v6286
      %v6351 = vpack.c.bf16 %v6287, %v6287
      %v6352 = vpack.c.bf16 %v6288, %v6288
      %v6353 = vpack.c.bf16 %v6289, %v6289
      %v6354 = vpack.c.bf16 %v6290, %v6290
      %v6355 = vpack.c.bf16 %v6291, %v6291
      %v6356 = vpack.c.bf16 %v6292, %v6292
      %v6357 = vpack.c.bf16 %v6293, %v6293
      %v6358 = vpack.c.bf16 %v6294, %v6294
      %v6359 = vpack.c.bf16 %v6295, %v6295
      %v6360 = vpack.c.bf16 %v6296, %v6296
      %v6361 = vpack.c.bf16 %v6297, %v6297
      %v6362 = vpack.c.bf16 %v6298, %v6298
      %v6363 = vpack.c.bf16 %v6299, %v6299
      %v6364 = vpack.c.bf16 %v6300, %v6300
      %v6365 = vpack.c.bf16 %v6301, %v6301
      %v6366 = vpack.c.bf16 %v6302, %v6302
      %v6367 = vpack.c.bf16 %v6303, %v6303
      %v6368 = vpack.c.bf16 %v6304, %v6304
      %v6369 = vpack.c.bf16 %v6305, %v6305
      %v6370 = vpack.c.bf16 %v6306, %v6306
      %v6371 = vpack.c.bf16 %v6307, %v6307
      %v6372 = vpack.c.bf16 %v6308, %v6308
      %6373 = vst [vmem:[%s340] sm:$0xf] %v6309
      %6374 = vst [vmem:[%s340 + $0x4] sm:$0xf] %v6310
      %6375 = vst [vmem:[%s340 + $0x8] sm:$0xf] %v6311
      %6376 = vst [vmem:[%s340 + $0xc] sm:$0xf] %v6312
      %6377 = vst [vmem:[%s340 + $0x10] sm:$0xf] %v6313
      %6378 = vst [vmem:[%s340 + $0x14] sm:$0xf] %v6314
      %6379 = vst [vmem:[%s340 + $0x18] sm:$0xf] %v6315
      %6380 = vst [vmem:[%s340 + $0x1c] sm:$0xf] %v6316
      %6381 = vst [vmem:[%s340 + $0x20] sm:$0xf] %v6317
      %6382 = vst [vmem:[%s340 + $0x24] sm:$0xf] %v6318
      %6383 = vst [vmem:[%s340 + $0x28] sm:$0xf] %v6319
      %6384 = vst [vmem:[%s340 + $0x2c] sm:$0xf] %v6320
      %6385 = vst [vmem:[%s340 + $0x30] sm:$0xf] %v6321
      %6386 = vst [vmem:[%s340 + $0x34] sm:$0xf] %v6322
      %6387 = vst [vmem:[%s340 + $0x38] sm:$0xf] %v6323
      %6388 = vst [vmem:[%s340 + $0x3c] sm:$0xf] %v6324
      %6389 = vst [vmem:[%s340 + $0x40] sm:$0xf] %v6325
      %6390 = vst [vmem:[%s340 + $0x44] sm:$0xf] %v6326
      %6391 = vst [vmem:[%s340 + $0x48] sm:$0xf] %v6327
      %6392 = vst [vmem:[%s340 + $0x4c] sm:$0xf] %v6328
      %6393 = vst [vmem:[%s340 + $0x50] sm:$0xf] %v6329
      %6394 = vst [vmem:[%s340 + $0x54] sm:$0xf] %v6330
      %6395 = vst [vmem:[%s340 + $0x58] sm:$0xf] %v6331
      %6396 = vst [vmem:[%s340 + $0x5c] sm:$0xf] %v6332
      %6397 = vst [vmem:[%s340 + $0x60] sm:$0xf] %v6333
      %6398 = vst [vmem:[%s340 + $0x64] sm:$0xf] %v6334
      %6399 = vst [vmem:[%s340 + $0x68] sm:$0xf] %v6335
      %6400 = vst [vmem:[%s340 + $0x6c] sm:$0xf] %v6336
      %6401 = vst [vmem:[%s340 + $0x70] sm:$0xf] %v6337
      %6402 = vst [vmem:[%s340 + $0x74] sm:$0xf] %v6338
      %6403 = vst [vmem:[%s340 + $0x78] sm:$0xf] %v6339
      %6404 = vst [vmem:[%s340 + $0x7c] sm:$0xf] %v6340
      %6405 = vst [vmem:[%s340 + $0x80] sm:$0xf] %v6341
      %6406 = vst [vmem:[%s340 + $0x84] sm:$0xf] %v6342
      %6407 = vst [vmem:[%s340 + $0x88] sm:$0xf] %v6343
      %6408 = vst [vmem:[%s340 + $0x8c] sm:$0xf] %v6344
      %6409 = vst [vmem:[%s340 + $0x90] sm:$0xf] %v6345
      %6410 = vst [vmem:[%s340 + $0x94] sm:$0xf] %v6346
      %6411 = vst [vmem:[%s340 + $0x98] sm:$0xf] %v6347
      %6412 = vst [vmem:[%s340 + $0x9c] sm:$0xf] %v6348
      %6413 = vst [vmem:[%s340 + $0xa0] sm:$0xf] %v6349
      %6414 = vst [vmem:[%s340 + $0xa4] sm:$0xf] %v6350
      %6415 = vst [vmem:[%s340 + $0xa8] sm:$0xf] %v6351
      %6416 = vst [vmem:[%s340 + $0xac] sm:$0xf] %v6352
      %6417 = vst [vmem:[%s340 + $0xb0] sm:$0xf] %v6353
      %6418 = vst [vmem:[%s340 + $0xb4] sm:$0xf] %v6354
      %6419 = vst [vmem:[%s340 + $0xb8] sm:$0xf] %v6355
      %6420 = vst [vmem:[%s340 + $0xbc] sm:$0xf] %v6356
      %6421 = vst [vmem:[%s340 + $0xc0] sm:$0xf] %v6357
      %6422 = vst [vmem:[%s340 + $0xc4] sm:$0xf] %v6358
      %6423 = vst [vmem:[%s340 + $0xc8] sm:$0xf] %v6359
      %6424 = vst [vmem:[%s340 + $0xcc] sm:$0xf] %v6360
      %6425 = vst [vmem:[%s340 + $0xd0] sm:$0xf] %v6361
      %6426 = vst [vmem:[%s340 + $0xd4] sm:$0xf] %v6362
      %6427 = vst [vmem:[%s340 + $0xd8] sm:$0xf] %v6363
      %6428 = vst [vmem:[%s340 + $0xdc] sm:$0xf] %v6364
      %6429 = vst [vmem:[%s340 + $0xe0] sm:$0xf] %v6365
      %6430 = vst [vmem:[%s340 + $0xe4] sm:$0xf] %v6366
      %6431 = vst [vmem:[%s340 + $0xe8] sm:$0xf] %v6367
      %6432 = vst [vmem:[%s340 + $0xec] sm:$0xf] %v6368
      %6433 = vst [vmem:[%s340 + $0xf0] sm:$0xf] %v6369
      %6434 = vst [vmem:[%s340 + $0xf4] sm:$0xf] %v6370
      %6435 = vst [vmem:[%s340 + $0xf8] sm:$0xf] %v6371
      %6436 = vst [vmem:[%s340 + $0xfc] sm:$0xf] %v6372
      %p6437 = scmp.lt.s32.totalorder %s22, 1
      %s6438 = scalar_select %p6437, %s22, 1
      %p6439 = scmp.lt.s32.totalorder %s23, 0
      %s6440 = scalar_select %p6439, %s23, 0
      %s6441 = smul.addr %s6438, 64
      %s6442 = sadd.s32 %s6440, %s6441
      %s6443 = smul.addr %s6442, 4
      %s6444 = scalar_lea.vmem %s7, %s6443
      // Predicated region
      $region53: #{_down_layer_forward_impl.1} parent=47 // pred_check
        %p6445 = pneg %p211
      $region54: #{_down_layer_forward_impl.1} parent=47 // pred_check_branch
        %6447 = sbr.rel (%p6445) target = $region56
      $region55: #{_down_layer_forward_impl.1} parent=47 // pred_region
        _
      $region56: #{_down_layer_forward_impl.1} parent=47 // pred_fallthru
        _
    $region48: #{_down_layer_forward_impl.1} parent=5 // pred_fallthru
      _
    %p6448 = scmp.le.s32.totalorder 2, %s13
    // Predicated region
    $region57: #{_down_layer_forward_impl.1} parent=5 // pred_check
      %p6449 = pneg %p6448
    $region58: #{_down_layer_forward_impl.1} parent=5 // pred_check_branch
      %6451 = sbr.rel (%p6449) target = $region60
    $region59: #{_down_layer_forward_impl.1} parent=5 // pred_region
      %s6452 = ssub.s32 %s13, 2
      // Predicated region
      $region61: #{_down_layer_forward_impl.1} parent=59 // pred_check
        %p6453 = pneg %p217
      $region62: #{_down_layer_forward_impl.1} parent=59 // pred_check_branch
        %6455 = sbr.rel (%p6453) target = $region64
      $region63: #{_down_layer_forward_impl.1} parent=59 // pred_region
        %p6456 = scmp.lt.s32.totalorder %s24, 1
        %s6457 = scalar_select %p6456, %s24, 1
        %p6458 = scmp.lt.s32.totalorder %s25, 0
        %s6459 = scalar_select %p6458, %s25, 0
        %s6460 = smul.addr %s6457, 64
        %s6461 = sadd.s32 %s6459, %s6460
        %s6462 = smul.addr %s6461, 4
        %s6463 = scalar_lea.vmem %s7, %s6462
      $region64: #{_down_layer_forward_impl.1} parent=59 // pred_fallthru
        _
    $region60: #{_down_layer_forward_impl.1} parent=5 // pred_fallthru
      _
  $region6: #{_down_layer_forward_impl.1} parent=0 // loop_footer
    %s17 = sadd.s32 1, %s13
  $region7: #{_down_layer_forward_impl.1} parent=0 // loop_footer_branch
    %12 = sbr.rel target = $region3
  $region8: #{_down_layer_forward_impl.1} parent=0 // loop_exit
    _

</llo_original>
